<compile_context>
chip_gen: v5e
topology: v5e:2x2
jax: 0.10.0
libtpu: 0.0.40
codegen_flags: <defaults>
</compile_context>

<pallas_src>
import functools

import jax
import jax.numpy as jnp
from jax.experimental import pallas as pl
from jax.experimental.pallas import tpu as pltpu

NEG_SLOPE = 0.2            # LeakyReLU slope used everywhere in the module
BN_EPS = 1e-5


def _leaky(x):
    return jnp.where(x >= 0, x, NEG_SLOPE * x)


# ----------------------------------------------------------------------------- kernels

def _conv3x3_kernel(xc_ref, xt_ref, xb_ref, sc_ref, w_ref, b_ref, o_ref, xpad_ref,
                    *, TH, W, act):
    """3x3 conv (stride 1, pad 1) on one (TH, W) row tile of one batch element.

    xc_ref: (1, TH, W, Cin) bf16  -- unpadded center tile
    xt_ref: (1, 1, W, Cin) bf16   -- halo row above (clamped at the border)
    xb_ref: (1, 1, W, Cin) bf16   -- halo row below (clamped at the border)
    sc_ref: (1, 1, Cin) f32       -- per-image channel scale from the previous CA layer
    w_ref:  (9*Cin, Cout) bf16    -- taps stacked tap-major (ky, kx, cin)
    b_ref:  (1, Cout) f32
    o_ref:  (1, TH, W, Cout)
    xpad_ref: (TH+2, W+2, Cin) bf16 scratch (scaled + zero padded tile)
    """
    Cin = w_ref.shape[0] // 9
    Cout = w_ref.shape[1]
    t_idx = pl.program_id(1)
    last = pl.num_programs(1) - 1
    z = sc_ref[0]                                            # (1, Cin) f32

    def scaled(v):
        return (v.astype(jnp.float32) * z).astype(jnp.bfloat16)

    # ---- stage the scaled, zero-padded tile (1-row halo) into VMEM ----------
    xpad_ref[1:TH + 1, 1:W + 1, :] = scaled(xc_ref[0])

    @pl.when(t_idx == 0)
    def _():
        xpad_ref[0:1, 1:W + 1, :] = jnp.zeros((1, W, Cin), jnp.bfloat16)

    @pl.when(t_idx > 0)
    def _():
        xpad_ref[0:1, 1:W + 1, :] = scaled(xt_ref[0])

    @pl.when(t_idx == last)
    def _():
        xpad_ref[TH + 1:TH + 2, 1:W + 1, :] = jnp.zeros((1, W, Cin), jnp.bfloat16)

    @pl.when(t_idx < last)
    def _():
        xpad_ref[TH + 1:TH + 2, 1:W + 1, :] = scaled(xb_ref[0])

    zcol = jnp.zeros((TH + 2, 1, Cin), jnp.bfloat16)
    xpad_ref[:, 0:1, :] = zcol
    xpad_ref[:, W + 1:W + 2, :] = zcol

    xp = xpad_ref[...]
    rows = TH * W

    # ---- single K = 9*Cin im2col matmul (no per-tap dot chain) --------------
    cols = jnp.concatenate(
        [xp[ky:ky + TH, kx:kx + W, :].reshape(rows, Cin)
         for ky in range(3) for kx in range(3)], axis=1)     # (rows, 9*Cin) bf16
    acc = jnp.dot(cols, w_ref[...], preferred_element_type=jnp.float32) + b_ref[...]
    if act == "leaky":
        acc = _leaky(acc)
    o_ref[0] = acc.reshape(TH, W, Cout).astype(o_ref.dtype)


def _resblock_kernel(xc_ref, xt0_ref, xt1_ref, xb0_ref, xb1_ref, sc_ref,
                     w1_ref, b1_ref, w2_ref, b2_ref,
                     o_ref, sum_ref,
                     xpad_ref, tpad_ref, col_ref, *, TH, W, C):
    """Fused ResidualBlock (minus the global channel attention) on one row tile.

    conv1 is evaluated on a row-extended window (TH+2 intermediate rows) so conv2,
    the BN-folded 1x1 shortcut (fused into conv2's K = 10*C matmul) and LeakyReLU
    all happen in one kernel.  Emits y and the per-tile channel sums needed by the
    channel-attention average pool.  The previous block's CA scale is applied to
    the input tile in-kernel (sc_ref).

    xc_ref:        (1, TH, W, C) bf16 -- unpadded center tile of the block input
    xt0/xt1_ref:   (1, 1, W, C) bf16  -- 2 halo rows above (clamped at the border)
    xb0/xb1_ref:   (1, 1, W, C) bf16  -- 2 halo rows below (clamped at the border)
    sc_ref:        (1, 1, C) f32      -- per-image CA scale of the previous block
    w1_ref:        (10*C, C) bf16     -- BN-folded conv1 weight, tap-major, last C rows zero
    b1_ref:        (1, C) f32         -- BN-folded conv1 bias
    w2_ref:        (10*C, C) bf16     -- [BN-folded conv2 taps ; BN-folded 1x1 shortcut]
    b2_ref:        (1, C) f32         -- conv2 BN bias + shortcut BN bias
    o_ref:         (1, TH, W, C) bf16
    sum_ref:       (1, 1, 1, C) f32   -- sum of y over this tile's pixels
    xpad_ref:      (TH+4, W+2, C) bf16 scratch (scaled + zero padded input)
    tpad_ref:      (TH+2, W+2, C) bf16 scratch (conv1 activation, 1-pixel border)
    col_ref:       ((TH+2)*W, 10*C) bf16 im2col scratch (128-lane aligned column pairs)
    """
    t_idx = pl.program_id(1)
    last = pl.num_programs(1) - 1
    z = sc_ref[0]                                            # (1, C) f32

    def scaled(v):
        return (v.astype(jnp.float32) * z).astype(jnp.bfloat16)

    # ---- stage the scaled, zero-padded tile (2-row halo) into VMEM ----------
    xpad_ref[2:TH + 2, 1:W + 1, :] = scaled(xc_ref[0])

    @pl.when(t_idx == 0)
    def _():
        xpad_ref[0:2, 1:W + 1, :] = jnp.zeros((2, W, C), jnp.bfloat16)

    @pl.when(t_idx > 0)
    def _():
        xpad_ref[0:1, 1:W + 1, :] = scaled(xt0_ref[0])
        xpad_ref[1:2, 1:W + 1, :] = scaled(xt1_ref[0])

    @pl.when(t_idx == last)
    def _():
        xpad_ref[TH + 2:TH + 4, 1:W + 1, :] = jnp.zeros((2, W, C), jnp.bfloat16)

    @pl.when(t_idx < last)
    def _():
        xpad_ref[TH + 2:TH + 3, 1:W + 1, :] = scaled(xb0_ref[0])
        xpad_ref[TH + 3:TH + 4, 1:W + 1, :] = scaled(xb1_ref[0])

    zcol = jnp.zeros((TH + 4, 1, C), jnp.bfloat16)
    xpad_ref[:, 0:1, :] = zcol
    xpad_ref[:, W + 1:W + 2, :] = zcol

    xp = xpad_ref[...]
    rows_ext = (TH + 2) * W
    rows = TH * W

    # ---- conv1 (BN folded) on the row-extended window ------------------------
    # im2col: 5 lane-dense 128-wide column-pair stores; the 10th column block is
    # a dummy (weights are zero there) so both convs share one 640-wide scratch.
    def tap_ext(k):
        ky, kx = divmod(k, 3)
        return xp[ky:ky + TH + 2, kx:kx + W, :].reshape(rows_ext, C)

    for k in range(0, 8, 2):
        col_ref[:, k * C:(k + 2) * C] = jnp.concatenate(
            [tap_ext(k), tap_ext(k + 1)], axis=1)
    col_ref[:, 8 * C:10 * C] = jnp.concatenate(
        [tap_ext(8), xp[1:TH + 3, 1:W + 1, :].reshape(rows_ext, C)], axis=1)

    a1 = jnp.dot(col_ref[...], w1_ref[...], preferred_element_type=jnp.float32)
    tact = _leaky(a1 + b1_ref[...])                          # (rows_ext, C) f32

    # ---- stage conv1 activation into the 1-pixel-padded bf16 scratch ---------
    tpad_ref[:, 1:W + 1, :] = tact.reshape(TH + 2, W, C).astype(jnp.bfloat16)
    zc2 = jnp.zeros((TH + 2, 1, C), jnp.bfloat16)
    tpad_ref[:, 0:1, :] = zc2
    tpad_ref[:, W + 1:W + 2, :] = zc2

    @pl.when(t_idx == 0)                                     # top image border
    def _():
        tpad_ref[0:1, :, :] = jnp.zeros((1, W + 2, C), jnp.bfloat16)

    @pl.when(t_idx == last)                                  # bottom image border
    def _():
        tpad_ref[TH + 1:TH + 2, :, :] = jnp.zeros((1, W + 2, C), jnp.bfloat16)

    tp = tpad_ref[...]

    # ---- conv2 + 1x1 shortcut fused into one K = 10*C matmul -----------------
    def tap(k):
        ky, kx = divmod(k, 3)
        return tp[ky:ky + TH, kx:kx + W, :].reshape(rows, C)

    for k in range(0, 8, 2):
        col_ref[0:rows, k * C:(k + 2) * C] = jnp.concatenate(
            [tap(k), tap(k + 1)], axis=1)
    x_in = xp[2:TH + 2, 1:W + 1, :].reshape(rows, C)         # scaled shortcut input
    col_ref[0:rows, 8 * C:10 * C] = jnp.concatenate([tap(8), x_in], axis=1)

    acc = jnp.dot(col_ref[0:rows, :], w2_ref[...], preferred_element_type=jnp.float32)
    y = _leaky(acc + b2_ref[...])                            # (rows, C) f32

    o_ref[0] = y.reshape(TH, W, C).astype(o_ref.dtype)
    sum_ref[...] = jnp.sum(y, axis=0).reshape(1, 1, 1, C)


# ----------------------------------------------------------------------------- tiling

def _tpu_vmem_bytes():
    try:
        return int(pltpu.get_tpu_info().vmem_capacity_bytes)
    except Exception:
        return 64 * 1024 * 1024          # conservative (v7x per-TensorCore)


def _pick_tile_h(H, W, C, vmem_bytes):
    """Largest divisor of H that keeps the im2col scratch small; >=2 row tiles."""
    per_row = max(1, W * 10 * C * 2)                        # bf16 col-scratch bytes / row
    cap = 64 if vmem_bytes >= (96 << 20) else 32            # v5e/v6e vs v7x
    cap = max(4, min(cap, vmem_bytes // (5 * per_row) - 2))
    cap = min(cap, H)
    best = 1
    for t in range(1, cap + 1):
        if H % t == 0:
            best = t
    if best == H and H > 1:
        # guarantee >= 2 row tiles so a batch-1 launch still feeds both v7x cores
        for t in range(H // 2, 0, -1):
            if H % t == 0:
                return t
    # TODO(synk): pad H or mask a partial last tile for heights with no small divisor.
    return best


# ----------------------------------------------------------------------------- wrappers

def conv3x3(x, z, w2d, b, *, act, th, out_dtype, vmem_limit):
    """x: (N,H,W,Cin) bf16; z: (N,Cin) f32 scale; w2d: (9*Cin,Cout) bf16; b: (Cout,) f32."""
    N, H, W, Cin = x.shape
    Cout = w2d.shape[1]
    assert H % th == 0
    T = H // th
    kern = functools.partial(_conv3x3_kernel, TH=th, W=W, act=act)
    zin = z.reshape(N, 1, Cin)
    return pl.pallas_call(
        kern,
        out_shape=jax.ShapeDtypeStruct((N, H, W, Cout), out_dtype),
        grid=(N, T),
        in_specs=[
            pl.BlockSpec((1, th, W, Cin), lambda n, t: (n, t, 0, 0)),
            pl.BlockSpec((1, 1, W, Cin),
                         lambda n, t: (n, jnp.maximum(t * th - 1, 0), 0, 0)),
            pl.BlockSpec((1, 1, W, Cin),
                         lambda n, t: (n, jnp.minimum((t + 1) * th, H - 1), 0, 0)),
            pl.BlockSpec((1, 1, Cin), lambda n, t: (n, 0, 0)),
            pl.BlockSpec((9 * Cin, Cout), lambda n, t: (0, 0)),
            pl.BlockSpec((1, Cout), lambda n, t: (0, 0)),
        ],
        out_specs=pl.BlockSpec((1, th, W, Cout), lambda n, t: (n, t, 0, 0)),
        scratch_shapes=[pltpu.VMEM((th + 2, W + 2, Cin), jnp.bfloat16)],
        compiler_params=pltpu.CompilerParams(
            dimension_semantics=("parallel", "parallel"),
            vmem_limit_bytes=vmem_limit),
    )(x, x, x, zin, w2d, b.reshape(1, Cout))


def resblock(x, z_prev, p, *, th, vmem_limit):
    """x: (N,H,W,C) bf16; z_prev: (N,C) f32 (previous block's CA scale)."""
    N, H, W, C = x.shape
    assert H % th == 0
    T = H // th
    kern = functools.partial(_resblock_kernel, TH=th, W=W, C=C)
    zin = z_prev.reshape(N, 1, C)
    y, tsum = pl.pallas_call(
        kern,
        out_shape=(jax.ShapeDtypeStruct((N, H, W, C), jnp.bfloat16),
                   jax.ShapeDtypeStruct((N, T, 1, C), jnp.float32)),
        grid=(N, T),
        in_specs=[
            pl.BlockSpec((1, th, W, C), lambda n, t: (n, t, 0, 0)),
            pl.BlockSpec((1, 1, W, C),
                         lambda n, t: (n, jnp.maximum(t * th - 2, 0), 0, 0)),
            pl.BlockSpec((1, 1, W, C),
                         lambda n, t: (n, jnp.maximum(t * th - 1, 0), 0, 0)),
            pl.BlockSpec((1, 1, W, C),
                         lambda n, t: (n, jnp.minimum((t + 1) * th, H - 1), 0, 0)),
            pl.BlockSpec((1, 1, W, C),
                         lambda n, t: (n, jnp.minimum((t + 1) * th + 1, H - 1), 0, 0)),
            pl.BlockSpec((1, 1, C), lambda n, t: (n, 0, 0)),
            pl.BlockSpec((10 * C, C), lambda n, t: (0, 0)),
            pl.BlockSpec((1, C), lambda n, t: (0, 0)),
            pl.BlockSpec((10 * C, C), lambda n, t: (0, 0)),
            pl.BlockSpec((1, C), lambda n, t: (0, 0)),
        ],
        out_specs=(pl.BlockSpec((1, th, W, C), lambda n, t: (n, t, 0, 0)),
                   pl.BlockSpec((1, 1, 1, C), lambda n, t: (n, t, 0, 0))),
        scratch_shapes=[pltpu.VMEM((th + 4, W + 2, C), jnp.bfloat16),
                        pltpu.VMEM((th + 2, W + 2, C), jnp.bfloat16),
                        pltpu.VMEM(((th + 2) * W, 10 * C), jnp.bfloat16)],
        compiler_params=pltpu.CompilerParams(
            dimension_semantics=("parallel", "parallel"),
            vmem_limit_bytes=vmem_limit),
    )(x, x, x, x, x, zin,
      p["w1s"], p["b1"].reshape(1, C), p["w2s"], p["b2s"].reshape(1, C))

    # Channel attention: global average pool -> 1x1 conv MLP -> sigmoid.  The MLP
    # is a tiny (N, C) computation in plain JAX; the scale itself is consumed by
    # the NEXT layer's kernel (applied to its input tile in-kernel).
    pooled = tsum.reshape(N, T, C).sum(axis=1) * (1.0 / (H * W))
    a1 = jnp.maximum(pooled @ p["caw1"] + p["cab1"], 0.0)
    zn = jax.nn.sigmoid(a1 @ p["caw2"] + p["cab2"])          # (N, C) f32
    return y, zn


def coarse_denoise_encoder(x_nchw, params, out_channels=1):
    """Forward pass of Coarse_DeNoise_Encoder.  (N, Cin, H, W) -> (N, out_channels, H, W)."""
    x = jnp.transpose(x_nchw, (0, 2, 3, 1))                  # NCHW -> NHWC
    N, H, W, cin = x.shape
    cin_pad = params["w_in"].shape[0] // 9
    C = params["blocks"][0]["w1s"].shape[1]
    x = jnp.pad(x, ((0, 0), (0, 0), (0, 0), (0, cin_pad - cin))).astype(jnp.bfloat16)

    vmem = _tpu_vmem_bytes()
    vmem_limit = min(int(vmem * 3 // 4), 100 * 1024 * 1024)
    th = _pick_tile_h(H, W, C, vmem)

    ones_in = jnp.ones((N, cin_pad), jnp.float32)
    h = conv3x3(x, ones_in, params["w_in"], params["b_in"], act="leaky",
                th=th, out_dtype=jnp.bfloat16, vmem_limit=vmem_limit)   # in_conv + lrelu
    z = jnp.ones((N, C), jnp.float32)
    for p in params["blocks"]:                                          # e_conv2 .. e_conv7
        h, z = resblock(h, z, p, th=th, vmem_limit=vmem_limit)
    out = conv3x3(h, z, params["w_out"], params["b_out"], act="none",
                  th=th, out_dtype=jnp.float32, vmem_limit=vmem_limit)  # out_conv
    out = out[..., :out_channels]                             # static python slice
    return jnp.transpose(out, (0, 3, 1, 2))                   # NHWC -> NCHW


# ----------------------------------------------------------------------------- params

def _fold_bn(w, gamma, beta, mean, var, eps=BN_EPS):
    """Fold inference-mode BatchNorm into a bias-free conv (w last axis = Cout)."""
    scale = gamma / jnp.sqrt(var + eps)
    return w * scale, beta - mean * scale


def _init_resblock_params(key, C, reduction=16, std=0.05):
    Cr = C // reduction
    ks = jax.random.split(key, 7)
    w1 = jax.random.normal(ks[0], (3, 3, C, C), jnp.float32) * std
    w2 = jax.random.normal(ks[1], (3, 3, C, C), jnp.float32) * std
    ws = jax.random.normal(ks[2], (1, 1, C, C), jnp.float32) * std
    # BatchNorm at PyTorch init (gamma=1, beta=0, running mean=0, var=1), eval mode.
    g = jnp.ones((C,), jnp.float32)
    bt = jnp.zeros((C,), jnp.float32)
    mu = jnp.zeros((C,), jnp.float32)
    var = jnp.ones((C,), jnp.float32)
    w1f, b1f = _fold_bn(w1, g, bt, mu, var)
    w2f, b2f = _fold_bn(w2, g, bt, mu, var)
    wsf, bsf = _fold_bn(ws, g, bt, mu, var)
    # conv1 weight padded with zero rows so both convs use the same 10*C-wide im2col;
    # conv2 weight has the 1x1 shortcut stacked under it (K fusion).
    w1s = jnp.concatenate([w1f.reshape(9 * C, C), jnp.zeros((C, C), jnp.float32)], axis=0)
    w2s = jnp.concatenate([w2f.reshape(9 * C, C), wsf.reshape(C, C)], axis=0)
    return {
        "w1s": w1s.astype(jnp.bfloat16),
        "b1": b1f,
        "w2s": w2s.astype(jnp.bfloat16),
        "b2s": b2f + bsf,                                    # conv2 BN bias + shortcut BN bias
        # CALayer 1x1 convs stored TRANSPOSED vs PyTorch's (Cout, Cin, 1, 1) layout,
        # so the attention MLP is `pooled @ caw1` / `a1 @ caw2`.
        "caw1": jax.random.normal(ks[3], (C, Cr), jnp.float32) * std,
        "cab1": jax.random.normal(ks[4], (Cr,), jnp.float32) * std,
        "caw2": jax.random.normal(ks[5], (Cr, C), jnp.float32) * std,
        "cab2": jax.random.normal(ks[6], (C,), jnp.float32) * std,
    }


def init_params(key, in_channels=2, out_channels=1, number_f=64, std=0.05):
    C = number_f
    k_in, k_out, k_blocks = jax.random.split(key, 3)
    cin_pad = max(8, ((in_channels + 7) // 8) * 8)
    cout_pad = max(8, ((out_channels + 7) // 8) * 8)

    w_in = jnp.zeros((3, 3, cin_pad, C), jnp.float32)
    w_in = w_in.at[:, :, :in_channels, :].set(
        jax.random.normal(k_in, (3, 3, in_channels, C), jnp.float32) * std)
    b_in = jax.random.normal(jax.random.fold_in(k_in, 1), (C,), jnp.float32) * std

    w_out = jnp.zeros((3, 3, C, cout_pad), jnp.float32)
    w_out = w_out.at[:, :, :, :out_channels].set(
        jax.random.normal(k_out, (3, 3, C, out_channels), jnp.float32) * std)
    b_out = jnp.zeros((cout_pad,), jnp.float32)
    b_out = b_out.at[:out_channels].set(
        jax.random.normal(jax.random.fold_in(k_out, 1), (out_channels,), jnp.float32) * std)

    blocks = [_init_resblock_params(k, C) for k in jax.random.split(k_blocks, 6)]
    return {
        "w_in": w_in.reshape(9 * cin_pad, C).astype(jnp.bfloat16),
        "b_in": b_in,
        "w_out": w_out.reshape(9 * C, cout_pad).astype(jnp.bfloat16),
        "b_out": b_out,
        "blocks": blocks,
    }


# ----------------------------------------------------------------------------- main

if __name__ == "__main__":
    key = jax.random.PRNGKey(0)
    kx, kp = jax.random.split(key)
    # NCHW input, in_channels=2 as in the module
    x = jax.random.normal(kx, (2, 2, 16, 16), jnp.float32)
    params = init_params(kp)

    fwd = jax.jit(coarse_denoise_encoder, static_argnames=("out_channels",))
    out = fwd(x, params, out_channels=1)
    jax.block_until_ready(out)
    assert out.shape == (2, 1, 16, 16), out.shape
    assert out.dtype == jnp.float32
    assert bool(jnp.all(jnp.isfinite(out)))
    print("KERNEL_OK")
</pallas_src>

<mosaic_0001>
module attributes {stable_mosaic.version = 11 : i64} {
  func.func @_conv3x3_kernel(%arg0: i32, %arg1: i32, %arg2: memref<1x8x16x8xbf16, #tpu.memory_space<vmem>>, %arg3: memref<1x1x16x8xbf16, #tpu.memory_space<vmem>>, %arg4: memref<1x1x16x8xbf16, #tpu.memory_space<vmem>>, %arg5: memref<1x1x8xf32, #tpu.memory_space<vmem>>, %arg6: memref<72x64xbf16, #tpu.memory_space<vmem>>, %arg7: memref<1x64xf32, #tpu.memory_space<vmem>>, %arg8: memref<1x8x16x64xbf16, #tpu.memory_space<vmem>>, %arg9: memref<10x18x8xbf16, #tpu.memory_space<vmem>>) attributes {dimension_semantics = [#tpu.dimension_semantics<parallel>, #tpu.dimension_semantics<parallel>], iteration_bounds = array<i64: 2, 2>, scalar_prefetch = 0 : i64, scratch_operands = 1 : i64, tpu.core_type = #tpu.core_type<tc>, window_params = [{transform_indices = @transform_0, window_bounds = array<i64: 1, 8, 16, 8>}, {transform_indices = @transform_1, window_bounds = array<i64: 1, 1, 16, 8>}, {transform_indices = @transform_2, window_bounds = array<i64: 1, 1, 16, 8>}, {transform_indices = @transform_3, window_bounds = array<i64: 1, 1, 8>}, {pipeline_mode = #tpu.pipeline_mode<synchronous>, transform_indices = @transform_4, window_bounds = array<i64: 72, 64>}, {pipeline_mode = #tpu.pipeline_mode<synchronous>, transform_indices = @transform_5, window_bounds = array<i64: 1, 64>}, {transform_indices = @transform_6, window_bounds = array<i64: 1, 8, 16, 64>}]} {
    %c0 = arith.constant 0 : index
    %c0_0 = arith.constant 0 : index
    %c0_1 = arith.constant 0 : index
    %0 = vector.load %arg5[%c0, %c0_0, %c0_1] : memref<1x1x8xf32, #tpu.memory_space<vmem>>, vector<1x1x8xf32>
    %1 = vector.shape_cast %0 : vector<1x1x8xf32> to vector<1x8xf32>
    %c0_2 = arith.constant 0 : index
    %c0_3 = arith.constant 0 : index
    %c0_4 = arith.constant 0 : index
    %c0_5 = arith.constant 0 : index
    %2 = vector.load %arg2[%c0_2, %c0_3, %c0_4, %c0_5] : memref<1x8x16x8xbf16, #tpu.memory_space<vmem>>, vector<1x8x16x8xbf16>
    %3 = vector.shape_cast %2 : vector<1x8x16x8xbf16> to vector<8x16x8xbf16>
    %4 = arith.extf %3 : vector<8x16x8xbf16> to vector<8x16x8xf32>
    %5 = vector.shape_cast %1 : vector<1x8xf32> to vector<1x1x8xf32>
    %6 = vector.broadcast %5 : vector<1x1x8xf32> to vector<8x16x8xf32>
    %7 = arith.mulf %4, %6 : vector<8x16x8xf32>
    %8 = arith.truncf %7 : vector<8x16x8xf32> to vector<8x16x8xbf16>
    %c1 = arith.constant 1 : index
    %c1_6 = arith.constant 1 : index
    %c0_7 = arith.constant 0 : index
    %9 = vector.load %arg9[%c1, %c1_6, %c0_7] : memref<10x18x8xbf16, #tpu.memory_space<vmem>>, vector<8x16x8xbf16>
    tpu.vector_store %arg9[%c1, %c1_6, %c0_7], %8 {strides = array<i32>} : memref<10x18x8xbf16, #tpu.memory_space<vmem>>, vector<8x16x8xbf16>,
    %c0_i32 = arith.constant 0 : i32
    %10 = arith.cmpi eq, %arg1, %c0_i32 : i32
    %11 = arith.extui %10 : i1 to i32
    %c0_i32_8 = arith.constant 0 : i32
    %12 = arith.cmpi ne, %11, %c0_i32_8 : i32
    scf.if %12 {
      %cst_33 = arith.constant 0.000000e+00 : bf16
      %60 = vector.broadcast %cst_33 : bf16 to vector<1x16x8xbf16>
      %c0_34 = arith.constant 0 : index
      %c1_35 = arith.constant 1 : index
      %c0_36 = arith.constant 0 : index
      %61 = vector.load %arg9[%c0_34, %c1_35, %c0_36] : memref<10x18x8xbf16, #tpu.memory_space<vmem>>, vector<1x16x8xbf16>
      tpu.vector_store %arg9[%c0_34, %c1_35, %c0_36], %60 {strides = array<i32>} : memref<10x18x8xbf16, #tpu.memory_space<vmem>>, vector<1x16x8xbf16>,
    } else {
    }
    %c0_i32_9 = arith.constant 0 : i32
    %13 = arith.cmpi sgt, %arg1, %c0_i32_9 : i32
    %14 = arith.extui %13 : i1 to i32
    %c0_i32_10 = arith.constant 0 : i32
    %15 = arith.cmpi ne, %14, %c0_i32_10 : i32
    scf.if %15 {
      %c0_33 = arith.constant 0 : index
      %c0_34 = arith.constant 0 : index
      %c0_35 = arith.constant 0 : index
      %c0_36 = arith.constant 0 : index
      %60 = vector.load %arg3[%c0_33, %c0_34, %c0_35, %c0_36] : memref<1x1x16x8xbf16, #tpu.memory_space<vmem>>, vector<1x1x16x8xbf16>
      %61 = vector.shape_cast %60 : vector<1x1x16x8xbf16> to vector<1x16x8xbf16>
      %62 = arith.extf %61 : vector<1x16x8xbf16> to vector<1x16x8xf32>
      %63 = vector.shape_cast %1 : vector<1x8xf32> to vector<1x1x8xf32>
      %64 = vector.broadcast %63 : vector<1x1x8xf32> to vector<1x16x8xf32>
      %65 = arith.mulf %62, %64 : vector<1x16x8xf32>
      %66 = arith.truncf %65 : vector<1x16x8xf32> to vector<1x16x8xbf16>
      %c0_37 = arith.constant 0 : index
      %c1_38 = arith.constant 1 : index
      %c0_39 = arith.constant 0 : index
      %67 = vector.load %arg9[%c0_37, %c1_38, %c0_39] : memref<10x18x8xbf16, #tpu.memory_space<vmem>>, vector<1x16x8xbf16>
      tpu.vector_store %arg9[%c0_37, %c1_38, %c0_39], %66 {strides = array<i32>} : memref<10x18x8xbf16, #tpu.memory_space<vmem>>, vector<1x16x8xbf16>,
    } else {
    }
    %c1_i32 = arith.constant 1 : i32
    %16 = arith.cmpi eq, %arg1, %c1_i32 : i32
    %17 = arith.extui %16 : i1 to i32
    %c0_i32_11 = arith.constant 0 : i32
    %18 = arith.cmpi ne, %17, %c0_i32_11 : i32
    scf.if %18 {
      %cst_33 = arith.constant 0.000000e+00 : bf16
      %60 = vector.broadcast %cst_33 : bf16 to vector<1x16x8xbf16>
      %c9 = arith.constant 9 : index
      %c1_34 = arith.constant 1 : index
      %c0_35 = arith.constant 0 : index
      %61 = vector.load %arg9[%c9, %c1_34, %c0_35] : memref<10x18x8xbf16, #tpu.memory_space<vmem>>, vector<1x16x8xbf16>
      tpu.vector_store %arg9[%c9, %c1_34, %c0_35], %60 {strides = array<i32>} : memref<10x18x8xbf16, #tpu.memory_space<vmem>>, vector<1x16x8xbf16>,
    } else {
    }
    %c1_i32_12 = arith.constant 1 : i32
    %19 = arith.cmpi slt, %arg1, %c1_i32_12 : i32
    %20 = arith.extui %19 : i1 to i32
    %c0_i32_13 = arith.constant 0 : i32
    %21 = arith.cmpi ne, %20, %c0_i32_13 : i32
    scf.if %21 {
      %c0_33 = arith.constant 0 : index
      %c0_34 = arith.constant 0 : index
      %c0_35 = arith.constant 0 : index
      %c0_36 = arith.constant 0 : index
      %60 = vector.load %arg4[%c0_33, %c0_34, %c0_35, %c0_36] : memref<1x1x16x8xbf16, #tpu.memory_space<vmem>>, vector<1x1x16x8xbf16>
      %61 = vector.shape_cast %60 : vector<1x1x16x8xbf16> to vector<1x16x8xbf16>
      %62 = arith.extf %61 : vector<1x16x8xbf16> to vector<1x16x8xf32>
      %63 = vector.shape_cast %1 : vector<1x8xf32> to vector<1x1x8xf32>
      %64 = vector.broadcast %63 : vector<1x1x8xf32> to vector<1x16x8xf32>
      %65 = arith.mulf %62, %64 : vector<1x16x8xf32>
      %66 = arith.truncf %65 : vector<1x16x8xf32> to vector<1x16x8xbf16>
      %c9 = arith.constant 9 : index
      %c1_37 = arith.constant 1 : index
      %c0_38 = arith.constant 0 : index
      %67 = vector.load %arg9[%c9, %c1_37, %c0_38] : memref<10x18x8xbf16, #tpu.memory_space<vmem>>, vector<1x16x8xbf16>
      tpu.vector_store %arg9[%c9, %c1_37, %c0_38], %66 {strides = array<i32>} : memref<10x18x8xbf16, #tpu.memory_space<vmem>>, vector<1x16x8xbf16>,
    } else {
    }
    %cst = arith.constant 0.000000e+00 : bf16
    %22 = vector.broadcast %cst : bf16 to vector<10x1x8xbf16>
    %c0_14 = arith.constant 0 : index
    %c0_15 = arith.constant 0 : index
    %c0_16 = arith.constant 0 : index
    %23 = vector.load %arg9[%c0_14, %c0_15, %c0_16] : memref<10x18x8xbf16, #tpu.memory_space<vmem>>, vector<10x1x8xbf16>
    tpu.vector_store %arg9[%c0_14, %c0_15, %c0_16], %22 {strides = array<i32>} : memref<10x18x8xbf16, #tpu.memory_space<vmem>>, vector<10x1x8xbf16>,
    %c0_17 = arith.constant 0 : index
    %c17 = arith.constant 17 : index
    %c0_18 = arith.constant 0 : index
    %24 = vector.load %arg9[%c0_17, %c17, %c0_18] : memref<10x18x8xbf16, #tpu.memory_space<vmem>>, vector<10x1x8xbf16>
    tpu.vector_store %arg9[%c0_17, %c17, %c0_18], %22 {strides = array<i32>} : memref<10x18x8xbf16, #tpu.memory_space<vmem>>, vector<10x1x8xbf16>,
    %c0_19 = arith.constant 0 : index
    %c0_20 = arith.constant 0 : index
    %c0_21 = arith.constant 0 : index
    %25 = vector.load %arg9[%c0_19, %c0_20, %c0_21] : memref<10x18x8xbf16, #tpu.memory_space<vmem>>, vector<10x18x8xbf16>
    %26 = vector.extract_strided_slice %25 {offsets = [0, 0, 0], sizes = [8, 16, 8], strides = [1, 1, 1]} : vector<10x18x8xbf16> to vector<8x16x8xbf16>
    %27 = vector.shape_cast %26 : vector<8x16x8xbf16> to vector<128x8xbf16>
    %28 = vector.extract_strided_slice %25 {offsets = [0, 1, 0], sizes = [8, 16, 8], strides = [1, 1, 1]} : vector<10x18x8xbf16> to vector<8x16x8xbf16>
    %29 = vector.shape_cast %28 : vector<8x16x8xbf16> to vector<128x8xbf16>
    %30 = vector.extract_strided_slice %25 {offsets = [0, 2, 0], sizes = [8, 16, 8], strides = [1, 1, 1]} : vector<10x18x8xbf16> to vector<8x16x8xbf16>
    %31 = vector.shape_cast %30 : vector<8x16x8xbf16> to vector<128x8xbf16>
    %32 = vector.extract_strided_slice %25 {offsets = [1, 0, 0], sizes = [8, 16, 8], strides = [1, 1, 1]} : vector<10x18x8xbf16> to vector<8x16x8xbf16>
    %33 = vector.shape_cast %32 : vector<8x16x8xbf16> to vector<128x8xbf16>
    %34 = vector.extract_strided_slice %25 {offsets = [1, 1, 0], sizes = [8, 16, 8], strides = [1, 1, 1]} : vector<10x18x8xbf16> to vector<8x16x8xbf16>
    %35 = vector.shape_cast %34 : vector<8x16x8xbf16> to vector<128x8xbf16>
    %36 = vector.extract_strided_slice %25 {offsets = [1, 2, 0], sizes = [8, 16, 8], strides = [1, 1, 1]} : vector<10x18x8xbf16> to vector<8x16x8xbf16>
    %37 = vector.shape_cast %36 : vector<8x16x8xbf16> to vector<128x8xbf16>
    %38 = vector.extract_strided_slice %25 {offsets = [2, 0, 0], sizes = [8, 16, 8], strides = [1, 1, 1]} : vector<10x18x8xbf16> to vector<8x16x8xbf16>
    %39 = vector.shape_cast %38 : vector<8x16x8xbf16> to vector<128x8xbf16>
    %40 = vector.extract_strided_slice %25 {offsets = [2, 1, 0], sizes = [8, 16, 8], strides = [1, 1, 1]} : vector<10x18x8xbf16> to vector<8x16x8xbf16>
    %41 = vector.shape_cast %40 : vector<8x16x8xbf16> to vector<128x8xbf16>
    %42 = vector.extract_strided_slice %25 {offsets = [2, 2, 0], sizes = [8, 16, 8], strides = [1, 1, 1]} : vector<10x18x8xbf16> to vector<8x16x8xbf16>
    %43 = vector.shape_cast %42 : vector<8x16x8xbf16> to vector<128x8xbf16>
    %44 = tpu.concatenate %27, %29, %31, %33, %35, %37, %39, %41, %43 in 1 : vector<128x8xbf16>, vector<128x8xbf16>, vector<128x8xbf16>, vector<128x8xbf16>, vector<128x8xbf16>, vector<128x8xbf16>, vector<128x8xbf16>, vector<128x8xbf16>, vector<128x8xbf16> -> vector<128x72xbf16>
    %c0_22 = arith.constant 0 : index
    %c0_23 = arith.constant 0 : index
    %45 = vector.load %arg6[%c0_22, %c0_23] : memref<72x64xbf16, #tpu.memory_space<vmem>>, vector<72x64xbf16>
    %cst_24 = arith.constant dense<0.000000e+00> : vector<128x64xf32>
    %46 = tpu.matmul %44, %45, %cst_24 {dimension_numbers = #tpu.dot_dimension_numbers<[1], [0], [0], [1], [0, 0, 1, 1], [], []>} : vector<128x72xbf16>, vector<72x64xbf16>, vector<128x64xf32> -> vector<128x64xf32>
    %c0_25 = arith.constant 0 : index
    %c0_26 = arith.constant 0 : index
    %47 = vector.load %arg7[%c0_25, %c0_26] : memref<1x64xf32, #tpu.memory_space<vmem>>, vector<1x64xf32>
    %48 = vector.broadcast %47 : vector<1x64xf32> to vector<128x64xf32>
    %49 = arith.addf %46, %48 : vector<128x64xf32>
    %cst_27 = arith.constant 0.000000e+00 : f32
    %50 = vector.broadcast %cst_27 : f32 to vector<128x64xf32>
    %51 = arith.cmpf oge, %49, %50 : vector<128x64xf32>
    %cst_28 = arith.constant 2.000000e-01 : f32
    %52 = vector.broadcast %cst_28 : f32 to vector<128x64xf32>
    %53 = arith.mulf %52, %49 : vector<128x64xf32>
    %54 = arith.select %51, %49, %53 : vector<128x64xi1>, vector<128x64xf32>
    %55 = vector.shape_cast %54 : vector<128x64xf32> to vector<8x16x64xf32>
    %56 = arith.truncf %55 : vector<8x16x64xf32> to vector<8x16x64xbf16>
    %c0_29 = arith.constant 0 : index
    %c0_30 = arith.constant 0 : index
    %c0_31 = arith.constant 0 : index
    %c0_32 = arith.constant 0 : index
    %57 = vector.load %arg8[%c0_29, %c0_30, %c0_31, %c0_32] : memref<1x8x16x64xbf16, #tpu.memory_space<vmem>>, vector<1x8x16x64xbf16>
    %58 = vector.shape_cast %57 : vector<1x8x16x64xbf16> to vector<8x16x64xbf16>
    %59 = vector.shape_cast %56 : vector<8x16x64xbf16> to vector<1x8x16x64xbf16>
    tpu.vector_store %arg8[%c0_29, %c0_30, %c0_31, %c0_32], %59 {strides = array<i32>} : memref<1x8x16x64xbf16, #tpu.memory_space<vmem>>, vector<1x8x16x64xbf16>,
    return
  }
  func.func @transform_0(%arg0: i32, %arg1: i32) -> (i32, i32, i32, i32) {
    %c0_i32 = arith.constant 0 : i32
    %c0_i32_0 = arith.constant 0 : i32
    %c0_i32_1 = arith.constant 0 : i32
    return %arg0, %arg1, %c0_i32, %c0_i32_0 : i32, i32, i32, i32
  }
  func.func @transform_1(%arg0: i32, %arg1: i32) -> (i32, i32, i32, i32) {
    %c8_i32 = arith.constant 8 : i32
    %0 = arith.muli %arg1, %c8_i32 : i32
    %c1_i32 = arith.constant 1 : i32
    %1 = arith.subi %0, %c1_i32 : i32
    %c0_i32 = arith.constant 0 : i32
    %2 = arith.maxsi %1, %c0_i32 : i32
    %c0_i32_0 = arith.constant 0 : i32
    %c0_i32_1 = arith.constant 0 : i32
    %c0_i32_2 = arith.constant 0 : i32
    return %arg0, %2, %c0_i32_0, %c0_i32_1 : i32, i32, i32, i32
  }
  func.func @transform_2(%arg0: i32, %arg1: i32) -> (i32, i32, i32, i32) {
    %c1_i32 = arith.constant 1 : i32
    %0 = arith.addi %arg1, %c1_i32 : i32
    %c8_i32 = arith.constant 8 : i32
    %1 = arith.muli %0, %c8_i32 : i32
    %c15_i32 = arith.constant 15 : i32
    %2 = arith.minsi %1, %c15_i32 : i32
    %c0_i32 = arith.constant 0 : i32
    %c0_i32_0 = arith.constant 0 : i32
    %c0_i32_1 = arith.constant 0 : i32
    return %arg0, %2, %c0_i32, %c0_i32_0 : i32, i32, i32, i32
  }
  func.func @transform_3(%arg0: i32, %arg1: i32) -> (i32, i32, i32) {
    %c0_i32 = arith.constant 0 : i32
    %c0_i32_0 = arith.constant 0 : i32
    %c0_i32_1 = arith.constant 0 : i32
    return %arg0, %c0_i32, %c0_i32_0 : i32, i32, i32
  }
  func.func @transform_4(%arg0: i32, %arg1: i32) -> (i32, i32) {
    %c0_i32 = arith.constant 0 : i32
    %c0_i32_0 = arith.constant 0 : i32
    %c0_i32_1 = arith.constant 0 : i32
    return %c0_i32, %c0_i32_0 : i32, i32
  }
  func.func @transform_5(%arg0: i32, %arg1: i32) -> (i32, i32) {
    %c0_i32 = arith.constant 0 : i32
    %c0_i32_0 = arith.constant 0 : i32
    %c0_i32_1 = arith.constant 0 : i32
    return %c0_i32, %c0_i32_0 : i32, i32
  }
  func.func @transform_6(%arg0: i32, %arg1: i32) -> (i32, i32, i32, i32) {
    %c0_i32 = arith.constant 0 : i32
    %c0_i32_0 = arith.constant 0 : i32
    %c0_i32_1 = arith.constant 0 : i32
    return %arg0, %arg1, %c0_i32, %c0_i32_0 : i32, i32, i32, i32
  }
}

module attributes {stable_mosaic.version = 11 : i64} {
  func.func @_resblock_kernel(%arg0: i32, %arg1: i32, %arg2: memref<1x8x16x64xbf16, #tpu.memory_space<vmem>>, %arg3: memref<1x1x16x64xbf16, #tpu.memory_space<vmem>>, %arg4: memref<1x1x16x64xbf16, #tpu.memory_space<vmem>>, %arg5: memref<1x1x16x64xbf16, #tpu.memory_space<vmem>>, %arg6: memref<1x1x16x64xbf16, #tpu.memory_space<vmem>>, %arg7: memref<1x1x64xf32, #tpu.memory_space<vmem>>, %arg8: memref<640x64xbf16, #tpu.memory_space<vmem>>, %arg9: memref<1x64xf32, #tpu.memory_space<vmem>>, %arg10: memref<640x64xbf16, #tpu.memory_space<vmem>>, %arg11: memref<1x64xf32, #tpu.memory_space<vmem>>, %arg12: memref<1x8x16x64xbf16, #tpu.memory_space<vmem>>, %arg13: memref<1x1x1x64xf32, #tpu.memory_space<vmem>>, %arg14: memref<12x18x64xbf16, #tpu.memory_space<vmem>>, %arg15: memref<10x18x64xbf16, #tpu.memory_space<vmem>>, %arg16: memref<160x640xbf16, #tpu.memory_space<vmem>>) attributes {dimension_semantics = [#tpu.dimension_semantics<parallel>, #tpu.dimension_semantics<parallel>], iteration_bounds = array<i64: 2, 2>, scalar_prefetch = 0 : i64, scratch_operands = 3 : i64, tpu.core_type = #tpu.core_type<tc>, window_params = [{transform_indices = @transform_0, window_bounds = array<i64: 1, 8, 16, 64>}, {transform_indices = @transform_1, window_bounds = array<i64: 1, 1, 16, 64>}, {transform_indices = @transform_2, window_bounds = array<i64: 1, 1, 16, 64>}, {transform_indices = @transform_3, window_bounds = array<i64: 1, 1, 16, 64>}, {transform_indices = @transform_4, window_bounds = array<i64: 1, 1, 16, 64>}, {transform_indices = @transform_5, window_bounds = array<i64: 1, 1, 64>}, {pipeline_mode = #tpu.pipeline_mode<synchronous>, transform_indices = @transform_6, window_bounds = array<i64: 640, 64>}, {pipeline_mode = #tpu.pipeline_mode<synchronous>, transform_indices = @transform_7, window_bounds = array<i64: 1, 64>}, {pipeline_mode = #tpu.pipeline_mode<synchronous>, transform_indices = @transform_8, window_bounds = array<i64: 640, 64>}, {pipeline_mode = #tpu.pipeline_mode<synchronous>, transform_indices = @transform_9, window_bounds = array<i64: 1, 64>}, {transform_indices = @transform_10, window_bounds = array<i64: 1, 8, 16, 64>}, {transform_indices = @transform_11, window_bounds = array<i64: 1, 1, 1, 64>}]} {
    %c0 = arith.constant 0 : index
    %c0_0 = arith.constant 0 : index
    %c0_1 = arith.constant 0 : index
    %0 = vector.load %arg7[%c0, %c0_0, %c0_1] : memref<1x1x64xf32, #tpu.memory_space<vmem>>, vector<1x1x64xf32>
    %1 = vector.shape_cast %0 : vector<1x1x64xf32> to vector<1x64xf32>
    %c0_2 = arith.constant 0 : index
    %c0_3 = arith.constant 0 : index
    %c0_4 = arith.constant 0 : index
    %c0_5 = arith.constant 0 : index
    %2 = vector.load %arg2[%c0_2, %c0_3, %c0_4, %c0_5] : memref<1x8x16x64xbf16, #tpu.memory_space<vmem>>, vector<1x8x16x64xbf16>
    %3 = vector.shape_cast %2 : vector<1x8x16x64xbf16> to vector<8x16x64xbf16>
    %4 = arith.extf %3 : vector<8x16x64xbf16> to vector<8x16x64xf32>
    %5 = vector.shape_cast %1 : vector<1x64xf32> to vector<1x1x64xf32>
    %6 = vector.broadcast %5 : vector<1x1x64xf32> to vector<8x16x64xf32>
    %7 = arith.mulf %4, %6 : vector<8x16x64xf32>
    %8 = arith.truncf %7 : vector<8x16x64xf32> to vector<8x16x64xbf16>
    %c2 = arith.constant 2 : index
    %c1 = arith.constant 1 : index
    %c0_6 = arith.constant 0 : index
    %9 = vector.load %arg14[%c2, %c1, %c0_6] : memref<12x18x64xbf16, #tpu.memory_space<vmem>>, vector<8x16x64xbf16>
    tpu.vector_store %arg14[%c2, %c1, %c0_6], %8 {strides = array<i32>} : memref<12x18x64xbf16, #tpu.memory_space<vmem>>, vector<8x16x64xbf16>,
    %c0_i32 = arith.constant 0 : i32
    %10 = arith.cmpi eq, %arg1, %c0_i32 : i32
    %11 = arith.extui %10 : i1 to i32
    %c0_i32_7 = arith.constant 0 : i32
    %12 = arith.cmpi ne, %11, %c0_i32_7 : i32
    scf.if %12 {
      %cst_81 = arith.constant 0.000000e+00 : bf16
      %129 = vector.broadcast %cst_81 : bf16 to vector<2x16x64xbf16>
      %c0_82 = arith.constant 0 : index
      %c1_83 = arith.constant 1 : index
      %c0_84 = arith.constant 0 : index
      %130 = vector.load %arg14[%c0_82, %c1_83, %c0_84] : memref<12x18x64xbf16, #tpu.memory_space<vmem>>, vector<2x16x64xbf16>
      tpu.vector_store %arg14[%c0_82, %c1_83, %c0_84], %129 {strides = array<i32>} : memref<12x18x64xbf16, #tpu.memory_space<vmem>>, vector<2x16x64xbf16>,
    } else {
    }
    %c0_i32_8 = arith.constant 0 : i32
    %13 = arith.cmpi sgt, %arg1, %c0_i32_8 : i32
    %14 = arith.extui %13 : i1 to i32
    %c0_i32_9 = arith.constant 0 : i32
    %15 = arith.cmpi ne, %14, %c0_i32_9 : i32
    scf.if %15 {
      %c0_81 = arith.constant 0 : index
      %c0_82 = arith.constant 0 : index
      %c0_83 = arith.constant 0 : index
      %c0_84 = arith.constant 0 : index
      %129 = vector.load %arg3[%c0_81, %c0_82, %c0_83, %c0_84] : memref<1x1x16x64xbf16, #tpu.memory_space<vmem>>, vector<1x1x16x64xbf16>
      %130 = vector.shape_cast %129 : vector<1x1x16x64xbf16> to vector<1x16x64xbf16>
      %131 = arith.extf %130 : vector<1x16x64xbf16> to vector<1x16x64xf32>
      %132 = vector.shape_cast %1 : vector<1x64xf32> to vector<1x1x64xf32>
      %133 = vector.broadcast %132 : vector<1x1x64xf32> to vector<1x16x64xf32>
      %134 = arith.mulf %131, %133 : vector<1x16x64xf32>
      %135 = arith.truncf %134 : vector<1x16x64xf32> to vector<1x16x64xbf16>
      %c0_85 = arith.constant 0 : index
      %c1_86 = arith.constant 1 : index
      %c0_87 = arith.constant 0 : index
      %136 = vector.load %arg14[%c0_85, %c1_86, %c0_87] : memref<12x18x64xbf16, #tpu.memory_space<vmem>>, vector<1x16x64xbf16>
      tpu.vector_store %arg14[%c0_85, %c1_86, %c0_87], %135 {strides = array<i32>} : memref<12x18x64xbf16, #tpu.memory_space<vmem>>, vector<1x16x64xbf16>,
      %c0_88 = arith.constant 0 : index
      %c0_89 = arith.constant 0 : index
      %c0_90 = arith.constant 0 : index
      %c0_91 = arith.constant 0 : index
      %137 = vector.load %arg4[%c0_88, %c0_89, %c0_90, %c0_91] : memref<1x1x16x64xbf16, #tpu.memory_space<vmem>>, vector<1x1x16x64xbf16>
      %138 = vector.shape_cast %137 : vector<1x1x16x64xbf16> to vector<1x16x64xbf16>
      %139 = arith.extf %138 : vector<1x16x64xbf16> to vector<1x16x64xf32>
      %140 = vector.shape_cast %1 : vector<1x64xf32> to vector<1x1x64xf32>
      %141 = vector.broadcast %140 : vector<1x1x64xf32> to vector<1x16x64xf32>
      %142 = arith.mulf %139, %141 : vector<1x16x64xf32>
      %143 = arith.truncf %142 : vector<1x16x64xf32> to vector<1x16x64xbf16>
      %c1_92 = arith.constant 1 : index
      %c1_93 = arith.constant 1 : index
      %c0_94 = arith.constant 0 : index
      %144 = vector.load %arg14[%c1_92, %c1_93, %c0_94] : memref<12x18x64xbf16, #tpu.memory_space<vmem>>, vector<1x16x64xbf16>
      tpu.vector_store %arg14[%c1_92, %c1_93, %c0_94], %143 {strides = array<i32>} : memref<12x18x64xbf16, #tpu.memory_space<vmem>>, vector<1x16x64xbf16>,
    } else {
    }
    %c1_i32 = arith.constant 1 : i32
    %16 = arith.cmpi eq, %arg1, %c1_i32 : i32
    %17 = arith.extui %16 : i1 to i32
    %c0_i32_10 = arith.constant 0 : i32
    %18 = arith.cmpi ne, %17, %c0_i32_10 : i32
    scf.if %18 {
      %cst_81 = arith.constant 0.000000e+00 : bf16
      %129 = vector.broadcast %cst_81 : bf16 to vector<2x16x64xbf16>
      %c10 = arith.constant 10 : index
      %c1_82 = arith.constant 1 : index
      %c0_83 = arith.constant 0 : index
      %130 = vector.load %arg14[%c10, %c1_82, %c0_83] : memref<12x18x64xbf16, #tpu.memory_space<vmem>>, vector<2x16x64xbf16>
      tpu.vector_store %arg14[%c10, %c1_82, %c0_83], %129 {strides = array<i32>} : memref<12x18x64xbf16, #tpu.memory_space<vmem>>, vector<2x16x64xbf16>,
    } else {
    }
    %c1_i32_11 = arith.constant 1 : i32
    %19 = arith.cmpi slt, %arg1, %c1_i32_11 : i32
    %20 = arith.extui %19 : i1 to i32
    %c0_i32_12 = arith.constant 0 : i32
    %21 = arith.cmpi ne, %20, %c0_i32_12 : i32
    scf.if %21 {
      %c0_81 = arith.constant 0 : index
      %c0_82 = arith.constant 0 : index
      %c0_83 = arith.constant 0 : index
      %c0_84 = arith.constant 0 : index
      %129 = vector.load %arg5[%c0_81, %c0_82, %c0_83, %c0_84] : memref<1x1x16x64xbf16, #tpu.memory_space<vmem>>, vector<1x1x16x64xbf16>
      %130 = vector.shape_cast %129 : vector<1x1x16x64xbf16> to vector<1x16x64xbf16>
      %131 = arith.extf %130 : vector<1x16x64xbf16> to vector<1x16x64xf32>
      %132 = vector.shape_cast %1 : vector<1x64xf32> to vector<1x1x64xf32>
      %133 = vector.broadcast %132 : vector<1x1x64xf32> to vector<1x16x64xf32>
      %134 = arith.mulf %131, %133 : vector<1x16x64xf32>
      %135 = arith.truncf %134 : vector<1x16x64xf32> to vector<1x16x64xbf16>
      %c10 = arith.constant 10 : index
      %c1_85 = arith.constant 1 : index
      %c0_86 = arith.constant 0 : index
      %136 = vector.load %arg14[%c10, %c1_85, %c0_86] : memref<12x18x64xbf16, #tpu.memory_space<vmem>>, vector<1x16x64xbf16>
      tpu.vector_store %arg14[%c10, %c1_85, %c0_86], %135 {strides = array<i32>} : memref<12x18x64xbf16, #tpu.memory_space<vmem>>, vector<1x16x64xbf16>,
      %c0_87 = arith.constant 0 : index
      %c0_88 = arith.constant 0 : index
      %c0_89 = arith.constant 0 : index
      %c0_90 = arith.constant 0 : index
      %137 = vector.load %arg6[%c0_87, %c0_88, %c0_89, %c0_90] : memref<1x1x16x64xbf16, #tpu.memory_space<vmem>>, vector<1x1x16x64xbf16>
      %138 = vector.shape_cast %137 : vector<1x1x16x64xbf16> to vector<1x16x64xbf16>
      %139 = arith.extf %138 : vector<1x16x64xbf16> to vector<1x16x64xf32>
      %140 = vector.shape_cast %1 : vector<1x64xf32> to vector<1x1x64xf32>
      %141 = vector.broadcast %140 : vector<1x1x64xf32> to vector<1x16x64xf32>
      %142 = arith.mulf %139, %141 : vector<1x16x64xf32>
      %143 = arith.truncf %142 : vector<1x16x64xf32> to vector<1x16x64xbf16>
      %c11 = arith.constant 11 : index
      %c1_91 = arith.constant 1 : index
      %c0_92 = arith.constant 0 : index
      %144 = vector.load %arg14[%c11, %c1_91, %c0_92] : memref<12x18x64xbf16, #tpu.memory_space<vmem>>, vector<1x16x64xbf16>
      tpu.vector_store %arg14[%c11, %c1_91, %c0_92], %143 {strides = array<i32>} : memref<12x18x64xbf16, #tpu.memory_space<vmem>>, vector<1x16x64xbf16>,
    } else {
    }
    %cst = arith.constant 0.000000e+00 : bf16
    %22 = vector.broadcast %cst : bf16 to vector<12x1x64xbf16>
    %c0_13 = arith.constant 0 : index
    %c0_14 = arith.constant 0 : index
    %c0_15 = arith.constant 0 : index
    %23 = vector.load %arg14[%c0_13, %c0_14, %c0_15] : memref<12x18x64xbf16, #tpu.memory_space<vmem>>, vector<12x1x64xbf16>
    tpu.vector_store %arg14[%c0_13, %c0_14, %c0_15], %22 {strides = array<i32>} : memref<12x18x64xbf16, #tpu.memory_space<vmem>>, vector<12x1x64xbf16>,
    %c0_16 = arith.constant 0 : index
    %c17 = arith.constant 17 : index
    %c0_17 = arith.constant 0 : index
    %24 = vector.load %arg14[%c0_16, %c17, %c0_17] : memref<12x18x64xbf16, #tpu.memory_space<vmem>>, vector<12x1x64xbf16>
    tpu.vector_store %arg14[%c0_16, %c17, %c0_17], %22 {strides = array<i32>} : memref<12x18x64xbf16, #tpu.memory_space<vmem>>, vector<12x1x64xbf16>,
    %c0_18 = arith.constant 0 : index
    %c0_19 = arith.constant 0 : index
    %c0_20 = arith.constant 0 : index
    %25 = vector.load %arg14[%c0_18, %c0_19, %c0_20] : memref<12x18x64xbf16, #tpu.memory_space<vmem>>, vector<12x18x64xbf16>
    %26 = vector.extract_strided_slice %25 {offsets = [0, 0, 0], sizes = [10, 16, 64], strides = [1, 1, 1]} : vector<12x18x64xbf16> to vector<10x16x64xbf16>
    %27 = vector.shape_cast %26 : vector<10x16x64xbf16> to vector<160x64xbf16>
    %28 = vector.extract_strided_slice %25 {offsets = [0, 1, 0], sizes = [10, 16, 64], strides = [1, 1, 1]} : vector<12x18x64xbf16> to vector<10x16x64xbf16>
    %29 = vector.shape_cast %28 : vector<10x16x64xbf16> to vector<160x64xbf16>
    %30 = tpu.concatenate %27, %29 in 1 : vector<160x64xbf16>, vector<160x64xbf16> -> vector<160x128xbf16>
    %c0_21 = arith.constant 0 : index
    %c0_22 = arith.constant 0 : index
    %31 = vector.load %arg16[%c0_21, %c0_22] : memref<160x640xbf16, #tpu.memory_space<vmem>>, vector<160x128xbf16>
    tpu.vector_store %arg16[%c0_21, %c0_22], %30 {strides = array<i32>} : memref<160x640xbf16, #tpu.memory_space<vmem>>, vector<160x128xbf16>,
    %32 = vector.extract_strided_slice %25 {offsets = [0, 2, 0], sizes = [10, 16, 64], strides = [1, 1, 1]} : vector<12x18x64xbf16> to vector<10x16x64xbf16>
    %33 = vector.shape_cast %32 : vector<10x16x64xbf16> to vector<160x64xbf16>
    %34 = vector.extract_strided_slice %25 {offsets = [1, 0, 0], sizes = [10, 16, 64], strides = [1, 1, 1]} : vector<12x18x64xbf16> to vector<10x16x64xbf16>
    %35 = vector.shape_cast %34 : vector<10x16x64xbf16> to vector<160x64xbf16>
    %36 = tpu.concatenate %33, %35 in 1 : vector<160x64xbf16>, vector<160x64xbf16> -> vector<160x128xbf16>
    %c0_23 = arith.constant 0 : index
    %c128 = arith.constant 128 : index
    %37 = vector.load %arg16[%c0_23, %c128] : memref<160x640xbf16, #tpu.memory_space<vmem>>, vector<160x128xbf16>
    tpu.vector_store %arg16[%c0_23, %c128], %36 {strides = array<i32>} : memref<160x640xbf16, #tpu.memory_space<vmem>>, vector<160x128xbf16>,
    %38 = vector.extract_strided_slice %25 {offsets = [1, 1, 0], sizes = [10, 16, 64], strides = [1, 1, 1]} : vector<12x18x64xbf16> to vector<10x16x64xbf16>
    %39 = vector.shape_cast %38 : vector<10x16x64xbf16> to vector<160x64xbf16>
    %40 = vector.extract_strided_slice %25 {offsets = [1, 2, 0], sizes = [10, 16, 64], strides = [1, 1, 1]} : vector<12x18x64xbf16> to vector<10x16x64xbf16>
    %41 = vector.shape_cast %40 : vector<10x16x64xbf16> to vector<160x64xbf16>
    %42 = tpu.concatenate %39, %41 in 1 : vector<160x64xbf16>, vector<160x64xbf16> -> vector<160x128xbf16>
    %c0_24 = arith.constant 0 : index
    %c256 = arith.constant 256 : index
    %43 = vector.load %arg16[%c0_24, %c256] : memref<160x640xbf16, #tpu.memory_space<vmem>>, vector<160x128xbf16>
    tpu.vector_store %arg16[%c0_24, %c256], %42 {strides = array<i32>} : memref<160x640xbf16, #tpu.memory_space<vmem>>, vector<160x128xbf16>,
    %44 = vector.extract_strided_slice %25 {offsets = [2, 0, 0], sizes = [10, 16, 64], strides = [1, 1, 1]} : vector<12x18x64xbf16> to vector<10x16x64xbf16>
    %45 = vector.shape_cast %44 : vector<10x16x64xbf16> to vector<160x64xbf16>
    %46 = vector.extract_strided_slice %25 {offsets = [2, 1, 0], sizes = [10, 16, 64], strides = [1, 1, 1]} : vector<12x18x64xbf16> to vector<10x16x64xbf16>
    %47 = vector.shape_cast %46 : vector<10x16x64xbf16> to vector<160x64xbf16>
    %48 = tpu.concatenate %45, %47 in 1 : vector<160x64xbf16>, vector<160x64xbf16> -> vector<160x128xbf16>
    %c0_25 = arith.constant 0 : index
    %c384 = arith.constant 384 : index
    %49 = vector.load %arg16[%c0_25, %c384] : memref<160x640xbf16, #tpu.memory_space<vmem>>, vector<160x128xbf16>
    tpu.vector_store %arg16[%c0_25, %c384], %48 {strides = array<i32>} : memref<160x640xbf16, #tpu.memory_space<vmem>>, vector<160x128xbf16>,
    %50 = vector.extract_strided_slice %25 {offsets = [2, 2, 0], sizes = [10, 16, 64], strides = [1, 1, 1]} : vector<12x18x64xbf16> to vector<10x16x64xbf16>
    %51 = vector.shape_cast %50 : vector<10x16x64xbf16> to vector<160x64xbf16>
    %52 = vector.extract_strided_slice %25 {offsets = [1, 1, 0], sizes = [10, 16, 64], strides = [1, 1, 1]} : vector<12x18x64xbf16> to vector<10x16x64xbf16>
    %53 = vector.shape_cast %52 : vector<10x16x64xbf16> to vector<160x64xbf16>
    %54 = tpu.concatenate %51, %53 in 1 : vector<160x64xbf16>, vector<160x64xbf16> -> vector<160x128xbf16>
    %c0_26 = arith.constant 0 : index
    %c512 = arith.constant 512 : index
    %55 = vector.load %arg16[%c0_26, %c512] : memref<160x640xbf16, #tpu.memory_space<vmem>>, vector<160x128xbf16>
    tpu.vector_store %arg16[%c0_26, %c512], %54 {strides = array<i32>} : memref<160x640xbf16, #tpu.memory_space<vmem>>, vector<160x128xbf16>,
    %c0_27 = arith.constant 0 : index
    %c0_28 = arith.constant 0 : index
    %56 = vector.load %arg16[%c0_27, %c0_28] : memref<160x640xbf16, #tpu.memory_space<vmem>>, vector<160x640xbf16>
    %c0_29 = arith.constant 0 : index
    %c0_30 = arith.constant 0 : index
    %57 = vector.load %arg8[%c0_29, %c0_30] : memref<640x64xbf16, #tpu.memory_space<vmem>>, vector<640x64xbf16>
    %cst_31 = arith.constant dense<0.000000e+00> : vector<160x64xf32>
    %58 = tpu.matmul %56, %57, %cst_31 {dimension_numbers = #tpu.dot_dimension_numbers<[1], [0], [0], [1], [0, 0, 1, 1], [], []>} : vector<160x640xbf16>, vector<640x64xbf16>, vector<160x64xf32> -> vector<160x64xf32>
    %c0_32 = arith.constant 0 : index
    %c0_33 = arith.constant 0 : index
    %59 = vector.load %arg9[%c0_32, %c0_33] : memref<1x64xf32, #tpu.memory_space<vmem>>, vector<1x64xf32>
    %60 = vector.broadcast %59 : vector<1x64xf32> to vector<160x64xf32>
    %61 = arith.addf %58, %60 : vector<160x64xf32>
    %cst_34 = arith.constant 0.000000e+00 : f32
    %62 = vector.broadcast %cst_34 : f32 to vector<160x64xf32>
    %63 = arith.cmpf oge, %61, %62 : vector<160x64xf32>
    %cst_35 = arith.constant 2.000000e-01 : f32
    %64 = vector.broadcast %cst_35 : f32 to vector<160x64xf32>
    %65 = arith.mulf %64, %61 : vector<160x64xf32>
    %66 = arith.select %63, %61, %65 : vector<160x64xi1>, vector<160x64xf32>
    %67 = vector.shape_cast %66 : vector<160x64xf32> to vector<10x16x64xf32>
    %68 = arith.truncf %67 : vector<10x16x64xf32> to vector<10x16x64xbf16>
    %c0_36 = arith.constant 0 : index
    %c1_37 = arith.constant 1 : index
    %c0_38 = arith.constant 0 : index
    %69 = vector.load %arg15[%c0_36, %c1_37, %c0_38] : memref<10x18x64xbf16, #tpu.memory_space<vmem>>, vector<10x16x64xbf16>
    tpu.vector_store %arg15[%c0_36, %c1_37, %c0_38], %68 {strides = array<i32>} : memref<10x18x64xbf16, #tpu.memory_space<vmem>>, vector<10x16x64xbf16>,
    %cst_39 = arith.constant 0.000000e+00 : bf16
    %70 = vector.broadcast %cst_39 : bf16 to vector<10x1x64xbf16>
    %c0_40 = arith.constant 0 : index
    %c0_41 = arith.constant 0 : index
    %c0_42 = arith.constant 0 : index
    %71 = vector.load %arg15[%c0_40, %c0_41, %c0_42] : memref<10x18x64xbf16, #tpu.memory_space<vmem>>, vector<10x1x64xbf16>
    tpu.vector_store %arg15[%c0_40, %c0_41, %c0_42], %70 {strides = array<i32>} : memref<10x18x64xbf16, #tpu.memory_space<vmem>>, vector<10x1x64xbf16>,
    %c0_43 = arith.constant 0 : index
    %c17_44 = arith.constant 17 : index
    %c0_45 = arith.constant 0 : index
    %72 = vector.load %arg15[%c0_43, %c17_44, %c0_45] : memref<10x18x64xbf16, #tpu.memory_space<vmem>>, vector<10x1x64xbf16>
    tpu.vector_store %arg15[%c0_43, %c17_44, %c0_45], %70 {strides = array<i32>} : memref<10x18x64xbf16, #tpu.memory_space<vmem>>, vector<10x1x64xbf16>,
    %c0_i32_46 = arith.constant 0 : i32
    %73 = arith.cmpi eq, %arg1, %c0_i32_46 : i32
    %74 = arith.extui %73 : i1 to i32
    %c0_i32_47 = arith.constant 0 : i32
    %75 = arith.cmpi ne, %74, %c0_i32_47 : i32
    scf.if %75 {
      %cst_81 = arith.constant 0.000000e+00 : bf16
      %129 = vector.broadcast %cst_81 : bf16 to vector<1x18x64xbf16>
      %c0_82 = arith.constant 0 : index
      %c0_83 = arith.constant 0 : index
      %c0_84 = arith.constant 0 : index
      %130 = vector.load %arg15[%c0_82, %c0_83, %c0_84] : memref<10x18x64xbf16, #tpu.memory_space<vmem>>, vector<1x18x64xbf16>
      tpu.vector_store %arg15[%c0_82, %c0_83, %c0_84], %129 {strides = array<i32>} : memref<10x18x64xbf16, #tpu.memory_space<vmem>>, vector<1x18x64xbf16>,
    } else {
    }
    %c1_i32_48 = arith.constant 1 : i32
    %76 = arith.cmpi eq, %arg1, %c1_i32_48 : i32
    %77 = arith.extui %76 : i1 to i32
    %c0_i32_49 = arith.constant 0 : i32
    %78 = arith.cmpi ne, %77, %c0_i32_49 : i32
    scf.if %78 {
      %cst_81 = arith.constant 0.000000e+00 : bf16
      %129 = vector.broadcast %cst_81 : bf16 to vector<1x18x64xbf16>
      %c9 = arith.constant 9 : index
      %c0_82 = arith.constant 0 : index
      %c0_83 = arith.constant 0 : index
      %130 = vector.load %arg15[%c9, %c0_82, %c0_83] : memref<10x18x64xbf16, #tpu.memory_space<vmem>>, vector<1x18x64xbf16>
      tpu.vector_store %arg15[%c9, %c0_82, %c0_83], %129 {strides = array<i32>} : memref<10x18x64xbf16, #tpu.memory_space<vmem>>, vector<1x18x64xbf16>,
    } else {
    }
    %c0_50 = arith.constant 0 : index
    %c0_51 = arith.constant 0 : index
    %c0_52 = arith.constant 0 : index
    %79 = vector.load %arg15[%c0_50, %c0_51, %c0_52] : memref<10x18x64xbf16, #tpu.memory_space<vmem>>, vector<10x18x64xbf16>
    %80 = vector.extract_strided_slice %79 {offsets = [0, 0, 0], sizes = [8, 16, 64], strides = [1, 1, 1]} : vector<10x18x64xbf16> to vector<8x16x64xbf16>
    %81 = vector.shape_cast %80 : vector<8x16x64xbf16> to vector<128x64xbf16>
    %82 = vector.extract_strided_slice %79 {offsets = [0, 1, 0], sizes = [8, 16, 64], strides = [1, 1, 1]} : vector<10x18x64xbf16> to vector<8x16x64xbf16>
    %83 = vector.shape_cast %82 : vector<8x16x64xbf16> to vector<128x64xbf16>
    %84 = tpu.concatenate %81, %83 in 1 : vector<128x64xbf16>, vector<128x64xbf16> -> vector<128x128xbf16>
    %c0_53 = arith.constant 0 : index
    %c0_54 = arith.constant 0 : index
    %85 = vector.load %arg16[%c0_53, %c0_54] : memref<160x640xbf16, #tpu.memory_space<vmem>>, vector<128x128xbf16>
    tpu.vector_store %arg16[%c0_53, %c0_54], %84 {strides = array<i32>} : memref<160x640xbf16, #tpu.memory_space<vmem>>, vector<128x128xbf16>,
    %86 = vector.extract_strided_slice %79 {offsets = [0, 2, 0], sizes = [8, 16, 64], strides = [1, 1, 1]} : vector<10x18x64xbf16> to vector<8x16x64xbf16>
    %87 = vector.shape_cast %86 : vector<8x16x64xbf16> to vector<128x64xbf16>
    %88 = vector.extract_strided_slice %79 {offsets = [1, 0, 0], sizes = [8, 16, 64], strides = [1, 1, 1]} : vector<10x18x64xbf16> to vector<8x16x64xbf16>
    %89 = vector.shape_cast %88 : vector<8x16x64xbf16> to vector<128x64xbf16>
    %90 = tpu.concatenate %87, %89 in 1 : vector<128x64xbf16>, vector<128x64xbf16> -> vector<128x128xbf16>
    %c0_55 = arith.constant 0 : index
    %c128_56 = arith.constant 128 : index
    %91 = vector.load %arg16[%c0_55, %c128_56] : memref<160x640xbf16, #tpu.memory_space<vmem>>, vector<128x128xbf16>
    tpu.vector_store %arg16[%c0_55, %c128_56], %90 {strides = array<i32>} : memref<160x640xbf16, #tpu.memory_space<vmem>>, vector<128x128xbf16>,
    %92 = vector.extract_strided_slice %79 {offsets = [1, 1, 0], sizes = [8, 16, 64], strides = [1, 1, 1]} : vector<10x18x64xbf16> to vector<8x16x64xbf16>
    %93 = vector.shape_cast %92 : vector<8x16x64xbf16> to vector<128x64xbf16>
    %94 = vector.extract_strided_slice %79 {offsets = [1, 2, 0], sizes = [8, 16, 64], strides = [1, 1, 1]} : vector<10x18x64xbf16> to vector<8x16x64xbf16>
    %95 = vector.shape_cast %94 : vector<8x16x64xbf16> to vector<128x64xbf16>
    %96 = tpu.concatenate %93, %95 in 1 : vector<128x64xbf16>, vector<128x64xbf16> -> vector<128x128xbf16>
    %c0_57 = arith.constant 0 : index
    %c256_58 = arith.constant 256 : index
    %97 = vector.load %arg16[%c0_57, %c256_58] : memref<160x640xbf16, #tpu.memory_space<vmem>>, vector<128x128xbf16>
    tpu.vector_store %arg16[%c0_57, %c256_58], %96 {strides = array<i32>} : memref<160x640xbf16, #tpu.memory_space<vmem>>, vector<128x128xbf16>,
    %98 = vector.extract_strided_slice %79 {offsets = [2, 0, 0], sizes = [8, 16, 64], strides = [1, 1, 1]} : vector<10x18x64xbf16> to vector<8x16x64xbf16>
    %99 = vector.shape_cast %98 : vector<8x16x64xbf16> to vector<128x64xbf16>
    %100 = vector.extract_strided_slice %79 {offsets = [2, 1, 0], sizes = [8, 16, 64], strides = [1, 1, 1]} : vector<10x18x64xbf16> to vector<8x16x64xbf16>
    %101 = vector.shape_cast %100 : vector<8x16x64xbf16> to vector<128x64xbf16>
    %102 = tpu.concatenate %99, %101 in 1 : vector<128x64xbf16>, vector<128x64xbf16> -> vector<128x128xbf16>
    %c0_59 = arith.constant 0 : index
    %c384_60 = arith.constant 384 : index
    %103 = vector.load %arg16[%c0_59, %c384_60] : memref<160x640xbf16, #tpu.memory_space<vmem>>, vector<128x128xbf16>
    tpu.vector_store %arg16[%c0_59, %c384_60], %102 {strides = array<i32>} : memref<160x640xbf16, #tpu.memory_space<vmem>>, vector<128x128xbf16>,
    %104 = vector.extract_strided_slice %25 {offsets = [2, 1, 0], sizes = [8, 16, 64], strides = [1, 1, 1]} : vector<12x18x64xbf16> to vector<8x16x64xbf16>
    %105 = vector.shape_cast %104 : vector<8x16x64xbf16> to vector<128x64xbf16>
    %106 = vector.extract_strided_slice %79 {offsets = [2, 2, 0], sizes = [8, 16, 64], strides = [1, 1, 1]} : vector<10x18x64xbf16> to vector<8x16x64xbf16>
    %107 = vector.shape_cast %106 : vector<8x16x64xbf16> to vector<128x64xbf16>
    %108 = tpu.concatenate %107, %105 in 1 : vector<128x64xbf16>, vector<128x64xbf16> -> vector<128x128xbf16>
    %c0_61 = arith.constant 0 : index
    %c512_62 = arith.constant 512 : index
    %109 = vector.load %arg16[%c0_61, %c512_62] : memref<160x640xbf16, #tpu.memory_space<vmem>>, vector<128x128xbf16>
    tpu.vector_store %arg16[%c0_61, %c512_62], %108 {strides = array<i32>} : memref<160x640xbf16, #tpu.memory_space<vmem>>, vector<128x128xbf16>,
    %c0_63 = arith.constant 0 : index
    %c0_64 = arith.constant 0 : index
    %110 = vector.load %arg16[%c0_63, %c0_64] : memref<160x640xbf16, #tpu.memory_space<vmem>>, vector<128x640xbf16>
    %c0_65 = arith.constant 0 : index
    %c0_66 = arith.constant 0 : index
    %111 = vector.load %arg10[%c0_65, %c0_66] : memref<640x64xbf16, #tpu.memory_space<vmem>>, vector<640x64xbf16>
    %cst_67 = arith.constant dense<0.000000e+00> : vector<128x64xf32>
    %112 = tpu.matmul %110, %111, %cst_67 {dimension_numbers = #tpu.dot_dimension_numbers<[1], [0], [0], [1], [0, 0, 1, 1], [], []>} : vector<128x640xbf16>, vector<640x64xbf16>, vector<128x64xf32> -> vector<128x64xf32>
    %c0_68 = arith.constant 0 : index
    %c0_69 = arith.constant 0 : index
    %113 = vector.load %arg11[%c0_68, %c0_69] : memref<1x64xf32, #tpu.memory_space<vmem>>, vector<1x64xf32>
    %114 = vector.broadcast %113 : vector<1x64xf32> to vector<128x64xf32>
    %115 = arith.addf %112, %114 : vector<128x64xf32>
    %cst_70 = arith.constant 0.000000e+00 : f32
    %116 = vector.broadcast %cst_70 : f32 to vector<128x64xf32>
    %117 = arith.cmpf oge, %115, %116 : vector<128x64xf32>
    %cst_71 = arith.constant 2.000000e-01 : f32
    %118 = vector.broadcast %cst_71 : f32 to vector<128x64xf32>
    %119 = arith.mulf %118, %115 : vector<128x64xf32>
    %120 = arith.select %117, %115, %119 : vector<128x64xi1>, vector<128x64xf32>
    %121 = vector.shape_cast %120 : vector<128x64xf32> to vector<8x16x64xf32>
    %122 = arith.truncf %121 : vector<8x16x64xf32> to vector<8x16x64xbf16>
    %c0_72 = arith.constant 0 : index
    %c0_73 = arith.constant 0 : index
    %c0_74 = arith.constant 0 : index
    %c0_75 = arith.constant 0 : index
    %123 = vector.load %arg12[%c0_72, %c0_73, %c0_74, %c0_75] : memref<1x8x16x64xbf16, #tpu.memory_space<vmem>>, vector<1x8x16x64xbf16>
    %124 = vector.shape_cast %123 : vector<1x8x16x64xbf16> to vector<8x16x64xbf16>
    %125 = vector.shape_cast %122 : vector<8x16x64xbf16> to vector<1x8x16x64xbf16>
    tpu.vector_store %arg12[%c0_72, %c0_73, %c0_74, %c0_75], %125 {strides = array<i32>} : memref<1x8x16x64xbf16, #tpu.memory_space<vmem>>, vector<1x8x16x64xbf16>,
    %cst_76 = arith.constant dense<0.000000e+00> : vector<64xf32>
    %126 = vector.multi_reduction <add>, %120, %cst_76 [0] : vector<128x64xf32> to vector<64xf32>
    %127 = vector.shape_cast %126 : vector<64xf32> to vector<1x1x1x64xf32>
    %c0_77 = arith.constant 0 : index
    %c0_78 = arith.constant 0 : index
    %c0_79 = arith.constant 0 : index
    %c0_80 = arith.constant 0 : index
    %128 = vector.load %arg13[%c0_77, %c0_78, %c0_79, %c0_80] : memref<1x1x1x64xf32, #tpu.memory_space<vmem>>, vector<1x1x1x64xf32>
    tpu.vector_store %arg13[%c0_77, %c0_78, %c0_79, %c0_80], %127 {strides = array<i32>} : memref<1x1x1x64xf32, #tpu.memory_space<vmem>>, vector<1x1x1x64xf32>,
    return
  }
  func.func @transform_0(%arg0: i32, %arg1: i32) -> (i32, i32, i32, i32) {
    %c0_i32 = arith.constant 0 : i32
    %c0_i32_0 = arith.constant 0 : i32
    %c0_i32_1 = arith.constant 0 : i32
    return %arg0, %arg1, %c0_i32, %c0_i32_0 : i32, i32, i32, i32
  }
  func.func @transform_1(%arg0: i32, %arg1: i32) -> (i32, i32, i32, i32) {
    %c8_i32 = arith.constant 8 : i32
    %0 = arith.muli %arg1, %c8_i32 : i32
    %c2_i32 = arith.constant 2 : i32
    %1 = arith.subi %0, %c2_i32 : i32
    %c0_i32 = arith.constant 0 : i32
    %2 = arith.maxsi %1, %c0_i32 : i32
    %c0_i32_0 = arith.constant 0 : i32
    %c0_i32_1 = arith.constant 0 : i32
    %c0_i32_2 = arith.constant 0 : i32
    return %arg0, %2, %c0_i32_0, %c0_i32_1 : i32, i32, i32, i32
  }
  func.func @transform_2(%arg0: i32, %arg1: i32) -> (i32, i32, i32, i32) {
    %c8_i32 = arith.constant 8 : i32
    %0 = arith.muli %arg1, %c8_i32 : i32
    %c1_i32 = arith.constant 1 : i32
    %1 = arith.subi %0, %c1_i32 : i32
    %c0_i32 = arith.constant 0 : i32
    %2 = arith.maxsi %1, %c0_i32 : i32
    %c0_i32_0 = arith.constant 0 : i32
    %c0_i32_1 = arith.constant 0 : i32
    %c0_i32_2 = arith.constant 0 : i32
    return %arg0, %2, %c0_i32_0, %c0_i32_1 : i32, i32, i32, i32
  }
  func.func @transform_3(%arg0: i32, %arg1: i32) -> (i32, i32, i32, i32) {
    %c1_i32 = arith.constant 1 : i32
    %0 = arith.addi %arg1, %c1_i32 : i32
    %c8_i32 = arith.constant 8 : i32
    %1 = arith.muli %0, %c8_i32 : i32
    %c15_i32 = arith.constant 15 : i32
    %2 = arith.minsi %1, %c15_i32 : i32
    %c0_i32 = arith.constant 0 : i32
    %c0_i32_0 = arith.constant 0 : i32
    %c0_i32_1 = arith.constant 0 : i32
    return %arg0, %2, %c0_i32, %c0_i32_0 : i32, i32, i32, i32
  }
  func.func @transform_4(%arg0: i32, %arg1: i32) -> (i32, i32, i32, i32) {
    %c1_i32 = arith.constant 1 : i32
    %0 = arith.addi %arg1, %c1_i32 : i32
    %c8_i32 = arith.constant 8 : i32
    %1 = arith.muli %0, %c8_i32 : i32
    %c1_i32_0 = arith.constant 1 : i32
    %2 = arith.addi %1, %c1_i32_0 : i32
    %c15_i32 = arith.constant 15 : i32
    %3 = arith.minsi %2, %c15_i32 : i32
    %c0_i32 = arith.constant 0 : i32
    %c0_i32_1 = arith.constant 0 : i32
    %c0_i32_2 = arith.constant 0 : i32
    return %arg0, %3, %c0_i32, %c0_i32_1 : i32, i32, i32, i32
  }
  func.func @transform_5(%arg0: i32, %arg1: i32) -> (i32, i32, i32) {
    %c0_i32 = arith.constant 0 : i32
    %c0_i32_0 = arith.constant 0 : i32
    %c0_i32_1 = arith.constant 0 : i32
    return %arg0, %c0_i32, %c0_i32_0 : i32, i32, i32
  }
  func.func @transform_6(%arg0: i32, %arg1: i32) -> (i32, i32) {
    %c0_i32 = arith.constant 0 : i32
    %c0_i32_0 = arith.constant 0 : i32
    %c0_i32_1 = arith.constant 0 : i32
    return %c0_i32, %c0_i32_0 : i32, i32
  }
  func.func @transform_7(%arg0: i32, %arg1: i32) -> (i32, i32) {
    %c0_i32 = arith.constant 0 : i32
    %c0_i32_0 = arith.constant 0 : i32
    %c0_i32_1 = arith.constant 0 : i32
    return %c0_i32, %c0_i32_0 : i32, i32
  }
  func.func @transform_8(%arg0: i32, %arg1: i32) -> (i32, i32) {
    %c0_i32 = arith.constant 0 : i32
    %c0_i32_0 = arith.constant 0 : i32
    %c0_i32_1 = arith.constant 0 : i32
    return %c0_i32, %c0_i32_0 : i32, i32
  }
  func.func @transform_9(%arg0: i32, %arg1: i32) -> (i32, i32) {
    %c0_i32 = arith.constant 0 : i32
    %c0_i32_0 = arith.constant 0 : i32
    %c0_i32_1 = arith.constant 0 : i32
    return %c0_i32, %c0_i32_0 : i32, i32
  }
  func.func @transform_10(%arg0: i32, %arg1: i32) -> (i32, i32, i32, i32) {
    %c0_i32 = arith.constant 0 : i32
    %c0_i32_0 = arith.constant 0 : i32
    %c0_i32_1 = arith.constant 0 : i32
    return %arg0, %arg1, %c0_i32, %c0_i32_0 : i32, i32, i32, i32
  }
  func.func @transform_11(%arg0: i32, %arg1: i32) -> (i32, i32, i32, i32) {
    %c0_i32 = arith.constant 0 : i32
    %c0_i32_0 = arith.constant 0 : i32
    %c0_i32_1 = arith.constant 0 : i32
    return %arg0, %arg1, %c0_i32, %c0_i32_0 : i32, i32, i32, i32
  }
}

module attributes {stable_mosaic.version = 11 : i64} {
  func.func @_conv3x3_kernel(%arg0: i32, %arg1: i32, %arg2: memref<1x8x16x64xbf16, #tpu.memory_space<vmem>>, %arg3: memref<1x1x16x64xbf16, #tpu.memory_space<vmem>>, %arg4: memref<1x1x16x64xbf16, #tpu.memory_space<vmem>>, %arg5: memref<1x1x64xf32, #tpu.memory_space<vmem>>, %arg6: memref<576x8xbf16, #tpu.memory_space<vmem>>, %arg7: memref<1x8xf32, #tpu.memory_space<vmem>>, %arg8: memref<1x8x16x8xf32, #tpu.memory_space<vmem>>, %arg9: memref<10x18x64xbf16, #tpu.memory_space<vmem>>) attributes {dimension_semantics = [#tpu.dimension_semantics<parallel>, #tpu.dimension_semantics<parallel>], iteration_bounds = array<i64: 2, 2>, scalar_prefetch = 0 : i64, scratch_operands = 1 : i64, tpu.core_type = #tpu.core_type<tc>, window_params = [{transform_indices = @transform_0, window_bounds = array<i64: 1, 8, 16, 64>}, {transform_indices = @transform_1, window_bounds = array<i64: 1, 1, 16, 64>}, {transform_indices = @transform_2, window_bounds = array<i64: 1, 1, 16, 64>}, {transform_indices = @transform_3, window_bounds = array<i64: 1, 1, 64>}, {pipeline_mode = #tpu.pipeline_mode<synchronous>, transform_indices = @transform_4, window_bounds = array<i64: 576, 8>}, {pipeline_mode = #tpu.pipeline_mode<synchronous>, transform_indices = @transform_5, window_bounds = array<i64: 1, 8>}, {transform_indices = @transform_6, window_bounds = array<i64: 1, 8, 16, 8>}]} {
    %c0 = arith.constant 0 : index
    %c0_0 = arith.constant 0 : index
    %c0_1 = arith.constant 0 : index
    %0 = vector.load %arg5[%c0, %c0_0, %c0_1] : memref<1x1x64xf32, #tpu.memory_space<vmem>>, vector<1x1x64xf32>
    %1 = vector.shape_cast %0 : vector<1x1x64xf32> to vector<1x64xf32>
    %c0_2 = arith.constant 0 : index
    %c0_3 = arith.constant 0 : index
    %c0_4 = arith.constant 0 : index
    %c0_5 = arith.constant 0 : index
    %2 = vector.load %arg2[%c0_2, %c0_3, %c0_4, %c0_5] : memref<1x8x16x64xbf16, #tpu.memory_space<vmem>>, vector<1x8x16x64xbf16>
    %3 = vector.shape_cast %2 : vector<1x8x16x64xbf16> to vector<8x16x64xbf16>
    %4 = arith.extf %3 : vector<8x16x64xbf16> to vector<8x16x64xf32>
    %5 = vector.shape_cast %1 : vector<1x64xf32> to vector<1x1x64xf32>
    %6 = vector.broadcast %5 : vector<1x1x64xf32> to vector<8x16x64xf32>
    %7 = arith.mulf %4, %6 : vector<8x16x64xf32>
    %8 = arith.truncf %7 : vector<8x16x64xf32> to vector<8x16x64xbf16>
    %c1 = arith.constant 1 : index
    %c1_6 = arith.constant 1 : index
    %c0_7 = arith.constant 0 : index
    %9 = vector.load %arg9[%c1, %c1_6, %c0_7] : memref<10x18x64xbf16, #tpu.memory_space<vmem>>, vector<8x16x64xbf16>
    tpu.vector_store %arg9[%c1, %c1_6, %c0_7], %8 {strides = array<i32>} : memref<10x18x64xbf16, #tpu.memory_space<vmem>>, vector<8x16x64xbf16>,
    %c0_i32 = arith.constant 0 : i32
    %10 = arith.cmpi eq, %arg1, %c0_i32 : i32
    %11 = arith.extui %10 : i1 to i32
    %c0_i32_8 = arith.constant 0 : i32
    %12 = arith.cmpi ne, %11, %c0_i32_8 : i32
    scf.if %12 {
      %cst_31 = arith.constant 0.000000e+00 : bf16
      %54 = vector.broadcast %cst_31 : bf16 to vector<1x16x64xbf16>
      %c0_32 = arith.constant 0 : index
      %c1_33 = arith.constant 1 : index
      %c0_34 = arith.constant 0 : index
      %55 = vector.load %arg9[%c0_32, %c1_33, %c0_34] : memref<10x18x64xbf16, #tpu.memory_space<vmem>>, vector<1x16x64xbf16>
      tpu.vector_store %arg9[%c0_32, %c1_33, %c0_34], %54 {strides = array<i32>} : memref<10x18x64xbf16, #tpu.memory_space<vmem>>, vector<1x16x64xbf16>,
    } else {
    }
    %c0_i32_9 = arith.constant 0 : i32
    %13 = arith.cmpi sgt, %arg1, %c0_i32_9 : i32
    %14 = arith.extui %13 : i1 to i32
    %c0_i32_10 = arith.constant 0 : i32
    %15 = arith.cmpi ne, %14, %c0_i32_10 : i32
    scf.if %15 {
      %c0_31 = arith.constant 0 : index
      %c0_32 = arith.constant 0 : index
      %c0_33 = arith.constant 0 : index
      %c0_34 = arith.constant 0 : index
      %54 = vector.load %arg3[%c0_31, %c0_32, %c0_33, %c0_34] : memref<1x1x16x64xbf16, #tpu.memory_space<vmem>>, vector<1x1x16x64xbf16>
      %55 = vector.shape_cast %54 : vector<1x1x16x64xbf16> to vector<1x16x64xbf16>
      %56 = arith.extf %55 : vector<1x16x64xbf16> to vector<1x16x64xf32>
      %57 = vector.shape_cast %1 : vector<1x64xf32> to vector<1x1x64xf32>
      %58 = vector.broadcast %57 : vector<1x1x64xf32> to vector<1x16x64xf32>
      %59 = arith.mulf %56, %58 : vector<1x16x64xf32>
      %60 = arith.truncf %59 : vector<1x16x64xf32> to vector<1x16x64xbf16>
      %c0_35 = arith.constant 0 : index
      %c1_36 = arith.constant 1 : index
      %c0_37 = arith.constant 0 : index
      %61 = vector.load %arg9[%c0_35, %c1_36, %c0_37] : memref<10x18x64xbf16, #tpu.memory_space<vmem>>, vector<1x16x64xbf16>
      tpu.vector_store %arg9[%c0_35, %c1_36, %c0_37], %60 {strides = array<i32>} : memref<10x18x64xbf16, #tpu.memory_space<vmem>>, vector<1x16x64xbf16>,
    } else {
    }
    %c1_i32 = arith.constant 1 : i32
    %16 = arith.cmpi eq, %arg1, %c1_i32 : i32
    %17 = arith.extui %16 : i1 to i32
    %c0_i32_11 = arith.constant 0 : i32
    %18 = arith.cmpi ne, %17, %c0_i32_11 : i32
    scf.if %18 {
      %cst_31 = arith.constant 0.000000e+00 : bf16
      %54 = vector.broadcast %cst_31 : bf16 to vector<1x16x64xbf16>
      %c9 = arith.constant 9 : index
      %c1_32 = arith.constant 1 : index
      %c0_33 = arith.constant 0 : index
      %55 = vector.load %arg9[%c9, %c1_32, %c0_33] : memref<10x18x64xbf16, #tpu.memory_space<vmem>>, vector<1x16x64xbf16>
      tpu.vector_store %arg9[%c9, %c1_32, %c0_33], %54 {strides = array<i32>} : memref<10x18x64xbf16, #tpu.memory_space<vmem>>, vector<1x16x64xbf16>,
    } else {
    }
    %c1_i32_12 = arith.constant 1 : i32
    %19 = arith.cmpi slt, %arg1, %c1_i32_12 : i32
    %20 = arith.extui %19 : i1 to i32
    %c0_i32_13 = arith.constant 0 : i32
    %21 = arith.cmpi ne, %20, %c0_i32_13 : i32
    scf.if %21 {
      %c0_31 = arith.constant 0 : index
      %c0_32 = arith.constant 0 : index
      %c0_33 = arith.constant 0 : index
      %c0_34 = arith.constant 0 : index
      %54 = vector.load %arg4[%c0_31, %c0_32, %c0_33, %c0_34] : memref<1x1x16x64xbf16, #tpu.memory_space<vmem>>, vector<1x1x16x64xbf16>
      %55 = vector.shape_cast %54 : vector<1x1x16x64xbf16> to vector<1x16x64xbf16>
      %56 = arith.extf %55 : vector<1x16x64xbf16> to vector<1x16x64xf32>
      %57 = vector.shape_cast %1 : vector<1x64xf32> to vector<1x1x64xf32>
      %58 = vector.broadcast %57 : vector<1x1x64xf32> to vector<1x16x64xf32>
      %59 = arith.mulf %56, %58 : vector<1x16x64xf32>
      %60 = arith.truncf %59 : vector<1x16x64xf32> to vector<1x16x64xbf16>
      %c9 = arith.constant 9 : index
      %c1_35 = arith.constant 1 : index
      %c0_36 = arith.constant 0 : index
      %61 = vector.load %arg9[%c9, %c1_35, %c0_36] : memref<10x18x64xbf16, #tpu.memory_space<vmem>>, vector<1x16x64xbf16>
      tpu.vector_store %arg9[%c9, %c1_35, %c0_36], %60 {strides = array<i32>} : memref<10x18x64xbf16, #tpu.memory_space<vmem>>, vector<1x16x64xbf16>,
    } else {
    }
    %cst = arith.constant 0.000000e+00 : bf16
    %22 = vector.broadcast %cst : bf16 to vector<10x1x64xbf16>
    %c0_14 = arith.constant 0 : index
    %c0_15 = arith.constant 0 : index
    %c0_16 = arith.constant 0 : index
    %23 = vector.load %arg9[%c0_14, %c0_15, %c0_16] : memref<10x18x64xbf16, #tpu.memory_space<vmem>>, vector<10x1x64xbf16>
    tpu.vector_store %arg9[%c0_14, %c0_15, %c0_16], %22 {strides = array<i32>} : memref<10x18x64xbf16, #tpu.memory_space<vmem>>, vector<10x1x64xbf16>,
    %c0_17 = arith.constant 0 : index
    %c17 = arith.constant 17 : index
    %c0_18 = arith.constant 0 : index
    %24 = vector.load %arg9[%c0_17, %c17, %c0_18] : memref<10x18x64xbf16, #tpu.memory_space<vmem>>, vector<10x1x64xbf16>
    tpu.vector_store %arg9[%c0_17, %c17, %c0_18], %22 {strides = array<i32>} : memref<10x18x64xbf16, #tpu.memory_space<vmem>>, vector<10x1x64xbf16>,
    %c0_19 = arith.constant 0 : index
    %c0_20 = arith.constant 0 : index
    %c0_21 = arith.constant 0 : index
    %25 = vector.load %arg9[%c0_19, %c0_20, %c0_21] : memref<10x18x64xbf16, #tpu.memory_space<vmem>>, vector<10x18x64xbf16>
    %26 = vector.extract_strided_slice %25 {offsets = [0, 0, 0], sizes = [8, 16, 64], strides = [1, 1, 1]} : vector<10x18x64xbf16> to vector<8x16x64xbf16>
    %27 = vector.shape_cast %26 : vector<8x16x64xbf16> to vector<128x64xbf16>
    %28 = vector.extract_strided_slice %25 {offsets = [0, 1, 0], sizes = [8, 16, 64], strides = [1, 1, 1]} : vector<10x18x64xbf16> to vector<8x16x64xbf16>
    %29 = vector.shape_cast %28 : vector<8x16x64xbf16> to vector<128x64xbf16>
    %30 = vector.extract_strided_slice %25 {offsets = [0, 2, 0], sizes = [8, 16, 64], strides = [1, 1, 1]} : vector<10x18x64xbf16> to vector<8x16x64xbf16>
    %31 = vector.shape_cast %30 : vector<8x16x64xbf16> to vector<128x64xbf16>
    %32 = vector.extract_strided_slice %25 {offsets = [1, 0, 0], sizes = [8, 16, 64], strides = [1, 1, 1]} : vector<10x18x64xbf16> to vector<8x16x64xbf16>
    %33 = vector.shape_cast %32 : vector<8x16x64xbf16> to vector<128x64xbf16>
    %34 = vector.extract_strided_slice %25 {offsets = [1, 1, 0], sizes = [8, 16, 64], strides = [1, 1, 1]} : vector<10x18x64xbf16> to vector<8x16x64xbf16>
    %35 = vector.shape_cast %34 : vector<8x16x64xbf16> to vector<128x64xbf16>
    %36 = vector.extract_strided_slice %25 {offsets = [1, 2, 0], sizes = [8, 16, 64], strides = [1, 1, 1]} : vector<10x18x64xbf16> to vector<8x16x64xbf16>
    %37 = vector.shape_cast %36 : vector<8x16x64xbf16> to vector<128x64xbf16>
    %38 = vector.extract_strided_slice %25 {offsets = [2, 0, 0], sizes = [8, 16, 64], strides = [1, 1, 1]} : vector<10x18x64xbf16> to vector<8x16x64xbf16>
    %39 = vector.shape_cast %38 : vector<8x16x64xbf16> to vector<128x64xbf16>
    %40 = vector.extract_strided_slice %25 {offsets = [2, 1, 0], sizes = [8, 16, 64], strides = [1, 1, 1]} : vector<10x18x64xbf16> to vector<8x16x64xbf16>
    %41 = vector.shape_cast %40 : vector<8x16x64xbf16> to vector<128x64xbf16>
    %42 = vector.extract_strided_slice %25 {offsets = [2, 2, 0], sizes = [8, 16, 64], strides = [1, 1, 1]} : vector<10x18x64xbf16> to vector<8x16x64xbf16>
    %43 = vector.shape_cast %42 : vector<8x16x64xbf16> to vector<128x64xbf16>
    %44 = tpu.concatenate %27, %29, %31, %33, %35, %37, %39, %41, %43 in 1 : vector<128x64xbf16>, vector<128x64xbf16>, vector<128x64xbf16>, vector<128x64xbf16>, vector<128x64xbf16>, vector<128x64xbf16>, vector<128x64xbf16>, vector<128x64xbf16>, vector<128x64xbf16> -> vector<128x576xbf16>
    %c0_22 = arith.constant 0 : index
    %c0_23 = arith.constant 0 : index
    %45 = vector.load %arg6[%c0_22, %c0_23] : memref<576x8xbf16, #tpu.memory_space<vmem>>, vector<576x8xbf16>
    %cst_24 = arith.constant dense<0.000000e+00> : vector<128x8xf32>
    %46 = tpu.matmul %44, %45, %cst_24 {dimension_numbers = #tpu.dot_dimension_numbers<[1], [0], [0], [1], [0, 0, 1, 1], [], []>} : vector<128x576xbf16>, vector<576x8xbf16>, vector<128x8xf32> -> vector<128x8xf32>
    %c0_25 = arith.constant 0 : index
    %c0_26 = arith.constant 0 : index
    %47 = vector.load %arg7[%c0_25, %c0_26] : memref<1x8xf32, #tpu.memory_space<vmem>>, vector<1x8xf32>
    %48 = vector.broadcast %47 : vector<1x8xf32> to vector<128x8xf32>
    %49 = arith.addf %46, %48 : vector<128x8xf32>
    %50 = vector.shape_cast %49 : vector<128x8xf32> to vector<8x16x8xf32>
    %c0_27 = arith.constant 0 : index
    %c0_28 = arith.constant 0 : index
    %c0_29 = arith.constant 0 : index
    %c0_30 = arith.constant 0 : index
    %51 = vector.load %arg8[%c0_27, %c0_28, %c0_29, %c0_30] : memref<1x8x16x8xf32, #tpu.memory_space<vmem>>, vector<1x8x16x8xf32>
    %52 = vector.shape_cast %51 : vector<1x8x16x8xf32> to vector<8x16x8xf32>
    %53 = vector.shape_cast %50 : vector<8x16x8xf32> to vector<1x8x16x8xf32>
    tpu.vector_store %arg8[%c0_27, %c0_28, %c0_29, %c0_30], %53 {strides = array<i32>} : memref<1x8x16x8xf32, #tpu.memory_space<vmem>>, vector<1x8x16x8xf32>,
    return
  }
  func.func @transform_0(%arg0: i32, %arg1: i32) -> (i32, i32, i32, i32) {
    %c0_i32 = arith.constant 0 : i32
    %c0_i32_0 = arith.constant 0 : i32
    %c0_i32_1 = arith.constant 0 : i32
    return %arg0, %arg1, %c0_i32, %c0_i32_0 : i32, i32, i32, i32
  }
  func.func @transform_1(%arg0: i32, %arg1: i32) -> (i32, i32, i32, i32) {
    %c8_i32 = arith.constant 8 : i32
    %0 = arith.muli %arg1, %c8_i32 : i32
    %c1_i32 = arith.constant 1 : i32
    %1 = arith.subi %0, %c1_i32 : i32
    %c0_i32 = arith.constant 0 : i32
    %2 = arith.maxsi %1, %c0_i32 : i32
    %c0_i32_0 = arith.constant 0 : i32
    %c0_i32_1 = arith.constant 0 : i32
    %c0_i32_2 = arith.constant 0 : i32
    return %arg0, %2, %c0_i32_0, %c0_i32_1 : i32, i32, i32, i32
  }
  func.func @transform_2(%arg0: i32, %arg1: i32) -> (i32, i32, i32, i32) {
    %c1_i32 = arith.constant 1 : i32
    %0 = arith.addi %arg1, %c1_i32 : i32
    %c8_i32 = arith.constant 8 : i32
    %1 = arith.muli %0, %c8_i32 : i32
    %c15_i32 = arith.constant 15 : i32
    %2 = arith.minsi %1, %c15_i32 : i32
    %c0_i32 = arith.constant 0 : i32
    %c0_i32_0 = arith.constant 0 : i32
    %c0_i32_1 = arith.constant 0 : i32
    return %arg0, %2, %c0_i32, %c0_i32_0 : i32, i32, i32, i32
  }
  func.func @transform_3(%arg0: i32, %arg1: i32) -> (i32, i32, i32) {
    %c0_i32 = arith.constant 0 : i32
    %c0_i32_0 = arith.constant 0 : i32
    %c0_i32_1 = arith.constant 0 : i32
    return %arg0, %c0_i32, %c0_i32_0 : i32, i32, i32
  }
  func.func @transform_4(%arg0: i32, %arg1: i32) -> (i32, i32) {
    %c0_i32 = arith.constant 0 : i32
    %c0_i32_0 = arith.constant 0 : i32
    %c0_i32_1 = arith.constant 0 : i32
    return %c0_i32, %c0_i32_0 : i32, i32
  }
  func.func @transform_5(%arg0: i32, %arg1: i32) -> (i32, i32) {
    %c0_i32 = arith.constant 0 : i32
    %c0_i32_0 = arith.constant 0 : i32
    %c0_i32_1 = arith.constant 0 : i32
    return %c0_i32, %c0_i32_0 : i32, i32
  }
  func.func @transform_6(%arg0: i32, %arg1: i32) -> (i32, i32, i32, i32) {
    %c0_i32 = arith.constant 0 : i32
    %c0_i32_0 = arith.constant 0 : i32
    %c0_i32_1 = arith.constant 0 : i32
    return %arg0, %arg1, %c0_i32, %c0_i32_0 : i32, i32, i32, i32
  }
}

</mosaic_0001>

<llo_original>
// kernel: coarse_denoise_encoder.8
$region0: #{coarse_denoise_encoder.8}
  #allocation0 [shape = 'u32[]', space=smem, size = 0x4, offset = 0x4, fixed_abs, tag = 'smem constant byte address 0x4 - core index']
  #allocation1 [shape = 'u32[72,128]{1,0:T(1,128)}', space=vmem, size = 0x9000, scoped, tag = 'internal scratch']
  #allocation2 [shape = 'bf16[10,18,8]{2,1,0:T(8,128)(2,1)}', space=vmem, size = 0xf000, scoped, tag = 'scratch operand']
  %s0 = inlined_call_operand.vmem [shape: bf16[2,16,16,8], index: 0, kind: input, shape index: {}, may-alias: {0,1,2}]
  %s1 = inlined_call_operand.vmem [shape: bf16[2,16,16,8], index: 1, kind: input, shape index: {}, may-alias: {0,1,2}]
  %s2 = inlined_call_operand.vmem [shape: bf16[2,16,16,8], index: 2, kind: input, shape index: {}, may-alias: {0,1,2}]
  %s3 = inlined_call_operand.vmem [shape: f32[2,1,8], index: 3, kind: input, shape index: {}]
  %s4 = inlined_call_operand.vmem [shape: bf16[72,64], index: 4, kind: input, shape index: {}]
  %s5 = inlined_call_operand.vmem [shape: f32[1,64], index: 5, kind: input, shape index: {}]
  %s6 = inlined_call_operand.vmem [shape: bf16[2,16,16,64], index: 6, kind: output, shape index: {}]
  %s7 = sld [smem:[#allocation0]]
  $region73: #{coarse_denoise_encoder.8} parent=0
    _
  %s9 = ssub.s32 1, %s7
  %s10 = scalar_select 0, %s9, %s7
  loop: start=0, step=1, limit=6
  $region2: #{coarse_denoise_encoder.8} parent=0 // loop_pre_header
    _
  $region3: #{coarse_denoise_encoder.8} parent=0 // loop_header
    %s12 = sphi 0, %s16
    %p13 = scmp.ge.s32.totalorder %s12, 6
    %s19 = sphi 0, %s31
    %s20 = sphi 0, %s27
    %s21 = sphi 0, %s19
    %s22 = sphi 0, %s20
    %s23 = sphi 0, %s21
    %s24 = sphi 0, %s22
    %s36 = sphi 0, %s38
    %s39 = sphi 0, %s36
    %s40 = sphi 0, %s39
    %s56 = sphi 0, %s40
    %s72 = sphi 0, %s74
    %s75 = sphi 0, %s72
    %s76 = sphi 0, %s75
    %s92 = sphi 0, %s76
    %s108 = sphi 0, %s110
    %s111 = sphi 0, %s108
    %s112 = sphi 0, %s111
    %s128 = sphi 0, %s112
    %s134 = sphi 0, %s136
    %s137 = sphi 0, %s134
    %s138 = sphi 0, %s137
    %s154 = sphi 0, %s138
    %s158 = sphi 0, %s158
    %s160 = sphi 0, %s158
    %s161 = sphi 0, %s160
    %s175 = sphi 0, %s161
    %s179 = sphi 0, %s179
    %s181 = sphi 0, %s179
    %s182 = sphi 0, %s181
    %s196 = sphi 0, %s182
    %s204 = sphi 0, %s206
    %s207 = sphi 0, %s204
    %s208 = sphi 0, %s207
    %s224 = sphi 0, %s208
  $region4: #{coarse_denoise_encoder.8} parent=0 // loop_header_branch
    %15 = sbr.rel (%p13) target = $region8
  $region5: #{coarse_denoise_encoder.8} parent=0 // loop_body
    %s17 = ssub.s32 %s12, 1
    %s18 = ssub.s32 %s12, 2
    %s25 = sadd.s32 1, %s20
    %p26 = scmp.ge.s32.totalorder %s25, 2
    %s27 = scalar_select %p26, 0, %s25
    %s28 = sadd.s32 1, %s19
    %s29 = scalar_select %p26, %s28, %s19
    %p30 = scmp.ge.s32.totalorder %s29, 2
    %s31 = scalar_select %p30, 0, %s29
    %s32 = ssub.s32 %s19, %s31
    %s33 = ssub.s32 %s20, %s27
    %s34 = sor.u32 %s32, %s33
    %p35 = scmp.eq.s32.totalorder %s34, 0
    %s37 = sadd.s32 %s36, 1
    %s38 = scalar_select %p35, %s36, %s37
    %p41 = pneg %p35
    %p42 = scmp.eq.s32.totalorder %s12, 3
    %p43 = por %p41, %p42
    %p44 = scmp.ne.s32.totalorder %s36, %s39
    %p45 = scmp.eq.s32.totalorder %s12, 0
    %p46 = por %p44, %p45
    %p47 = scmp.ne.s32.totalorder %s36, %s39
    %p48 = scmp.eq.s32.totalorder %s17, 3
    %p49 = por %p47, %p48
    %p50 = scmp.ne.s32.totalorder %s39, %s40
    %p51 = scmp.eq.s32.totalorder %s17, 0
    %p52 = por %p50, %p51
    %p53 = scmp.ne.s32.totalorder %s39, %s40
    %p54 = scmp.eq.s32.totalorder %s18, 3
    %p55 = por %p53, %p54
    %p57 = scmp.ne.s32.totalorder %s40, %s56
    %p58 = scmp.eq.s32.totalorder %s18, 0
    %p59 = por %p57, %p58
    %s60 = smul.u32 %s20, 8
    %s61 = ssub.s32 %s60, 1
    %p62 = scmp.gt.s32.totalorder %s61, 0
    %s63 = scalar_select %p62, %s61, 0
    %s64 = smul.u32 %s27, 8
    %s65 = ssub.s32 %s64, 1
    %p66 = scmp.gt.s32.totalorder %s65, 0
    %s67 = scalar_select %p66, %s65, 0
    %s68 = ssub.s32 %s19, %s31
    %s69 = ssub.s32 %s63, %s67
    %s70 = sor.u32 %s68, %s69
    %p71 = scmp.eq.s32.totalorder %s70, 0
    %s73 = sadd.s32 %s72, 1
    %s74 = scalar_select %p71, %s72, %s73
    %p77 = pneg %p71
    %p78 = scmp.eq.s32.totalorder %s12, 3
    %p79 = por %p77, %p78
    %p80 = scmp.ne.s32.totalorder %s72, %s75
    %p81 = scmp.eq.s32.totalorder %s12, 0
    %p82 = por %p80, %p81
    %p83 = scmp.ne.s32.totalorder %s72, %s75
    %p84 = scmp.eq.s32.totalorder %s17, 3
    %p85 = por %p83, %p84
    %p86 = scmp.ne.s32.totalorder %s75, %s76
    %p87 = scmp.eq.s32.totalorder %s17, 0
    %p88 = por %p86, %p87
    %p89 = scmp.ne.s32.totalorder %s75, %s76
    %p90 = scmp.eq.s32.totalorder %s18, 3
    %p91 = por %p89, %p90
    %p93 = scmp.ne.s32.totalorder %s76, %s92
    %p94 = scmp.eq.s32.totalorder %s18, 0
    %p95 = por %p93, %p94
    %s96 = sadd.s32 %s20, 1
    %s97 = smul.u32 %s96, 8
    %p98 = scmp.lt.s32.totalorder %s97, 15
    %s99 = scalar_select %p98, %s97, 15
    %s100 = sadd.s32 %s27, 1
    %s101 = smul.u32 %s100, 8
    %p102 = scmp.lt.s32.totalorder %s101, 15
    %s103 = scalar_select %p102, %s101, 15
    %s104 = ssub.s32 %s19, %s31
    %s105 = ssub.s32 %s99, %s103
    %s106 = sor.u32 %s104, %s105
    %p107 = scmp.eq.s32.totalorder %s106, 0
    %s109 = sadd.s32 %s108, 1
    %s110 = scalar_select %p107, %s108, %s109
    %p113 = pneg %p107
    %p114 = scmp.eq.s32.totalorder %s12, 3
    %p115 = por %p113, %p114
    %p116 = scmp.ne.s32.totalorder %s108, %s111
    %p117 = scmp.eq.s32.totalorder %s12, 0
    %p118 = por %p116, %p117
    %p119 = scmp.ne.s32.totalorder %s108, %s111
    %p120 = scmp.eq.s32.totalorder %s17, 3
    %p121 = por %p119, %p120
    %p122 = scmp.ne.s32.totalorder %s111, %s112
    %p123 = scmp.eq.s32.totalorder %s17, 0
    %p124 = por %p122, %p123
    %p125 = scmp.ne.s32.totalorder %s111, %s112
    %p126 = scmp.eq.s32.totalorder %s18, 3
    %p127 = por %p125, %p126
    %p129 = scmp.ne.s32.totalorder %s112, %s128
    %p130 = scmp.eq.s32.totalorder %s18, 0
    %p131 = por %p129, %p130
    %s132 = ssub.s32 %s19, %s31
    %p133 = scmp.eq.s32.totalorder %s132, 0
    %s135 = sadd.s32 %s134, 1
    %s136 = scalar_select %p133, %s134, %s135
    %p139 = pneg %p133
    %p140 = scmp.eq.s32.totalorder %s12, 3
    %p141 = por %p139, %p140
    %p142 = scmp.ne.s32.totalorder %s134, %s137
    %p143 = scmp.eq.s32.totalorder %s12, 0
    %p144 = por %p142, %p143
    %p145 = scmp.ne.s32.totalorder %s134, %s137
    %p146 = scmp.eq.s32.totalorder %s17, 3
    %p147 = por %p145, %p146
    %p148 = scmp.ne.s32.totalorder %s137, %s138
    %p149 = scmp.eq.s32.totalorder %s17, 0
    %p150 = por %p148, %p149
    %p151 = scmp.ne.s32.totalorder %s137, %s138
    %p152 = scmp.eq.s32.totalorder %s18, 3
    %p153 = por %p151, %p152
    %p155 = scmp.ne.s32.totalorder %s138, %s154
    %p156 = scmp.eq.s32.totalorder %s18, 0
    %p157 = por %p155, %p156
    %s159 = sadd.s32 %s158, 1
    %p162 = scmp.eq.s32.totalorder %s12, 3
    %p163 = scmp.ne.s32.totalorder %s158, %s160
    %p164 = scmp.eq.s32.totalorder %s12, 0
    %p165 = por %p163, %p164
    %p166 = scmp.ne.s32.totalorder %s158, %s160
    %p167 = scmp.eq.s32.totalorder %s17, 3
    %p168 = por %p166, %p167
    %p169 = scmp.ne.s32.totalorder %s160, %s161
    %p170 = scmp.eq.s32.totalorder %s17, 0
    %p171 = por %p169, %p170
    %p172 = scmp.ne.s32.totalorder %s160, %s161
    %p173 = scmp.eq.s32.totalorder %s18, 3
    %p174 = por %p172, %p173
    %p176 = scmp.ne.s32.totalorder %s161, %s175
    %p177 = scmp.eq.s32.totalorder %s18, 0
    %p178 = por %p176, %p177
    %s180 = sadd.s32 %s179, 1
    %p183 = scmp.eq.s32.totalorder %s12, 3
    %p184 = scmp.ne.s32.totalorder %s179, %s181
    %p185 = scmp.eq.s32.totalorder %s12, 0
    %p186 = por %p184, %p185
    %p187 = scmp.ne.s32.totalorder %s179, %s181
    %p188 = scmp.eq.s32.totalorder %s17, 3
    %p189 = por %p187, %p188
    %p190 = scmp.ne.s32.totalorder %s181, %s182
    %p191 = scmp.eq.s32.totalorder %s17, 0
    %p192 = por %p190, %p191
    %p193 = scmp.ne.s32.totalorder %s181, %s182
    %p194 = scmp.eq.s32.totalorder %s18, 3
    %p195 = por %p193, %p194
    %p197 = scmp.ne.s32.totalorder %s182, %s196
    %p198 = scmp.eq.s32.totalorder %s18, 0
    %p199 = por %p197, %p198
    %s200 = ssub.s32 %s19, %s31
    %s201 = ssub.s32 %s20, %s27
    %s202 = sor.u32 %s200, %s201
    %p203 = scmp.eq.s32.totalorder %s202, 0
    %s205 = sadd.s32 %s204, 1
    %s206 = scalar_select %p203, %s204, %s205
    %p209 = pneg %p203
    %p210 = scmp.eq.s32.totalorder %s12, 3
    %p211 = por %p209, %p210
    %p212 = scmp.ne.s32.totalorder %s204, %s207
    %p213 = scmp.eq.s32.totalorder %s12, 0
    %p214 = por %p212, %p213
    %p215 = scmp.ne.s32.totalorder %s204, %s207
    %p216 = scmp.eq.s32.totalorder %s17, 3
    %p217 = por %p215, %p216
    %p218 = scmp.ne.s32.totalorder %s207, %s208
    %p219 = scmp.eq.s32.totalorder %s17, 0
    %p220 = por %p218, %p219
    %p221 = scmp.ne.s32.totalorder %s207, %s208
    %p222 = scmp.eq.s32.totalorder %s18, 3
    %p223 = por %p221, %p222
    %p225 = scmp.ne.s32.totalorder %s208, %s224
    %p226 = scmp.eq.s32.totalorder %s18, 0
    %p227 = por %p225, %p226
    %p228 = scmp.le.s32.totalorder 1, %s12
    %p229 = scmp.lt.s32.totalorder %s12, 5
    %p230 = pnand %p228, %p229
    %p231 = pneg %p230
    // Predicated region
    $region9: #{coarse_denoise_encoder.8} parent=5 // pred_check
      _
    $region10: #{coarse_denoise_encoder.8} parent=5 // pred_check_branch
      %233 = sbr.rel (%p230) target = $region12
    $region11: #{coarse_denoise_encoder.8} parent=5 // pred_region
      %s234 = ssub.s32 %s12, 1
      // Predicated region
      $region13: #{coarse_denoise_encoder.8} parent=11 // pred_check
        %p235 = pneg %p171
      $region14: #{coarse_denoise_encoder.8} parent=11 // pred_check_branch
        %237 = sbr.rel (%p235) target = $region16
      $region15: #{coarse_denoise_encoder.8} parent=11 // pred_region
        _
      $region16: #{coarse_denoise_encoder.8} parent=11 // pred_fallthru
        _
      // Predicated region
      $region17: #{coarse_denoise_encoder.8} parent=11 // pred_check
        %p238 = pneg %p192
      $region18: #{coarse_denoise_encoder.8} parent=11 // pred_check_branch
        %240 = sbr.rel (%p238) target = $region20
      $region19: #{coarse_denoise_encoder.8} parent=11 // pred_region
        _
      $region20: #{coarse_denoise_encoder.8} parent=11 // pred_fallthru
        _
    $region12: #{coarse_denoise_encoder.8} parent=5 // pred_fallthru
      _
    %p241 = scmp.lt.s32.totalorder %s12, 4
    // Predicated region
    $region21: #{coarse_denoise_encoder.8} parent=5 // pred_check
      %p242 = pneg %p241
    $region22: #{coarse_denoise_encoder.8} parent=5 // pred_check_branch
      %244 = sbr.rel (%p242) target = $region24
    $region23: #{coarse_denoise_encoder.8} parent=5 // pred_region
      // Predicated region
      $region25: #{coarse_denoise_encoder.8} parent=23 // pred_check
        %p245 = pneg %p46
      $region26: #{coarse_denoise_encoder.8} parent=23 // pred_check_branch
        %247 = sbr.rel (%p245) target = $region28
      $region27: #{coarse_denoise_encoder.8} parent=23 // pred_region
        %s248 = smul.u32 8, %s20
        %p249 = scmp.lt.s32.totalorder %s19, 1
        %s250 = scalar_select %p249, %s19, 1
        %p251 = scmp.lt.s32.totalorder %s248, 15
        %s252 = scalar_select %p251, %s248, 15
        %s253 = smul.addr %s252, 2
        %s254 = smul.addr %s250, 32
        %s255 = sadd.s32 %s253, %s254
        %s256 = smul.addr %s255, 4
        %s257 = scalar_lea.vmem %s0, %s256
        %s258 = smul.u32 8, %s20
      $region28: #{coarse_denoise_encoder.8} parent=23 // pred_fallthru
        _
      // Predicated region
      $region29: #{coarse_denoise_encoder.8} parent=23 // pred_check
        %p259 = pneg %p82
      $region30: #{coarse_denoise_encoder.8} parent=23 // pred_check_branch
        %261 = sbr.rel (%p259) target = $region32
      $region31: #{coarse_denoise_encoder.8} parent=23 // pred_region
        %s262 = smul.u32 %s20, 8
        %s263 = ssub.s32 %s262, 1
        %p264 = scmp.gt.s32.totalorder %s263, 0
        %s265 = scalar_select %p264, %s263, 0
        %p266 = scmp.lt.s32.totalorder %s19, 1
        %s267 = scalar_select %p266, %s19, 1
        %p268 = scmp.lt.s32.totalorder %s265, 15
        %s269 = scalar_select %p268, %s265, 15
        %s270 = smul.addr %s269, 2
        %s271 = smul.addr %s267, 32
        %s272 = sadd.s32 %s270, %s271
        %s273 = smul.addr %s272, 4
        %s274 = scalar_lea.vmem %s1, %s273
        %s275 = smul.u32 %s20, 8
        %s276 = ssub.s32 %s275, 1
        %p277 = scmp.gt.s32.totalorder %s276, 0
        %s278 = scalar_select %p277, %s276, 0
      $region32: #{coarse_denoise_encoder.8} parent=23 // pred_fallthru
        _
      // Predicated region
      $region33: #{coarse_denoise_encoder.8} parent=23 // pred_check
        %p279 = pneg %p118
      $region34: #{coarse_denoise_encoder.8} parent=23 // pred_check_branch
        %281 = sbr.rel (%p279) target = $region36
      $region35: #{coarse_denoise_encoder.8} parent=23 // pred_region
        %s282 = sadd.s32 %s20, 1
        %s283 = smul.u32 %s282, 8
        %p284 = scmp.lt.s32.totalorder %s283, 15
        %s285 = scalar_select %p284, %s283, 15
        %p286 = scmp.lt.s32.totalorder %s19, 1
        %s287 = scalar_select %p286, %s19, 1
        %p288 = scmp.lt.s32.totalorder %s285, 15
        %s289 = scalar_select %p288, %s285, 15
        %s290 = smul.addr %s289, 2
        %s291 = smul.addr %s287, 32
        %s292 = sadd.s32 %s290, %s291
        %s293 = smul.addr %s292, 4
        %s294 = scalar_lea.vmem %s2, %s293
        %s295 = sadd.s32 %s20, 1
        %s296 = smul.u32 %s295, 8
        %p297 = scmp.lt.s32.totalorder %s296, 15
        %s298 = scalar_select %p297, %s296, 15
      $region36: #{coarse_denoise_encoder.8} parent=23 // pred_fallthru
        _
      // Predicated region
      $region37: #{coarse_denoise_encoder.8} parent=23 // pred_check
        %p299 = pneg %p144
      $region38: #{coarse_denoise_encoder.8} parent=23 // pred_check_branch
        %301 = sbr.rel (%p299) target = $region40
      $region39: #{coarse_denoise_encoder.8} parent=23 // pred_region
        %p302 = scmp.lt.s32.totalorder %s19, 1
        %s303 = scalar_select %p302, %s19, 1
        %s304 = scalar_lea.vmem %s3, %s303
      $region40: #{coarse_denoise_encoder.8} parent=23 // pred_fallthru
        _
    $region24: #{coarse_denoise_encoder.8} parent=5 // pred_fallthru
      _
    %p305 = scmp.le.s32.totalorder 1, %s12
    %p306 = scmp.lt.s32.totalorder %s12, 5
    %p307 = pnand %p305, %p306
    %p308 = pneg %p307
    // Predicated region
    $region41: #{coarse_denoise_encoder.8} parent=5 // pred_check
      _
    $region42: #{coarse_denoise_encoder.8} parent=5 // pred_check_branch
      %310 = sbr.rel (%p307) target = $region44
    $region43: #{coarse_denoise_encoder.8} parent=5 // pred_region
      %s311 = ssub.s32 %s12, 1
      %s312 = smul.u32 8, %s22
      %p313 = scmp.lt.s32.totalorder %s21, 1
      %s314 = scalar_select %p313, %s21, 1
      %p315 = scmp.lt.s32.totalorder %s312, 15
      %s316 = scalar_select %p315, %s312, 15
      %s317 = smul.addr %s316, 2
      %s318 = smul.addr %s314, 32
      %s319 = sadd.s32 %s317, %s318
      %s320 = smul.addr %s319, 4
      %s321 = scalar_lea.vmem %s0, %s320
      %p322 = pneg %p52
      %p323 = pneg %p49
      %s324 = smul.u32 %s22, 8
      %s325 = ssub.s32 %s324, 1
      %p326 = scmp.gt.s32.totalorder %s325, 0
      %s327 = scalar_select %p326, %s325, 0
      %p328 = scmp.lt.s32.totalorder %s21, 1
      %s329 = scalar_select %p328, %s21, 1
      %p330 = scmp.lt.s32.totalorder %s327, 15
      %s331 = scalar_select %p330, %s327, 15
      %s332 = smul.addr %s331, 2
      %s333 = smul.addr %s329, 32
      %s334 = sadd.s32 %s332, %s333
      %s335 = smul.addr %s334, 4
      %s336 = scalar_lea.vmem %s1, %s335
      %p337 = pneg %p88
      %p338 = pneg %p85
      %s339 = sadd.s32 %s22, 1
      %s340 = smul.u32 %s339, 8
      %p341 = scmp.lt.s32.totalorder %s340, 15
      %s342 = scalar_select %p341, %s340, 15
      %p343 = scmp.lt.s32.totalorder %s21, 1
      %s344 = scalar_select %p343, %s21, 1
      %p345 = scmp.lt.s32.totalorder %s342, 15
      %s346 = scalar_select %p345, %s342, 15
      %s347 = smul.addr %s346, 2
      %s348 = smul.addr %s344, 32
      %s349 = sadd.s32 %s347, %s348
      %s350 = smul.addr %s349, 4
      %s351 = scalar_lea.vmem %s2, %s350
      %p352 = pneg %p124
      %p353 = pneg %p121
      %p354 = scmp.lt.s32.totalorder %s21, 1
      %s355 = scalar_select %p354, %s21, 1
      %s356 = scalar_lea.vmem %s3, %s355
      %p357 = pneg %p150
      %p358 = pneg %p147
      %p359 = pneg %p171
      %p360 = pneg %p168
      %p361 = pneg %p192
      %p362 = pneg %p189
      %p363 = pneg %p220
      %p364 = pneg %p217
      %s365 = smul.u32 8, %s22
      %p366 = scmp.lt.s32.totalorder %s21, 1
      %s367 = scalar_select %p366, %s21, 1
      %p368 = scmp.lt.s32.totalorder %s365, 15
      %s369 = scalar_select %p368, %s365, 15
      %s370 = smul.addr %s369, 2
      %s371 = smul.addr %s367, 32
      %s372 = sadd.s32 %s370, %s371
      %s373 = smul.addr %s372, 4
      %s374 = scalar_lea.vmem %s6, %s373
      %s375 = smul.u32 8, %s22
      %p376 = scmp.lt.s32.totalorder %s21, 1
      %s377 = scalar_select %p376, %s21, 1
      %p378 = scmp.lt.s32.totalorder %s375, 15
      %s379 = scalar_select %p378, %s375, 15
      %s380 = smul.addr %s379, 2
      %s381 = smul.addr %s377, 32
      %s382 = sadd.s32 %s380, %s381
      %s383 = smul.addr %s382, 4
      %s384 = scalar_lea.vmem %s0, %s383
      %s385 = smul.u32 8, %s22
      %s386 = smul.u32 %s22, 8
      %s387 = ssub.s32 %s386, 1
      %p388 = scmp.gt.s32.totalorder %s387, 0
      %s389 = scalar_select %p388, %s387, 0
      %p390 = scmp.lt.s32.totalorder %s21, 1
      %s391 = scalar_select %p390, %s21, 1
      %p392 = scmp.lt.s32.totalorder %s389, 15
      %s393 = scalar_select %p392, %s389, 15
      %s394 = smul.addr %s393, 2
      %s395 = smul.addr %s391, 32
      %s396 = sadd.s32 %s394, %s395
      %s397 = smul.addr %s396, 4
      %s398 = scalar_lea.vmem %s1, %s397
      %s399 = smul.u32 %s22, 8
      %s400 = ssub.s32 %s399, 1
      %p401 = scmp.gt.s32.totalorder %s400, 0
      %s402 = scalar_select %p401, %s400, 0
      %s403 = sadd.s32 %s22, 1
      %s404 = smul.u32 %s403, 8
      %p405 = scmp.lt.s32.totalorder %s404, 15
      %s406 = scalar_select %p405, %s404, 15
      %p407 = scmp.lt.s32.totalorder %s21, 1
      %s408 = scalar_select %p407, %s21, 1
      %p409 = scmp.lt.s32.totalorder %s406, 15
      %s410 = scalar_select %p409, %s406, 15
      %s411 = smul.addr %s410, 2
      %s412 = smul.addr %s408, 32
      %s413 = sadd.s32 %s411, %s412
      %s414 = smul.addr %s413, 4
      %s415 = scalar_lea.vmem %s2, %s414
      %s416 = sadd.s32 %s22, 1
      %s417 = smul.u32 %s416, 8
      %p418 = scmp.lt.s32.totalorder %s417, 15
      %s419 = scalar_select %p418, %s417, 15
      %p420 = scmp.lt.s32.totalorder %s21, 1
      %s421 = scalar_select %p420, %s21, 1
      %s422 = scalar_lea.vmem %s3, %s421
      %s423 = smul.u32 8, %s22
      %p424 = scmp.lt.s32.totalorder %s21, 1
      %s425 = scalar_select %p424, %s21, 1
      %p426 = scmp.lt.s32.totalorder %s423, 15
      %s427 = scalar_select %p426, %s423, 15
      %s428 = smul.addr %s427, 2
      %s429 = smul.addr %s425, 32
      %s430 = sadd.s32 %s428, %s429
      %s431 = smul.addr %s430, 4
      %s432 = scalar_lea.vmem %s6, %s431
      %s433 = smul.u32 8, %s22
      %v435 = vld [vmem:[%s422] sm:$0x1]
      %v436 = vld [vmem:[%s384] sm:$0xf]
      %v437 = vld [vmem:[%s384 + $0x4] sm:$0xf]
      %v438 = vld [vmem:[%s384 + $0x8] sm:$0xf]
      %v439 = vld [vmem:[%s384 + $0xc] sm:$0xf]
      %v440 = vld [vmem:[%s384 + $0x10] sm:$0xf]
      %v441 = vld [vmem:[%s384 + $0x14] sm:$0xf]
      %v442 = vld [vmem:[%s384 + $0x18] sm:$0xf]
      %v443 = vld [vmem:[%s384 + $0x1c] sm:$0xf]
      %v444 = vld [vmem:[%s384 + $0x20] sm:$0xf]
      %v445 = vld [vmem:[%s384 + $0x24] sm:$0xf]
      %v446 = vld [vmem:[%s384 + $0x28] sm:$0xf]
      %v447 = vld [vmem:[%s384 + $0x2c] sm:$0xf]
      %v448 = vld [vmem:[%s384 + $0x30] sm:$0xf]
      %v449 = vld [vmem:[%s384 + $0x34] sm:$0xf]
      %v450 = vld [vmem:[%s384 + $0x38] sm:$0xf]
      %v451 = vld [vmem:[%s384 + $0x3c] sm:$0xf]
      %v452 = vunpack.c.l.bf16 %v436
      %v453 = vunpack.c.l.bf16 %v437
      %v454 = vunpack.c.l.bf16 %v438
      %v455 = vunpack.c.l.bf16 %v439
      %v456 = vunpack.c.l.bf16 %v440
      %v457 = vunpack.c.l.bf16 %v441
      %v458 = vunpack.c.l.bf16 %v442
      %v459 = vunpack.c.l.bf16 %v443
      %v460 = vunpack.c.l.bf16 %v444
      %v461 = vunpack.c.l.bf16 %v445
      %v462 = vunpack.c.l.bf16 %v446
      %v463 = vunpack.c.l.bf16 %v447
      %v464 = vunpack.c.l.bf16 %v448
      %v465 = vunpack.c.l.bf16 %v449
      %v466 = vunpack.c.l.bf16 %v450
      %v467 = vunpack.c.l.bf16 %v451
      %v469 = vperm.slane %v435, 0
      %v471 = vmul.f32 %v452, %v469
      %v472 = vmul.f32 %v453, %v469
      %v473 = vmul.f32 %v454, %v469
      %v474 = vmul.f32 %v455, %v469
      %v475 = vmul.f32 %v456, %v469
      %v476 = vmul.f32 %v457, %v469
      %v477 = vmul.f32 %v458, %v469
      %v478 = vmul.f32 %v459, %v469
      %v479 = vmul.f32 %v460, %v469
      %v480 = vmul.f32 %v461, %v469
      %v481 = vmul.f32 %v462, %v469
      %v482 = vmul.f32 %v463, %v469
      %v483 = vmul.f32 %v464, %v469
      %v484 = vmul.f32 %v465, %v469
      %v485 = vmul.f32 %v466, %v469
      %v486 = vmul.f32 %v467, %v469
      %v487 = vpack.c.bf16 %v471, %v471
      %v488 = vpack.c.bf16 %v472, %v472
      %v489 = vpack.c.bf16 %v473, %v473
      %v490 = vpack.c.bf16 %v474, %v474
      %v491 = vpack.c.bf16 %v475, %v475
      %v492 = vpack.c.bf16 %v476, %v476
      %v493 = vpack.c.bf16 %v477, %v477
      %v494 = vpack.c.bf16 %v478, %v478
      %v495 = vpack.c.bf16 %v479, %v479
      %v496 = vpack.c.bf16 %v480, %v480
      %v497 = vpack.c.bf16 %v481, %v481
      %v498 = vpack.c.bf16 %v482, %v482
      %v499 = vpack.c.bf16 %v483, %v483
      %v500 = vpack.c.bf16 %v484, %v484
      %v501 = vpack.c.bf16 %v485, %v485
      %v502 = vpack.c.bf16 %v486, %v486
      %vm503 = vsmask.f32 256
      %vm504 = vsmask.f32 4368
      %vm505 = vmor %vm503, %vm504
      %v507 = vshrl.u32 %v487, 16
      %v509 = vrot.slane %v507, 7
      %v510 = vshll.u32 %v487, 16
      %v512 = vor.u32 %v509, %v510
      %v513 = vrot.slane %v509, 4
      %v515 = vshrl.u32 %v488, 16
      %v517 = vrot.slane %v515, 7
      %v518 = vshll.u32 %v488, 16
      %v520 = vor.u32 %v517, %v518
      %v521 = vsel %vm505, %v513, %v520
      %v522 = vrot.slane %v517, 4
      %v524 = vshrl.u32 %v489, 16
      %v526 = vrot.slane %v524, 7
      %v527 = vshll.u32 %v489, 16
      %v529 = vor.u32 %v526, %v527
      %v530 = vrot.slane %v526, 4
      %v532 = vshrl.u32 %v490, 16
      %v534 = vrot.slane %v532, 7
      %v535 = vshll.u32 %v490, 16
      %v537 = vor.u32 %v534, %v535
      %v538 = vsel %vm505, %v530, %v537
      %v539 = vrot.slane %v534, 4
      %v541 = vshrl.u32 %v491, 16
      %v543 = vrot.slane %v541, 7
      %v544 = vshll.u32 %v491, 16
      %v546 = vor.u32 %v543, %v544
      %v547 = vrot.slane %v543, 4
      %v549 = vshrl.u32 %v492, 16
      %v551 = vrot.slane %v549, 7
      %v552 = vshll.u32 %v492, 16
      %v554 = vor.u32 %v551, %v552
      %v555 = vsel %vm505, %v547, %v554
      %v556 = vrot.slane %v551, 4
      %v558 = vshrl.u32 %v493, 16
      %v560 = vrot.slane %v558, 7
      %v561 = vshll.u32 %v493, 16
      %v563 = vor.u32 %v560, %v561
      %v564 = vrot.slane %v560, 4
      %v566 = vshrl.u32 %v494, 16
      %v568 = vrot.slane %v566, 7
      %v569 = vshll.u32 %v494, 16
      %v571 = vor.u32 %v568, %v569
      %v572 = vsel %vm505, %v564, %v571
      %v573 = vrot.slane %v568, 4
      %v575 = vshrl.u32 %v495, 16
      %v577 = vrot.slane %v575, 7
      %v578 = vshll.u32 %v495, 16
      %v580 = vor.u32 %v577, %v578
      %v581 = vrot.slane %v577, 4
      %v583 = vshrl.u32 %v496, 16
      %v585 = vrot.slane %v583, 7
      %v586 = vshll.u32 %v496, 16
      %v588 = vor.u32 %v585, %v586
      %v589 = vsel %vm505, %v581, %v588
      %v590 = vrot.slane %v585, 4
      %v592 = vshrl.u32 %v497, 16
      %v594 = vrot.slane %v592, 7
      %v595 = vshll.u32 %v497, 16
      %v597 = vor.u32 %v594, %v595
      %v598 = vrot.slane %v594, 4
      %v600 = vshrl.u32 %v498, 16
      %v602 = vrot.slane %v600, 7
      %v603 = vshll.u32 %v498, 16
      %v605 = vor.u32 %v602, %v603
      %v606 = vsel %vm505, %v598, %v605
      %v607 = vrot.slane %v602, 4
      %v609 = vshrl.u32 %v499, 16
      %v611 = vrot.slane %v609, 7
      %v612 = vshll.u32 %v499, 16
      %v614 = vor.u32 %v611, %v612
      %v615 = vrot.slane %v611, 4
      %v617 = vshrl.u32 %v500, 16
      %v619 = vrot.slane %v617, 7
      %v620 = vshll.u32 %v500, 16
      %v622 = vor.u32 %v619, %v620
      %v623 = vsel %vm505, %v615, %v622
      %v624 = vrot.slane %v619, 4
      %v626 = vshrl.u32 %v501, 16
      %v628 = vrot.slane %v626, 7
      %v629 = vshll.u32 %v501, 16
      %v631 = vor.u32 %v628, %v629
      %v632 = vrot.slane %v628, 4
      %v634 = vshrl.u32 %v502, 16
      %v636 = vrot.slane %v634, 7
      %v637 = vshll.u32 %v502, 16
      %v639 = vor.u32 %v636, %v637
      %v640 = vsel %vm505, %v632, %v639
      %v641 = vrot.slane %v636, 4
      %s666 = scalar_lea.vmem [#allocation2], 12
      %vm667 = vcmask 60416
      %vm668 = vsmask.f32 7938
      %vm669 = vmand %vm667, %vm668
      %v670 = vld [vmem:[%s666] sm:$0xf]
      %v671 = vsel %vm669, %v512, %v670
      %672 = vst [vmem:[%s666] sm:$0xf] %v671
      %vm673 = vcmask 60416
      %674 = vst.msk [vmem:[%s666 + $0x4] sm:$0xf] %vm673, %v521
      %vm675 = vcmask 57344
      %vm676 = vmand %vm675, %vm503
      %v677 = vld [vmem:[%s666 + $0x8] sm:$0x1]
      %v678 = vsel %vm676, %v522, %v677
      %679 = vst [vmem:[%s666 + $0x8] sm:$0x1] %v678
      %v680 = vld [vmem:[%s666 + $0xc] sm:$0xf]
      %v681 = vsel %vm669, %v529, %v680
      %682 = vst [vmem:[%s666 + $0xc] sm:$0xf] %v681
      %683 = vst.msk [vmem:[%s666 + $0x10] sm:$0xf] %vm673, %v538
      %v684 = vld [vmem:[%s666 + $0x14] sm:$0x1]
      %v685 = vsel %vm676, %v539, %v684
      %686 = vst [vmem:[%s666 + $0x14] sm:$0x1] %v685
      %v687 = vld [vmem:[%s666 + $0x18] sm:$0xf]
      %v688 = vsel %vm669, %v546, %v687
      %689 = vst [vmem:[%s666 + $0x18] sm:$0xf] %v688
      %690 = vst.msk [vmem:[%s666 + $0x1c] sm:$0xf] %vm673, %v555
      %v691 = vld [vmem:[%s666 + $0x20] sm:$0x1]
      %v692 = vsel %vm676, %v556, %v691
      %693 = vst [vmem:[%s666 + $0x20] sm:$0x1] %v692
      %v694 = vld [vmem:[%s666 + $0x24] sm:$0xf]
      %v695 = vsel %vm669, %v563, %v694
      %696 = vst [vmem:[%s666 + $0x24] sm:$0xf] %v695
      %697 = vst.msk [vmem:[%s666 + $0x28] sm:$0xf] %vm673, %v572
      %v698 = vld [vmem:[%s666 + $0x2c] sm:$0x1]
      %v699 = vsel %vm676, %v573, %v698
      %700 = vst [vmem:[%s666 + $0x2c] sm:$0x1] %v699
      %v701 = vld [vmem:[%s666 + $0x30] sm:$0xf]
      %v702 = vsel %vm669, %v580, %v701
      %703 = vst [vmem:[%s666 + $0x30] sm:$0xf] %v702
      %704 = vst.msk [vmem:[%s666 + $0x34] sm:$0xf] %vm673, %v589
      %v705 = vld [vmem:[%s666 + $0x38] sm:$0x1]
      %v706 = vsel %vm676, %v590, %v705
      %707 = vst [vmem:[%s666 + $0x38] sm:$0x1] %v706
      %v708 = vld [vmem:[%s666 + $0x3c] sm:$0xf]
      %v709 = vsel %vm669, %v597, %v708
      %710 = vst [vmem:[%s666 + $0x3c] sm:$0xf] %v709
      %711 = vst.msk [vmem:[%s666 + $0x40] sm:$0xf] %vm673, %v606
      %v712 = vld [vmem:[%s666 + $0x44] sm:$0x1]
      %v713 = vsel %vm676, %v607, %v712
      %714 = vst [vmem:[%s666 + $0x44] sm:$0x1] %v713
      %v715 = vld [vmem:[%s666 + $0x48] sm:$0xf]
      %v716 = vsel %vm669, %v614, %v715
      %717 = vst [vmem:[%s666 + $0x48] sm:$0xf] %v716
      %718 = vst.msk [vmem:[%s666 + $0x4c] sm:$0xf] %vm673, %v623
      %v719 = vld [vmem:[%s666 + $0x50] sm:$0x1]
      %v720 = vsel %vm676, %v624, %v719
      %721 = vst [vmem:[%s666 + $0x50] sm:$0x1] %v720
      %v722 = vld [vmem:[%s666 + $0x54] sm:$0xf]
      %v723 = vsel %vm669, %v631, %v722
      %724 = vst [vmem:[%s666 + $0x54] sm:$0xf] %v723
      %725 = vst.msk [vmem:[%s666 + $0x58] sm:$0xf] %vm673, %v640
      %v726 = vld [vmem:[%s666 + $0x5c] sm:$0x1]
      %v727 = vsel %vm676, %v641, %v726
      %728 = vst [vmem:[%s666 + $0x5c] sm:$0x1] %v727
      %p729 = scmp.eq.s32.totalorder %s22, 0
      // Predicated region
      $region45: #{coarse_denoise_encoder.8} parent=43 // pred_check
        %p730 = pneg %p729
      $region46: #{coarse_denoise_encoder.8} parent=43 // pred_check_branch
        %732 = sbr.rel (%p730) target = $region48
      $region47: #{coarse_denoise_encoder.8} parent=43 // pred_region
        %v733 = vld [vmem:[#allocation2] sm:$0xf]
        %v734 = vsel %vm669, 0, %v733
        %735 = vst [vmem:[#allocation2] sm:$0xf] %v734
        %736 = vst.msk [vmem:[#allocation2 + $0x4] sm:$0xf] %vm673, 0
        %v737 = vld [vmem:[#allocation2 + $0x8] sm:$0x1]
        %v738 = vsel %vm676, 0, %v737
        %739 = vst [vmem:[#allocation2 + $0x8] sm:$0x1] %v738
      $region48: #{coarse_denoise_encoder.8} parent=43 // pred_fallthru
        _
      %p740 = scmp.gt.s32.totalorder %s22, 0
      // Predicated region
      $region49: #{coarse_denoise_encoder.8} parent=43 // pred_check
        %p741 = pneg %p740
      $region50: #{coarse_denoise_encoder.8} parent=43 // pred_check_branch
        %743 = sbr.rel (%p741) target = $region52
      $region51: #{coarse_denoise_encoder.8} parent=43 // pred_region
        %v744 = vld [vmem:[%s398] sm:$0xf]
        %v745 = vld [vmem:[%s398 + $0x4] sm:$0xf]
        %v746 = vunpack.c.l.bf16 %v744
        %v747 = vunpack.c.l.bf16 %v745
        %v748 = vmul.f32 %v746, %v469
        %v749 = vmul.f32 %v747, %v469
        %v750 = vpack.c.bf16 %v748, %v748
        %v751 = vpack.c.bf16 %v749, %v749
        %v753 = vshrl.u32 %v750, 16
        %v755 = vrot.slane %v753, 7
        %v756 = vshll.u32 %v750, 16
        %v758 = vor.u32 %v755, %v756
        %v759 = vrot.slane %v755, 4
        %v761 = vshrl.u32 %v751, 16
        %v763 = vrot.slane %v761, 7
        %v764 = vshll.u32 %v751, 16
        %v766 = vor.u32 %v763, %v764
        %v767 = vsel %vm505, %v759, %v766
        %v768 = vrot.slane %v763, 4
        %v772 = vld [vmem:[#allocation2] sm:$0xf]
        %v773 = vsel %vm669, %v758, %v772
        %774 = vst [vmem:[#allocation2] sm:$0xf] %v773
        %775 = vst.msk [vmem:[#allocation2 + $0x4] sm:$0xf] %vm673, %v767
        %v776 = vld [vmem:[#allocation2 + $0x8] sm:$0x1]
        %v777 = vsel %vm676, %v768, %v776
        %778 = vst [vmem:[#allocation2 + $0x8] sm:$0x1] %v777
      $region52: #{coarse_denoise_encoder.8} parent=43 // pred_fallthru
        _
      %p779 = scmp.eq.s32.totalorder %s22, 1
      // Predicated region
      $region53: #{coarse_denoise_encoder.8} parent=43 // pred_check
        %p780 = pneg %p779
      $region54: #{coarse_denoise_encoder.8} parent=43 // pred_check_branch
        %782 = sbr.rel (%p780) target = $region56
      $region55: #{coarse_denoise_encoder.8} parent=43 // pred_region
        %s783 = scalar_lea.vmem [#allocation2], 108
        %v784 = vld [vmem:[%s783] sm:$0xf]
        %v785 = vsel %vm669, 0, %v784
        %786 = vst [vmem:[%s783] sm:$0xf] %v785
        %787 = vst.msk [vmem:[%s783 + $0x4] sm:$0xf] %vm673, 0
        %v788 = vld [vmem:[%s783 + $0x8] sm:$0x1]
        %v789 = vsel %vm676, 0, %v788
        %790 = vst [vmem:[%s783 + $0x8] sm:$0x1] %v789
      $region56: #{coarse_denoise_encoder.8} parent=43 // pred_fallthru
        _
      %p791 = scmp.lt.s32.totalorder %s22, 1
      // Predicated region
      $region57: #{coarse_denoise_encoder.8} parent=43 // pred_check
        %p792 = pneg %p791
      $region58: #{coarse_denoise_encoder.8} parent=43 // pred_check_branch
        %794 = sbr.rel (%p792) target = $region60
      $region59: #{coarse_denoise_encoder.8} parent=43 // pred_region
        %v795 = vld [vmem:[%s415] sm:$0xf]
        %v796 = vld [vmem:[%s415 + $0x4] sm:$0xf]
        %v797 = vunpack.c.l.bf16 %v795
        %v798 = vunpack.c.l.bf16 %v796
        %v799 = vmul.f32 %v797, %v469
        %v800 = vmul.f32 %v798, %v469
        %v801 = vpack.c.bf16 %v799, %v799
        %v802 = vpack.c.bf16 %v800, %v800
        %v804 = vshrl.u32 %v801, 16
        %v806 = vrot.slane %v804, 7
        %v807 = vshll.u32 %v801, 16
        %v809 = vor.u32 %v806, %v807
        %v810 = vrot.slane %v806, 4
        %v812 = vshrl.u32 %v802, 16
        %v814 = vrot.slane %v812, 7
        %v815 = vshll.u32 %v802, 16
        %v817 = vor.u32 %v814, %v815
        %v818 = vsel %vm505, %v810, %v817
        %v819 = vrot.slane %v814, 4
        %s823 = scalar_lea.vmem [#allocation2], 108
        %v824 = vld [vmem:[%s823] sm:$0xf]
        %v825 = vsel %vm669, %v809, %v824
        %826 = vst [vmem:[%s823] sm:$0xf] %v825
        %827 = vst.msk [vmem:[%s823 + $0x4] sm:$0xf] %vm673, %v818
        %v828 = vld [vmem:[%s823 + $0x8] sm:$0x1]
        %v829 = vsel %vm676, %v819, %v828
        %830 = vst [vmem:[%s823 + $0x8] sm:$0x1] %v829
      $region60: #{coarse_denoise_encoder.8} parent=43 // pred_fallthru
        _
      %v831 = vld [vmem:[#allocation2] sm:$0x1]
      %v832 = vsel %vm676, 0, %v831
      %833 = vst [vmem:[#allocation2] sm:$0x1] %v832
      %v834 = vld [vmem:[#allocation2 + $0xc] sm:$0x1]
      %v835 = vsel %vm676, 0, %v834
      %836 = vst [vmem:[#allocation2 + $0xc] sm:$0x1] %v835
      %v837 = vld [vmem:[#allocation2 + $0x18] sm:$0x1]
      %v838 = vsel %vm676, 0, %v837
      %839 = vst [vmem:[#allocation2 + $0x18] sm:$0x1] %v838
      %v840 = vld [vmem:[#allocation2 + $0x24] sm:$0x1]
      %v841 = vsel %vm676, 0, %v840
      %842 = vst [vmem:[#allocation2 + $0x24] sm:$0x1] %v841
      %v843 = vld [vmem:[#allocation2 + $0x30] sm:$0x1]
      %v844 = vsel %vm676, 0, %v843
      %845 = vst [vmem:[#allocation2 + $0x30] sm:$0x1] %v844
      %v846 = vld [vmem:[#allocation2 + $0x3c] sm:$0x1]
      %v847 = vsel %vm676, 0, %v846
      %848 = vst [vmem:[#allocation2 + $0x3c] sm:$0x1] %v847
      %v849 = vld [vmem:[#allocation2 + $0x48] sm:$0x1]
      %v850 = vsel %vm676, 0, %v849
      %851 = vst [vmem:[#allocation2 + $0x48] sm:$0x1] %v850
      %v852 = vld [vmem:[#allocation2 + $0x54] sm:$0x1]
      %v853 = vsel %vm676, 0, %v852
      %854 = vst [vmem:[#allocation2 + $0x54] sm:$0x1] %v853
      %v855 = vld [vmem:[#allocation2 + $0x60] sm:$0x1]
      %v856 = vsel %vm676, 0, %v855
      %857 = vst [vmem:[#allocation2 + $0x60] sm:$0x1] %v856
      %v858 = vld [vmem:[#allocation2 + $0x6c] sm:$0x1]
      %v859 = vsel %vm676, 0, %v858
      %860 = vst [vmem:[#allocation2 + $0x6c] sm:$0x1] %v859
      %vm861 = vmand %vm675, %vm668
      %v862 = vld [vmem:[#allocation2 + $0x8] sm:$0x1]
      %v863 = vsel %vm861, 0, %v862
      %864 = vst [vmem:[#allocation2 + $0x8] sm:$0x1] %v863
      %v865 = vld [vmem:[#allocation2 + $0x14] sm:$0x1]
      %v866 = vsel %vm861, 0, %v865
      %867 = vst [vmem:[#allocation2 + $0x14] sm:$0x1] %v866
      %v868 = vld [vmem:[#allocation2 + $0x20] sm:$0x1]
      %v869 = vsel %vm861, 0, %v868
      %870 = vst [vmem:[#allocation2 + $0x20] sm:$0x1] %v869
      %v871 = vld [vmem:[#allocation2 + $0x2c] sm:$0x1]
      %v872 = vsel %vm861, 0, %v871
      %873 = vst [vmem:[#allocation2 + $0x2c] sm:$0x1] %v872
      %v874 = vld [vmem:[#allocation2 + $0x38] sm:$0x1]
      %v875 = vsel %vm861, 0, %v874
      %876 = vst [vmem:[#allocation2 + $0x38] sm:$0x1] %v875
      %v877 = vld [vmem:[#allocation2 + $0x44] sm:$0x1]
      %v878 = vsel %vm861, 0, %v877
      %879 = vst [vmem:[#allocation2 + $0x44] sm:$0x1] %v878
      %v880 = vld [vmem:[#allocation2 + $0x50] sm:$0x1]
      %v881 = vsel %vm861, 0, %v880
      %882 = vst [vmem:[#allocation2 + $0x50] sm:$0x1] %v881
      %v883 = vld [vmem:[#allocation2 + $0x5c] sm:$0x1]
      %v884 = vsel %vm861, 0, %v883
      %885 = vst [vmem:[#allocation2 + $0x5c] sm:$0x1] %v884
      %v886 = vld [vmem:[#allocation2 + $0x68] sm:$0x1]
      %v887 = vsel %vm861, 0, %v886
      %888 = vst [vmem:[#allocation2 + $0x68] sm:$0x1] %v887
      %v889 = vld [vmem:[#allocation2 + $0x74] sm:$0x1]
      %v890 = vsel %vm861, 0, %v889
      %891 = vst [vmem:[#allocation2 + $0x74] sm:$0x1] %v890
      %v892 = vld [vmem:[#allocation2] sm:$0xf]
      %v893 = vld [vmem:[#allocation2 + $0x4] sm:$0xf]
      %v894 = vld [vmem:[#allocation2 + $0x8] sm:$0x1]
      %v895 = vld [vmem:[#allocation2 + $0xc] sm:$0xf]
      %v896 = vld [vmem:[#allocation2 + $0x10] sm:$0xf]
      %v897 = vld [vmem:[#allocation2 + $0x14] sm:$0x1]
      %v898 = vld [vmem:[#allocation2 + $0x18] sm:$0xf]
      %v899 = vld [vmem:[#allocation2 + $0x1c] sm:$0xf]
      %v900 = vld [vmem:[#allocation2 + $0x20] sm:$0x1]
      %v901 = vld [vmem:[#allocation2 + $0x24] sm:$0xf]
      %v902 = vld [vmem:[#allocation2 + $0x28] sm:$0xf]
      %v903 = vld [vmem:[#allocation2 + $0x2c] sm:$0x1]
      %v904 = vld [vmem:[#allocation2 + $0x30] sm:$0xf]
      %v905 = vld [vmem:[#allocation2 + $0x34] sm:$0xf]
      %v906 = vld [vmem:[#allocation2 + $0x38] sm:$0x1]
      %v907 = vld [vmem:[#allocation2 + $0x3c] sm:$0xf]
      %v908 = vld [vmem:[#allocation2 + $0x40] sm:$0xf]
      %v909 = vld [vmem:[#allocation2 + $0x44] sm:$0x1]
      %v910 = vld [vmem:[#allocation2 + $0x48] sm:$0xf]
      %v911 = vld [vmem:[#allocation2 + $0x4c] sm:$0xf]
      %v912 = vld [vmem:[#allocation2 + $0x50] sm:$0x1]
      %v913 = vld [vmem:[#allocation2 + $0x54] sm:$0xf]
      %v914 = vld [vmem:[#allocation2 + $0x58] sm:$0xf]
      %v915 = vld [vmem:[#allocation2 + $0x5c] sm:$0x1]
      %v916 = vld [vmem:[#allocation2 + $0x60] sm:$0xf]
      %v917 = vld [vmem:[#allocation2 + $0x64] sm:$0xf]
      %v918 = vld [vmem:[#allocation2 + $0x68] sm:$0x1]
      %v919 = vld [vmem:[#allocation2 + $0x6c] sm:$0xf]
      %v920 = vld [vmem:[#allocation2 + $0x70] sm:$0xf]
      %v921 = vld [vmem:[#allocation2 + $0x74] sm:$0x1]
      %vm922 = vsmask.f32 3328
      %vm923 = vsmask.f32 7440
      %vm924 = vmor %vm922, %vm923
      %v926 = vshrl.u32 %v892, 16
      %v928 = vrot.slane %v926, 4
      %v929 = vshll.u32 %v892, 16
      %v931 = vrot.slane %v929, 5
      %v932 = vor.u32 %v928, %v931
      %v933 = vrot.slane %v932, 4
      %v935 = vshll.u32 %v893, 16
      %v937 = vrot.slane %v935, 5
      %v938 = vsel %vm924, %v933, %v937
      %v939 = vshrl.u32 %v893, 16
      %v941 = vrot.slane %v939, 4
      %v942 = vor.u32 %v941, %v937
      %v943 = vrot.slane %v942, 4
      %v945 = vshll.u32 %v894, 16
      %v947 = vrot.slane %v945, 5
      %v948 = vsel %vm924, %v943, %v947
      %v950 = vshrl.u32 %v895, 16
      %v952 = vrot.slane %v950, 4
      %v953 = vshll.u32 %v895, 16
      %v955 = vrot.slane %v953, 5
      %v956 = vor.u32 %v952, %v955
      %v957 = vrot.slane %v956, 4
      %v959 = vshll.u32 %v896, 16
      %v961 = vrot.slane %v959, 5
      %v962 = vsel %vm924, %v957, %v961
      %v963 = vshrl.u32 %v896, 16
      %v965 = vrot.slane %v963, 4
      %v966 = vor.u32 %v965, %v961
      %v967 = vrot.slane %v966, 4
      %v969 = vshll.u32 %v897, 16
      %v971 = vrot.slane %v969, 5
      %v972 = vsel %vm924, %v967, %v971
      %v974 = vshrl.u32 %v898, 16
      %v976 = vrot.slane %v974, 4
      %v977 = vshll.u32 %v898, 16
      %v979 = vrot.slane %v977, 5
      %v980 = vor.u32 %v976, %v979
      %v981 = vrot.slane %v980, 4
      %v983 = vshll.u32 %v899, 16
      %v985 = vrot.slane %v983, 5
      %v986 = vsel %vm924, %v981, %v985
      %v987 = vshrl.u32 %v899, 16
      %v989 = vrot.slane %v987, 4
      %v990 = vor.u32 %v989, %v985
      %v991 = vrot.slane %v990, 4
      %v993 = vshll.u32 %v900, 16
      %v995 = vrot.slane %v993, 5
      %v996 = vsel %vm924, %v991, %v995
      %v998 = vshrl.u32 %v901, 16
      %v1000 = vrot.slane %v998, 4
      %v1001 = vshll.u32 %v901, 16
      %v1003 = vrot.slane %v1001, 5
      %v1004 = vor.u32 %v1000, %v1003
      %v1005 = vrot.slane %v1004, 4
      %v1007 = vshll.u32 %v902, 16
      %v1009 = vrot.slane %v1007, 5
      %v1010 = vsel %vm924, %v1005, %v1009
      %v1011 = vshrl.u32 %v902, 16
      %v1013 = vrot.slane %v1011, 4
      %v1014 = vor.u32 %v1013, %v1009
      %v1015 = vrot.slane %v1014, 4
      %v1017 = vshll.u32 %v903, 16
      %v1019 = vrot.slane %v1017, 5
      %v1020 = vsel %vm924, %v1015, %v1019
      %v1022 = vshrl.u32 %v904, 16
      %v1024 = vrot.slane %v1022, 4
      %v1025 = vshll.u32 %v904, 16
      %v1027 = vrot.slane %v1025, 5
      %v1028 = vor.u32 %v1024, %v1027
      %v1029 = vrot.slane %v1028, 4
      %v1031 = vshll.u32 %v905, 16
      %v1033 = vrot.slane %v1031, 5
      %v1034 = vsel %vm924, %v1029, %v1033
      %v1035 = vshrl.u32 %v905, 16
      %v1037 = vrot.slane %v1035, 4
      %v1038 = vor.u32 %v1037, %v1033
      %v1039 = vrot.slane %v1038, 4
      %v1041 = vshll.u32 %v906, 16
      %v1043 = vrot.slane %v1041, 5
      %v1044 = vsel %vm924, %v1039, %v1043
      %v1046 = vshrl.u32 %v907, 16
      %v1048 = vrot.slane %v1046, 4
      %v1049 = vshll.u32 %v907, 16
      %v1051 = vrot.slane %v1049, 5
      %v1052 = vor.u32 %v1048, %v1051
      %v1053 = vrot.slane %v1052, 4
      %v1055 = vshll.u32 %v908, 16
      %v1057 = vrot.slane %v1055, 5
      %v1058 = vsel %vm924, %v1053, %v1057
      %v1059 = vshrl.u32 %v908, 16
      %v1061 = vrot.slane %v1059, 4
      %v1062 = vor.u32 %v1061, %v1057
      %v1063 = vrot.slane %v1062, 4
      %v1065 = vshll.u32 %v909, 16
      %v1067 = vrot.slane %v1065, 5
      %v1068 = vsel %vm924, %v1063, %v1067
      %v1070 = vshrl.u32 %v910, 16
      %v1072 = vrot.slane %v1070, 4
      %v1073 = vshll.u32 %v910, 16
      %v1075 = vrot.slane %v1073, 5
      %v1076 = vor.u32 %v1072, %v1075
      %v1077 = vrot.slane %v1076, 4
      %v1079 = vshll.u32 %v911, 16
      %v1081 = vrot.slane %v1079, 5
      %v1082 = vsel %vm924, %v1077, %v1081
      %v1083 = vshrl.u32 %v911, 16
      %v1085 = vrot.slane %v1083, 4
      %v1086 = vor.u32 %v1085, %v1081
      %v1087 = vrot.slane %v1086, 4
      %v1089 = vshll.u32 %v912, 16
      %v1091 = vrot.slane %v1089, 5
      %v1092 = vsel %vm924, %v1087, %v1091
      %v1094 = vshrl.u32 %v913, 16
      %v1096 = vrot.slane %v1094, 4
      %v1097 = vshll.u32 %v913, 16
      %v1099 = vrot.slane %v1097, 5
      %v1100 = vor.u32 %v1096, %v1099
      %v1101 = vrot.slane %v1100, 4
      %v1103 = vshll.u32 %v914, 16
      %v1105 = vrot.slane %v1103, 5
      %v1106 = vsel %vm924, %v1101, %v1105
      %v1107 = vshrl.u32 %v914, 16
      %v1109 = vrot.slane %v1107, 4
      %v1110 = vor.u32 %v1109, %v1105
      %v1111 = vrot.slane %v1110, 4
      %v1113 = vshll.u32 %v915, 16
      %v1115 = vrot.slane %v1113, 5
      %v1116 = vsel %vm924, %v1111, %v1115
      %vm1141 = vcmask 1042432
      %vm1142 = vcmask 1046532
      %vm1143 = vmor %vm1141, %vm1142
      %v1144 = vrot.slane %v892, 5
      %v1145 = vrot.slane %v1144, 4
      %v1146 = vrot.slane %v893, 5
      %v1147 = vsel %vm1143, %v1145, %v1146
      %v1148 = vrot.slane %v1146, 4
      %v1149 = vrot.slane %v894, 5
      %v1150 = vsel %vm1143, %v1148, %v1149
      %v1151 = vrot.slane %v895, 5
      %v1152 = vrot.slane %v1151, 4
      %v1153 = vrot.slane %v896, 5
      %v1154 = vsel %vm1143, %v1152, %v1153
      %v1155 = vrot.slane %v1153, 4
      %v1156 = vrot.slane %v897, 5
      %v1157 = vsel %vm1143, %v1155, %v1156
      %v1158 = vrot.slane %v898, 5
      %v1159 = vrot.slane %v1158, 4
      %v1160 = vrot.slane %v899, 5
      %v1161 = vsel %vm1143, %v1159, %v1160
      %v1162 = vrot.slane %v1160, 4
      %v1163 = vrot.slane %v900, 5
      %v1164 = vsel %vm1143, %v1162, %v1163
      %v1165 = vrot.slane %v901, 5
      %v1166 = vrot.slane %v1165, 4
      %v1167 = vrot.slane %v902, 5
      %v1168 = vsel %vm1143, %v1166, %v1167
      %v1169 = vrot.slane %v1167, 4
      %v1170 = vrot.slane %v903, 5
      %v1171 = vsel %vm1143, %v1169, %v1170
      %v1172 = vrot.slane %v904, 5
      %v1173 = vrot.slane %v1172, 4
      %v1174 = vrot.slane %v905, 5
      %v1175 = vsel %vm1143, %v1173, %v1174
      %v1176 = vrot.slane %v1174, 4
      %v1177 = vrot.slane %v906, 5
      %v1178 = vsel %vm1143, %v1176, %v1177
      %v1179 = vrot.slane %v907, 5
      %v1180 = vrot.slane %v1179, 4
      %v1181 = vrot.slane %v908, 5
      %v1182 = vsel %vm1143, %v1180, %v1181
      %v1183 = vrot.slane %v1181, 4
      %v1184 = vrot.slane %v909, 5
      %v1185 = vsel %vm1143, %v1183, %v1184
      %v1186 = vrot.slane %v910, 5
      %v1187 = vrot.slane %v1186, 4
      %v1188 = vrot.slane %v911, 5
      %v1189 = vsel %vm1143, %v1187, %v1188
      %v1190 = vrot.slane %v1188, 4
      %v1191 = vrot.slane %v912, 5
      %v1192 = vsel %vm1143, %v1190, %v1191
      %v1193 = vrot.slane %v913, 5
      %v1194 = vrot.slane %v1193, 4
      %v1195 = vrot.slane %v914, 5
      %v1196 = vsel %vm1143, %v1194, %v1195
      %v1197 = vrot.slane %v1195, 4
      %v1198 = vrot.slane %v915, 5
      %v1199 = vsel %vm1143, %v1197, %v1198
      %v1201 = vshrl.u32 %v916, 16
      %v1203 = vrot.slane %v1201, 4
      %v1204 = vshll.u32 %v916, 16
      %v1206 = vrot.slane %v1204, 5
      %v1207 = vor.u32 %v1203, %v1206
      %v1208 = vrot.slane %v1207, 4
      %v1210 = vshll.u32 %v917, 16
      %v1212 = vrot.slane %v1210, 5
      %v1213 = vsel %vm924, %v1208, %v1212
      %v1214 = vshrl.u32 %v917, 16
      %v1216 = vrot.slane %v1214, 4
      %v1217 = vor.u32 %v1216, %v1212
      %v1218 = vrot.slane %v1217, 4
      %v1220 = vshll.u32 %v918, 16
      %v1222 = vrot.slane %v1220, 5
      %v1223 = vsel %vm924, %v1218, %v1222
      %v1227 = vrot.slane %v916, 5
      %v1228 = vrot.slane %v1227, 4
      %v1229 = vrot.slane %v917, 5
      %v1230 = vsel %vm1143, %v1228, %v1229
      %v1231 = vrot.slane %v1229, 4
      %v1232 = vrot.slane %v918, 5
      %v1233 = vsel %vm1143, %v1231, %v1232
      %v1235 = vshrl.u32 %v919, 16
      %v1237 = vrot.slane %v1235, 4
      %v1238 = vshll.u32 %v919, 16
      %v1240 = vrot.slane %v1238, 5
      %v1241 = vor.u32 %v1237, %v1240
      %v1242 = vrot.slane %v1241, 4
      %v1244 = vshll.u32 %v920, 16
      %v1246 = vrot.slane %v1244, 5
      %v1247 = vsel %vm924, %v1242, %v1246
      %v1248 = vshrl.u32 %v920, 16
      %v1250 = vrot.slane %v1248, 4
      %v1251 = vor.u32 %v1250, %v1246
      %v1252 = vrot.slane %v1251, 4
      %v1254 = vshll.u32 %v921, 16
      %v1256 = vrot.slane %v1254, 5
      %v1257 = vsel %vm924, %v1252, %v1256
      %v1261 = vrot.slane %v919, 5
      %v1262 = vrot.slane %v1261, 4
      %v1263 = vrot.slane %v920, 5
      %v1264 = vsel %vm1143, %v1262, %v1263
      %v1265 = vrot.slane %v1263, 4
      %v1266 = vrot.slane %v921, 5
      %v1267 = vsel %vm1143, %v1265, %v1266
      %v1268 = vunpack.c.l.b16 %v892
      %v1269 = vunpack.c.l.b16 %v893
      %v1270 = vunpack.c.l.b16 %v895
      %v1271 = vunpack.c.l.b16 %v896
      %v1272 = vunpack.c.l.b16 %v898
      %v1273 = vunpack.c.l.b16 %v899
      %v1274 = vunpack.c.l.b16 %v901
      %v1275 = vunpack.c.l.b16 %v902
      %v1276 = vunpack.c.l.b16 %v904
      %v1277 = vunpack.c.l.b16 %v905
      %v1278 = vunpack.c.l.b16 %v907
      %v1279 = vunpack.c.l.b16 %v908
      %v1280 = vunpack.c.l.b16 %v910
      %v1281 = vunpack.c.l.b16 %v911
      %v1282 = vunpack.c.l.b16 %v913
      %v1283 = vunpack.c.l.b16 %v914
      %v1284 = vpack.c.b16 %v1269, %v1268
      %v1285 = vpack.c.b16 %v1271, %v1270
      %v1286 = vpack.c.b16 %v1273, %v1272
      %v1287 = vpack.c.b16 %v1275, %v1274
      %v1288 = vpack.c.b16 %v1277, %v1276
      %v1289 = vpack.c.b16 %v1279, %v1278
      %v1290 = vpack.c.b16 %v1281, %v1280
      %v1291 = vpack.c.b16 %v1283, %v1282
      %v1292 = vunpack.c.l.b16 %v938
      %v1293 = vunpack.c.l.b16 %v948
      %v1294 = vunpack.c.l.b16 %v962
      %v1295 = vunpack.c.l.b16 %v972
      %v1296 = vunpack.c.l.b16 %v986
      %v1297 = vunpack.c.l.b16 %v996
      %v1298 = vunpack.c.l.b16 %v1010
      %v1299 = vunpack.c.l.b16 %v1020
      %v1300 = vunpack.c.l.b16 %v1034
      %v1301 = vunpack.c.l.b16 %v1044
      %v1302 = vunpack.c.l.b16 %v1058
      %v1303 = vunpack.c.l.b16 %v1068
      %v1304 = vunpack.c.l.b16 %v1082
      %v1305 = vunpack.c.l.b16 %v1092
      %v1306 = vunpack.c.l.b16 %v1106
      %v1307 = vunpack.c.l.b16 %v1116
      %v1308 = vpack.c.b16 %v1293, %v1292
      %v1309 = vpack.c.b16 %v1295, %v1294
      %v1310 = vpack.c.b16 %v1297, %v1296
      %v1311 = vpack.c.b16 %v1299, %v1298
      %v1312 = vpack.c.b16 %v1301, %v1300
      %v1313 = vpack.c.b16 %v1303, %v1302
      %v1314 = vpack.c.b16 %v1305, %v1304
      %v1315 = vpack.c.b16 %v1307, %v1306
      %1316 = vrot.lane.b32.xlu0 %v1308, 8
      %v1317 = vpop.permute.xlu0 %1316
      %1318 = vrot.lane.b32.xlu0 %v1309, 8
      %v1319 = vpop.permute.xlu0 %1318
      %1320 = vrot.lane.b32.xlu0 %v1310, 8
      %v1321 = vpop.permute.xlu0 %1320
      %1322 = vrot.lane.b32.xlu0 %v1311, 8
      %v1323 = vpop.permute.xlu0 %1322
      %1324 = vrot.lane.b32.xlu0 %v1312, 8
      %v1325 = vpop.permute.xlu0 %1324
      %1326 = vrot.lane.b32.xlu0 %v1313, 8
      %v1327 = vpop.permute.xlu0 %1326
      %1328 = vrot.lane.b32.xlu0 %v1314, 8
      %v1329 = vpop.permute.xlu0 %1328
      %1330 = vrot.lane.b32.xlu0 %v1315, 8
      %v1331 = vpop.permute.xlu0 %1330
      %v1332 = vunpack.c.l.b16 %v1147
      %v1333 = vunpack.c.l.b16 %v1150
      %v1334 = vunpack.c.l.b16 %v1154
      %v1335 = vunpack.c.l.b16 %v1157
      %v1336 = vunpack.c.l.b16 %v1161
      %v1337 = vunpack.c.l.b16 %v1164
      %v1338 = vunpack.c.l.b16 %v1168
      %v1339 = vunpack.c.l.b16 %v1171
      %v1340 = vunpack.c.l.b16 %v1175
      %v1341 = vunpack.c.l.b16 %v1178
      %v1342 = vunpack.c.l.b16 %v1182
      %v1343 = vunpack.c.l.b16 %v1185
      %v1344 = vunpack.c.l.b16 %v1189
      %v1345 = vunpack.c.l.b16 %v1192
      %v1346 = vunpack.c.l.b16 %v1196
      %v1347 = vunpack.c.l.b16 %v1199
      %v1348 = vpack.c.b16 %v1333, %v1332
      %v1349 = vpack.c.b16 %v1335, %v1334
      %v1350 = vpack.c.b16 %v1337, %v1336
      %v1351 = vpack.c.b16 %v1339, %v1338
      %v1352 = vpack.c.b16 %v1341, %v1340
      %v1353 = vpack.c.b16 %v1343, %v1342
      %v1354 = vpack.c.b16 %v1345, %v1344
      %v1355 = vpack.c.b16 %v1347, %v1346
      %1356 = vrot.lane.b32.xlu0 %v1348, 16
      %v1357 = vpop.permute.xlu0 %1356
      %1358 = vrot.lane.b32.xlu0 %v1349, 16
      %v1359 = vpop.permute.xlu0 %1358
      %1360 = vrot.lane.b32.xlu0 %v1350, 16
      %v1361 = vpop.permute.xlu0 %1360
      %1362 = vrot.lane.b32.xlu0 %v1351, 16
      %v1363 = vpop.permute.xlu0 %1362
      %1364 = vrot.lane.b32.xlu0 %v1352, 16
      %v1365 = vpop.permute.xlu0 %1364
      %1366 = vrot.lane.b32.xlu0 %v1353, 16
      %v1367 = vpop.permute.xlu0 %1366
      %1368 = vrot.lane.b32.xlu0 %v1354, 16
      %v1369 = vpop.permute.xlu0 %1368
      %1370 = vrot.lane.b32.xlu0 %v1355, 16
      %v1371 = vpop.permute.xlu0 %1370
      %v1372 = vunpack.c.l.b16 %v916
      %v1373 = vunpack.c.l.b16 %v917
      %v1374 = vpack.c.b16 %v1373, %v1372
      %1375 = vrot.lane.b32.xlu0 %v1285, 24
      %v1376 = vpop.permute.xlu0 %1375
      %1377 = vrot.lane.b32.xlu0 %v1286, 24
      %v1378 = vpop.permute.xlu0 %1377
      %1379 = vrot.lane.b32.xlu0 %v1287, 24
      %v1380 = vpop.permute.xlu0 %1379
      %1381 = vrot.lane.b32.xlu0 %v1288, 24
      %v1382 = vpop.permute.xlu0 %1381
      %1383 = vrot.lane.b32.xlu0 %v1289, 24
      %v1384 = vpop.permute.xlu0 %1383
      %1385 = vrot.lane.b32.xlu0 %v1290, 24
      %v1386 = vpop.permute.xlu0 %1385
      %1387 = vrot.lane.b32.xlu0 %v1291, 24
      %v1388 = vpop.permute.xlu0 %1387
      %1389 = vrot.lane.b32.xlu0 %v1374, 24
      %v1390 = vpop.permute.xlu0 %1389
      %v1391 = vunpack.c.l.b16 %v1213
      %v1392 = vunpack.c.l.b16 %v1223
      %v1393 = vpack.c.b16 %v1392, %v1391
      %1394 = vrot.lane.b32.xlu0 %v1309, 32
      %v1395 = vpop.permute.xlu0 %1394
      %1396 = vrot.lane.b32.xlu0 %v1310, 32
      %v1397 = vpop.permute.xlu0 %1396
      %1398 = vrot.lane.b32.xlu0 %v1311, 32
      %v1399 = vpop.permute.xlu0 %1398
      %1400 = vrot.lane.b32.xlu0 %v1312, 32
      %v1401 = vpop.permute.xlu0 %1400
      %1402 = vrot.lane.b32.xlu0 %v1313, 32
      %v1403 = vpop.permute.xlu0 %1402
      %1404 = vrot.lane.b32.xlu0 %v1314, 32
      %v1405 = vpop.permute.xlu0 %1404
      %1406 = vrot.lane.b32.xlu0 %v1315, 32
      %v1407 = vpop.permute.xlu0 %1406
      %1408 = vrot.lane.b32.xlu0 %v1393, 32
      %v1409 = vpop.permute.xlu0 %1408
      %v1410 = vunpack.c.l.b16 %v1230
      %v1411 = vunpack.c.l.b16 %v1233
      %v1412 = vpack.c.b16 %v1411, %v1410
      %1413 = vrot.lane.b32.xlu0 %v1349, 40
      %v1414 = vpop.permute.xlu0 %1413
      %1415 = vrot.lane.b32.xlu0 %v1350, 40
      %v1416 = vpop.permute.xlu0 %1415
      %1417 = vrot.lane.b32.xlu0 %v1351, 40
      %v1418 = vpop.permute.xlu0 %1417
      %1419 = vrot.lane.b32.xlu0 %v1352, 40
      %v1420 = vpop.permute.xlu0 %1419
      %1421 = vrot.lane.b32.xlu0 %v1353, 40
      %v1422 = vpop.permute.xlu0 %1421
      %1423 = vrot.lane.b32.xlu0 %v1354, 40
      %v1424 = vpop.permute.xlu0 %1423
      %1425 = vrot.lane.b32.xlu0 %v1355, 40
      %v1426 = vpop.permute.xlu0 %1425
      %1427 = vrot.lane.b32.xlu0 %v1412, 40
      %v1428 = vpop.permute.xlu0 %1427
      %v1429 = vunpack.c.l.b16 %v919
      %v1430 = vunpack.c.l.b16 %v920
      %v1431 = vpack.c.b16 %v1430, %v1429
      %1432 = vrot.lane.b32.xlu0 %v1286, 48
      %v1433 = vpop.permute.xlu0 %1432
      %1434 = vrot.lane.b32.xlu0 %v1287, 48
      %v1435 = vpop.permute.xlu0 %1434
      %1436 = vrot.lane.b32.xlu0 %v1288, 48
      %v1437 = vpop.permute.xlu0 %1436
      %1438 = vrot.lane.b32.xlu0 %v1289, 48
      %v1439 = vpop.permute.xlu0 %1438
      %1440 = vrot.lane.b32.xlu0 %v1290, 48
      %v1441 = vpop.permute.xlu0 %1440
      %1442 = vrot.lane.b32.xlu0 %v1291, 48
      %v1443 = vpop.permute.xlu0 %1442
      %1444 = vrot.lane.b32.xlu0 %v1374, 48
      %v1445 = vpop.permute.xlu0 %1444
      %1446 = vrot.lane.b32.xlu0 %v1431, 48
      %v1447 = vpop.permute.xlu0 %1446
      %v1448 = vunpack.c.l.b16 %v1247
      %v1449 = vunpack.c.l.b16 %v1257
      %v1450 = vpack.c.b16 %v1449, %v1448
      %1451 = vrot.lane.b32.xlu0 %v1310, 56
      %v1452 = vpop.permute.xlu0 %1451
      %1453 = vrot.lane.b32.xlu0 %v1311, 56
      %v1454 = vpop.permute.xlu0 %1453
      %1455 = vrot.lane.b32.xlu0 %v1312, 56
      %v1456 = vpop.permute.xlu0 %1455
      %1457 = vrot.lane.b32.xlu0 %v1313, 56
      %v1458 = vpop.permute.xlu0 %1457
      %1459 = vrot.lane.b32.xlu0 %v1314, 56
      %v1460 = vpop.permute.xlu0 %1459
      %1461 = vrot.lane.b32.xlu0 %v1315, 56
      %v1462 = vpop.permute.xlu0 %1461
      %1463 = vrot.lane.b32.xlu0 %v1393, 56
      %v1464 = vpop.permute.xlu0 %1463
      %1465 = vrot.lane.b32.xlu0 %v1450, 56
      %v1466 = vpop.permute.xlu0 %1465
      %v1467 = vunpack.c.l.b16 %v1264
      %v1468 = vunpack.c.l.b16 %v1267
      %v1469 = vpack.c.b16 %v1468, %v1467
      %1470 = vrot.lane.b32.xlu0 %v1350, 64
      %v1471 = vpop.permute.xlu0 %1470
      %1472 = vrot.lane.b32.xlu0 %v1351, 64
      %v1473 = vpop.permute.xlu0 %1472
      %1474 = vrot.lane.b32.xlu0 %v1352, 64
      %v1475 = vpop.permute.xlu0 %1474
      %1476 = vrot.lane.b32.xlu0 %v1353, 64
      %v1477 = vpop.permute.xlu0 %1476
      %1478 = vrot.lane.b32.xlu0 %v1354, 64
      %v1479 = vpop.permute.xlu0 %1478
      %1480 = vrot.lane.b32.xlu0 %v1355, 64
      %v1481 = vpop.permute.xlu0 %1480
      %1482 = vrot.lane.b32.xlu0 %v1412, 64
      %v1483 = vpop.permute.xlu0 %1482
      %1484 = vrot.lane.b32.xlu0 %v1469, 64
      %v1485 = vpop.permute.xlu0 %1484
      %vm1486 = vcmask 64512
      %v1489 = vsel %vm1486, %v1284, %v1317
      %v1492 = vsel %vm1486, %v1285, %v1319
      %v1495 = vsel %vm1486, %v1286, %v1321
      %v1498 = vsel %vm1486, %v1287, %v1323
      %v1501 = vsel %vm1486, %v1288, %v1325
      %v1504 = vsel %vm1486, %v1289, %v1327
      %v1507 = vsel %vm1486, %v1290, %v1329
      %v1510 = vsel %vm1486, %v1291, %v1331
      %vm1511 = vcmask 130048
      %v1513 = vsel %vm1511, %v1489, %v1357
      %v1515 = vsel %vm1511, %v1492, %v1359
      %v1517 = vsel %vm1511, %v1495, %v1361
      %v1519 = vsel %vm1511, %v1498, %v1363
      %v1521 = vsel %vm1511, %v1501, %v1365
      %v1523 = vsel %vm1511, %v1504, %v1367
      %v1525 = vsel %vm1511, %v1507, %v1369
      %v1527 = vsel %vm1511, %v1510, %v1371
      %vm1528 = vcmask 195584
      %v1530 = vsel %vm1528, %v1513, %v1376
      %v1532 = vsel %vm1528, %v1515, %v1378
      %v1534 = vsel %vm1528, %v1517, %v1380
      %v1536 = vsel %vm1528, %v1519, %v1382
      %v1538 = vsel %vm1528, %v1521, %v1384
      %v1540 = vsel %vm1528, %v1523, %v1386
      %v1542 = vsel %vm1528, %v1525, %v1388
      %v1544 = vsel %vm1528, %v1527, %v1390
      %vm1545 = vcmask 261120
      %v1547 = vsel %vm1545, %v1530, %v1395
      %v1549 = vsel %vm1545, %v1532, %v1397
      %v1551 = vsel %vm1545, %v1534, %v1399
      %v1553 = vsel %vm1545, %v1536, %v1401
      %v1555 = vsel %vm1545, %v1538, %v1403
      %v1557 = vsel %vm1545, %v1540, %v1405
      %v1559 = vsel %vm1545, %v1542, %v1407
      %v1561 = vsel %vm1545, %v1544, %v1409
      %vm1562 = vcmask 326656
      %v1564 = vsel %vm1562, %v1547, %v1414
      %v1566 = vsel %vm1562, %v1549, %v1416
      %v1568 = vsel %vm1562, %v1551, %v1418
      %v1570 = vsel %vm1562, %v1553, %v1420
      %v1572 = vsel %vm1562, %v1555, %v1422
      %v1574 = vsel %vm1562, %v1557, %v1424
      %v1576 = vsel %vm1562, %v1559, %v1426
      %v1578 = vsel %vm1562, %v1561, %v1428
      %vm1579 = vcmask 392192
      %v1581 = vsel %vm1579, %v1564, %v1433
      %v1583 = vsel %vm1579, %v1566, %v1435
      %v1585 = vsel %vm1579, %v1568, %v1437
      %v1587 = vsel %vm1579, %v1570, %v1439
      %v1589 = vsel %vm1579, %v1572, %v1441
      %v1591 = vsel %vm1579, %v1574, %v1443
      %v1593 = vsel %vm1579, %v1576, %v1445
      %v1595 = vsel %vm1579, %v1578, %v1447
      %vm1596 = vcmask 457728
      %v1598 = vsel %vm1596, %v1581, %v1452
      %v1600 = vsel %vm1596, %v1583, %v1454
      %v1602 = vsel %vm1596, %v1585, %v1456
      %v1604 = vsel %vm1596, %v1587, %v1458
      %v1606 = vsel %vm1596, %v1589, %v1460
      %v1608 = vsel %vm1596, %v1591, %v1462
      %v1610 = vsel %vm1596, %v1593, %v1464
      %v1612 = vsel %vm1596, %v1595, %v1466
      %vm1613 = vcmask 523264
      %v1615 = vsel %vm1613, %v1598, %v1471
      %v1617 = vsel %vm1613, %v1600, %v1473
      %v1619 = vsel %vm1613, %v1602, %v1475
      %v1621 = vsel %vm1613, %v1604, %v1477
      %v1623 = vsel %vm1613, %v1606, %v1479
      %v1625 = vsel %vm1613, %v1608, %v1481
      %v1627 = vsel %vm1613, %v1610, %v1483
      %v1629 = vsel %vm1613, %v1612, %v1485
      %v1630 = vld [vmem:[%s4] sm:$0xf]
      %v1631 = vld [vmem:[%s4 + $0x4] sm:$0xf]
      %v1632 = vld [vmem:[%s4 + $0x8] sm:$0xf]
      %v1633 = vld [vmem:[%s4 + $0xc] sm:$0xf]
      %v1634 = vld [vmem:[%s4 + $0x10] sm:$0xf]
      %v1635 = vld [vmem:[%s4 + $0x14] sm:$0xf]
      %v1636 = vld [vmem:[%s4 + $0x18] sm:$0xf]
      %v1637 = vld [vmem:[%s4 + $0x1c] sm:$0xf]
      %v1638 = vld [vmem:[%s4 + $0x20] sm:$0xf]
      %v1639 = vld [vmem:[%s5] sm:$0x1]
      %v1641 = vperm.slane %v1639, 0
      %v1652 = vunpack.c.l.b16 %v1630
      %v1653 = vunpack.c.l.b16 %v1631
      %v1654 = vunpack.c.l.b16 %v1632
      %v1655 = vunpack.c.l.b16 %v1633
      %v1656 = vunpack.c.l.b16 %v1634
      %v1657 = vunpack.c.l.b16 %v1635
      %v1658 = vunpack.c.l.b16 %v1636
      %v1659 = vunpack.c.l.b16 %v1637
      %v1660 = vunpack.c.l.b16 %v1638
      %v1661 = vpack.c.b16 %v1653, %v1652
      %v1662 = vpack.c.b16 %v1655, %v1654
      %v1663 = vpack.c.b16 %v1657, %v1656
      %v1664 = vpack.c.b16 %v1659, %v1658
      %v1665 = vpack.c.b16 %v1660, %v1660
      %vm1670 = vcmask 588800
      %v1671 = vsel %vm1670, %v1615, 0
      %v1673 = vsel %vm1670, %v1617, 0
      %v1675 = vsel %vm1670, %v1619, 0
      %v1677 = vsel %vm1670, %v1621, 0
      %v1679 = vsel %vm1670, %v1623, 0
      %v1681 = vsel %vm1670, %v1625, 0
      %v1683 = vsel %vm1670, %v1627, 0
      %v1685 = vsel %vm1670, %v1629, 0
      %vm1687 = vcmask 1043456
      %v1689 = vsel %vm1687, %v1665, 0
      %1691 = vmatpush.bf16.msra.mxu0 0
      %1692 = vmatpush.bf16.msra.mxu0 0
      %1693 = vmatpush.bf16.msra.mxu0 0
      %1694 = vmatpush.bf16.msra.mxu0 %v1689
      %1695 = vmatpush.bf16.msra.mxu0 %v1664
      %1696 = vmatpush.bf16.msra.mxu0 %v1663
      %1697 = vmatpush.bf16.msra.mxu0 %v1662
      %1698 = vmatpush.bf16.msra.mxu0 %v1661
      %1699 = vmatmul.bf16.gmra.mxu0 %v1671
      %v1700 = vpop.f32.mrf.mxu0
      %v1701 = vadd.f32 %v1641, %v1700
      %v1702 = vpop.f32.mrf.mxu0
      %v1703 = vadd.f32 %v1641, %v1702
      %1704 = vmatmul.bf16.gmra.mxu0 %v1673
      %v1705 = vpop.f32.mrf.mxu0
      %v1706 = vadd.f32 %v1641, %v1705
      %v1707 = vpop.f32.mrf.mxu0
      %v1708 = vadd.f32 %v1641, %v1707
      %1709 = vmatmul.bf16.gmra.mxu0 %v1675
      %v1710 = vpop.f32.mrf.mxu0
      %v1711 = vadd.f32 %v1641, %v1710
      %v1712 = vpop.f32.mrf.mxu0
      %v1713 = vadd.f32 %v1641, %v1712
      %1714 = vmatmul.bf16.gmra.mxu0 %v1677
      %v1715 = vpop.f32.mrf.mxu0
      %v1716 = vadd.f32 %v1641, %v1715
      %v1717 = vpop.f32.mrf.mxu0
      %v1718 = vadd.f32 %v1641, %v1717
      %1719 = vmatmul.bf16.gmra.mxu0 %v1679
      %v1720 = vpop.f32.mrf.mxu0
      %v1721 = vadd.f32 %v1641, %v1720
      %v1722 = vpop.f32.mrf.mxu0
      %v1723 = vadd.f32 %v1641, %v1722
      %1724 = vmatmul.bf16.gmra.mxu0 %v1681
      %v1725 = vpop.f32.mrf.mxu0
      %v1726 = vadd.f32 %v1641, %v1725
      %v1727 = vpop.f32.mrf.mxu0
      %v1728 = vadd.f32 %v1641, %v1727
      %1729 = vmatmul.bf16.gmra.mxu0 %v1683
      %v1730 = vpop.f32.mrf.mxu0
      %v1731 = vadd.f32 %v1641, %v1730
      %v1732 = vpop.f32.mrf.mxu0
      %v1733 = vadd.f32 %v1641, %v1732
      %1734 = vmatmul.bf16.gmra.mxu0 %v1685
      %v1735 = vpop.f32.mrf.mxu0
      %v1736 = vadd.f32 %v1641, %v1735
      %v1737 = vpop.f32.mrf.mxu0
      %v1738 = vadd.f32 %v1641, %v1737
      %1739 = vdwg.mxu0
      %vm1740 = vcmp.ge.f32.partialorder %v1701, 0.0
      %vm1741 = vcmp.ge.f32.partialorder %v1703, 0.0
      %vm1742 = vcmp.ge.f32.partialorder %v1706, 0.0
      %vm1743 = vcmp.ge.f32.partialorder %v1708, 0.0
      %vm1744 = vcmp.ge.f32.partialorder %v1711, 0.0
      %vm1745 = vcmp.ge.f32.partialorder %v1713, 0.0
      %vm1746 = vcmp.ge.f32.partialorder %v1716, 0.0
      %vm1747 = vcmp.ge.f32.partialorder %v1718, 0.0
      %vm1748 = vcmp.ge.f32.partialorder %v1721, 0.0
      %vm1749 = vcmp.ge.f32.partialorder %v1723, 0.0
      %vm1750 = vcmp.ge.f32.partialorder %v1726, 0.0
      %vm1751 = vcmp.ge.f32.partialorder %v1728, 0.0
      %vm1752 = vcmp.ge.f32.partialorder %v1731, 0.0
      %vm1753 = vcmp.ge.f32.partialorder %v1733, 0.0
      %vm1754 = vcmp.ge.f32.partialorder %v1736, 0.0
      %vm1755 = vcmp.ge.f32.partialorder %v1738, 0.0
      %v1756 = vmul.f32 %v1701, 0.2
      %v1757 = vmul.f32 %v1703, 0.2
      %v1758 = vmul.f32 %v1706, 0.2
      %v1759 = vmul.f32 %v1708, 0.2
      %v1760 = vmul.f32 %v1711, 0.2
      %v1761 = vmul.f32 %v1713, 0.2
      %v1762 = vmul.f32 %v1716, 0.2
      %v1763 = vmul.f32 %v1718, 0.2
      %v1764 = vmul.f32 %v1721, 0.2
      %v1765 = vmul.f32 %v1723, 0.2
      %v1766 = vmul.f32 %v1726, 0.2
      %v1767 = vmul.f32 %v1728, 0.2
      %v1768 = vmul.f32 %v1731, 0.2
      %v1769 = vmul.f32 %v1733, 0.2
      %v1770 = vmul.f32 %v1736, 0.2
      %v1771 = vmul.f32 %v1738, 0.2
      %v1772 = vsel %vm1740, %v1701, %v1756
      %v1773 = vsel %vm1741, %v1703, %v1757
      %v1774 = vsel %vm1742, %v1706, %v1758
      %v1775 = vsel %vm1743, %v1708, %v1759
      %v1776 = vsel %vm1744, %v1711, %v1760
      %v1777 = vsel %vm1745, %v1713, %v1761
      %v1778 = vsel %vm1746, %v1716, %v1762
      %v1779 = vsel %vm1747, %v1718, %v1763
      %v1780 = vsel %vm1748, %v1721, %v1764
      %v1781 = vsel %vm1749, %v1723, %v1765
      %v1782 = vsel %vm1750, %v1726, %v1766
      %v1783 = vsel %vm1751, %v1728, %v1767
      %v1784 = vsel %vm1752, %v1731, %v1768
      %v1785 = vsel %vm1753, %v1733, %v1769
      %v1786 = vsel %vm1754, %v1736, %v1770
      %v1787 = vsel %vm1755, %v1738, %v1771
      %v1788 = vpack.c.bf16 %v1772, %v1772
      %v1789 = vpack.c.bf16 %v1773, %v1773
      %v1790 = vpack.c.bf16 %v1774, %v1774
      %v1791 = vpack.c.bf16 %v1775, %v1775
      %v1792 = vpack.c.bf16 %v1776, %v1776
      %v1793 = vpack.c.bf16 %v1777, %v1777
      %v1794 = vpack.c.bf16 %v1778, %v1778
      %v1795 = vpack.c.bf16 %v1779, %v1779
      %v1796 = vpack.c.bf16 %v1780, %v1780
      %v1797 = vpack.c.bf16 %v1781, %v1781
      %v1798 = vpack.c.bf16 %v1782, %v1782
      %v1799 = vpack.c.bf16 %v1783, %v1783
      %v1800 = vpack.c.bf16 %v1784, %v1784
      %v1801 = vpack.c.bf16 %v1785, %v1785
      %v1802 = vpack.c.bf16 %v1786, %v1786
      %v1803 = vpack.c.bf16 %v1787, %v1787
      %vm1804 = vcmask 519168
      %1805 = vst.msk [vmem:[%s432] sm:$0xf] %vm1804, %v1788
      %1806 = vst.msk [vmem:[%s432 + $0x4] sm:$0xf] %vm1804, %v1789
      %1807 = vst.msk [vmem:[%s432 + $0x8] sm:$0xf] %vm1804, %v1790
      %1808 = vst.msk [vmem:[%s432 + $0xc] sm:$0xf] %vm1804, %v1791
      %1809 = vst.msk [vmem:[%s432 + $0x10] sm:$0xf] %vm1804, %v1792
      %1810 = vst.msk [vmem:[%s432 + $0x14] sm:$0xf] %vm1804, %v1793
      %1811 = vst.msk [vmem:[%s432 + $0x18] sm:$0xf] %vm1804, %v1794
      %1812 = vst.msk [vmem:[%s432 + $0x1c] sm:$0xf] %vm1804, %v1795
      %1813 = vst.msk [vmem:[%s432 + $0x20] sm:$0xf] %vm1804, %v1796
      %1814 = vst.msk [vmem:[%s432 + $0x24] sm:$0xf] %vm1804, %v1797
      %1815 = vst.msk [vmem:[%s432 + $0x28] sm:$0xf] %vm1804, %v1798
      %1816 = vst.msk [vmem:[%s432 + $0x2c] sm:$0xf] %vm1804, %v1799
      %1817 = vst.msk [vmem:[%s432 + $0x30] sm:$0xf] %vm1804, %v1800
      %1818 = vst.msk [vmem:[%s432 + $0x34] sm:$0xf] %vm1804, %v1801
      %1819 = vst.msk [vmem:[%s432 + $0x38] sm:$0xf] %vm1804, %v1802
      %1820 = vst.msk [vmem:[%s432 + $0x3c] sm:$0xf] %vm1804, %v1803
      %s1821 = smul.u32 8, %s22
      %p1822 = scmp.lt.s32.totalorder %s21, 1
      %s1823 = scalar_select %p1822, %s21, 1
      %p1824 = scmp.lt.s32.totalorder %s1821, 15
      %s1825 = scalar_select %p1824, %s1821, 15
      %s1826 = smul.addr %s1825, 2
      %s1827 = smul.addr %s1823, 32
      %s1828 = sadd.s32 %s1826, %s1827
      %s1829 = smul.addr %s1828, 4
      %s1830 = scalar_lea.vmem %s6, %s1829
      // Predicated region
      $region61: #{coarse_denoise_encoder.8} parent=43 // pred_check
        %p1831 = pneg %p217
      $region62: #{coarse_denoise_encoder.8} parent=43 // pred_check_branch
        %1833 = sbr.rel (%p1831) target = $region64
      $region63: #{coarse_denoise_encoder.8} parent=43 // pred_region
        %s1834 = smul.u32 8, %s22
      $region64: #{coarse_denoise_encoder.8} parent=43 // pred_fallthru
        _
    $region44: #{coarse_denoise_encoder.8} parent=5 // pred_fallthru
      _
    %p1835 = scmp.le.s32.totalorder 2, %s12
    // Predicated region
    $region65: #{coarse_denoise_encoder.8} parent=5 // pred_check
      %p1836 = pneg %p1835
    $region66: #{coarse_denoise_encoder.8} parent=5 // pred_check_branch
      %1838 = sbr.rel (%p1836) target = $region68
    $region67: #{coarse_denoise_encoder.8} parent=5 // pred_region
      %s1839 = ssub.s32 %s12, 2
      // Predicated region
      $region69: #{coarse_denoise_encoder.8} parent=67 // pred_check
        %p1840 = pneg %p223
      $region70: #{coarse_denoise_encoder.8} parent=67 // pred_check_branch
        %1842 = sbr.rel (%p1840) target = $region72
      $region71: #{coarse_denoise_encoder.8} parent=67 // pred_region
        %s1843 = smul.u32 8, %s24
        %p1844 = scmp.lt.s32.totalorder %s23, 1
        %s1845 = scalar_select %p1844, %s23, 1
        %p1846 = scmp.lt.s32.totalorder %s1843, 15
        %s1847 = scalar_select %p1846, %s1843, 15
        %s1848 = smul.addr %s1847, 2
        %s1849 = smul.addr %s1845, 32
        %s1850 = sadd.s32 %s1848, %s1849
        %s1851 = smul.addr %s1850, 4
        %s1852 = scalar_lea.vmem %s6, %s1851
      $region72: #{coarse_denoise_encoder.8} parent=67 // pred_fallthru
        _
    $region68: #{coarse_denoise_encoder.8} parent=5 // pred_fallthru
      _
  $region6: #{coarse_denoise_encoder.8} parent=0 // loop_footer
    %s16 = sadd.s32 1, %s12
  $region7: #{coarse_denoise_encoder.8} parent=0 // loop_footer_branch
    %11 = sbr.rel target = $region3
  $region8: #{coarse_denoise_encoder.8} parent=0 // loop_exit
    _

// kernel: coarse_denoise_encoder.15
$region0: #{coarse_denoise_encoder.15}
  #allocation0 [shape = 'u32[]', space=smem, size = 0x4, offset = 0x4, fixed_abs, tag = 'smem constant byte address 0x4 - core index']
  #allocation1 [shape = 'u32[72,128]{1,0:T(1,128)}', space=vmem, size = 0x9000, scoped, tag = 'internal scratch']
  #allocation2 [shape = 'bf16[10,18,64]{2,1,0:T(8,128)(2,1)}', space=vmem, size = 0xf000, scoped, tag = 'scratch operand']
  %s0 = inlined_call_operand.vmem [shape: bf16[2,16,16,64], index: 0, kind: input, shape index: {}, may-alias: {0,1,2}]
  %s1 = inlined_call_operand.vmem [shape: bf16[2,16,16,64], index: 1, kind: input, shape index: {}, may-alias: {0,1,2}]
  %s2 = inlined_call_operand.vmem [shape: bf16[2,16,16,64], index: 2, kind: input, shape index: {}, may-alias: {0,1,2}]
  %s3 = inlined_call_operand.vmem [shape: f32[2,1,64], index: 3, kind: input, shape index: {}]
  %s4 = inlined_call_operand.vmem [shape: bf16[576,8], index: 4, kind: input, shape index: {}]
  %s5 = inlined_call_operand.vmem [shape: f32[1,8], index: 5, kind: input, shape index: {}]
  %s6 = inlined_call_operand.vmem [shape: f32[2,16,16,8], index: 6, kind: output, shape index: {}]
  %s7 = sld [smem:[#allocation0]]
  $region73: #{coarse_denoise_encoder.15} parent=0
    _
  %s9 = ssub.s32 1, %s7
  %s10 = scalar_select 0, %s9, %s7
  loop: start=0, step=1, limit=6
  $region2: #{coarse_denoise_encoder.15} parent=0 // loop_pre_header
    _
  $region3: #{coarse_denoise_encoder.15} parent=0 // loop_header
    %s12 = sphi 0, %s16
    %p13 = scmp.ge.s32.totalorder %s12, 6
    %s19 = sphi 0, %s31
    %s20 = sphi 0, %s27
    %s21 = sphi 0, %s19
    %s22 = sphi 0, %s20
    %s23 = sphi 0, %s21
    %s24 = sphi 0, %s22
    %s36 = sphi 0, %s38
    %s39 = sphi 0, %s36
    %s40 = sphi 0, %s39
    %s56 = sphi 0, %s40
    %s72 = sphi 0, %s74
    %s75 = sphi 0, %s72
    %s76 = sphi 0, %s75
    %s92 = sphi 0, %s76
    %s108 = sphi 0, %s110
    %s111 = sphi 0, %s108
    %s112 = sphi 0, %s111
    %s128 = sphi 0, %s112
    %s134 = sphi 0, %s136
    %s137 = sphi 0, %s134
    %s138 = sphi 0, %s137
    %s154 = sphi 0, %s138
    %s158 = sphi 0, %s158
    %s160 = sphi 0, %s158
    %s161 = sphi 0, %s160
    %s175 = sphi 0, %s161
    %s179 = sphi 0, %s179
    %s181 = sphi 0, %s179
    %s182 = sphi 0, %s181
    %s196 = sphi 0, %s182
    %s204 = sphi 0, %s206
    %s207 = sphi 0, %s204
    %s208 = sphi 0, %s207
    %s224 = sphi 0, %s208
  $region4: #{coarse_denoise_encoder.15} parent=0 // loop_header_branch
    %15 = sbr.rel (%p13) target = $region8
  $region5: #{coarse_denoise_encoder.15} parent=0 // loop_body
    %s17 = ssub.s32 %s12, 1
    %s18 = ssub.s32 %s12, 2
    %s25 = sadd.s32 1, %s20
    %p26 = scmp.ge.s32.totalorder %s25, 2
    %s27 = scalar_select %p26, 0, %s25
    %s28 = sadd.s32 1, %s19
    %s29 = scalar_select %p26, %s28, %s19
    %p30 = scmp.ge.s32.totalorder %s29, 2
    %s31 = scalar_select %p30, 0, %s29
    %s32 = ssub.s32 %s19, %s31
    %s33 = ssub.s32 %s20, %s27
    %s34 = sor.u32 %s32, %s33
    %p35 = scmp.eq.s32.totalorder %s34, 0
    %s37 = sadd.s32 %s36, 1
    %s38 = scalar_select %p35, %s36, %s37
    %p41 = pneg %p35
    %p42 = scmp.eq.s32.totalorder %s12, 3
    %p43 = por %p41, %p42
    %p44 = scmp.ne.s32.totalorder %s36, %s39
    %p45 = scmp.eq.s32.totalorder %s12, 0
    %p46 = por %p44, %p45
    %p47 = scmp.ne.s32.totalorder %s36, %s39
    %p48 = scmp.eq.s32.totalorder %s17, 3
    %p49 = por %p47, %p48
    %p50 = scmp.ne.s32.totalorder %s39, %s40
    %p51 = scmp.eq.s32.totalorder %s17, 0
    %p52 = por %p50, %p51
    %p53 = scmp.ne.s32.totalorder %s39, %s40
    %p54 = scmp.eq.s32.totalorder %s18, 3
    %p55 = por %p53, %p54
    %p57 = scmp.ne.s32.totalorder %s40, %s56
    %p58 = scmp.eq.s32.totalorder %s18, 0
    %p59 = por %p57, %p58
    %s60 = smul.u32 %s20, 8
    %s61 = ssub.s32 %s60, 1
    %p62 = scmp.gt.s32.totalorder %s61, 0
    %s63 = scalar_select %p62, %s61, 0
    %s64 = smul.u32 %s27, 8
    %s65 = ssub.s32 %s64, 1
    %p66 = scmp.gt.s32.totalorder %s65, 0
    %s67 = scalar_select %p66, %s65, 0
    %s68 = ssub.s32 %s19, %s31
    %s69 = ssub.s32 %s63, %s67
    %s70 = sor.u32 %s68, %s69
    %p71 = scmp.eq.s32.totalorder %s70, 0
    %s73 = sadd.s32 %s72, 1
    %s74 = scalar_select %p71, %s72, %s73
    %p77 = pneg %p71
    %p78 = scmp.eq.s32.totalorder %s12, 3
    %p79 = por %p77, %p78
    %p80 = scmp.ne.s32.totalorder %s72, %s75
    %p81 = scmp.eq.s32.totalorder %s12, 0
    %p82 = por %p80, %p81
    %p83 = scmp.ne.s32.totalorder %s72, %s75
    %p84 = scmp.eq.s32.totalorder %s17, 3
    %p85 = por %p83, %p84
    %p86 = scmp.ne.s32.totalorder %s75, %s76
    %p87 = scmp.eq.s32.totalorder %s17, 0
    %p88 = por %p86, %p87
    %p89 = scmp.ne.s32.totalorder %s75, %s76
    %p90 = scmp.eq.s32.totalorder %s18, 3
    %p91 = por %p89, %p90
    %p93 = scmp.ne.s32.totalorder %s76, %s92
    %p94 = scmp.eq.s32.totalorder %s18, 0
    %p95 = por %p93, %p94
    %s96 = sadd.s32 %s20, 1
    %s97 = smul.u32 %s96, 8
    %p98 = scmp.lt.s32.totalorder %s97, 15
    %s99 = scalar_select %p98, %s97, 15
    %s100 = sadd.s32 %s27, 1
    %s101 = smul.u32 %s100, 8
    %p102 = scmp.lt.s32.totalorder %s101, 15
    %s103 = scalar_select %p102, %s101, 15
    %s104 = ssub.s32 %s19, %s31
    %s105 = ssub.s32 %s99, %s103
    %s106 = sor.u32 %s104, %s105
    %p107 = scmp.eq.s32.totalorder %s106, 0
    %s109 = sadd.s32 %s108, 1
    %s110 = scalar_select %p107, %s108, %s109
    %p113 = pneg %p107
    %p114 = scmp.eq.s32.totalorder %s12, 3
    %p115 = por %p113, %p114
    %p116 = scmp.ne.s32.totalorder %s108, %s111
    %p117 = scmp.eq.s32.totalorder %s12, 0
    %p118 = por %p116, %p117
    %p119 = scmp.ne.s32.totalorder %s108, %s111
    %p120 = scmp.eq.s32.totalorder %s17, 3
    %p121 = por %p119, %p120
    %p122 = scmp.ne.s32.totalorder %s111, %s112
    %p123 = scmp.eq.s32.totalorder %s17, 0
    %p124 = por %p122, %p123
    %p125 = scmp.ne.s32.totalorder %s111, %s112
    %p126 = scmp.eq.s32.totalorder %s18, 3
    %p127 = por %p125, %p126
    %p129 = scmp.ne.s32.totalorder %s112, %s128
    %p130 = scmp.eq.s32.totalorder %s18, 0
    %p131 = por %p129, %p130
    %s132 = ssub.s32 %s19, %s31
    %p133 = scmp.eq.s32.totalorder %s132, 0
    %s135 = sadd.s32 %s134, 1
    %s136 = scalar_select %p133, %s134, %s135
    %p139 = pneg %p133
    %p140 = scmp.eq.s32.totalorder %s12, 3
    %p141 = por %p139, %p140
    %p142 = scmp.ne.s32.totalorder %s134, %s137
    %p143 = scmp.eq.s32.totalorder %s12, 0
    %p144 = por %p142, %p143
    %p145 = scmp.ne.s32.totalorder %s134, %s137
    %p146 = scmp.eq.s32.totalorder %s17, 3
    %p147 = por %p145, %p146
    %p148 = scmp.ne.s32.totalorder %s137, %s138
    %p149 = scmp.eq.s32.totalorder %s17, 0
    %p150 = por %p148, %p149
    %p151 = scmp.ne.s32.totalorder %s137, %s138
    %p152 = scmp.eq.s32.totalorder %s18, 3
    %p153 = por %p151, %p152
    %p155 = scmp.ne.s32.totalorder %s138, %s154
    %p156 = scmp.eq.s32.totalorder %s18, 0
    %p157 = por %p155, %p156
    %s159 = sadd.s32 %s158, 1
    %p162 = scmp.eq.s32.totalorder %s12, 3
    %p163 = scmp.ne.s32.totalorder %s158, %s160
    %p164 = scmp.eq.s32.totalorder %s12, 0
    %p165 = por %p163, %p164
    %p166 = scmp.ne.s32.totalorder %s158, %s160
    %p167 = scmp.eq.s32.totalorder %s17, 3
    %p168 = por %p166, %p167
    %p169 = scmp.ne.s32.totalorder %s160, %s161
    %p170 = scmp.eq.s32.totalorder %s17, 0
    %p171 = por %p169, %p170
    %p172 = scmp.ne.s32.totalorder %s160, %s161
    %p173 = scmp.eq.s32.totalorder %s18, 3
    %p174 = por %p172, %p173
    %p176 = scmp.ne.s32.totalorder %s161, %s175
    %p177 = scmp.eq.s32.totalorder %s18, 0
    %p178 = por %p176, %p177
    %s180 = sadd.s32 %s179, 1
    %p183 = scmp.eq.s32.totalorder %s12, 3
    %p184 = scmp.ne.s32.totalorder %s179, %s181
    %p185 = scmp.eq.s32.totalorder %s12, 0
    %p186 = por %p184, %p185
    %p187 = scmp.ne.s32.totalorder %s179, %s181
    %p188 = scmp.eq.s32.totalorder %s17, 3
    %p189 = por %p187, %p188
    %p190 = scmp.ne.s32.totalorder %s181, %s182
    %p191 = scmp.eq.s32.totalorder %s17, 0
    %p192 = por %p190, %p191
    %p193 = scmp.ne.s32.totalorder %s181, %s182
    %p194 = scmp.eq.s32.totalorder %s18, 3
    %p195 = por %p193, %p194
    %p197 = scmp.ne.s32.totalorder %s182, %s196
    %p198 = scmp.eq.s32.totalorder %s18, 0
    %p199 = por %p197, %p198
    %s200 = ssub.s32 %s19, %s31
    %s201 = ssub.s32 %s20, %s27
    %s202 = sor.u32 %s200, %s201
    %p203 = scmp.eq.s32.totalorder %s202, 0
    %s205 = sadd.s32 %s204, 1
    %s206 = scalar_select %p203, %s204, %s205
    %p209 = pneg %p203
    %p210 = scmp.eq.s32.totalorder %s12, 3
    %p211 = por %p209, %p210
    %p212 = scmp.ne.s32.totalorder %s204, %s207
    %p213 = scmp.eq.s32.totalorder %s12, 0
    %p214 = por %p212, %p213
    %p215 = scmp.ne.s32.totalorder %s204, %s207
    %p216 = scmp.eq.s32.totalorder %s17, 3
    %p217 = por %p215, %p216
    %p218 = scmp.ne.s32.totalorder %s207, %s208
    %p219 = scmp.eq.s32.totalorder %s17, 0
    %p220 = por %p218, %p219
    %p221 = scmp.ne.s32.totalorder %s207, %s208
    %p222 = scmp.eq.s32.totalorder %s18, 3
    %p223 = por %p221, %p222
    %p225 = scmp.ne.s32.totalorder %s208, %s224
    %p226 = scmp.eq.s32.totalorder %s18, 0
    %p227 = por %p225, %p226
    %p228 = scmp.le.s32.totalorder 1, %s12
    %p229 = scmp.lt.s32.totalorder %s12, 5
    %p230 = pnand %p228, %p229
    %p231 = pneg %p230
    // Predicated region
    $region9: #{coarse_denoise_encoder.15} parent=5 // pred_check
      _
    $region10: #{coarse_denoise_encoder.15} parent=5 // pred_check_branch
      %233 = sbr.rel (%p230) target = $region12
    $region11: #{coarse_denoise_encoder.15} parent=5 // pred_region
      %s234 = ssub.s32 %s12, 1
      // Predicated region
      $region13: #{coarse_denoise_encoder.15} parent=11 // pred_check
        %p235 = pneg %p171
      $region14: #{coarse_denoise_encoder.15} parent=11 // pred_check_branch
        %237 = sbr.rel (%p235) target = $region16
      $region15: #{coarse_denoise_encoder.15} parent=11 // pred_region
        _
      $region16: #{coarse_denoise_encoder.15} parent=11 // pred_fallthru
        _
      // Predicated region
      $region17: #{coarse_denoise_encoder.15} parent=11 // pred_check
        %p238 = pneg %p192
      $region18: #{coarse_denoise_encoder.15} parent=11 // pred_check_branch
        %240 = sbr.rel (%p238) target = $region20
      $region19: #{coarse_denoise_encoder.15} parent=11 // pred_region
        _
      $region20: #{coarse_denoise_encoder.15} parent=11 // pred_fallthru
        _
    $region12: #{coarse_denoise_encoder.15} parent=5 // pred_fallthru
      _
    %p241 = scmp.lt.s32.totalorder %s12, 4
    // Predicated region
    $region21: #{coarse_denoise_encoder.15} parent=5 // pred_check
      %p242 = pneg %p241
    $region22: #{coarse_denoise_encoder.15} parent=5 // pred_check_branch
      %244 = sbr.rel (%p242) target = $region24
    $region23: #{coarse_denoise_encoder.15} parent=5 // pred_region
      // Predicated region
      $region25: #{coarse_denoise_encoder.15} parent=23 // pred_check
        %p245 = pneg %p46
      $region26: #{coarse_denoise_encoder.15} parent=23 // pred_check_branch
        %247 = sbr.rel (%p245) target = $region28
      $region27: #{coarse_denoise_encoder.15} parent=23 // pred_region
        %s248 = smul.u32 8, %s20
        %p249 = scmp.lt.s32.totalorder %s19, 1
        %s250 = scalar_select %p249, %s19, 1
        %p251 = scmp.lt.s32.totalorder %s248, 15
        %s252 = scalar_select %p251, %s248, 15
        %s253 = smul.addr %s252, 2
        %s254 = smul.addr %s250, 32
        %s255 = sadd.s32 %s253, %s254
        %s256 = smul.addr %s255, 4
        %s257 = scalar_lea.vmem %s0, %s256
        %s258 = smul.u32 8, %s20
      $region28: #{coarse_denoise_encoder.15} parent=23 // pred_fallthru
        _
      // Predicated region
      $region29: #{coarse_denoise_encoder.15} parent=23 // pred_check
        %p259 = pneg %p82
      $region30: #{coarse_denoise_encoder.15} parent=23 // pred_check_branch
        %261 = sbr.rel (%p259) target = $region32
      $region31: #{coarse_denoise_encoder.15} parent=23 // pred_region
        %s262 = smul.u32 %s20, 8
        %s263 = ssub.s32 %s262, 1
        %p264 = scmp.gt.s32.totalorder %s263, 0
        %s265 = scalar_select %p264, %s263, 0
        %p266 = scmp.lt.s32.totalorder %s19, 1
        %s267 = scalar_select %p266, %s19, 1
        %p268 = scmp.lt.s32.totalorder %s265, 15
        %s269 = scalar_select %p268, %s265, 15
        %s270 = smul.addr %s269, 2
        %s271 = smul.addr %s267, 32
        %s272 = sadd.s32 %s270, %s271
        %s273 = smul.addr %s272, 4
        %s274 = scalar_lea.vmem %s1, %s273
        %s275 = smul.u32 %s20, 8
        %s276 = ssub.s32 %s275, 1
        %p277 = scmp.gt.s32.totalorder %s276, 0
        %s278 = scalar_select %p277, %s276, 0
      $region32: #{coarse_denoise_encoder.15} parent=23 // pred_fallthru
        _
      // Predicated region
      $region33: #{coarse_denoise_encoder.15} parent=23 // pred_check
        %p279 = pneg %p118
      $region34: #{coarse_denoise_encoder.15} parent=23 // pred_check_branch
        %281 = sbr.rel (%p279) target = $region36
      $region35: #{coarse_denoise_encoder.15} parent=23 // pred_region
        %s282 = sadd.s32 %s20, 1
        %s283 = smul.u32 %s282, 8
        %p284 = scmp.lt.s32.totalorder %s283, 15
        %s285 = scalar_select %p284, %s283, 15
        %p286 = scmp.lt.s32.totalorder %s19, 1
        %s287 = scalar_select %p286, %s19, 1
        %p288 = scmp.lt.s32.totalorder %s285, 15
        %s289 = scalar_select %p288, %s285, 15
        %s290 = smul.addr %s289, 2
        %s291 = smul.addr %s287, 32
        %s292 = sadd.s32 %s290, %s291
        %s293 = smul.addr %s292, 4
        %s294 = scalar_lea.vmem %s2, %s293
        %s295 = sadd.s32 %s20, 1
        %s296 = smul.u32 %s295, 8
        %p297 = scmp.lt.s32.totalorder %s296, 15
        %s298 = scalar_select %p297, %s296, 15
      $region36: #{coarse_denoise_encoder.15} parent=23 // pred_fallthru
        _
      // Predicated region
      $region37: #{coarse_denoise_encoder.15} parent=23 // pred_check
        %p299 = pneg %p144
      $region38: #{coarse_denoise_encoder.15} parent=23 // pred_check_branch
        %301 = sbr.rel (%p299) target = $region40
      $region39: #{coarse_denoise_encoder.15} parent=23 // pred_region
        %p302 = scmp.lt.s32.totalorder %s19, 1
        %s303 = scalar_select %p302, %s19, 1
        %s304 = scalar_lea.vmem %s3, %s303
      $region40: #{coarse_denoise_encoder.15} parent=23 // pred_fallthru
        _
    $region24: #{coarse_denoise_encoder.15} parent=5 // pred_fallthru
      _
    %p305 = scmp.le.s32.totalorder 1, %s12
    %p306 = scmp.lt.s32.totalorder %s12, 5
    %p307 = pnand %p305, %p306
    %p308 = pneg %p307
    // Predicated region
    $region41: #{coarse_denoise_encoder.15} parent=5 // pred_check
      _
    $region42: #{coarse_denoise_encoder.15} parent=5 // pred_check_branch
      %310 = sbr.rel (%p307) target = $region44
    $region43: #{coarse_denoise_encoder.15} parent=5 // pred_region
      %s311 = ssub.s32 %s12, 1
      %s312 = smul.u32 8, %s22
      %p313 = scmp.lt.s32.totalorder %s21, 1
      %s314 = scalar_select %p313, %s21, 1
      %p315 = scmp.lt.s32.totalorder %s312, 15
      %s316 = scalar_select %p315, %s312, 15
      %s317 = smul.addr %s316, 2
      %s318 = smul.addr %s314, 32
      %s319 = sadd.s32 %s317, %s318
      %s320 = smul.addr %s319, 4
      %s321 = scalar_lea.vmem %s0, %s320
      %p322 = pneg %p52
      %p323 = pneg %p49
      %s324 = smul.u32 %s22, 8
      %s325 = ssub.s32 %s324, 1
      %p326 = scmp.gt.s32.totalorder %s325, 0
      %s327 = scalar_select %p326, %s325, 0
      %p328 = scmp.lt.s32.totalorder %s21, 1
      %s329 = scalar_select %p328, %s21, 1
      %p330 = scmp.lt.s32.totalorder %s327, 15
      %s331 = scalar_select %p330, %s327, 15
      %s332 = smul.addr %s331, 2
      %s333 = smul.addr %s329, 32
      %s334 = sadd.s32 %s332, %s333
      %s335 = smul.addr %s334, 4
      %s336 = scalar_lea.vmem %s1, %s335
      %p337 = pneg %p88
      %p338 = pneg %p85
      %s339 = sadd.s32 %s22, 1
      %s340 = smul.u32 %s339, 8
      %p341 = scmp.lt.s32.totalorder %s340, 15
      %s342 = scalar_select %p341, %s340, 15
      %p343 = scmp.lt.s32.totalorder %s21, 1
      %s344 = scalar_select %p343, %s21, 1
      %p345 = scmp.lt.s32.totalorder %s342, 15
      %s346 = scalar_select %p345, %s342, 15
      %s347 = smul.addr %s346, 2
      %s348 = smul.addr %s344, 32
      %s349 = sadd.s32 %s347, %s348
      %s350 = smul.addr %s349, 4
      %s351 = scalar_lea.vmem %s2, %s350
      %p352 = pneg %p124
      %p353 = pneg %p121
      %p354 = scmp.lt.s32.totalorder %s21, 1
      %s355 = scalar_select %p354, %s21, 1
      %s356 = scalar_lea.vmem %s3, %s355
      %p357 = pneg %p150
      %p358 = pneg %p147
      %p359 = pneg %p171
      %p360 = pneg %p168
      %p361 = pneg %p192
      %p362 = pneg %p189
      %p363 = pneg %p220
      %p364 = pneg %p217
      %s365 = smul.u32 8, %s22
      %p366 = scmp.lt.s32.totalorder %s21, 1
      %s367 = scalar_select %p366, %s21, 1
      %p368 = scmp.lt.s32.totalorder %s365, 15
      %s369 = scalar_select %p368, %s365, 15
      %s370 = smul.addr %s369, 2
      %s371 = smul.addr %s367, 32
      %s372 = sadd.s32 %s370, %s371
      %s373 = smul.addr %s372, 8
      %s374 = scalar_lea.vmem %s6, %s373
      %s375 = smul.u32 8, %s22
      %p376 = scmp.lt.s32.totalorder %s21, 1
      %s377 = scalar_select %p376, %s21, 1
      %p378 = scmp.lt.s32.totalorder %s375, 15
      %s379 = scalar_select %p378, %s375, 15
      %s380 = smul.addr %s379, 2
      %s381 = smul.addr %s377, 32
      %s382 = sadd.s32 %s380, %s381
      %s383 = smul.addr %s382, 4
      %s384 = scalar_lea.vmem %s0, %s383
      %s385 = smul.u32 8, %s22
      %s386 = smul.u32 %s22, 8
      %s387 = ssub.s32 %s386, 1
      %p388 = scmp.gt.s32.totalorder %s387, 0
      %s389 = scalar_select %p388, %s387, 0
      %p390 = scmp.lt.s32.totalorder %s21, 1
      %s391 = scalar_select %p390, %s21, 1
      %p392 = scmp.lt.s32.totalorder %s389, 15
      %s393 = scalar_select %p392, %s389, 15
      %s394 = smul.addr %s393, 2
      %s395 = smul.addr %s391, 32
      %s396 = sadd.s32 %s394, %s395
      %s397 = smul.addr %s396, 4
      %s398 = scalar_lea.vmem %s1, %s397
      %s399 = smul.u32 %s22, 8
      %s400 = ssub.s32 %s399, 1
      %p401 = scmp.gt.s32.totalorder %s400, 0
      %s402 = scalar_select %p401, %s400, 0
      %s403 = sadd.s32 %s22, 1
      %s404 = smul.u32 %s403, 8
      %p405 = scmp.lt.s32.totalorder %s404, 15
      %s406 = scalar_select %p405, %s404, 15
      %p407 = scmp.lt.s32.totalorder %s21, 1
      %s408 = scalar_select %p407, %s21, 1
      %p409 = scmp.lt.s32.totalorder %s406, 15
      %s410 = scalar_select %p409, %s406, 15
      %s411 = smul.addr %s410, 2
      %s412 = smul.addr %s408, 32
      %s413 = sadd.s32 %s411, %s412
      %s414 = smul.addr %s413, 4
      %s415 = scalar_lea.vmem %s2, %s414
      %s416 = sadd.s32 %s22, 1
      %s417 = smul.u32 %s416, 8
      %p418 = scmp.lt.s32.totalorder %s417, 15
      %s419 = scalar_select %p418, %s417, 15
      %p420 = scmp.lt.s32.totalorder %s21, 1
      %s421 = scalar_select %p420, %s21, 1
      %s422 = scalar_lea.vmem %s3, %s421
      %s423 = smul.u32 8, %s22
      %p424 = scmp.lt.s32.totalorder %s21, 1
      %s425 = scalar_select %p424, %s21, 1
      %p426 = scmp.lt.s32.totalorder %s423, 15
      %s427 = scalar_select %p426, %s423, 15
      %s428 = smul.addr %s427, 2
      %s429 = smul.addr %s425, 32
      %s430 = sadd.s32 %s428, %s429
      %s431 = smul.addr %s430, 8
      %s432 = scalar_lea.vmem %s6, %s431
      %s433 = smul.u32 8, %s22
      %v435 = vld [vmem:[%s422] sm:$0x1]
      %v436 = vld [vmem:[%s384] sm:$0xf]
      %v437 = vld [vmem:[%s384 + $0x4] sm:$0xf]
      %v438 = vld [vmem:[%s384 + $0x8] sm:$0xf]
      %v439 = vld [vmem:[%s384 + $0xc] sm:$0xf]
      %v440 = vld [vmem:[%s384 + $0x10] sm:$0xf]
      %v441 = vld [vmem:[%s384 + $0x14] sm:$0xf]
      %v442 = vld [vmem:[%s384 + $0x18] sm:$0xf]
      %v443 = vld [vmem:[%s384 + $0x1c] sm:$0xf]
      %v444 = vld [vmem:[%s384 + $0x20] sm:$0xf]
      %v445 = vld [vmem:[%s384 + $0x24] sm:$0xf]
      %v446 = vld [vmem:[%s384 + $0x28] sm:$0xf]
      %v447 = vld [vmem:[%s384 + $0x2c] sm:$0xf]
      %v448 = vld [vmem:[%s384 + $0x30] sm:$0xf]
      %v449 = vld [vmem:[%s384 + $0x34] sm:$0xf]
      %v450 = vld [vmem:[%s384 + $0x38] sm:$0xf]
      %v451 = vld [vmem:[%s384 + $0x3c] sm:$0xf]
      %v452 = vunpack.c.l.bf16 %v436
      %v453 = vunpack.c.l.bf16 %v437
      %v454 = vunpack.c.l.bf16 %v438
      %v455 = vunpack.c.l.bf16 %v439
      %v456 = vunpack.c.l.bf16 %v440
      %v457 = vunpack.c.l.bf16 %v441
      %v458 = vunpack.c.l.bf16 %v442
      %v459 = vunpack.c.l.bf16 %v443
      %v460 = vunpack.c.l.bf16 %v444
      %v461 = vunpack.c.l.bf16 %v445
      %v462 = vunpack.c.l.bf16 %v446
      %v463 = vunpack.c.l.bf16 %v447
      %v464 = vunpack.c.l.bf16 %v448
      %v465 = vunpack.c.l.bf16 %v449
      %v466 = vunpack.c.l.bf16 %v450
      %v467 = vunpack.c.l.bf16 %v451
      %v469 = vperm.slane %v435, 0
      %v471 = vmul.f32 %v452, %v469
      %v472 = vmul.f32 %v453, %v469
      %v473 = vmul.f32 %v454, %v469
      %v474 = vmul.f32 %v455, %v469
      %v475 = vmul.f32 %v456, %v469
      %v476 = vmul.f32 %v457, %v469
      %v477 = vmul.f32 %v458, %v469
      %v478 = vmul.f32 %v459, %v469
      %v479 = vmul.f32 %v460, %v469
      %v480 = vmul.f32 %v461, %v469
      %v481 = vmul.f32 %v462, %v469
      %v482 = vmul.f32 %v463, %v469
      %v483 = vmul.f32 %v464, %v469
      %v484 = vmul.f32 %v465, %v469
      %v485 = vmul.f32 %v466, %v469
      %v486 = vmul.f32 %v467, %v469
      %v487 = vpack.c.bf16 %v471, %v471
      %v488 = vpack.c.bf16 %v472, %v472
      %v489 = vpack.c.bf16 %v473, %v473
      %v490 = vpack.c.bf16 %v474, %v474
      %v491 = vpack.c.bf16 %v475, %v475
      %v492 = vpack.c.bf16 %v476, %v476
      %v493 = vpack.c.bf16 %v477, %v477
      %v494 = vpack.c.bf16 %v478, %v478
      %v495 = vpack.c.bf16 %v479, %v479
      %v496 = vpack.c.bf16 %v480, %v480
      %v497 = vpack.c.bf16 %v481, %v481
      %v498 = vpack.c.bf16 %v482, %v482
      %v499 = vpack.c.bf16 %v483, %v483
      %v500 = vpack.c.bf16 %v484, %v484
      %v501 = vpack.c.bf16 %v485, %v485
      %v502 = vpack.c.bf16 %v486, %v486
      %vm503 = vsmask.f32 256
      %vm504 = vsmask.f32 4368
      %vm505 = vmor %vm503, %vm504
      %v507 = vshrl.u32 %v487, 16
      %v509 = vrot.slane %v507, 7
      %v510 = vshll.u32 %v487, 16
      %v512 = vor.u32 %v509, %v510
      %v513 = vrot.slane %v509, 4
      %v515 = vshrl.u32 %v488, 16
      %v517 = vrot.slane %v515, 7
      %v518 = vshll.u32 %v488, 16
      %v520 = vor.u32 %v517, %v518
      %v521 = vsel %vm505, %v513, %v520
      %v522 = vrot.slane %v517, 4
      %v524 = vshrl.u32 %v489, 16
      %v526 = vrot.slane %v524, 7
      %v527 = vshll.u32 %v489, 16
      %v529 = vor.u32 %v526, %v527
      %v530 = vrot.slane %v526, 4
      %v532 = vshrl.u32 %v490, 16
      %v534 = vrot.slane %v532, 7
      %v535 = vshll.u32 %v490, 16
      %v537 = vor.u32 %v534, %v535
      %v538 = vsel %vm505, %v530, %v537
      %v539 = vrot.slane %v534, 4
      %v541 = vshrl.u32 %v491, 16
      %v543 = vrot.slane %v541, 7
      %v544 = vshll.u32 %v491, 16
      %v546 = vor.u32 %v543, %v544
      %v547 = vrot.slane %v543, 4
      %v549 = vshrl.u32 %v492, 16
      %v551 = vrot.slane %v549, 7
      %v552 = vshll.u32 %v492, 16
      %v554 = vor.u32 %v551, %v552
      %v555 = vsel %vm505, %v547, %v554
      %v556 = vrot.slane %v551, 4
      %v558 = vshrl.u32 %v493, 16
      %v560 = vrot.slane %v558, 7
      %v561 = vshll.u32 %v493, 16
      %v563 = vor.u32 %v560, %v561
      %v564 = vrot.slane %v560, 4
      %v566 = vshrl.u32 %v494, 16
      %v568 = vrot.slane %v566, 7
      %v569 = vshll.u32 %v494, 16
      %v571 = vor.u32 %v568, %v569
      %v572 = vsel %vm505, %v564, %v571
      %v573 = vrot.slane %v568, 4
      %v575 = vshrl.u32 %v495, 16
      %v577 = vrot.slane %v575, 7
      %v578 = vshll.u32 %v495, 16
      %v580 = vor.u32 %v577, %v578
      %v581 = vrot.slane %v577, 4
      %v583 = vshrl.u32 %v496, 16
      %v585 = vrot.slane %v583, 7
      %v586 = vshll.u32 %v496, 16
      %v588 = vor.u32 %v585, %v586
      %v589 = vsel %vm505, %v581, %v588
      %v590 = vrot.slane %v585, 4
      %v592 = vshrl.u32 %v497, 16
      %v594 = vrot.slane %v592, 7
      %v595 = vshll.u32 %v497, 16
      %v597 = vor.u32 %v594, %v595
      %v598 = vrot.slane %v594, 4
      %v600 = vshrl.u32 %v498, 16
      %v602 = vrot.slane %v600, 7
      %v603 = vshll.u32 %v498, 16
      %v605 = vor.u32 %v602, %v603
      %v606 = vsel %vm505, %v598, %v605
      %v607 = vrot.slane %v602, 4
      %v609 = vshrl.u32 %v499, 16
      %v611 = vrot.slane %v609, 7
      %v612 = vshll.u32 %v499, 16
      %v614 = vor.u32 %v611, %v612
      %v615 = vrot.slane %v611, 4
      %v617 = vshrl.u32 %v500, 16
      %v619 = vrot.slane %v617, 7
      %v620 = vshll.u32 %v500, 16
      %v622 = vor.u32 %v619, %v620
      %v623 = vsel %vm505, %v615, %v622
      %v624 = vrot.slane %v619, 4
      %v626 = vshrl.u32 %v501, 16
      %v628 = vrot.slane %v626, 7
      %v629 = vshll.u32 %v501, 16
      %v631 = vor.u32 %v628, %v629
      %v632 = vrot.slane %v628, 4
      %v634 = vshrl.u32 %v502, 16
      %v636 = vrot.slane %v634, 7
      %v637 = vshll.u32 %v502, 16
      %v639 = vor.u32 %v636, %v637
      %v640 = vsel %vm505, %v632, %v639
      %v641 = vrot.slane %v636, 4
      %s666 = scalar_lea.vmem [#allocation2], 12
      %vm667 = vcmask 519168
      %vm668 = vsmask.f32 7938
      %vm669 = vmand %vm667, %vm668
      %v670 = vld [vmem:[%s666] sm:$0xf]
      %v671 = vsel %vm669, %v512, %v670
      %672 = vst [vmem:[%s666] sm:$0xf] %v671
      %vm673 = vcmask 519168
      %674 = vst.msk [vmem:[%s666 + $0x4] sm:$0xf] %vm673, %v521
      %vm675 = vcmask 516096
      %vm676 = vmand %vm675, %vm503
      %v677 = vld [vmem:[%s666 + $0x8] sm:$0x1]
      %v678 = vsel %vm676, %v522, %v677
      %679 = vst [vmem:[%s666 + $0x8] sm:$0x1] %v678
      %v680 = vld [vmem:[%s666 + $0xc] sm:$0xf]
      %v681 = vsel %vm669, %v529, %v680
      %682 = vst [vmem:[%s666 + $0xc] sm:$0xf] %v681
      %683 = vst.msk [vmem:[%s666 + $0x10] sm:$0xf] %vm673, %v538
      %v684 = vld [vmem:[%s666 + $0x14] sm:$0x1]
      %v685 = vsel %vm676, %v539, %v684
      %686 = vst [vmem:[%s666 + $0x14] sm:$0x1] %v685
      %v687 = vld [vmem:[%s666 + $0x18] sm:$0xf]
      %v688 = vsel %vm669, %v546, %v687
      %689 = vst [vmem:[%s666 + $0x18] sm:$0xf] %v688
      %690 = vst.msk [vmem:[%s666 + $0x1c] sm:$0xf] %vm673, %v555
      %v691 = vld [vmem:[%s666 + $0x20] sm:$0x1]
      %v692 = vsel %vm676, %v556, %v691
      %693 = vst [vmem:[%s666 + $0x20] sm:$0x1] %v692
      %v694 = vld [vmem:[%s666 + $0x24] sm:$0xf]
      %v695 = vsel %vm669, %v563, %v694
      %696 = vst [vmem:[%s666 + $0x24] sm:$0xf] %v695
      %697 = vst.msk [vmem:[%s666 + $0x28] sm:$0xf] %vm673, %v572
      %v698 = vld [vmem:[%s666 + $0x2c] sm:$0x1]
      %v699 = vsel %vm676, %v573, %v698
      %700 = vst [vmem:[%s666 + $0x2c] sm:$0x1] %v699
      %v701 = vld [vmem:[%s666 + $0x30] sm:$0xf]
      %v702 = vsel %vm669, %v580, %v701
      %703 = vst [vmem:[%s666 + $0x30] sm:$0xf] %v702
      %704 = vst.msk [vmem:[%s666 + $0x34] sm:$0xf] %vm673, %v589
      %v705 = vld [vmem:[%s666 + $0x38] sm:$0x1]
      %v706 = vsel %vm676, %v590, %v705
      %707 = vst [vmem:[%s666 + $0x38] sm:$0x1] %v706
      %v708 = vld [vmem:[%s666 + $0x3c] sm:$0xf]
      %v709 = vsel %vm669, %v597, %v708
      %710 = vst [vmem:[%s666 + $0x3c] sm:$0xf] %v709
      %711 = vst.msk [vmem:[%s666 + $0x40] sm:$0xf] %vm673, %v606
      %v712 = vld [vmem:[%s666 + $0x44] sm:$0x1]
      %v713 = vsel %vm676, %v607, %v712
      %714 = vst [vmem:[%s666 + $0x44] sm:$0x1] %v713
      %v715 = vld [vmem:[%s666 + $0x48] sm:$0xf]
      %v716 = vsel %vm669, %v614, %v715
      %717 = vst [vmem:[%s666 + $0x48] sm:$0xf] %v716
      %718 = vst.msk [vmem:[%s666 + $0x4c] sm:$0xf] %vm673, %v623
      %v719 = vld [vmem:[%s666 + $0x50] sm:$0x1]
      %v720 = vsel %vm676, %v624, %v719
      %721 = vst [vmem:[%s666 + $0x50] sm:$0x1] %v720
      %v722 = vld [vmem:[%s666 + $0x54] sm:$0xf]
      %v723 = vsel %vm669, %v631, %v722
      %724 = vst [vmem:[%s666 + $0x54] sm:$0xf] %v723
      %725 = vst.msk [vmem:[%s666 + $0x58] sm:$0xf] %vm673, %v640
      %v726 = vld [vmem:[%s666 + $0x5c] sm:$0x1]
      %v727 = vsel %vm676, %v641, %v726
      %728 = vst [vmem:[%s666 + $0x5c] sm:$0x1] %v727
      %p729 = scmp.eq.s32.totalorder %s22, 0
      // Predicated region
      $region45: #{coarse_denoise_encoder.15} parent=43 // pred_check
        %p730 = pneg %p729
      $region46: #{coarse_denoise_encoder.15} parent=43 // pred_check_branch
        %732 = sbr.rel (%p730) target = $region48
      $region47: #{coarse_denoise_encoder.15} parent=43 // pred_region
        %v733 = vld [vmem:[#allocation2] sm:$0xf]
        %v734 = vsel %vm669, 0, %v733
        %735 = vst [vmem:[#allocation2] sm:$0xf] %v734
        %736 = vst.msk [vmem:[#allocation2 + $0x4] sm:$0xf] %vm673, 0
        %v737 = vld [vmem:[#allocation2 + $0x8] sm:$0x1]
        %v738 = vsel %vm676, 0, %v737
        %739 = vst [vmem:[#allocation2 + $0x8] sm:$0x1] %v738
      $region48: #{coarse_denoise_encoder.15} parent=43 // pred_fallthru
        _
      %p740 = scmp.gt.s32.totalorder %s22, 0
      // Predicated region
      $region49: #{coarse_denoise_encoder.15} parent=43 // pred_check
        %p741 = pneg %p740
      $region50: #{coarse_denoise_encoder.15} parent=43 // pred_check_branch
        %743 = sbr.rel (%p741) target = $region52
      $region51: #{coarse_denoise_encoder.15} parent=43 // pred_region
        %v744 = vld [vmem:[%s398] sm:$0xf]
        %v745 = vld [vmem:[%s398 + $0x4] sm:$0xf]
        %v746 = vunpack.c.l.bf16 %v744
        %v747 = vunpack.c.l.bf16 %v745
        %v748 = vmul.f32 %v746, %v469
        %v749 = vmul.f32 %v747, %v469
        %v750 = vpack.c.bf16 %v748, %v748
        %v751 = vpack.c.bf16 %v749, %v749
        %v753 = vshrl.u32 %v750, 16
        %v755 = vrot.slane %v753, 7
        %v756 = vshll.u32 %v750, 16
        %v758 = vor.u32 %v755, %v756
        %v759 = vrot.slane %v755, 4
        %v761 = vshrl.u32 %v751, 16
        %v763 = vrot.slane %v761, 7
        %v764 = vshll.u32 %v751, 16
        %v766 = vor.u32 %v763, %v764
        %v767 = vsel %vm505, %v759, %v766
        %v768 = vrot.slane %v763, 4
        %v772 = vld [vmem:[#allocation2] sm:$0xf]
        %v773 = vsel %vm669, %v758, %v772
        %774 = vst [vmem:[#allocation2] sm:$0xf] %v773
        %775 = vst.msk [vmem:[#allocation2 + $0x4] sm:$0xf] %vm673, %v767
        %v776 = vld [vmem:[#allocation2 + $0x8] sm:$0x1]
        %v777 = vsel %vm676, %v768, %v776
        %778 = vst [vmem:[#allocation2 + $0x8] sm:$0x1] %v777
      $region52: #{coarse_denoise_encoder.15} parent=43 // pred_fallthru
        _
      %p779 = scmp.eq.s32.totalorder %s22, 1
      // Predicated region
      $region53: #{coarse_denoise_encoder.15} parent=43 // pred_check
        %p780 = pneg %p779
      $region54: #{coarse_denoise_encoder.15} parent=43 // pred_check_branch
        %782 = sbr.rel (%p780) target = $region56
      $region55: #{coarse_denoise_encoder.15} parent=43 // pred_region
        %s783 = scalar_lea.vmem [#allocation2], 108
        %v784 = vld [vmem:[%s783] sm:$0xf]
        %v785 = vsel %vm669, 0, %v784
        %786 = vst [vmem:[%s783] sm:$0xf] %v785
        %787 = vst.msk [vmem:[%s783 + $0x4] sm:$0xf] %vm673, 0
        %v788 = vld [vmem:[%s783 + $0x8] sm:$0x1]
        %v789 = vsel %vm676, 0, %v788
        %790 = vst [vmem:[%s783 + $0x8] sm:$0x1] %v789
      $region56: #{coarse_denoise_encoder.15} parent=43 // pred_fallthru
        _
      %p791 = scmp.lt.s32.totalorder %s22, 1
      // Predicated region
      $region57: #{coarse_denoise_encoder.15} parent=43 // pred_check
        %p792 = pneg %p791
      $region58: #{coarse_denoise_encoder.15} parent=43 // pred_check_branch
        %794 = sbr.rel (%p792) target = $region60
      $region59: #{coarse_denoise_encoder.15} parent=43 // pred_region
        %v795 = vld [vmem:[%s415] sm:$0xf]
        %v796 = vld [vmem:[%s415 + $0x4] sm:$0xf]
        %v797 = vunpack.c.l.bf16 %v795
        %v798 = vunpack.c.l.bf16 %v796
        %v799 = vmul.f32 %v797, %v469
        %v800 = vmul.f32 %v798, %v469
        %v801 = vpack.c.bf16 %v799, %v799
        %v802 = vpack.c.bf16 %v800, %v800
        %v804 = vshrl.u32 %v801, 16
        %v806 = vrot.slane %v804, 7
        %v807 = vshll.u32 %v801, 16
        %v809 = vor.u32 %v806, %v807
        %v810 = vrot.slane %v806, 4
        %v812 = vshrl.u32 %v802, 16
        %v814 = vrot.slane %v812, 7
        %v815 = vshll.u32 %v802, 16
        %v817 = vor.u32 %v814, %v815
        %v818 = vsel %vm505, %v810, %v817
        %v819 = vrot.slane %v814, 4
        %s823 = scalar_lea.vmem [#allocation2], 108
        %v824 = vld [vmem:[%s823] sm:$0xf]
        %v825 = vsel %vm669, %v809, %v824
        %826 = vst [vmem:[%s823] sm:$0xf] %v825
        %827 = vst.msk [vmem:[%s823 + $0x4] sm:$0xf] %vm673, %v818
        %v828 = vld [vmem:[%s823 + $0x8] sm:$0x1]
        %v829 = vsel %vm676, %v819, %v828
        %830 = vst [vmem:[%s823 + $0x8] sm:$0x1] %v829
      $region60: #{coarse_denoise_encoder.15} parent=43 // pred_fallthru
        _
      %v831 = vld [vmem:[#allocation2] sm:$0x1]
      %v832 = vsel %vm676, 0, %v831
      %833 = vst [vmem:[#allocation2] sm:$0x1] %v832
      %v834 = vld [vmem:[#allocation2 + $0xc] sm:$0x1]
      %v835 = vsel %vm676, 0, %v834
      %836 = vst [vmem:[#allocation2 + $0xc] sm:$0x1] %v835
      %v837 = vld [vmem:[#allocation2 + $0x18] sm:$0x1]
      %v838 = vsel %vm676, 0, %v837
      %839 = vst [vmem:[#allocation2 + $0x18] sm:$0x1] %v838
      %v840 = vld [vmem:[#allocation2 + $0x24] sm:$0x1]
      %v841 = vsel %vm676, 0, %v840
      %842 = vst [vmem:[#allocation2 + $0x24] sm:$0x1] %v841
      %v843 = vld [vmem:[#allocation2 + $0x30] sm:$0x1]
      %v844 = vsel %vm676, 0, %v843
      %845 = vst [vmem:[#allocation2 + $0x30] sm:$0x1] %v844
      %v846 = vld [vmem:[#allocation2 + $0x3c] sm:$0x1]
      %v847 = vsel %vm676, 0, %v846
      %848 = vst [vmem:[#allocation2 + $0x3c] sm:$0x1] %v847
      %v849 = vld [vmem:[#allocation2 + $0x48] sm:$0x1]
      %v850 = vsel %vm676, 0, %v849
      %851 = vst [vmem:[#allocation2 + $0x48] sm:$0x1] %v850
      %v852 = vld [vmem:[#allocation2 + $0x54] sm:$0x1]
      %v853 = vsel %vm676, 0, %v852
      %854 = vst [vmem:[#allocation2 + $0x54] sm:$0x1] %v853
      %v855 = vld [vmem:[#allocation2 + $0x60] sm:$0x1]
      %v856 = vsel %vm676, 0, %v855
      %857 = vst [vmem:[#allocation2 + $0x60] sm:$0x1] %v856
      %v858 = vld [vmem:[#allocation2 + $0x6c] sm:$0x1]
      %v859 = vsel %vm676, 0, %v858
      %860 = vst [vmem:[#allocation2 + $0x6c] sm:$0x1] %v859
      %vm861 = vmand %vm675, %vm668
      %v862 = vld [vmem:[#allocation2 + $0x8] sm:$0x1]
      %v863 = vsel %vm861, 0, %v862
      %864 = vst [vmem:[#allocation2 + $0x8] sm:$0x1] %v863
      %v865 = vld [vmem:[#allocation2 + $0x14] sm:$0x1]
      %v866 = vsel %vm861, 0, %v865
      %867 = vst [vmem:[#allocation2 + $0x14] sm:$0x1] %v866
      %v868 = vld [vmem:[#allocation2 + $0x20] sm:$0x1]
      %v869 = vsel %vm861, 0, %v868
      %870 = vst [vmem:[#allocation2 + $0x20] sm:$0x1] %v869
      %v871 = vld [vmem:[#allocation2 + $0x2c] sm:$0x1]
      %v872 = vsel %vm861, 0, %v871
      %873 = vst [vmem:[#allocation2 + $0x2c] sm:$0x1] %v872
      %v874 = vld [vmem:[#allocation2 + $0x38] sm:$0x1]
      %v875 = vsel %vm861, 0, %v874
      %876 = vst [vmem:[#allocation2 + $0x38] sm:$0x1] %v875
      %v877 = vld [vmem:[#allocation2 + $0x44] sm:$0x1]
      %v878 = vsel %vm861, 0, %v877
      %879 = vst [vmem:[#allocation2 + $0x44] sm:$0x1] %v878
      %v880 = vld [vmem:[#allocation2 + $0x50] sm:$0x1]
      %v881 = vsel %vm861, 0, %v880
      %882 = vst [vmem:[#allocation2 + $0x50] sm:$0x1] %v881
      %v883 = vld [vmem:[#allocation2 + $0x5c] sm:$0x1]
      %v884 = vsel %vm861, 0, %v883
      %885 = vst [vmem:[#allocation2 + $0x5c] sm:$0x1] %v884
      %v886 = vld [vmem:[#allocation2 + $0x68] sm:$0x1]
      %v887 = vsel %vm861, 0, %v886
      %888 = vst [vmem:[#allocation2 + $0x68] sm:$0x1] %v887
      %v889 = vld [vmem:[#allocation2 + $0x74] sm:$0x1]
      %v890 = vsel %vm861, 0, %v889
      %891 = vst [vmem:[#allocation2 + $0x74] sm:$0x1] %v890
      %v892 = vld [vmem:[#allocation2] sm:$0xf]
      %v893 = vld [vmem:[#allocation2 + $0x4] sm:$0xf]
      %v894 = vld [vmem:[#allocation2 + $0x8] sm:$0x1]
      %v895 = vld [vmem:[#allocation2 + $0xc] sm:$0xf]
      %v896 = vld [vmem:[#allocation2 + $0x10] sm:$0xf]
      %v897 = vld [vmem:[#allocation2 + $0x14] sm:$0x1]
      %v898 = vld [vmem:[#allocation2 + $0x18] sm:$0xf]
      %v899 = vld [vmem:[#allocation2 + $0x1c] sm:$0xf]
      %v900 = vld [vmem:[#allocation2 + $0x20] sm:$0x1]
      %v901 = vld [vmem:[#allocation2 + $0x24] sm:$0xf]
      %v902 = vld [vmem:[#allocation2 + $0x28] sm:$0xf]
      %v903 = vld [vmem:[#allocation2 + $0x2c] sm:$0x1]
      %v904 = vld [vmem:[#allocation2 + $0x30] sm:$0xf]
      %v905 = vld [vmem:[#allocation2 + $0x34] sm:$0xf]
      %v906 = vld [vmem:[#allocation2 + $0x38] sm:$0x1]
      %v907 = vld [vmem:[#allocation2 + $0x3c] sm:$0xf]
      %v908 = vld [vmem:[#allocation2 + $0x40] sm:$0xf]
      %v909 = vld [vmem:[#allocation2 + $0x44] sm:$0x1]
      %v910 = vld [vmem:[#allocation2 + $0x48] sm:$0xf]
      %v911 = vld [vmem:[#allocation2 + $0x4c] sm:$0xf]
      %v912 = vld [vmem:[#allocation2 + $0x50] sm:$0x1]
      %v913 = vld [vmem:[#allocation2 + $0x54] sm:$0xf]
      %v914 = vld [vmem:[#allocation2 + $0x58] sm:$0xf]
      %v915 = vld [vmem:[#allocation2 + $0x5c] sm:$0x1]
      %v916 = vld [vmem:[#allocation2 + $0x60] sm:$0xf]
      %v917 = vld [vmem:[#allocation2 + $0x64] sm:$0xf]
      %v918 = vld [vmem:[#allocation2 + $0x68] sm:$0x1]
      %v919 = vld [vmem:[#allocation2 + $0x6c] sm:$0xf]
      %v920 = vld [vmem:[#allocation2 + $0x70] sm:$0xf]
      %v921 = vld [vmem:[#allocation2 + $0x74] sm:$0x1]
      %vm922 = vsmask.f32 3328
      %vm923 = vsmask.f32 7440
      %vm924 = vmor %vm922, %vm923
      %v926 = vshrl.u32 %v892, 16
      %v928 = vrot.slane %v926, 4
      %v929 = vshll.u32 %v892, 16
      %v931 = vrot.slane %v929, 5
      %v932 = vor.u32 %v928, %v931
      %v933 = vrot.slane %v932, 4
      %v935 = vshll.u32 %v893, 16
      %v937 = vrot.slane %v935, 5
      %v938 = vsel %vm924, %v933, %v937
      %v939 = vshrl.u32 %v893, 16
      %v941 = vrot.slane %v939, 4
      %v942 = vor.u32 %v941, %v937
      %v943 = vrot.slane %v942, 4
      %v945 = vshll.u32 %v894, 16
      %v947 = vrot.slane %v945, 5
      %v948 = vsel %vm924, %v943, %v947
      %v950 = vshrl.u32 %v895, 16
      %v952 = vrot.slane %v950, 4
      %v953 = vshll.u32 %v895, 16
      %v955 = vrot.slane %v953, 5
      %v956 = vor.u32 %v952, %v955
      %v957 = vrot.slane %v956, 4
      %v959 = vshll.u32 %v896, 16
      %v961 = vrot.slane %v959, 5
      %v962 = vsel %vm924, %v957, %v961
      %v963 = vshrl.u32 %v896, 16
      %v965 = vrot.slane %v963, 4
      %v966 = vor.u32 %v965, %v961
      %v967 = vrot.slane %v966, 4
      %v969 = vshll.u32 %v897, 16
      %v971 = vrot.slane %v969, 5
      %v972 = vsel %vm924, %v967, %v971
      %v974 = vshrl.u32 %v898, 16
      %v976 = vrot.slane %v974, 4
      %v977 = vshll.u32 %v898, 16
      %v979 = vrot.slane %v977, 5
      %v980 = vor.u32 %v976, %v979
      %v981 = vrot.slane %v980, 4
      %v983 = vshll.u32 %v899, 16
      %v985 = vrot.slane %v983, 5
      %v986 = vsel %vm924, %v981, %v985
      %v987 = vshrl.u32 %v899, 16
      %v989 = vrot.slane %v987, 4
      %v990 = vor.u32 %v989, %v985
      %v991 = vrot.slane %v990, 4
      %v993 = vshll.u32 %v900, 16
      %v995 = vrot.slane %v993, 5
      %v996 = vsel %vm924, %v991, %v995
      %v998 = vshrl.u32 %v901, 16
      %v1000 = vrot.slane %v998, 4
      %v1001 = vshll.u32 %v901, 16
      %v1003 = vrot.slane %v1001, 5
      %v1004 = vor.u32 %v1000, %v1003
      %v1005 = vrot.slane %v1004, 4
      %v1007 = vshll.u32 %v902, 16
      %v1009 = vrot.slane %v1007, 5
      %v1010 = vsel %vm924, %v1005, %v1009
      %v1011 = vshrl.u32 %v902, 16
      %v1013 = vrot.slane %v1011, 4
      %v1014 = vor.u32 %v1013, %v1009
      %v1015 = vrot.slane %v1014, 4
      %v1017 = vshll.u32 %v903, 16
      %v1019 = vrot.slane %v1017, 5
      %v1020 = vsel %vm924, %v1015, %v1019
      %v1022 = vshrl.u32 %v904, 16
      %v1024 = vrot.slane %v1022, 4
      %v1025 = vshll.u32 %v904, 16
      %v1027 = vrot.slane %v1025, 5
      %v1028 = vor.u32 %v1024, %v1027
      %v1029 = vrot.slane %v1028, 4
      %v1031 = vshll.u32 %v905, 16
      %v1033 = vrot.slane %v1031, 5
      %v1034 = vsel %vm924, %v1029, %v1033
      %v1035 = vshrl.u32 %v905, 16
      %v1037 = vrot.slane %v1035, 4
      %v1038 = vor.u32 %v1037, %v1033
      %v1039 = vrot.slane %v1038, 4
      %v1041 = vshll.u32 %v906, 16
      %v1043 = vrot.slane %v1041, 5
      %v1044 = vsel %vm924, %v1039, %v1043
      %v1046 = vshrl.u32 %v907, 16
      %v1048 = vrot.slane %v1046, 4
      %v1049 = vshll.u32 %v907, 16
      %v1051 = vrot.slane %v1049, 5
      %v1052 = vor.u32 %v1048, %v1051
      %v1053 = vrot.slane %v1052, 4
      %v1055 = vshll.u32 %v908, 16
      %v1057 = vrot.slane %v1055, 5
      %v1058 = vsel %vm924, %v1053, %v1057
      %v1059 = vshrl.u32 %v908, 16
      %v1061 = vrot.slane %v1059, 4
      %v1062 = vor.u32 %v1061, %v1057
      %v1063 = vrot.slane %v1062, 4
      %v1065 = vshll.u32 %v909, 16
      %v1067 = vrot.slane %v1065, 5
      %v1068 = vsel %vm924, %v1063, %v1067
      %v1070 = vshrl.u32 %v910, 16
      %v1072 = vrot.slane %v1070, 4
      %v1073 = vshll.u32 %v910, 16
      %v1075 = vrot.slane %v1073, 5
      %v1076 = vor.u32 %v1072, %v1075
      %v1077 = vrot.slane %v1076, 4
      %v1079 = vshll.u32 %v911, 16
      %v1081 = vrot.slane %v1079, 5
      %v1082 = vsel %vm924, %v1077, %v1081
      %v1083 = vshrl.u32 %v911, 16
      %v1085 = vrot.slane %v1083, 4
      %v1086 = vor.u32 %v1085, %v1081
      %v1087 = vrot.slane %v1086, 4
      %v1089 = vshll.u32 %v912, 16
      %v1091 = vrot.slane %v1089, 5
      %v1092 = vsel %vm924, %v1087, %v1091
      %v1094 = vshrl.u32 %v913, 16
      %v1096 = vrot.slane %v1094, 4
      %v1097 = vshll.u32 %v913, 16
      %v1099 = vrot.slane %v1097, 5
      %v1100 = vor.u32 %v1096, %v1099
      %v1101 = vrot.slane %v1100, 4
      %v1103 = vshll.u32 %v914, 16
      %v1105 = vrot.slane %v1103, 5
      %v1106 = vsel %vm924, %v1101, %v1105
      %v1107 = vshrl.u32 %v914, 16
      %v1109 = vrot.slane %v1107, 4
      %v1110 = vor.u32 %v1109, %v1105
      %v1111 = vrot.slane %v1110, 4
      %v1113 = vshll.u32 %v915, 16
      %v1115 = vrot.slane %v1113, 5
      %v1116 = vsel %vm924, %v1111, %v1115
      %vm1141 = vcmask 1042432
      %vm1142 = vcmask 1046532
      %vm1143 = vmor %vm1141, %vm1142
      %v1144 = vrot.slane %v892, 5
      %v1145 = vrot.slane %v1144, 4
      %v1146 = vrot.slane %v893, 5
      %v1147 = vsel %vm1143, %v1145, %v1146
      %v1148 = vrot.slane %v1146, 4
      %v1149 = vrot.slane %v894, 5
      %v1150 = vsel %vm1143, %v1148, %v1149
      %v1151 = vrot.slane %v895, 5
      %v1152 = vrot.slane %v1151, 4
      %v1153 = vrot.slane %v896, 5
      %v1154 = vsel %vm1143, %v1152, %v1153
      %v1155 = vrot.slane %v1153, 4
      %v1156 = vrot.slane %v897, 5
      %v1157 = vsel %vm1143, %v1155, %v1156
      %v1158 = vrot.slane %v898, 5
      %v1159 = vrot.slane %v1158, 4
      %v1160 = vrot.slane %v899, 5
      %v1161 = vsel %vm1143, %v1159, %v1160
      %v1162 = vrot.slane %v1160, 4
      %v1163 = vrot.slane %v900, 5
      %v1164 = vsel %vm1143, %v1162, %v1163
      %v1165 = vrot.slane %v901, 5
      %v1166 = vrot.slane %v1165, 4
      %v1167 = vrot.slane %v902, 5
      %v1168 = vsel %vm1143, %v1166, %v1167
      %v1169 = vrot.slane %v1167, 4
      %v1170 = vrot.slane %v903, 5
      %v1171 = vsel %vm1143, %v1169, %v1170
      %v1172 = vrot.slane %v904, 5
      %v1173 = vrot.slane %v1172, 4
      %v1174 = vrot.slane %v905, 5
      %v1175 = vsel %vm1143, %v1173, %v1174
      %v1176 = vrot.slane %v1174, 4
      %v1177 = vrot.slane %v906, 5
      %v1178 = vsel %vm1143, %v1176, %v1177
      %v1179 = vrot.slane %v907, 5
      %v1180 = vrot.slane %v1179, 4
      %v1181 = vrot.slane %v908, 5
      %v1182 = vsel %vm1143, %v1180, %v1181
      %v1183 = vrot.slane %v1181, 4
      %v1184 = vrot.slane %v909, 5
      %v1185 = vsel %vm1143, %v1183, %v1184
      %v1186 = vrot.slane %v910, 5
      %v1187 = vrot.slane %v1186, 4
      %v1188 = vrot.slane %v911, 5
      %v1189 = vsel %vm1143, %v1187, %v1188
      %v1190 = vrot.slane %v1188, 4
      %v1191 = vrot.slane %v912, 5
      %v1192 = vsel %vm1143, %v1190, %v1191
      %v1193 = vrot.slane %v913, 5
      %v1194 = vrot.slane %v1193, 4
      %v1195 = vrot.slane %v914, 5
      %v1196 = vsel %vm1143, %v1194, %v1195
      %v1197 = vrot.slane %v1195, 4
      %v1198 = vrot.slane %v915, 5
      %v1199 = vsel %vm1143, %v1197, %v1198
      %v1201 = vshrl.u32 %v916, 16
      %v1203 = vrot.slane %v1201, 4
      %v1204 = vshll.u32 %v916, 16
      %v1206 = vrot.slane %v1204, 5
      %v1207 = vor.u32 %v1203, %v1206
      %v1208 = vrot.slane %v1207, 4
      %v1210 = vshll.u32 %v917, 16
      %v1212 = vrot.slane %v1210, 5
      %v1213 = vsel %vm924, %v1208, %v1212
      %v1214 = vshrl.u32 %v917, 16
      %v1216 = vrot.slane %v1214, 4
      %v1217 = vor.u32 %v1216, %v1212
      %v1218 = vrot.slane %v1217, 4
      %v1220 = vshll.u32 %v918, 16
      %v1222 = vrot.slane %v1220, 5
      %v1223 = vsel %vm924, %v1218, %v1222
      %v1227 = vrot.slane %v916, 5
      %v1228 = vrot.slane %v1227, 4
      %v1229 = vrot.slane %v917, 5
      %v1230 = vsel %vm1143, %v1228, %v1229
      %v1231 = vrot.slane %v1229, 4
      %v1232 = vrot.slane %v918, 5
      %v1233 = vsel %vm1143, %v1231, %v1232
      %v1235 = vshrl.u32 %v919, 16
      %v1237 = vrot.slane %v1235, 4
      %v1238 = vshll.u32 %v919, 16
      %v1240 = vrot.slane %v1238, 5
      %v1241 = vor.u32 %v1237, %v1240
      %v1242 = vrot.slane %v1241, 4
      %v1244 = vshll.u32 %v920, 16
      %v1246 = vrot.slane %v1244, 5
      %v1247 = vsel %vm924, %v1242, %v1246
      %v1248 = vshrl.u32 %v920, 16
      %v1250 = vrot.slane %v1248, 4
      %v1251 = vor.u32 %v1250, %v1246
      %v1252 = vrot.slane %v1251, 4
      %v1254 = vshll.u32 %v921, 16
      %v1256 = vrot.slane %v1254, 5
      %v1257 = vsel %vm924, %v1252, %v1256
      %v1261 = vrot.slane %v919, 5
      %v1262 = vrot.slane %v1261, 4
      %v1263 = vrot.slane %v920, 5
      %v1264 = vsel %vm1143, %v1262, %v1263
      %v1265 = vrot.slane %v1263, 4
      %v1266 = vrot.slane %v921, 5
      %v1267 = vsel %vm1143, %v1265, %v1266
      %v1268 = vunpack.c.l.b16 %v892
      %v1269 = vunpack.c.l.b16 %v893
      %v1270 = vunpack.c.l.b16 %v895
      %v1271 = vunpack.c.l.b16 %v896
      %v1272 = vunpack.c.l.b16 %v898
      %v1273 = vunpack.c.l.b16 %v899
      %v1274 = vunpack.c.l.b16 %v901
      %v1275 = vunpack.c.l.b16 %v902
      %v1276 = vunpack.c.l.b16 %v904
      %v1277 = vunpack.c.l.b16 %v905
      %v1278 = vunpack.c.l.b16 %v907
      %v1279 = vunpack.c.l.b16 %v908
      %v1280 = vunpack.c.l.b16 %v910
      %v1281 = vunpack.c.l.b16 %v911
      %v1282 = vunpack.c.l.b16 %v913
      %v1283 = vunpack.c.l.b16 %v914
      %v1284 = vpack.c.b16 %v1269, %v1268
      %v1285 = vpack.c.b16 %v1271, %v1270
      %v1286 = vpack.c.b16 %v1273, %v1272
      %v1287 = vpack.c.b16 %v1275, %v1274
      %v1288 = vpack.c.b16 %v1277, %v1276
      %v1289 = vpack.c.b16 %v1279, %v1278
      %v1290 = vpack.c.b16 %v1281, %v1280
      %v1291 = vpack.c.b16 %v1283, %v1282
      %v1292 = vunpack.c.l.b16 %v938
      %v1293 = vunpack.c.l.b16 %v948
      %v1294 = vunpack.c.l.b16 %v962
      %v1295 = vunpack.c.l.b16 %v972
      %v1296 = vunpack.c.l.b16 %v986
      %v1297 = vunpack.c.l.b16 %v996
      %v1298 = vunpack.c.l.b16 %v1010
      %v1299 = vunpack.c.l.b16 %v1020
      %v1300 = vunpack.c.l.b16 %v1034
      %v1301 = vunpack.c.l.b16 %v1044
      %v1302 = vunpack.c.l.b16 %v1058
      %v1303 = vunpack.c.l.b16 %v1068
      %v1304 = vunpack.c.l.b16 %v1082
      %v1305 = vunpack.c.l.b16 %v1092
      %v1306 = vunpack.c.l.b16 %v1106
      %v1307 = vunpack.c.l.b16 %v1116
      %v1308 = vpack.c.b16 %v1293, %v1292
      %v1309 = vpack.c.b16 %v1295, %v1294
      %v1310 = vpack.c.b16 %v1297, %v1296
      %v1311 = vpack.c.b16 %v1299, %v1298
      %v1312 = vpack.c.b16 %v1301, %v1300
      %v1313 = vpack.c.b16 %v1303, %v1302
      %v1314 = vpack.c.b16 %v1305, %v1304
      %v1315 = vpack.c.b16 %v1307, %v1306
      %1316 = vrot.lane.b32.xlu0 %v1308, 64
      %v1317 = vpop.permute.xlu0 %1316
      %1318 = vrot.lane.b32.xlu0 %v1309, 64
      %v1319 = vpop.permute.xlu0 %1318
      %1320 = vrot.lane.b32.xlu0 %v1310, 64
      %v1321 = vpop.permute.xlu0 %1320
      %1322 = vrot.lane.b32.xlu0 %v1311, 64
      %v1323 = vpop.permute.xlu0 %1322
      %1324 = vrot.lane.b32.xlu0 %v1312, 64
      %v1325 = vpop.permute.xlu0 %1324
      %1326 = vrot.lane.b32.xlu0 %v1313, 64
      %v1327 = vpop.permute.xlu0 %1326
      %1328 = vrot.lane.b32.xlu0 %v1314, 64
      %v1329 = vpop.permute.xlu0 %1328
      %1330 = vrot.lane.b32.xlu0 %v1315, 64
      %v1331 = vpop.permute.xlu0 %1330
      %v1332 = vunpack.c.l.b16 %v1147
      %v1333 = vunpack.c.l.b16 %v1150
      %v1334 = vunpack.c.l.b16 %v1154
      %v1335 = vunpack.c.l.b16 %v1157
      %v1336 = vunpack.c.l.b16 %v1161
      %v1337 = vunpack.c.l.b16 %v1164
      %v1338 = vunpack.c.l.b16 %v1168
      %v1339 = vunpack.c.l.b16 %v1171
      %v1340 = vunpack.c.l.b16 %v1175
      %v1341 = vunpack.c.l.b16 %v1178
      %v1342 = vunpack.c.l.b16 %v1182
      %v1343 = vunpack.c.l.b16 %v1185
      %v1344 = vunpack.c.l.b16 %v1189
      %v1345 = vunpack.c.l.b16 %v1192
      %v1346 = vunpack.c.l.b16 %v1196
      %v1347 = vunpack.c.l.b16 %v1199
      %v1348 = vpack.c.b16 %v1333, %v1332
      %v1349 = vpack.c.b16 %v1335, %v1334
      %v1350 = vpack.c.b16 %v1337, %v1336
      %v1351 = vpack.c.b16 %v1339, %v1338
      %v1352 = vpack.c.b16 %v1341, %v1340
      %v1353 = vpack.c.b16 %v1343, %v1342
      %v1354 = vpack.c.b16 %v1345, %v1344
      %v1355 = vpack.c.b16 %v1347, %v1346
      %v1356 = vunpack.c.l.b16 %v916
      %v1357 = vunpack.c.l.b16 %v917
      %v1358 = vpack.c.b16 %v1357, %v1356
      %1359 = vrot.lane.b32.xlu0 %v1285, 64
      %v1360 = vpop.permute.xlu0 %1359
      %1361 = vrot.lane.b32.xlu0 %v1286, 64
      %v1362 = vpop.permute.xlu0 %1361
      %1363 = vrot.lane.b32.xlu0 %v1287, 64
      %v1364 = vpop.permute.xlu0 %1363
      %1365 = vrot.lane.b32.xlu0 %v1288, 64
      %v1366 = vpop.permute.xlu0 %1365
      %1367 = vrot.lane.b32.xlu0 %v1289, 64
      %v1368 = vpop.permute.xlu0 %1367
      %1369 = vrot.lane.b32.xlu0 %v1290, 64
      %v1370 = vpop.permute.xlu0 %1369
      %1371 = vrot.lane.b32.xlu0 %v1291, 64
      %v1372 = vpop.permute.xlu0 %1371
      %1373 = vrot.lane.b32.xlu0 %v1358, 64
      %v1374 = vpop.permute.xlu0 %1373
      %v1375 = vunpack.c.l.b16 %v1213
      %v1376 = vunpack.c.l.b16 %v1223
      %v1377 = vpack.c.b16 %v1376, %v1375
      %v1378 = vunpack.c.l.b16 %v1230
      %v1379 = vunpack.c.l.b16 %v1233
      %v1380 = vpack.c.b16 %v1379, %v1378
      %1381 = vrot.lane.b32.xlu0 %v1349, 64
      %v1382 = vpop.permute.xlu0 %1381
      %1383 = vrot.lane.b32.xlu0 %v1350, 64
      %v1384 = vpop.permute.xlu0 %1383
      %1385 = vrot.lane.b32.xlu0 %v1351, 64
      %v1386 = vpop.permute.xlu0 %1385
      %1387 = vrot.lane.b32.xlu0 %v1352, 64
      %v1388 = vpop.permute.xlu0 %1387
      %1389 = vrot.lane.b32.xlu0 %v1353, 64
      %v1390 = vpop.permute.xlu0 %1389
      %1391 = vrot.lane.b32.xlu0 %v1354, 64
      %v1392 = vpop.permute.xlu0 %1391
      %1393 = vrot.lane.b32.xlu0 %v1355, 64
      %v1394 = vpop.permute.xlu0 %1393
      %1395 = vrot.lane.b32.xlu0 %v1380, 64
      %v1396 = vpop.permute.xlu0 %1395
      %v1397 = vunpack.c.l.b16 %v919
      %v1398 = vunpack.c.l.b16 %v920
      %v1399 = vpack.c.b16 %v1398, %v1397
      %v1400 = vunpack.c.l.b16 %v1247
      %v1401 = vunpack.c.l.b16 %v1257
      %v1402 = vpack.c.b16 %v1401, %v1400
      %1403 = vrot.lane.b32.xlu0 %v1377, 64
      %v1404 = vpop.permute.xlu0 %1403
      %1405 = vrot.lane.b32.xlu0 %v1402, 64
      %v1406 = vpop.permute.xlu0 %1405
      %v1407 = vunpack.c.l.b16 %v1264
      %v1408 = vunpack.c.l.b16 %v1267
      %v1409 = vpack.c.b16 %v1408, %v1407
      %vm1410 = vcmask 523264
      %v1413 = vsel %vm1410, %v1284, %v1317
      %v1417 = vsel %vm1410, %v1285, %v1319
      %v1421 = vsel %vm1410, %v1286, %v1321
      %v1425 = vsel %vm1410, %v1287, %v1323
      %v1429 = vsel %vm1410, %v1288, %v1325
      %v1433 = vsel %vm1410, %v1289, %v1327
      %v1437 = vsel %vm1410, %v1290, %v1329
      %v1441 = vsel %vm1410, %v1291, %v1331
      %v1445 = vsel %vm1410, %v1348, %v1360
      %v1449 = vsel %vm1410, %v1349, %v1362
      %v1453 = vsel %vm1410, %v1350, %v1364
      %v1457 = vsel %vm1410, %v1351, %v1366
      %v1461 = vsel %vm1410, %v1352, %v1368
      %v1465 = vsel %vm1410, %v1353, %v1370
      %v1469 = vsel %vm1410, %v1354, %v1372
      %v1473 = vsel %vm1410, %v1355, %v1374
      %v1477 = vsel %vm1410, %v1309, %v1382
      %v1481 = vsel %vm1410, %v1310, %v1384
      %v1485 = vsel %vm1410, %v1311, %v1386
      %v1489 = vsel %vm1410, %v1312, %v1388
      %v1493 = vsel %vm1410, %v1313, %v1390
      %v1497 = vsel %vm1410, %v1314, %v1392
      %v1501 = vsel %vm1410, %v1315, %v1394
      %v1505 = vsel %vm1410, %v1377, %v1396
      %v1509 = vsel %vm1410, %v1358, %v1404
      %v1513 = vsel %vm1410, %v1399, %v1406
      %v1515 = vld [vmem:[%s4] sm:$0xf]
      %v1516 = vld [vmem:[%s4 + $0x4] sm:$0xf]
      %v1517 = vld [vmem:[%s4 + $0x8] sm:$0xf]
      %v1518 = vld [vmem:[%s4 + $0xc] sm:$0xf]
      %v1519 = vld [vmem:[%s4 + $0x10] sm:$0xf]
      %v1520 = vld [vmem:[%s4 + $0x14] sm:$0xf]
      %v1521 = vld [vmem:[%s4 + $0x18] sm:$0xf]
      %v1522 = vld [vmem:[%s4 + $0x1c] sm:$0xf]
      %v1523 = vld [vmem:[%s4 + $0x20] sm:$0xf]
      %v1524 = vld [vmem:[%s4 + $0x24] sm:$0xf]
      %v1525 = vld [vmem:[%s4 + $0x28] sm:$0xf]
      %v1526 = vld [vmem:[%s4 + $0x2c] sm:$0xf]
      %v1527 = vld [vmem:[%s4 + $0x30] sm:$0xf]
      %v1528 = vld [vmem:[%s4 + $0x34] sm:$0xf]
      %v1529 = vld [vmem:[%s4 + $0x38] sm:$0xf]
      %v1530 = vld [vmem:[%s4 + $0x3c] sm:$0xf]
      %v1531 = vld [vmem:[%s4 + $0x40] sm:$0xf]
      %v1532 = vld [vmem:[%s4 + $0x44] sm:$0xf]
      %v1533 = vld [vmem:[%s4 + $0x48] sm:$0xf]
      %v1534 = vld [vmem:[%s4 + $0x4c] sm:$0xf]
      %v1535 = vld [vmem:[%s4 + $0x50] sm:$0xf]
      %v1536 = vld [vmem:[%s4 + $0x54] sm:$0xf]
      %v1537 = vld [vmem:[%s4 + $0x58] sm:$0xf]
      %v1538 = vld [vmem:[%s4 + $0x5c] sm:$0xf]
      %v1539 = vld [vmem:[%s4 + $0x60] sm:$0xf]
      %v1540 = vld [vmem:[%s4 + $0x64] sm:$0xf]
      %v1541 = vld [vmem:[%s4 + $0x68] sm:$0xf]
      %v1542 = vld [vmem:[%s4 + $0x6c] sm:$0xf]
      %v1543 = vld [vmem:[%s4 + $0x70] sm:$0xf]
      %v1544 = vld [vmem:[%s4 + $0x74] sm:$0xf]
      %v1545 = vld [vmem:[%s4 + $0x78] sm:$0xf]
      %v1546 = vld [vmem:[%s4 + $0x7c] sm:$0xf]
      %v1547 = vld [vmem:[%s4 + $0x80] sm:$0xf]
      %v1548 = vld [vmem:[%s4 + $0x84] sm:$0xf]
      %v1549 = vld [vmem:[%s4 + $0x88] sm:$0xf]
      %v1550 = vld [vmem:[%s4 + $0x8c] sm:$0xf]
      %v1551 = vld [vmem:[%s4 + $0x90] sm:$0xf]
      %v1552 = vld [vmem:[%s4 + $0x94] sm:$0xf]
      %v1553 = vld [vmem:[%s4 + $0x98] sm:$0xf]
      %v1554 = vld [vmem:[%s4 + $0x9c] sm:$0xf]
      %v1555 = vld [vmem:[%s4 + $0xa0] sm:$0xf]
      %v1556 = vld [vmem:[%s4 + $0xa4] sm:$0xf]
      %v1557 = vld [vmem:[%s4 + $0xa8] sm:$0xf]
      %v1558 = vld [vmem:[%s4 + $0xac] sm:$0xf]
      %v1559 = vld [vmem:[%s4 + $0xb0] sm:$0xf]
      %v1560 = vld [vmem:[%s4 + $0xb4] sm:$0xf]
      %v1561 = vld [vmem:[%s4 + $0xb8] sm:$0xf]
      %v1562 = vld [vmem:[%s4 + $0xbc] sm:$0xf]
      %v1563 = vld [vmem:[%s4 + $0xc0] sm:$0xf]
      %v1564 = vld [vmem:[%s4 + $0xc4] sm:$0xf]
      %v1565 = vld [vmem:[%s4 + $0xc8] sm:$0xf]
      %v1566 = vld [vmem:[%s4 + $0xcc] sm:$0xf]
      %v1567 = vld [vmem:[%s4 + $0xd0] sm:$0xf]
      %v1568 = vld [vmem:[%s4 + $0xd4] sm:$0xf]
      %v1569 = vld [vmem:[%s4 + $0xd8] sm:$0xf]
      %v1570 = vld [vmem:[%s4 + $0xdc] sm:$0xf]
      %v1571 = vld [vmem:[%s4 + $0xe0] sm:$0xf]
      %v1572 = vld [vmem:[%s4 + $0xe4] sm:$0xf]
      %v1573 = vld [vmem:[%s4 + $0xe8] sm:$0xf]
      %v1574 = vld [vmem:[%s4 + $0xec] sm:$0xf]
      %v1575 = vld [vmem:[%s4 + $0xf0] sm:$0xf]
      %v1576 = vld [vmem:[%s4 + $0xf4] sm:$0xf]
      %v1577 = vld [vmem:[%s4 + $0xf8] sm:$0xf]
      %v1578 = vld [vmem:[%s4 + $0xfc] sm:$0xf]
      %v1579 = vld [vmem:[%s4 + $0x100] sm:$0xf]
      %v1580 = vld [vmem:[%s4 + $0x104] sm:$0xf]
      %v1581 = vld [vmem:[%s4 + $0x108] sm:$0xf]
      %v1582 = vld [vmem:[%s4 + $0x10c] sm:$0xf]
      %v1583 = vld [vmem:[%s4 + $0x110] sm:$0xf]
      %v1584 = vld [vmem:[%s4 + $0x114] sm:$0xf]
      %v1585 = vld [vmem:[%s4 + $0x118] sm:$0xf]
      %v1586 = vld [vmem:[%s4 + $0x11c] sm:$0xf]
      %v1587 = vld [vmem:[%s5] sm:$0x1]
      %v1589 = vperm.slane %v1587, 0
      %v1663 = vunpack.c.l.b16 %v1515
      %v1664 = vunpack.c.l.b16 %v1516
      %v1665 = vunpack.c.l.b16 %v1517
      %v1666 = vunpack.c.l.b16 %v1518
      %v1667 = vunpack.c.l.b16 %v1519
      %v1668 = vunpack.c.l.b16 %v1520
      %v1669 = vunpack.c.l.b16 %v1521
      %v1670 = vunpack.c.l.b16 %v1522
      %v1671 = vunpack.c.l.b16 %v1523
      %v1672 = vunpack.c.l.b16 %v1524
      %v1673 = vunpack.c.l.b16 %v1525
      %v1674 = vunpack.c.l.b16 %v1526
      %v1675 = vunpack.c.l.b16 %v1527
      %v1676 = vunpack.c.l.b16 %v1528
      %v1677 = vunpack.c.l.b16 %v1529
      %v1678 = vunpack.c.l.b16 %v1530
      %v1679 = vunpack.c.l.b16 %v1531
      %v1680 = vunpack.c.l.b16 %v1532
      %v1681 = vunpack.c.l.b16 %v1533
      %v1682 = vunpack.c.l.b16 %v1534
      %v1683 = vunpack.c.l.b16 %v1535
      %v1684 = vunpack.c.l.b16 %v1536
      %v1685 = vunpack.c.l.b16 %v1537
      %v1686 = vunpack.c.l.b16 %v1538
      %v1687 = vunpack.c.l.b16 %v1539
      %v1688 = vunpack.c.l.b16 %v1540
      %v1689 = vunpack.c.l.b16 %v1541
      %v1690 = vunpack.c.l.b16 %v1542
      %v1691 = vunpack.c.l.b16 %v1543
      %v1692 = vunpack.c.l.b16 %v1544
      %v1693 = vunpack.c.l.b16 %v1545
      %v1694 = vunpack.c.l.b16 %v1546
      %v1695 = vunpack.c.l.b16 %v1547
      %v1696 = vunpack.c.l.b16 %v1548
      %v1697 = vunpack.c.l.b16 %v1549
      %v1698 = vunpack.c.l.b16 %v1550
      %v1699 = vunpack.c.l.b16 %v1551
      %v1700 = vunpack.c.l.b16 %v1552
      %v1701 = vunpack.c.l.b16 %v1553
      %v1702 = vunpack.c.l.b16 %v1554
      %v1703 = vunpack.c.l.b16 %v1555
      %v1704 = vunpack.c.l.b16 %v1556
      %v1705 = vunpack.c.l.b16 %v1557
      %v1706 = vunpack.c.l.b16 %v1558
      %v1707 = vunpack.c.l.b16 %v1559
      %v1708 = vunpack.c.l.b16 %v1560
      %v1709 = vunpack.c.l.b16 %v1561
      %v1710 = vunpack.c.l.b16 %v1562
      %v1711 = vunpack.c.l.b16 %v1563
      %v1712 = vunpack.c.l.b16 %v1564
      %v1713 = vunpack.c.l.b16 %v1565
      %v1714 = vunpack.c.l.b16 %v1566
      %v1715 = vunpack.c.l.b16 %v1567
      %v1716 = vunpack.c.l.b16 %v1568
      %v1717 = vunpack.c.l.b16 %v1569
      %v1718 = vunpack.c.l.b16 %v1570
      %v1719 = vunpack.c.l.b16 %v1571
      %v1720 = vunpack.c.l.b16 %v1572
      %v1721 = vunpack.c.l.b16 %v1573
      %v1722 = vunpack.c.l.b16 %v1574
      %v1723 = vunpack.c.l.b16 %v1575
      %v1724 = vunpack.c.l.b16 %v1576
      %v1725 = vunpack.c.l.b16 %v1577
      %v1726 = vunpack.c.l.b16 %v1578
      %v1727 = vunpack.c.l.b16 %v1579
      %v1728 = vunpack.c.l.b16 %v1580
      %v1729 = vunpack.c.l.b16 %v1581
      %v1730 = vunpack.c.l.b16 %v1582
      %v1731 = vunpack.c.l.b16 %v1583
      %v1732 = vunpack.c.l.b16 %v1584
      %v1733 = vunpack.c.l.b16 %v1585
      %v1734 = vunpack.c.l.b16 %v1586
      %v1735 = vpack.c.b16 %v1664, %v1663
      %v1736 = vpack.c.b16 %v1666, %v1665
      %v1737 = vpack.c.b16 %v1668, %v1667
      %v1738 = vpack.c.b16 %v1670, %v1669
      %v1739 = vpack.c.b16 %v1672, %v1671
      %v1740 = vpack.c.b16 %v1674, %v1673
      %v1741 = vpack.c.b16 %v1676, %v1675
      %v1742 = vpack.c.b16 %v1678, %v1677
      %v1743 = vpack.c.b16 %v1680, %v1679
      %v1744 = vpack.c.b16 %v1682, %v1681
      %v1745 = vpack.c.b16 %v1684, %v1683
      %v1746 = vpack.c.b16 %v1686, %v1685
      %v1747 = vpack.c.b16 %v1688, %v1687
      %v1748 = vpack.c.b16 %v1690, %v1689
      %v1749 = vpack.c.b16 %v1692, %v1691
      %v1750 = vpack.c.b16 %v1694, %v1693
      %v1751 = vpack.c.b16 %v1696, %v1695
      %v1752 = vpack.c.b16 %v1698, %v1697
      %v1753 = vpack.c.b16 %v1700, %v1699
      %v1754 = vpack.c.b16 %v1702, %v1701
      %v1755 = vpack.c.b16 %v1704, %v1703
      %v1756 = vpack.c.b16 %v1706, %v1705
      %v1757 = vpack.c.b16 %v1708, %v1707
      %v1758 = vpack.c.b16 %v1710, %v1709
      %v1759 = vpack.c.b16 %v1712, %v1711
      %v1760 = vpack.c.b16 %v1714, %v1713
      %v1761 = vpack.c.b16 %v1716, %v1715
      %v1762 = vpack.c.b16 %v1718, %v1717
      %v1763 = vpack.c.b16 %v1720, %v1719
      %v1764 = vpack.c.b16 %v1722, %v1721
      %v1765 = vpack.c.b16 %v1724, %v1723
      %v1766 = vpack.c.b16 %v1726, %v1725
      %v1767 = vpack.c.b16 %v1728, %v1727
      %v1768 = vpack.c.b16 %v1730, %v1729
      %v1769 = vpack.c.b16 %v1732, %v1731
      %v1770 = vpack.c.b16 %v1734, %v1733
      %v1807 = vsel %vm1410, %v1350, 0
      %v1809 = vsel %vm1410, %v1351, 0
      %v1811 = vsel %vm1410, %v1352, 0
      %v1813 = vsel %vm1410, %v1353, 0
      %v1815 = vsel %vm1410, %v1354, 0
      %v1817 = vsel %vm1410, %v1355, 0
      %v1820 = vsel %vm1410, %v1380, 0
      %v1823 = vsel %vm1410, %v1409, 0
      %1825 = vmatpush.bf16.msra.mxu0 %v1742
      %1826 = vmatpush.bf16.msra.mxu0 %v1741
      %1827 = vmatpush.bf16.msra.mxu0 %v1740
      %1828 = vmatpush.bf16.msra.mxu0 %v1739
      %1829 = vmatpush.bf16.msra.mxu0 %v1738
      %1830 = vmatpush.bf16.msra.mxu0 %v1737
      %1831 = vmatpush.bf16.msra.mxu0 %v1736
      %1832 = vmatpush.bf16.msra.mxu0 %v1735
      %1833 = vmatmul.bf16.gmra.mxu0 %v1413
      %v1834 = vpop.f32.mrf.mxu0
      %v1835 = vadd.f32 %v1589, %v1834
      %v1836 = vpop.f32.mrf.mxu0
      %v1837 = vadd.f32 %v1589, %v1836
      %1838 = vmatmul.bf16.gmra.mxu0 %v1417
      %v1839 = vpop.f32.mrf.mxu0
      %v1840 = vadd.f32 %v1589, %v1839
      %v1841 = vpop.f32.mrf.mxu0
      %v1842 = vadd.f32 %v1589, %v1841
      %1843 = vmatmul.bf16.gmra.mxu0 %v1421
      %v1844 = vpop.f32.mrf.mxu0
      %v1845 = vadd.f32 %v1589, %v1844
      %v1846 = vpop.f32.mrf.mxu0
      %v1847 = vadd.f32 %v1589, %v1846
      %1848 = vmatmul.bf16.gmra.mxu0 %v1425
      %v1849 = vpop.f32.mrf.mxu0
      %v1850 = vadd.f32 %v1589, %v1849
      %v1851 = vpop.f32.mrf.mxu0
      %v1852 = vadd.f32 %v1589, %v1851
      %1853 = vmatmul.bf16.gmra.mxu0 %v1429
      %v1854 = vpop.f32.mrf.mxu0
      %v1855 = vadd.f32 %v1589, %v1854
      %v1856 = vpop.f32.mrf.mxu0
      %v1857 = vadd.f32 %v1589, %v1856
      %1858 = vmatmul.bf16.gmra.mxu0 %v1433
      %v1859 = vpop.f32.mrf.mxu0
      %v1860 = vadd.f32 %v1589, %v1859
      %v1861 = vpop.f32.mrf.mxu0
      %v1862 = vadd.f32 %v1589, %v1861
      %1863 = vmatmul.bf16.gmra.mxu0 %v1437
      %v1864 = vpop.f32.mrf.mxu0
      %v1865 = vadd.f32 %v1589, %v1864
      %v1866 = vpop.f32.mrf.mxu0
      %v1867 = vadd.f32 %v1589, %v1866
      %1868 = vmatmul.bf16.gmra.mxu0 %v1441
      %v1869 = vpop.f32.mrf.mxu0
      %v1870 = vadd.f32 %v1589, %v1869
      %v1871 = vpop.f32.mrf.mxu0
      %v1872 = vadd.f32 %v1589, %v1871
      %1873 = vdwg.mxu0
      %1874 = vmatpush.bf16.msra.mxu0 %v1750
      %1875 = vmatpush.bf16.msra.mxu0 %v1749
      %1876 = vmatpush.bf16.msra.mxu0 %v1748
      %1877 = vmatpush.bf16.msra.mxu0 %v1747
      %1878 = vmatpush.bf16.msra.mxu0 %v1746
      %1879 = vmatpush.bf16.msra.mxu0 %v1745
      %1880 = vmatpush.bf16.msra.mxu0 %v1744
      %1881 = vmatpush.bf16.msra.mxu0 %v1743
      %1882 = vmatmul.bf16.gmra.mxu0 %v1445
      %v1883 = vpop.f32.mrf.mxu0
      %v1884 = vadd.f32 %v1835, %v1883
      %v1885 = vpop.f32.mrf.mxu0
      %v1886 = vadd.f32 %v1837, %v1885
      %1887 = vmatmul.bf16.gmra.mxu0 %v1449
      %v1888 = vpop.f32.mrf.mxu0
      %v1889 = vadd.f32 %v1840, %v1888
      %v1890 = vpop.f32.mrf.mxu0
      %v1891 = vadd.f32 %v1842, %v1890
      %1892 = vmatmul.bf16.gmra.mxu0 %v1453
      %v1893 = vpop.f32.mrf.mxu0
      %v1894 = vadd.f32 %v1845, %v1893
      %v1895 = vpop.f32.mrf.mxu0
      %v1896 = vadd.f32 %v1847, %v1895
      %1897 = vmatmul.bf16.gmra.mxu0 %v1457
      %v1898 = vpop.f32.mrf.mxu0
      %v1899 = vadd.f32 %v1850, %v1898
      %v1900 = vpop.f32.mrf.mxu0
      %v1901 = vadd.f32 %v1852, %v1900
      %1902 = vmatmul.bf16.gmra.mxu0 %v1461
      %v1903 = vpop.f32.mrf.mxu0
      %v1904 = vadd.f32 %v1855, %v1903
      %v1905 = vpop.f32.mrf.mxu0
      %v1906 = vadd.f32 %v1857, %v1905
      %1907 = vmatmul.bf16.gmra.mxu0 %v1465
      %v1908 = vpop.f32.mrf.mxu0
      %v1909 = vadd.f32 %v1860, %v1908
      %v1910 = vpop.f32.mrf.mxu0
      %v1911 = vadd.f32 %v1862, %v1910
      %1912 = vmatmul.bf16.gmra.mxu0 %v1469
      %v1913 = vpop.f32.mrf.mxu0
      %v1914 = vadd.f32 %v1865, %v1913
      %v1915 = vpop.f32.mrf.mxu0
      %v1916 = vadd.f32 %v1867, %v1915
      %1917 = vmatmul.bf16.gmra.mxu0 %v1473
      %v1918 = vpop.f32.mrf.mxu0
      %v1919 = vadd.f32 %v1870, %v1918
      %v1920 = vpop.f32.mrf.mxu0
      %v1921 = vadd.f32 %v1872, %v1920
      %1922 = vdwg.mxu0
      %1923 = vmatpush.bf16.msra.mxu0 %v1758
      %1924 = vmatpush.bf16.msra.mxu0 %v1757
      %1925 = vmatpush.bf16.msra.mxu0 %v1756
      %1926 = vmatpush.bf16.msra.mxu0 %v1755
      %1927 = vmatpush.bf16.msra.mxu0 %v1754
      %1928 = vmatpush.bf16.msra.mxu0 %v1753
      %1929 = vmatpush.bf16.msra.mxu0 %v1752
      %1930 = vmatpush.bf16.msra.mxu0 %v1751
      %1931 = vmatmul.bf16.gmra.mxu0 %v1477
      %v1932 = vpop.f32.mrf.mxu0
      %v1933 = vadd.f32 %v1884, %v1932
      %v1934 = vpop.f32.mrf.mxu0
      %v1935 = vadd.f32 %v1886, %v1934
      %1936 = vmatmul.bf16.gmra.mxu0 %v1481
      %v1937 = vpop.f32.mrf.mxu0
      %v1938 = vadd.f32 %v1889, %v1937
      %v1939 = vpop.f32.mrf.mxu0
      %v1940 = vadd.f32 %v1891, %v1939
      %1941 = vmatmul.bf16.gmra.mxu0 %v1485
      %v1942 = vpop.f32.mrf.mxu0
      %v1943 = vadd.f32 %v1894, %v1942
      %v1944 = vpop.f32.mrf.mxu0
      %v1945 = vadd.f32 %v1896, %v1944
      %1946 = vmatmul.bf16.gmra.mxu0 %v1489
      %v1947 = vpop.f32.mrf.mxu0
      %v1948 = vadd.f32 %v1899, %v1947
      %v1949 = vpop.f32.mrf.mxu0
      %v1950 = vadd.f32 %v1901, %v1949
      %1951 = vmatmul.bf16.gmra.mxu0 %v1493
      %v1952 = vpop.f32.mrf.mxu0
      %v1953 = vadd.f32 %v1904, %v1952
      %v1954 = vpop.f32.mrf.mxu0
      %v1955 = vadd.f32 %v1906, %v1954
      %1956 = vmatmul.bf16.gmra.mxu0 %v1497
      %v1957 = vpop.f32.mrf.mxu0
      %v1958 = vadd.f32 %v1909, %v1957
      %v1959 = vpop.f32.mrf.mxu0
      %v1960 = vadd.f32 %v1911, %v1959
      %1961 = vmatmul.bf16.gmra.mxu0 %v1501
      %v1962 = vpop.f32.mrf.mxu0
      %v1963 = vadd.f32 %v1914, %v1962
      %v1964 = vpop.f32.mrf.mxu0
      %v1965 = vadd.f32 %v1916, %v1964
      %1966 = vmatmul.bf16.gmra.mxu0 %v1505
      %v1967 = vpop.f32.mrf.mxu0
      %v1968 = vadd.f32 %v1919, %v1967
      %v1969 = vpop.f32.mrf.mxu0
      %v1970 = vadd.f32 %v1921, %v1969
      %1971 = vdwg.mxu0
      %1972 = vmatpush.bf16.msra.mxu0 %v1766
      %1973 = vmatpush.bf16.msra.mxu0 %v1765
      %1974 = vmatpush.bf16.msra.mxu0 %v1764
      %1975 = vmatpush.bf16.msra.mxu0 %v1763
      %1976 = vmatpush.bf16.msra.mxu0 %v1762
      %1977 = vmatpush.bf16.msra.mxu0 %v1761
      %1978 = vmatpush.bf16.msra.mxu0 %v1760
      %1979 = vmatpush.bf16.msra.mxu0 %v1759
      %1980 = vmatmul.bf16.gmra.mxu0 %v1421
      %v1981 = vpop.f32.mrf.mxu0
      %v1982 = vadd.f32 %v1933, %v1981
      %v1983 = vpop.f32.mrf.mxu0
      %v1984 = vadd.f32 %v1935, %v1983
      %1985 = vmatmul.bf16.gmra.mxu0 %v1425
      %v1986 = vpop.f32.mrf.mxu0
      %v1987 = vadd.f32 %v1938, %v1986
      %v1988 = vpop.f32.mrf.mxu0
      %v1989 = vadd.f32 %v1940, %v1988
      %1990 = vmatmul.bf16.gmra.mxu0 %v1429
      %v1991 = vpop.f32.mrf.mxu0
      %v1992 = vadd.f32 %v1943, %v1991
      %v1993 = vpop.f32.mrf.mxu0
      %v1994 = vadd.f32 %v1945, %v1993
      %1995 = vmatmul.bf16.gmra.mxu0 %v1433
      %v1996 = vpop.f32.mrf.mxu0
      %v1997 = vadd.f32 %v1948, %v1996
      %v1998 = vpop.f32.mrf.mxu0
      %v1999 = vadd.f32 %v1950, %v1998
      %2000 = vmatmul.bf16.gmra.mxu0 %v1437
      %v2001 = vpop.f32.mrf.mxu0
      %v2002 = vadd.f32 %v1953, %v2001
      %v2003 = vpop.f32.mrf.mxu0
      %v2004 = vadd.f32 %v1955, %v2003
      %2005 = vmatmul.bf16.gmra.mxu0 %v1441
      %v2006 = vpop.f32.mrf.mxu0
      %v2007 = vadd.f32 %v1958, %v2006
      %v2008 = vpop.f32.mrf.mxu0
      %v2009 = vadd.f32 %v1960, %v2008
      %2010 = vmatmul.bf16.gmra.mxu0 %v1509
      %v2011 = vpop.f32.mrf.mxu0
      %v2012 = vadd.f32 %v1963, %v2011
      %v2013 = vpop.f32.mrf.mxu0
      %v2014 = vadd.f32 %v1965, %v2013
      %2015 = vmatmul.bf16.gmra.mxu0 %v1513
      %v2016 = vpop.f32.mrf.mxu0
      %v2017 = vadd.f32 %v1968, %v2016
      %v2018 = vpop.f32.mrf.mxu0
      %v2019 = vadd.f32 %v1970, %v2018
      %2020 = vdwg.mxu0
      %2021 = vmatpush.bf16.msra.mxu0 0
      %2022 = vmatpush.bf16.msra.mxu0 0
      %2023 = vmatpush.bf16.msra.mxu0 0
      %2024 = vmatpush.bf16.msra.mxu0 0
      %2025 = vmatpush.bf16.msra.mxu0 %v1770
      %2026 = vmatpush.bf16.msra.mxu0 %v1769
      %2027 = vmatpush.bf16.msra.mxu0 %v1768
      %2028 = vmatpush.bf16.msra.mxu0 %v1767
      %2029 = vmatmul.bf16.gmra.mxu0 %v1807
      %v2030 = vpop.f32.mrf.mxu0
      %v2031 = vadd.f32 %v1982, %v2030
      %v2032 = vpop.f32.mrf.mxu0
      %v2033 = vadd.f32 %v1984, %v2032
      %2034 = vmatmul.bf16.gmra.mxu0 %v1809
      %v2035 = vpop.f32.mrf.mxu0
      %v2036 = vadd.f32 %v1987, %v2035
      %v2037 = vpop.f32.mrf.mxu0
      %v2038 = vadd.f32 %v1989, %v2037
      %2039 = vmatmul.bf16.gmra.mxu0 %v1811
      %v2040 = vpop.f32.mrf.mxu0
      %v2041 = vadd.f32 %v1992, %v2040
      %v2042 = vpop.f32.mrf.mxu0
      %v2043 = vadd.f32 %v1994, %v2042
      %2044 = vmatmul.bf16.gmra.mxu0 %v1813
      %v2045 = vpop.f32.mrf.mxu0
      %v2046 = vadd.f32 %v1997, %v2045
      %v2047 = vpop.f32.mrf.mxu0
      %v2048 = vadd.f32 %v1999, %v2047
      %2049 = vmatmul.bf16.gmra.mxu0 %v1815
      %v2050 = vpop.f32.mrf.mxu0
      %v2051 = vadd.f32 %v2002, %v2050
      %v2052 = vpop.f32.mrf.mxu0
      %v2053 = vadd.f32 %v2004, %v2052
      %2054 = vmatmul.bf16.gmra.mxu0 %v1817
      %v2055 = vpop.f32.mrf.mxu0
      %v2056 = vadd.f32 %v2007, %v2055
      %v2057 = vpop.f32.mrf.mxu0
      %v2058 = vadd.f32 %v2009, %v2057
      %2059 = vmatmul.bf16.gmra.mxu0 %v1820
      %v2060 = vpop.f32.mrf.mxu0
      %v2061 = vadd.f32 %v2012, %v2060
      %v2062 = vpop.f32.mrf.mxu0
      %v2063 = vadd.f32 %v2014, %v2062
      %2064 = vmatmul.bf16.gmra.mxu0 %v1823
      %v2065 = vpop.f32.mrf.mxu0
      %v2066 = vadd.f32 %v2017, %v2065
      %v2067 = vpop.f32.mrf.mxu0
      %v2068 = vadd.f32 %v2019, %v2067
      %2069 = vdwg.mxu0
      %vm2070 = vcmask 64512
      %2071 = vst.msk [vmem:[%s432] sm:$0xff] %vm2070, %v2031
      %2072 = vst.msk [vmem:[%s432 + $0x8] sm:$0xff] %vm2070, %v2033
      %2073 = vst.msk [vmem:[%s432 + $0x10] sm:$0xff] %vm2070, %v2036
      %2074 = vst.msk [vmem:[%s432 + $0x18] sm:$0xff] %vm2070, %v2038
      %2075 = vst.msk [vmem:[%s432 + $0x20] sm:$0xff] %vm2070, %v2041
      %2076 = vst.msk [vmem:[%s432 + $0x28] sm:$0xff] %vm2070, %v2043
      %2077 = vst.msk [vmem:[%s432 + $0x30] sm:$0xff] %vm2070, %v2046
      %2078 = vst.msk [vmem:[%s432 + $0x38] sm:$0xff] %vm2070, %v2048
      %2079 = vst.msk [vmem:[%s432 + $0x40] sm:$0xff] %vm2070, %v2051
      %2080 = vst.msk [vmem:[%s432 + $0x48] sm:$0xff] %vm2070, %v2053
      %2081 = vst.msk [vmem:[%s432 + $0x50] sm:$0xff] %vm2070, %v2056
      %2082 = vst.msk [vmem:[%s432 + $0x58] sm:$0xff] %vm2070, %v2058
      %2083 = vst.msk [vmem:[%s432 + $0x60] sm:$0xff] %vm2070, %v2061
      %2084 = vst.msk [vmem:[%s432 + $0x68] sm:$0xff] %vm2070, %v2063
      %2085 = vst.msk [vmem:[%s432 + $0x70] sm:$0xff] %vm2070, %v2066
      %2086 = vst.msk [vmem:[%s432 + $0x78] sm:$0xff] %vm2070, %v2068
      %s2087 = smul.u32 8, %s22
      %p2088 = scmp.lt.s32.totalorder %s21, 1
      %s2089 = scalar_select %p2088, %s21, 1
      %p2090 = scmp.lt.s32.totalorder %s2087, 15
      %s2091 = scalar_select %p2090, %s2087, 15
      %s2092 = smul.addr %s2091, 2
      %s2093 = smul.addr %s2089, 32
      %s2094 = sadd.s32 %s2092, %s2093
      %s2095 = smul.addr %s2094, 8
      %s2096 = scalar_lea.vmem %s6, %s2095
      // Predicated region
      $region61: #{coarse_denoise_encoder.15} parent=43 // pred_check
        %p2097 = pneg %p217
      $region62: #{coarse_denoise_encoder.15} parent=43 // pred_check_branch
        %2099 = sbr.rel (%p2097) target = $region64
      $region63: #{coarse_denoise_encoder.15} parent=43 // pred_region
        %s2100 = smul.u32 8, %s22
      $region64: #{coarse_denoise_encoder.15} parent=43 // pred_fallthru
        _
    $region44: #{coarse_denoise_encoder.15} parent=5 // pred_fallthru
      _
    %p2101 = scmp.le.s32.totalorder 2, %s12
    // Predicated region
    $region65: #{coarse_denoise_encoder.15} parent=5 // pred_check
      %p2102 = pneg %p2101
    $region66: #{coarse_denoise_encoder.15} parent=5 // pred_check_branch
      %2104 = sbr.rel (%p2102) target = $region68
    $region67: #{coarse_denoise_encoder.15} parent=5 // pred_region
      %s2105 = ssub.s32 %s12, 2
      // Predicated region
      $region69: #{coarse_denoise_encoder.15} parent=67 // pred_check
        %p2106 = pneg %p223
      $region70: #{coarse_denoise_encoder.15} parent=67 // pred_check_branch
        %2108 = sbr.rel (%p2106) target = $region72
      $region71: #{coarse_denoise_encoder.15} parent=67 // pred_region
        %s2109 = smul.u32 8, %s24
        %p2110 = scmp.lt.s32.totalorder %s23, 1
        %s2111 = scalar_select %p2110, %s23, 1
        %p2112 = scmp.lt.s32.totalorder %s2109, 15
        %s2113 = scalar_select %p2112, %s2109, 15
        %s2114 = smul.addr %s2113, 2
        %s2115 = smul.addr %s2111, 32
        %s2116 = sadd.s32 %s2114, %s2115
        %s2117 = smul.addr %s2116, 8
        %s2118 = scalar_lea.vmem %s6, %s2117
      $region72: #{coarse_denoise_encoder.15} parent=67 // pred_fallthru
        _
    $region68: #{coarse_denoise_encoder.15} parent=5 // pred_fallthru
      _
  $region6: #{coarse_denoise_encoder.15} parent=0 // loop_footer
    %s16 = sadd.s32 1, %s12
  $region7: #{coarse_denoise_encoder.15} parent=0 // loop_footer_branch
    %11 = sbr.rel target = $region3
  $region8: #{coarse_denoise_encoder.15} parent=0 // loop_exit
    _

// kernel: coarse_denoise_encoder.9
$region0: #{coarse_denoise_encoder.9}
  #allocation0 [shape = 'u32[]', space=smem, size = 0x4, offset = 0x4, fixed_abs, tag = 'smem constant byte address 0x4 - core index']
  #allocation1 [shape = 'u32[72,128]{1,0:T(1,128)}', space=vmem, size = 0x9000, scoped, tag = 'internal scratch']
  #allocation2 [shape = 'bf16[12,18,64]{2,1,0:T(8,128)(2,1)}', space=vmem, size = 0x12000, scoped, tag = 'scratch operand']
  #allocation3 [shape = 'bf16[10,18,64]{2,1,0:T(8,128)(2,1)}', space=vmem, size = 0xf000, scoped, tag = 'scratch operand']
  #allocation4 [shape = 'bf16[160,640]{1,0:T(8,128)(2,1)}', space=vmem, size = 0x32000, scoped, tag = 'scratch operand']
  %s0 = inlined_call_operand.vmem [shape: bf16[2,16,16,64], index: 0, kind: input, shape index: {}, may-alias: {0,1,2,3,4}]
  %s1 = inlined_call_operand.vmem [shape: bf16[2,16,16,64], index: 1, kind: input, shape index: {}, may-alias: {0,1,2,3,4}]
  %s2 = inlined_call_operand.vmem [shape: bf16[2,16,16,64], index: 2, kind: input, shape index: {}, may-alias: {0,1,2,3,4}]
  %s3 = inlined_call_operand.vmem [shape: bf16[2,16,16,64], index: 3, kind: input, shape index: {}, may-alias: {0,1,2,3,4}]
  %s4 = inlined_call_operand.vmem [shape: bf16[2,16,16,64], index: 4, kind: input, shape index: {}, may-alias: {0,1,2,3,4}]
  %s5 = inlined_call_operand.vmem [shape: f32[2,1,64], index: 5, kind: input, shape index: {}]
  %s6 = inlined_call_operand.vmem [shape: bf16[640,64], index: 6, kind: input, shape index: {}]
  %s7 = inlined_call_operand.vmem [shape: f32[1,64], index: 7, kind: input, shape index: {}]
  %s8 = inlined_call_operand.vmem [shape: bf16[640,64], index: 8, kind: input, shape index: {}]
  %s9 = inlined_call_operand.vmem [shape: f32[1,64], index: 9, kind: input, shape index: {}]
  %s10 = inlined_call_operand.vmem [shape: bf16[2,16,16,64], index: 10, kind: output, shape index: {0}]
  %s11 = inlined_call_operand.vmem [shape: f32[2,2,1,64], index: 11, kind: output, shape index: {1}]
  %12 = xla_tuple %s10, %s11
  %s13 = sld [smem:[#allocation0]]
  $region105: #{coarse_denoise_encoder.9} parent=0
    _
  %s15 = ssub.s32 1, %s13
  %s16 = scalar_select 0, %s15, %s13
  loop: start=0, step=1, limit=6
  $region2: #{coarse_denoise_encoder.9} parent=0 // loop_pre_header
    _
  $region3: #{coarse_denoise_encoder.9} parent=0 // loop_header
    %s18 = sphi 0, %s22
    %p19 = scmp.ge.s32.totalorder %s18, 6
    %s25 = sphi 0, %s37
    %s26 = sphi 0, %s33
    %s27 = sphi 0, %s25
    %s28 = sphi 0, %s26
    %s29 = sphi 0, %s27
    %s30 = sphi 0, %s28
    %s42 = sphi 0, %s44
    %s45 = sphi 0, %s42
    %s46 = sphi 0, %s45
    %s62 = sphi 0, %s46
    %s78 = sphi 0, %s80
    %s81 = sphi 0, %s78
    %s82 = sphi 0, %s81
    %s98 = sphi 0, %s82
    %s114 = sphi 0, %s116
    %s117 = sphi 0, %s114
    %s118 = sphi 0, %s117
    %s134 = sphi 0, %s118
    %s150 = sphi 0, %s152
    %s153 = sphi 0, %s150
    %s154 = sphi 0, %s153
    %s170 = sphi 0, %s154
    %s188 = sphi 0, %s190
    %s191 = sphi 0, %s188
    %s192 = sphi 0, %s191
    %s208 = sphi 0, %s192
    %s214 = sphi 0, %s216
    %s217 = sphi 0, %s214
    %s218 = sphi 0, %s217
    %s234 = sphi 0, %s218
    %s238 = sphi 0, %s238
    %s240 = sphi 0, %s238
    %s241 = sphi 0, %s240
    %s255 = sphi 0, %s241
    %s259 = sphi 0, %s259
    %s261 = sphi 0, %s259
    %s262 = sphi 0, %s261
    %s276 = sphi 0, %s262
    %s280 = sphi 0, %s280
    %s282 = sphi 0, %s280
    %s283 = sphi 0, %s282
    %s297 = sphi 0, %s283
    %s301 = sphi 0, %s301
    %s303 = sphi 0, %s301
    %s304 = sphi 0, %s303
    %s318 = sphi 0, %s304
    %s326 = sphi 0, %s328
    %s329 = sphi 0, %s326
    %s330 = sphi 0, %s329
    %s346 = sphi 0, %s330
    %s354 = sphi 0, %s356
    %s357 = sphi 0, %s354
    %s358 = sphi 0, %s357
    %s374 = sphi 0, %s358
  $region4: #{coarse_denoise_encoder.9} parent=0 // loop_header_branch
    %21 = sbr.rel (%p19) target = $region8
  $region5: #{coarse_denoise_encoder.9} parent=0 // loop_body
    %s23 = ssub.s32 %s18, 1
    %s24 = ssub.s32 %s18, 2
    %s31 = sadd.s32 1, %s26
    %p32 = scmp.ge.s32.totalorder %s31, 2
    %s33 = scalar_select %p32, 0, %s31
    %s34 = sadd.s32 1, %s25
    %s35 = scalar_select %p32, %s34, %s25
    %p36 = scmp.ge.s32.totalorder %s35, 2
    %s37 = scalar_select %p36, 0, %s35
    %s38 = ssub.s32 %s25, %s37
    %s39 = ssub.s32 %s26, %s33
    %s40 = sor.u32 %s38, %s39
    %p41 = scmp.eq.s32.totalorder %s40, 0
    %s43 = sadd.s32 %s42, 1
    %s44 = scalar_select %p41, %s42, %s43
    %p47 = pneg %p41
    %p48 = scmp.eq.s32.totalorder %s18, 3
    %p49 = por %p47, %p48
    %p50 = scmp.ne.s32.totalorder %s42, %s45
    %p51 = scmp.eq.s32.totalorder %s18, 0
    %p52 = por %p50, %p51
    %p53 = scmp.ne.s32.totalorder %s42, %s45
    %p54 = scmp.eq.s32.totalorder %s23, 3
    %p55 = por %p53, %p54
    %p56 = scmp.ne.s32.totalorder %s45, %s46
    %p57 = scmp.eq.s32.totalorder %s23, 0
    %p58 = por %p56, %p57
    %p59 = scmp.ne.s32.totalorder %s45, %s46
    %p60 = scmp.eq.s32.totalorder %s24, 3
    %p61 = por %p59, %p60
    %p63 = scmp.ne.s32.totalorder %s46, %s62
    %p64 = scmp.eq.s32.totalorder %s24, 0
    %p65 = por %p63, %p64
    %s66 = smul.u32 %s26, 8
    %s67 = ssub.s32 %s66, 2
    %p68 = scmp.gt.s32.totalorder %s67, 0
    %s69 = scalar_select %p68, %s67, 0
    %s70 = smul.u32 %s33, 8
    %s71 = ssub.s32 %s70, 2
    %p72 = scmp.gt.s32.totalorder %s71, 0
    %s73 = scalar_select %p72, %s71, 0
    %s74 = ssub.s32 %s25, %s37
    %s75 = ssub.s32 %s69, %s73
    %s76 = sor.u32 %s74, %s75
    %p77 = scmp.eq.s32.totalorder %s76, 0
    %s79 = sadd.s32 %s78, 1
    %s80 = scalar_select %p77, %s78, %s79
    %p83 = pneg %p77
    %p84 = scmp.eq.s32.totalorder %s18, 3
    %p85 = por %p83, %p84
    %p86 = scmp.ne.s32.totalorder %s78, %s81
    %p87 = scmp.eq.s32.totalorder %s18, 0
    %p88 = por %p86, %p87
    %p89 = scmp.ne.s32.totalorder %s78, %s81
    %p90 = scmp.eq.s32.totalorder %s23, 3
    %p91 = por %p89, %p90
    %p92 = scmp.ne.s32.totalorder %s81, %s82
    %p93 = scmp.eq.s32.totalorder %s23, 0
    %p94 = por %p92, %p93
    %p95 = scmp.ne.s32.totalorder %s81, %s82
    %p96 = scmp.eq.s32.totalorder %s24, 3
    %p97 = por %p95, %p96
    %p99 = scmp.ne.s32.totalorder %s82, %s98
    %p100 = scmp.eq.s32.totalorder %s24, 0
    %p101 = por %p99, %p100
    %s102 = smul.u32 %s26, 8
    %s103 = ssub.s32 %s102, 1
    %p104 = scmp.gt.s32.totalorder %s103, 0
    %s105 = scalar_select %p104, %s103, 0
    %s106 = smul.u32 %s33, 8
    %s107 = ssub.s32 %s106, 1
    %p108 = scmp.gt.s32.totalorder %s107, 0
    %s109 = scalar_select %p108, %s107, 0
    %s110 = ssub.s32 %s25, %s37
    %s111 = ssub.s32 %s105, %s109
    %s112 = sor.u32 %s110, %s111
    %p113 = scmp.eq.s32.totalorder %s112, 0
    %s115 = sadd.s32 %s114, 1
    %s116 = scalar_select %p113, %s114, %s115
    %p119 = pneg %p113
    %p120 = scmp.eq.s32.totalorder %s18, 3
    %p121 = por %p119, %p120
    %p122 = scmp.ne.s32.totalorder %s114, %s117
    %p123 = scmp.eq.s32.totalorder %s18, 0
    %p124 = por %p122, %p123
    %p125 = scmp.ne.s32.totalorder %s114, %s117
    %p126 = scmp.eq.s32.totalorder %s23, 3
    %p127 = por %p125, %p126
    %p128 = scmp.ne.s32.totalorder %s117, %s118
    %p129 = scmp.eq.s32.totalorder %s23, 0
    %p130 = por %p128, %p129
    %p131 = scmp.ne.s32.totalorder %s117, %s118
    %p132 = scmp.eq.s32.totalorder %s24, 3
    %p133 = por %p131, %p132
    %p135 = scmp.ne.s32.totalorder %s118, %s134
    %p136 = scmp.eq.s32.totalorder %s24, 0
    %p137 = por %p135, %p136
    %s138 = sadd.s32 %s26, 1
    %s139 = smul.u32 %s138, 8
    %p140 = scmp.lt.s32.totalorder %s139, 15
    %s141 = scalar_select %p140, %s139, 15
    %s142 = sadd.s32 %s33, 1
    %s143 = smul.u32 %s142, 8
    %p144 = scmp.lt.s32.totalorder %s143, 15
    %s145 = scalar_select %p144, %s143, 15
    %s146 = ssub.s32 %s25, %s37
    %s147 = ssub.s32 %s141, %s145
    %s148 = sor.u32 %s146, %s147
    %p149 = scmp.eq.s32.totalorder %s148, 0
    %s151 = sadd.s32 %s150, 1
    %s152 = scalar_select %p149, %s150, %s151
    %p155 = pneg %p149
    %p156 = scmp.eq.s32.totalorder %s18, 3
    %p157 = por %p155, %p156
    %p158 = scmp.ne.s32.totalorder %s150, %s153
    %p159 = scmp.eq.s32.totalorder %s18, 0
    %p160 = por %p158, %p159
    %p161 = scmp.ne.s32.totalorder %s150, %s153
    %p162 = scmp.eq.s32.totalorder %s23, 3
    %p163 = por %p161, %p162
    %p164 = scmp.ne.s32.totalorder %s153, %s154
    %p165 = scmp.eq.s32.totalorder %s23, 0
    %p166 = por %p164, %p165
    %p167 = scmp.ne.s32.totalorder %s153, %s154
    %p168 = scmp.eq.s32.totalorder %s24, 3
    %p169 = por %p167, %p168
    %p171 = scmp.ne.s32.totalorder %s154, %s170
    %p172 = scmp.eq.s32.totalorder %s24, 0
    %p173 = por %p171, %p172
    %s174 = sadd.s32 %s26, 1
    %s175 = smul.u32 %s174, 8
    %s176 = sadd.s32 %s175, 1
    %p177 = scmp.lt.s32.totalorder %s176, 15
    %s178 = scalar_select %p177, %s176, 15
    %s179 = sadd.s32 %s33, 1
    %s180 = smul.u32 %s179, 8
    %s181 = sadd.s32 %s180, 1
    %p182 = scmp.lt.s32.totalorder %s181, 15
    %s183 = scalar_select %p182, %s181, 15
    %s184 = ssub.s32 %s25, %s37
    %s185 = ssub.s32 %s178, %s183
    %s186 = sor.u32 %s184, %s185
    %p187 = scmp.eq.s32.totalorder %s186, 0
    %s189 = sadd.s32 %s188, 1
    %s190 = scalar_select %p187, %s188, %s189
    %p193 = pneg %p187
    %p194 = scmp.eq.s32.totalorder %s18, 3
    %p195 = por %p193, %p194
    %p196 = scmp.ne.s32.totalorder %s188, %s191
    %p197 = scmp.eq.s32.totalorder %s18, 0
    %p198 = por %p196, %p197
    %p199 = scmp.ne.s32.totalorder %s188, %s191
    %p200 = scmp.eq.s32.totalorder %s23, 3
    %p201 = por %p199, %p200
    %p202 = scmp.ne.s32.totalorder %s191, %s192
    %p203 = scmp.eq.s32.totalorder %s23, 0
    %p204 = por %p202, %p203
    %p205 = scmp.ne.s32.totalorder %s191, %s192
    %p206 = scmp.eq.s32.totalorder %s24, 3
    %p207 = por %p205, %p206
    %p209 = scmp.ne.s32.totalorder %s192, %s208
    %p210 = scmp.eq.s32.totalorder %s24, 0
    %p211 = por %p209, %p210
    %s212 = ssub.s32 %s25, %s37
    %p213 = scmp.eq.s32.totalorder %s212, 0
    %s215 = sadd.s32 %s214, 1
    %s216 = scalar_select %p213, %s214, %s215
    %p219 = pneg %p213
    %p220 = scmp.eq.s32.totalorder %s18, 3
    %p221 = por %p219, %p220
    %p222 = scmp.ne.s32.totalorder %s214, %s217
    %p223 = scmp.eq.s32.totalorder %s18, 0
    %p224 = por %p222, %p223
    %p225 = scmp.ne.s32.totalorder %s214, %s217
    %p226 = scmp.eq.s32.totalorder %s23, 3
    %p227 = por %p225, %p226
    %p228 = scmp.ne.s32.totalorder %s217, %s218
    %p229 = scmp.eq.s32.totalorder %s23, 0
    %p230 = por %p228, %p229
    %p231 = scmp.ne.s32.totalorder %s217, %s218
    %p232 = scmp.eq.s32.totalorder %s24, 3
    %p233 = por %p231, %p232
    %p235 = scmp.ne.s32.totalorder %s218, %s234
    %p236 = scmp.eq.s32.totalorder %s24, 0
    %p237 = por %p235, %p236
    %s239 = sadd.s32 %s238, 1
    %p242 = scmp.eq.s32.totalorder %s18, 3
    %p243 = scmp.ne.s32.totalorder %s238, %s240
    %p244 = scmp.eq.s32.totalorder %s18, 0
    %p245 = por %p243, %p244
    %p246 = scmp.ne.s32.totalorder %s238, %s240
    %p247 = scmp.eq.s32.totalorder %s23, 3
    %p248 = por %p246, %p247
    %p249 = scmp.ne.s32.totalorder %s240, %s241
    %p250 = scmp.eq.s32.totalorder %s23, 0
    %p251 = por %p249, %p250
    %p252 = scmp.ne.s32.totalorder %s240, %s241
    %p253 = scmp.eq.s32.totalorder %s24, 3
    %p254 = por %p252, %p253
    %p256 = scmp.ne.s32.totalorder %s241, %s255
    %p257 = scmp.eq.s32.totalorder %s24, 0
    %p258 = por %p256, %p257
    %s260 = sadd.s32 %s259, 1
    %p263 = scmp.eq.s32.totalorder %s18, 3
    %p264 = scmp.ne.s32.totalorder %s259, %s261
    %p265 = scmp.eq.s32.totalorder %s18, 0
    %p266 = por %p264, %p265
    %p267 = scmp.ne.s32.totalorder %s259, %s261
    %p268 = scmp.eq.s32.totalorder %s23, 3
    %p269 = por %p267, %p268
    %p270 = scmp.ne.s32.totalorder %s261, %s262
    %p271 = scmp.eq.s32.totalorder %s23, 0
    %p272 = por %p270, %p271
    %p273 = scmp.ne.s32.totalorder %s261, %s262
    %p274 = scmp.eq.s32.totalorder %s24, 3
    %p275 = por %p273, %p274
    %p277 = scmp.ne.s32.totalorder %s262, %s276
    %p278 = scmp.eq.s32.totalorder %s24, 0
    %p279 = por %p277, %p278
    %s281 = sadd.s32 %s280, 1
    %p284 = scmp.eq.s32.totalorder %s18, 3
    %p285 = scmp.ne.s32.totalorder %s280, %s282
    %p286 = scmp.eq.s32.totalorder %s18, 0
    %p287 = por %p285, %p286
    %p288 = scmp.ne.s32.totalorder %s280, %s282
    %p289 = scmp.eq.s32.totalorder %s23, 3
    %p290 = por %p288, %p289
    %p291 = scmp.ne.s32.totalorder %s282, %s283
    %p292 = scmp.eq.s32.totalorder %s23, 0
    %p293 = por %p291, %p292
    %p294 = scmp.ne.s32.totalorder %s282, %s283
    %p295 = scmp.eq.s32.totalorder %s24, 3
    %p296 = por %p294, %p295
    %p298 = scmp.ne.s32.totalorder %s283, %s297
    %p299 = scmp.eq.s32.totalorder %s24, 0
    %p300 = por %p298, %p299
    %s302 = sadd.s32 %s301, 1
    %p305 = scmp.eq.s32.totalorder %s18, 3
    %p306 = scmp.ne.s32.totalorder %s301, %s303
    %p307 = scmp.eq.s32.totalorder %s18, 0
    %p308 = por %p306, %p307
    %p309 = scmp.ne.s32.totalorder %s301, %s303
    %p310 = scmp.eq.s32.totalorder %s23, 3
    %p311 = por %p309, %p310
    %p312 = scmp.ne.s32.totalorder %s303, %s304
    %p313 = scmp.eq.s32.totalorder %s23, 0
    %p314 = por %p312, %p313
    %p315 = scmp.ne.s32.totalorder %s303, %s304
    %p316 = scmp.eq.s32.totalorder %s24, 3
    %p317 = por %p315, %p316
    %p319 = scmp.ne.s32.totalorder %s304, %s318
    %p320 = scmp.eq.s32.totalorder %s24, 0
    %p321 = por %p319, %p320
    %s322 = ssub.s32 %s25, %s37
    %s323 = ssub.s32 %s26, %s33
    %s324 = sor.u32 %s322, %s323
    %p325 = scmp.eq.s32.totalorder %s324, 0
    %s327 = sadd.s32 %s326, 1
    %s328 = scalar_select %p325, %s326, %s327
    %p331 = pneg %p325
    %p332 = scmp.eq.s32.totalorder %s18, 3
    %p333 = por %p331, %p332
    %p334 = scmp.ne.s32.totalorder %s326, %s329
    %p335 = scmp.eq.s32.totalorder %s18, 0
    %p336 = por %p334, %p335
    %p337 = scmp.ne.s32.totalorder %s326, %s329
    %p338 = scmp.eq.s32.totalorder %s23, 3
    %p339 = por %p337, %p338
    %p340 = scmp.ne.s32.totalorder %s329, %s330
    %p341 = scmp.eq.s32.totalorder %s23, 0
    %p342 = por %p340, %p341
    %p343 = scmp.ne.s32.totalorder %s329, %s330
    %p344 = scmp.eq.s32.totalorder %s24, 3
    %p345 = por %p343, %p344
    %p347 = scmp.ne.s32.totalorder %s330, %s346
    %p348 = scmp.eq.s32.totalorder %s24, 0
    %p349 = por %p347, %p348
    %s350 = ssub.s32 %s25, %s37
    %s351 = ssub.s32 %s26, %s33
    %s352 = sor.u32 %s350, %s351
    %p353 = scmp.eq.s32.totalorder %s352, 0
    %s355 = sadd.s32 %s354, 1
    %s356 = scalar_select %p353, %s354, %s355
    %p359 = pneg %p353
    %p360 = scmp.eq.s32.totalorder %s18, 3
    %p361 = por %p359, %p360
    %p362 = scmp.ne.s32.totalorder %s354, %s357
    %p363 = scmp.eq.s32.totalorder %s18, 0
    %p364 = por %p362, %p363
    %p365 = scmp.ne.s32.totalorder %s354, %s357
    %p366 = scmp.eq.s32.totalorder %s23, 3
    %p367 = por %p365, %p366
    %p368 = scmp.ne.s32.totalorder %s357, %s358
    %p369 = scmp.eq.s32.totalorder %s23, 0
    %p370 = por %p368, %p369
    %p371 = scmp.ne.s32.totalorder %s357, %s358
    %p372 = scmp.eq.s32.totalorder %s24, 3
    %p373 = por %p371, %p372
    %p375 = scmp.ne.s32.totalorder %s358, %s374
    %p376 = scmp.eq.s32.totalorder %s24, 0
    %p377 = por %p375, %p376
    %p378 = scmp.le.s32.totalorder 1, %s18
    %p379 = scmp.lt.s32.totalorder %s18, 5
    %p380 = pnand %p378, %p379
    %p381 = pneg %p380
    // Predicated region
    $region9: #{coarse_denoise_encoder.9} parent=5 // pred_check
      _
    $region10: #{coarse_denoise_encoder.9} parent=5 // pred_check_branch
      %383 = sbr.rel (%p380) target = $region12
    $region11: #{coarse_denoise_encoder.9} parent=5 // pred_region
      %s384 = ssub.s32 %s18, 1
      // Predicated region
      $region13: #{coarse_denoise_encoder.9} parent=11 // pred_check
        %p385 = pneg %p251
      $region14: #{coarse_denoise_encoder.9} parent=11 // pred_check_branch
        %387 = sbr.rel (%p385) target = $region16
      $region15: #{coarse_denoise_encoder.9} parent=11 // pred_region
        _
      $region16: #{coarse_denoise_encoder.9} parent=11 // pred_fallthru
        _
      // Predicated region
      $region17: #{coarse_denoise_encoder.9} parent=11 // pred_check
        %p388 = pneg %p272
      $region18: #{coarse_denoise_encoder.9} parent=11 // pred_check_branch
        %390 = sbr.rel (%p388) target = $region20
      $region19: #{coarse_denoise_encoder.9} parent=11 // pred_region
        _
      $region20: #{coarse_denoise_encoder.9} parent=11 // pred_fallthru
        _
      // Predicated region
      $region21: #{coarse_denoise_encoder.9} parent=11 // pred_check
        %p391 = pneg %p293
      $region22: #{coarse_denoise_encoder.9} parent=11 // pred_check_branch
        %393 = sbr.rel (%p391) target = $region24
      $region23: #{coarse_denoise_encoder.9} parent=11 // pred_region
        _
      $region24: #{coarse_denoise_encoder.9} parent=11 // pred_fallthru
        _
      // Predicated region
      $region25: #{coarse_denoise_encoder.9} parent=11 // pred_check
        %p394 = pneg %p314
      $region26: #{coarse_denoise_encoder.9} parent=11 // pred_check_branch
        %396 = sbr.rel (%p394) target = $region28
      $region27: #{coarse_denoise_encoder.9} parent=11 // pred_region
        _
      $region28: #{coarse_denoise_encoder.9} parent=11 // pred_fallthru
        _
    $region12: #{coarse_denoise_encoder.9} parent=5 // pred_fallthru
      _
    %p397 = scmp.lt.s32.totalorder %s18, 4
    // Predicated region
    $region29: #{coarse_denoise_encoder.9} parent=5 // pred_check
      %p398 = pneg %p397
    $region30: #{coarse_denoise_encoder.9} parent=5 // pred_check_branch
      %400 = sbr.rel (%p398) target = $region32
    $region31: #{coarse_denoise_encoder.9} parent=5 // pred_region
      // Predicated region
      $region33: #{coarse_denoise_encoder.9} parent=31 // pred_check
        %p401 = pneg %p52
      $region34: #{coarse_denoise_encoder.9} parent=31 // pred_check_branch
        %403 = sbr.rel (%p401) target = $region36
      $region35: #{coarse_denoise_encoder.9} parent=31 // pred_region
        %s404 = smul.u32 8, %s26
        %p405 = scmp.lt.s32.totalorder %s25, 1
        %s406 = scalar_select %p405, %s25, 1
        %p407 = scmp.lt.s32.totalorder %s404, 15
        %s408 = scalar_select %p407, %s404, 15
        %s409 = smul.addr %s408, 2
        %s410 = smul.addr %s406, 32
        %s411 = sadd.s32 %s409, %s410
        %s412 = smul.addr %s411, 4
        %s413 = scalar_lea.vmem %s0, %s412
        %s414 = smul.u32 8, %s26
      $region36: #{coarse_denoise_encoder.9} parent=31 // pred_fallthru
        _
      // Predicated region
      $region37: #{coarse_denoise_encoder.9} parent=31 // pred_check
        %p415 = pneg %p88
      $region38: #{coarse_denoise_encoder.9} parent=31 // pred_check_branch
        %417 = sbr.rel (%p415) target = $region40
      $region39: #{coarse_denoise_encoder.9} parent=31 // pred_region
        %s418 = smul.u32 %s26, 8
        %s419 = ssub.s32 %s418, 2
        %p420 = scmp.gt.s32.totalorder %s419, 0
        %s421 = scalar_select %p420, %s419, 0
        %p422 = scmp.lt.s32.totalorder %s25, 1
        %s423 = scalar_select %p422, %s25, 1
        %p424 = scmp.lt.s32.totalorder %s421, 15
        %s425 = scalar_select %p424, %s421, 15
        %s426 = smul.addr %s425, 2
        %s427 = smul.addr %s423, 32
        %s428 = sadd.s32 %s426, %s427
        %s429 = smul.addr %s428, 4
        %s430 = scalar_lea.vmem %s1, %s429
        %s431 = smul.u32 %s26, 8
        %s432 = ssub.s32 %s431, 2
        %p433 = scmp.gt.s32.totalorder %s432, 0
        %s434 = scalar_select %p433, %s432, 0
      $region40: #{coarse_denoise_encoder.9} parent=31 // pred_fallthru
        _
      // Predicated region
      $region41: #{coarse_denoise_encoder.9} parent=31 // pred_check
        %p435 = pneg %p124
      $region42: #{coarse_denoise_encoder.9} parent=31 // pred_check_branch
        %437 = sbr.rel (%p435) target = $region44
      $region43: #{coarse_denoise_encoder.9} parent=31 // pred_region
        %s438 = smul.u32 %s26, 8
        %s439 = ssub.s32 %s438, 1
        %p440 = scmp.gt.s32.totalorder %s439, 0
        %s441 = scalar_select %p440, %s439, 0
        %p442 = scmp.lt.s32.totalorder %s25, 1
        %s443 = scalar_select %p442, %s25, 1
        %p444 = scmp.lt.s32.totalorder %s441, 15
        %s445 = scalar_select %p444, %s441, 15
        %s446 = smul.addr %s445, 2
        %s447 = smul.addr %s443, 32
        %s448 = sadd.s32 %s446, %s447
        %s449 = smul.addr %s448, 4
        %s450 = scalar_lea.vmem %s2, %s449
        %s451 = smul.u32 %s26, 8
        %s452 = ssub.s32 %s451, 1
        %p453 = scmp.gt.s32.totalorder %s452, 0
        %s454 = scalar_select %p453, %s452, 0
      $region44: #{coarse_denoise_encoder.9} parent=31 // pred_fallthru
        _
      // Predicated region
      $region45: #{coarse_denoise_encoder.9} parent=31 // pred_check
        %p455 = pneg %p160
      $region46: #{coarse_denoise_encoder.9} parent=31 // pred_check_branch
        %457 = sbr.rel (%p455) target = $region48
      $region47: #{coarse_denoise_encoder.9} parent=31 // pred_region
        %s458 = sadd.s32 %s26, 1
        %s459 = smul.u32 %s458, 8
        %p460 = scmp.lt.s32.totalorder %s459, 15
        %s461 = scalar_select %p460, %s459, 15
        %p462 = scmp.lt.s32.totalorder %s25, 1
        %s463 = scalar_select %p462, %s25, 1
        %p464 = scmp.lt.s32.totalorder %s461, 15
        %s465 = scalar_select %p464, %s461, 15
        %s466 = smul.addr %s465, 2
        %s467 = smul.addr %s463, 32
        %s468 = sadd.s32 %s466, %s467
        %s469 = smul.addr %s468, 4
        %s470 = scalar_lea.vmem %s3, %s469
        %s471 = sadd.s32 %s26, 1
        %s472 = smul.u32 %s471, 8
        %p473 = scmp.lt.s32.totalorder %s472, 15
        %s474 = scalar_select %p473, %s472, 15
      $region48: #{coarse_denoise_encoder.9} parent=31 // pred_fallthru
        _
      // Predicated region
      $region49: #{coarse_denoise_encoder.9} parent=31 // pred_check
        %p475 = pneg %p198
      $region50: #{coarse_denoise_encoder.9} parent=31 // pred_check_branch
        %477 = sbr.rel (%p475) target = $region52
      $region51: #{coarse_denoise_encoder.9} parent=31 // pred_region
        %s478 = sadd.s32 %s26, 1
        %s479 = smul.u32 %s478, 8
        %s480 = sadd.s32 %s479, 1
        %p481 = scmp.lt.s32.totalorder %s480, 15
        %s482 = scalar_select %p481, %s480, 15
        %p483 = scmp.lt.s32.totalorder %s25, 1
        %s484 = scalar_select %p483, %s25, 1
        %p485 = scmp.lt.s32.totalorder %s482, 15
        %s486 = scalar_select %p485, %s482, 15
        %s487 = smul.addr %s486, 2
        %s488 = smul.addr %s484, 32
        %s489 = sadd.s32 %s487, %s488
        %s490 = smul.addr %s489, 4
        %s491 = scalar_lea.vmem %s4, %s490
        %s492 = sadd.s32 %s26, 1
        %s493 = smul.u32 %s492, 8
        %s494 = sadd.s32 %s493, 1
        %p495 = scmp.lt.s32.totalorder %s494, 15
        %s496 = scalar_select %p495, %s494, 15
      $region52: #{coarse_denoise_encoder.9} parent=31 // pred_fallthru
        _
      // Predicated region
      $region53: #{coarse_denoise_encoder.9} parent=31 // pred_check
        %p497 = pneg %p224
      $region54: #{coarse_denoise_encoder.9} parent=31 // pred_check_branch
        %499 = sbr.rel (%p497) target = $region56
      $region55: #{coarse_denoise_encoder.9} parent=31 // pred_region
        %p500 = scmp.lt.s32.totalorder %s25, 1
        %s501 = scalar_select %p500, %s25, 1
        %s502 = scalar_lea.vmem %s5, %s501
      $region56: #{coarse_denoise_encoder.9} parent=31 // pred_fallthru
        _
    $region32: #{coarse_denoise_encoder.9} parent=5 // pred_fallthru
      _
    %p503 = scmp.le.s32.totalorder 1, %s18
    %p504 = scmp.lt.s32.totalorder %s18, 5
    %p505 = pnand %p503, %p504
    %p506 = pneg %p505
    // Predicated region
    $region57: #{coarse_denoise_encoder.9} parent=5 // pred_check
      _
    $region58: #{coarse_denoise_encoder.9} parent=5 // pred_check_branch
      %508 = sbr.rel (%p505) target = $region60
    $region59: #{coarse_denoise_encoder.9} parent=5 // pred_region
      %s509 = ssub.s32 %s18, 1
      %s510 = smul.u32 8, %s28
      %p511 = scmp.lt.s32.totalorder %s27, 1
      %s512 = scalar_select %p511, %s27, 1
      %p513 = scmp.lt.s32.totalorder %s510, 15
      %s514 = scalar_select %p513, %s510, 15
      %s515 = smul.addr %s514, 2
      %s516 = smul.addr %s512, 32
      %s517 = sadd.s32 %s515, %s516
      %s518 = smul.addr %s517, 4
      %s519 = scalar_lea.vmem %s0, %s518
      %p520 = pneg %p58
      %p521 = pneg %p55
      %s522 = smul.u32 %s28, 8
      %s523 = ssub.s32 %s522, 2
      %p524 = scmp.gt.s32.totalorder %s523, 0
      %s525 = scalar_select %p524, %s523, 0
      %p526 = scmp.lt.s32.totalorder %s27, 1
      %s527 = scalar_select %p526, %s27, 1
      %p528 = scmp.lt.s32.totalorder %s525, 15
      %s529 = scalar_select %p528, %s525, 15
      %s530 = smul.addr %s529, 2
      %s531 = smul.addr %s527, 32
      %s532 = sadd.s32 %s530, %s531
      %s533 = smul.addr %s532, 4
      %s534 = scalar_lea.vmem %s1, %s533
      %p535 = pneg %p94
      %p536 = pneg %p91
      %s537 = smul.u32 %s28, 8
      %s538 = ssub.s32 %s537, 1
      %p539 = scmp.gt.s32.totalorder %s538, 0
      %s540 = scalar_select %p539, %s538, 0
      %p541 = scmp.lt.s32.totalorder %s27, 1
      %s542 = scalar_select %p541, %s27, 1
      %p543 = scmp.lt.s32.totalorder %s540, 15
      %s544 = scalar_select %p543, %s540, 15
      %s545 = smul.addr %s544, 2
      %s546 = smul.addr %s542, 32
      %s547 = sadd.s32 %s545, %s546
      %s548 = smul.addr %s547, 4
      %s549 = scalar_lea.vmem %s2, %s548
      %p550 = pneg %p130
      %p551 = pneg %p127
      %s552 = sadd.s32 %s28, 1
      %s553 = smul.u32 %s552, 8
      %p554 = scmp.lt.s32.totalorder %s553, 15
      %s555 = scalar_select %p554, %s553, 15
      %p556 = scmp.lt.s32.totalorder %s27, 1
      %s557 = scalar_select %p556, %s27, 1
      %p558 = scmp.lt.s32.totalorder %s555, 15
      %s559 = scalar_select %p558, %s555, 15
      %s560 = smul.addr %s559, 2
      %s561 = smul.addr %s557, 32
      %s562 = sadd.s32 %s560, %s561
      %s563 = smul.addr %s562, 4
      %s564 = scalar_lea.vmem %s3, %s563
      %p565 = pneg %p166
      %p566 = pneg %p163
      %s567 = sadd.s32 %s28, 1
      %s568 = smul.u32 %s567, 8
      %s569 = sadd.s32 %s568, 1
      %p570 = scmp.lt.s32.totalorder %s569, 15
      %s571 = scalar_select %p570, %s569, 15
      %p572 = scmp.lt.s32.totalorder %s27, 1
      %s573 = scalar_select %p572, %s27, 1
      %p574 = scmp.lt.s32.totalorder %s571, 15
      %s575 = scalar_select %p574, %s571, 15
      %s576 = smul.addr %s575, 2
      %s577 = smul.addr %s573, 32
      %s578 = sadd.s32 %s576, %s577
      %s579 = smul.addr %s578, 4
      %s580 = scalar_lea.vmem %s4, %s579
      %p581 = pneg %p204
      %p582 = pneg %p201
      %p583 = scmp.lt.s32.totalorder %s27, 1
      %s584 = scalar_select %p583, %s27, 1
      %s585 = scalar_lea.vmem %s5, %s584
      %p586 = pneg %p230
      %p587 = pneg %p227
      %p588 = pneg %p251
      %p589 = pneg %p248
      %p590 = pneg %p272
      %p591 = pneg %p269
      %p592 = pneg %p293
      %p593 = pneg %p290
      %p594 = pneg %p314
      %p595 = pneg %p311
      %p596 = pneg %p342
      %p597 = pneg %p339
      %s598 = smul.u32 8, %s28
      %p599 = scmp.lt.s32.totalorder %s27, 1
      %s600 = scalar_select %p599, %s27, 1
      %p601 = scmp.lt.s32.totalorder %s598, 15
      %s602 = scalar_select %p601, %s598, 15
      %s603 = smul.addr %s602, 2
      %s604 = smul.addr %s600, 32
      %s605 = sadd.s32 %s603, %s604
      %s606 = smul.addr %s605, 4
      %s607 = scalar_lea.vmem %s10, %s606
      %p608 = pneg %p370
      %p609 = pneg %p367
      %p610 = scmp.lt.s32.totalorder %s27, 1
      %s611 = scalar_select %p610, %s27, 1
      %p612 = scmp.lt.s32.totalorder %s28, 1
      %s613 = scalar_select %p612, %s28, 1
      %s614 = smul.addr %s611, 2
      %s615 = sadd.s32 %s613, %s614
      %s616 = scalar_lea.vmem %s11, %s615
      %s617 = smul.u32 8, %s28
      %p618 = scmp.lt.s32.totalorder %s27, 1
      %s619 = scalar_select %p618, %s27, 1
      %p620 = scmp.lt.s32.totalorder %s617, 15
      %s621 = scalar_select %p620, %s617, 15
      %s622 = smul.addr %s621, 2
      %s623 = smul.addr %s619, 32
      %s624 = sadd.s32 %s622, %s623
      %s625 = smul.addr %s624, 4
      %s626 = scalar_lea.vmem %s0, %s625
      %s627 = smul.u32 8, %s28
      %s628 = smul.u32 %s28, 8
      %s629 = ssub.s32 %s628, 2
      %p630 = scmp.gt.s32.totalorder %s629, 0
      %s631 = scalar_select %p630, %s629, 0
      %p632 = scmp.lt.s32.totalorder %s27, 1
      %s633 = scalar_select %p632, %s27, 1
      %p634 = scmp.lt.s32.totalorder %s631, 15
      %s635 = scalar_select %p634, %s631, 15
      %s636 = smul.addr %s635, 2
      %s637 = smul.addr %s633, 32
      %s638 = sadd.s32 %s636, %s637
      %s639 = smul.addr %s638, 4
      %s640 = scalar_lea.vmem %s1, %s639
      %s641 = smul.u32 %s28, 8
      %s642 = ssub.s32 %s641, 2
      %p643 = scmp.gt.s32.totalorder %s642, 0
      %s644 = scalar_select %p643, %s642, 0
      %s645 = smul.u32 %s28, 8
      %s646 = ssub.s32 %s645, 1
      %p647 = scmp.gt.s32.totalorder %s646, 0
      %s648 = scalar_select %p647, %s646, 0
      %p649 = scmp.lt.s32.totalorder %s27, 1
      %s650 = scalar_select %p649, %s27, 1
      %p651 = scmp.lt.s32.totalorder %s648, 15
      %s652 = scalar_select %p651, %s648, 15
      %s653 = smul.addr %s652, 2
      %s654 = smul.addr %s650, 32
      %s655 = sadd.s32 %s653, %s654
      %s656 = smul.addr %s655, 4
      %s657 = scalar_lea.vmem %s2, %s656
      %s658 = smul.u32 %s28, 8
      %s659 = ssub.s32 %s658, 1
      %p660 = scmp.gt.s32.totalorder %s659, 0
      %s661 = scalar_select %p660, %s659, 0
      %s662 = sadd.s32 %s28, 1
      %s663 = smul.u32 %s662, 8
      %p664 = scmp.lt.s32.totalorder %s663, 15
      %s665 = scalar_select %p664, %s663, 15
      %p666 = scmp.lt.s32.totalorder %s27, 1
      %s667 = scalar_select %p666, %s27, 1
      %p668 = scmp.lt.s32.totalorder %s665, 15
      %s669 = scalar_select %p668, %s665, 15
      %s670 = smul.addr %s669, 2
      %s671 = smul.addr %s667, 32
      %s672 = sadd.s32 %s670, %s671
      %s673 = smul.addr %s672, 4
      %s674 = scalar_lea.vmem %s3, %s673
      %s675 = sadd.s32 %s28, 1
      %s676 = smul.u32 %s675, 8
      %p677 = scmp.lt.s32.totalorder %s676, 15
      %s678 = scalar_select %p677, %s676, 15
      %s679 = sadd.s32 %s28, 1
      %s680 = smul.u32 %s679, 8
      %s681 = sadd.s32 %s680, 1
      %p682 = scmp.lt.s32.totalorder %s681, 15
      %s683 = scalar_select %p682, %s681, 15
      %p684 = scmp.lt.s32.totalorder %s27, 1
      %s685 = scalar_select %p684, %s27, 1
      %p686 = scmp.lt.s32.totalorder %s683, 15
      %s687 = scalar_select %p686, %s683, 15
      %s688 = smul.addr %s687, 2
      %s689 = smul.addr %s685, 32
      %s690 = sadd.s32 %s688, %s689
      %s691 = smul.addr %s690, 4
      %s692 = scalar_lea.vmem %s4, %s691
      %s693 = sadd.s32 %s28, 1
      %s694 = smul.u32 %s693, 8
      %s695 = sadd.s32 %s694, 1
      %p696 = scmp.lt.s32.totalorder %s695, 15
      %s697 = scalar_select %p696, %s695, 15
      %p698 = scmp.lt.s32.totalorder %s27, 1
      %s699 = scalar_select %p698, %s27, 1
      %s700 = scalar_lea.vmem %s5, %s699
      %s701 = smul.u32 8, %s28
      %p702 = scmp.lt.s32.totalorder %s27, 1
      %s703 = scalar_select %p702, %s27, 1
      %p704 = scmp.lt.s32.totalorder %s701, 15
      %s705 = scalar_select %p704, %s701, 15
      %s706 = smul.addr %s705, 2
      %s707 = smul.addr %s703, 32
      %s708 = sadd.s32 %s706, %s707
      %s709 = smul.addr %s708, 4
      %s710 = scalar_lea.vmem %s10, %s709
      %s711 = smul.u32 8, %s28
      %p712 = scmp.lt.s32.totalorder %s27, 1
      %s713 = scalar_select %p712, %s27, 1
      %p714 = scmp.lt.s32.totalorder %s28, 1
      %s715 = scalar_select %p714, %s28, 1
      %s716 = smul.addr %s713, 2
      %s717 = sadd.s32 %s715, %s716
      %s718 = scalar_lea.vmem %s11, %s717
      %v720 = vld [vmem:[%s700] sm:$0x1]
      %v721 = vld [vmem:[%s626] sm:$0xf]
      %v722 = vld [vmem:[%s626 + $0x4] sm:$0xf]
      %v723 = vld [vmem:[%s626 + $0x8] sm:$0xf]
      %v724 = vld [vmem:[%s626 + $0xc] sm:$0xf]
      %v725 = vld [vmem:[%s626 + $0x10] sm:$0xf]
      %v726 = vld [vmem:[%s626 + $0x14] sm:$0xf]
      %v727 = vld [vmem:[%s626 + $0x18] sm:$0xf]
      %v728 = vld [vmem:[%s626 + $0x1c] sm:$0xf]
      %v729 = vld [vmem:[%s626 + $0x20] sm:$0xf]
      %v730 = vld [vmem:[%s626 + $0x24] sm:$0xf]
      %v731 = vld [vmem:[%s626 + $0x28] sm:$0xf]
      %v732 = vld [vmem:[%s626 + $0x2c] sm:$0xf]
      %v733 = vld [vmem:[%s626 + $0x30] sm:$0xf]
      %v734 = vld [vmem:[%s626 + $0x34] sm:$0xf]
      %v735 = vld [vmem:[%s626 + $0x38] sm:$0xf]
      %v736 = vld [vmem:[%s626 + $0x3c] sm:$0xf]
      %v737 = vunpack.c.l.bf16 %v721
      %v738 = vunpack.c.l.bf16 %v722
      %v739 = vunpack.c.l.bf16 %v723
      %v740 = vunpack.c.l.bf16 %v724
      %v741 = vunpack.c.l.bf16 %v725
      %v742 = vunpack.c.l.bf16 %v726
      %v743 = vunpack.c.l.bf16 %v727
      %v744 = vunpack.c.l.bf16 %v728
      %v745 = vunpack.c.l.bf16 %v729
      %v746 = vunpack.c.l.bf16 %v730
      %v747 = vunpack.c.l.bf16 %v731
      %v748 = vunpack.c.l.bf16 %v732
      %v749 = vunpack.c.l.bf16 %v733
      %v750 = vunpack.c.l.bf16 %v734
      %v751 = vunpack.c.l.bf16 %v735
      %v752 = vunpack.c.l.bf16 %v736
      %v754 = vperm.slane %v720, 0
      %v756 = vmul.f32 %v737, %v754
      %v757 = vmul.f32 %v738, %v754
      %v758 = vmul.f32 %v739, %v754
      %v759 = vmul.f32 %v740, %v754
      %v760 = vmul.f32 %v741, %v754
      %v761 = vmul.f32 %v742, %v754
      %v762 = vmul.f32 %v743, %v754
      %v763 = vmul.f32 %v744, %v754
      %v764 = vmul.f32 %v745, %v754
      %v765 = vmul.f32 %v746, %v754
      %v766 = vmul.f32 %v747, %v754
      %v767 = vmul.f32 %v748, %v754
      %v768 = vmul.f32 %v749, %v754
      %v769 = vmul.f32 %v750, %v754
      %v770 = vmul.f32 %v751, %v754
      %v771 = vmul.f32 %v752, %v754
      %v772 = vpack.c.bf16 %v756, %v756
      %v773 = vpack.c.bf16 %v757, %v757
      %v774 = vpack.c.bf16 %v758, %v758
      %v775 = vpack.c.bf16 %v759, %v759
      %v776 = vpack.c.bf16 %v760, %v760
      %v777 = vpack.c.bf16 %v761, %v761
      %v778 = vpack.c.bf16 %v762, %v762
      %v779 = vpack.c.bf16 %v763, %v763
      %v780 = vpack.c.bf16 %v764, %v764
      %v781 = vpack.c.bf16 %v765, %v765
      %v782 = vpack.c.bf16 %v766, %v766
      %v783 = vpack.c.bf16 %v767, %v767
      %v784 = vpack.c.bf16 %v768, %v768
      %v785 = vpack.c.bf16 %v769, %v769
      %v786 = vpack.c.bf16 %v770, %v770
      %v787 = vpack.c.bf16 %v771, %v771
      %vm788 = vsmask.f32 256
      %vm789 = vsmask.f32 4368
      %vm790 = vmor %vm788, %vm789
      %v792 = vshrl.u32 %v772, 16
      %v794 = vrot.slane %v792, 7
      %v795 = vshll.u32 %v772, 16
      %v797 = vor.u32 %v794, %v795
      %v798 = vrot.slane %v794, 4
      %v800 = vshrl.u32 %v773, 16
      %v802 = vrot.slane %v800, 7
      %v803 = vshll.u32 %v773, 16
      %v805 = vor.u32 %v802, %v803
      %v806 = vsel %vm790, %v798, %v805
      %v807 = vrot.slane %v802, 4
      %v809 = vshrl.u32 %v774, 16
      %v811 = vrot.slane %v809, 7
      %v812 = vshll.u32 %v774, 16
      %v814 = vor.u32 %v811, %v812
      %v815 = vrot.slane %v811, 4
      %v817 = vshrl.u32 %v775, 16
      %v819 = vrot.slane %v817, 7
      %v820 = vshll.u32 %v775, 16
      %v822 = vor.u32 %v819, %v820
      %v823 = vsel %vm790, %v815, %v822
      %v824 = vrot.slane %v819, 4
      %v826 = vshrl.u32 %v776, 16
      %v828 = vrot.slane %v826, 7
      %v829 = vshll.u32 %v776, 16
      %v831 = vor.u32 %v828, %v829
      %v832 = vrot.slane %v828, 4
      %v834 = vshrl.u32 %v777, 16
      %v836 = vrot.slane %v834, 7
      %v837 = vshll.u32 %v777, 16
      %v839 = vor.u32 %v836, %v837
      %v840 = vsel %vm790, %v832, %v839
      %v841 = vrot.slane %v836, 4
      %v843 = vshrl.u32 %v778, 16
      %v845 = vrot.slane %v843, 7
      %v846 = vshll.u32 %v778, 16
      %v848 = vor.u32 %v845, %v846
      %v849 = vrot.slane %v845, 4
      %v851 = vshrl.u32 %v779, 16
      %v853 = vrot.slane %v851, 7
      %v854 = vshll.u32 %v779, 16
      %v856 = vor.u32 %v853, %v854
      %v857 = vsel %vm790, %v849, %v856
      %v858 = vrot.slane %v853, 4
      %v860 = vshrl.u32 %v780, 16
      %v862 = vrot.slane %v860, 7
      %v863 = vshll.u32 %v780, 16
      %v865 = vor.u32 %v862, %v863
      %v866 = vrot.slane %v862, 4
      %v868 = vshrl.u32 %v781, 16
      %v870 = vrot.slane %v868, 7
      %v871 = vshll.u32 %v781, 16
      %v873 = vor.u32 %v870, %v871
      %v874 = vsel %vm790, %v866, %v873
      %v875 = vrot.slane %v870, 4
      %v877 = vshrl.u32 %v782, 16
      %v879 = vrot.slane %v877, 7
      %v880 = vshll.u32 %v782, 16
      %v882 = vor.u32 %v879, %v880
      %v883 = vrot.slane %v879, 4
      %v885 = vshrl.u32 %v783, 16
      %v887 = vrot.slane %v885, 7
      %v888 = vshll.u32 %v783, 16
      %v890 = vor.u32 %v887, %v888
      %v891 = vsel %vm790, %v883, %v890
      %v892 = vrot.slane %v887, 4
      %v894 = vshrl.u32 %v784, 16
      %v896 = vrot.slane %v894, 7
      %v897 = vshll.u32 %v784, 16
      %v899 = vor.u32 %v896, %v897
      %v900 = vrot.slane %v896, 4
      %v902 = vshrl.u32 %v785, 16
      %v904 = vrot.slane %v902, 7
      %v905 = vshll.u32 %v785, 16
      %v907 = vor.u32 %v904, %v905
      %v908 = vsel %vm790, %v900, %v907
      %v909 = vrot.slane %v904, 4
      %v911 = vshrl.u32 %v786, 16
      %v913 = vrot.slane %v911, 7
      %v914 = vshll.u32 %v786, 16
      %v916 = vor.u32 %v913, %v914
      %v917 = vrot.slane %v913, 4
      %v919 = vshrl.u32 %v787, 16
      %v921 = vrot.slane %v919, 7
      %v922 = vshll.u32 %v787, 16
      %v924 = vor.u32 %v921, %v922
      %v925 = vsel %vm790, %v917, %v924
      %v926 = vrot.slane %v921, 4
      %s951 = scalar_lea.vmem [#allocation2], 24
      %vm952 = vcmask 519168
      %vm953 = vsmask.f32 7938
      %vm954 = vmand %vm952, %vm953
      %v955 = vld [vmem:[%s951] sm:$0xf]
      %v956 = vsel %vm954, %v797, %v955
      %957 = vst [vmem:[%s951] sm:$0xf] %v956
      %vm958 = vcmask 519168
      %959 = vst.msk [vmem:[%s951 + $0x4] sm:$0xf] %vm958, %v806
      %vm960 = vcmask 516096
      %vm961 = vmand %vm960, %vm788
      %v962 = vld [vmem:[%s951 + $0x8] sm:$0x1]
      %v963 = vsel %vm961, %v807, %v962
      %964 = vst [vmem:[%s951 + $0x8] sm:$0x1] %v963
      %v965 = vld [vmem:[%s951 + $0xc] sm:$0xf]
      %v966 = vsel %vm954, %v814, %v965
      %967 = vst [vmem:[%s951 + $0xc] sm:$0xf] %v966
      %968 = vst.msk [vmem:[%s951 + $0x10] sm:$0xf] %vm958, %v823
      %v969 = vld [vmem:[%s951 + $0x14] sm:$0x1]
      %v970 = vsel %vm961, %v824, %v969
      %971 = vst [vmem:[%s951 + $0x14] sm:$0x1] %v970
      %v972 = vld [vmem:[%s951 + $0x18] sm:$0xf]
      %v973 = vsel %vm954, %v831, %v972
      %974 = vst [vmem:[%s951 + $0x18] sm:$0xf] %v973
      %975 = vst.msk [vmem:[%s951 + $0x1c] sm:$0xf] %vm958, %v840
      %v976 = vld [vmem:[%s951 + $0x20] sm:$0x1]
      %v977 = vsel %vm961, %v841, %v976
      %978 = vst [vmem:[%s951 + $0x20] sm:$0x1] %v977
      %v979 = vld [vmem:[%s951 + $0x24] sm:$0xf]
      %v980 = vsel %vm954, %v848, %v979
      %981 = vst [vmem:[%s951 + $0x24] sm:$0xf] %v980
      %982 = vst.msk [vmem:[%s951 + $0x28] sm:$0xf] %vm958, %v857
      %v983 = vld [vmem:[%s951 + $0x2c] sm:$0x1]
      %v984 = vsel %vm961, %v858, %v983
      %985 = vst [vmem:[%s951 + $0x2c] sm:$0x1] %v984
      %v986 = vld [vmem:[%s951 + $0x30] sm:$0xf]
      %v987 = vsel %vm954, %v865, %v986
      %988 = vst [vmem:[%s951 + $0x30] sm:$0xf] %v987
      %989 = vst.msk [vmem:[%s951 + $0x34] sm:$0xf] %vm958, %v874
      %v990 = vld [vmem:[%s951 + $0x38] sm:$0x1]
      %v991 = vsel %vm961, %v875, %v990
      %992 = vst [vmem:[%s951 + $0x38] sm:$0x1] %v991
      %v993 = vld [vmem:[%s951 + $0x3c] sm:$0xf]
      %v994 = vsel %vm954, %v882, %v993
      %995 = vst [vmem:[%s951 + $0x3c] sm:$0xf] %v994
      %996 = vst.msk [vmem:[%s951 + $0x40] sm:$0xf] %vm958, %v891
      %v997 = vld [vmem:[%s951 + $0x44] sm:$0x1]
      %v998 = vsel %vm961, %v892, %v997
      %999 = vst [vmem:[%s951 + $0x44] sm:$0x1] %v998
      %v1000 = vld [vmem:[%s951 + $0x48] sm:$0xf]
      %v1001 = vsel %vm954, %v899, %v1000
      %1002 = vst [vmem:[%s951 + $0x48] sm:$0xf] %v1001
      %1003 = vst.msk [vmem:[%s951 + $0x4c] sm:$0xf] %vm958, %v908
      %v1004 = vld [vmem:[%s951 + $0x50] sm:$0x1]
      %v1005 = vsel %vm961, %v909, %v1004
      %1006 = vst [vmem:[%s951 + $0x50] sm:$0x1] %v1005
      %v1007 = vld [vmem:[%s951 + $0x54] sm:$0xf]
      %v1008 = vsel %vm954, %v916, %v1007
      %1009 = vst [vmem:[%s951 + $0x54] sm:$0xf] %v1008
      %1010 = vst.msk [vmem:[%s951 + $0x58] sm:$0xf] %vm958, %v925
      %v1011 = vld [vmem:[%s951 + $0x5c] sm:$0x1]
      %v1012 = vsel %vm961, %v926, %v1011
      %1013 = vst [vmem:[%s951 + $0x5c] sm:$0x1] %v1012
      %p1014 = scmp.eq.s32.totalorder %s28, 0
      // Predicated region
      $region61: #{coarse_denoise_encoder.9} parent=59 // pred_check
        %p1015 = pneg %p1014
      $region62: #{coarse_denoise_encoder.9} parent=59 // pred_check_branch
        %1017 = sbr.rel (%p1015) target = $region64
      $region63: #{coarse_denoise_encoder.9} parent=59 // pred_region
        %v1018 = vld [vmem:[#allocation2] sm:$0xf]
        %v1019 = vsel %vm954, 0, %v1018
        %1020 = vst [vmem:[#allocation2] sm:$0xf] %v1019
        %1021 = vst.msk [vmem:[#allocation2 + $0x4] sm:$0xf] %vm958, 0
        %v1022 = vld [vmem:[#allocation2 + $0x8] sm:$0x1]
        %v1023 = vsel %vm961, 0, %v1022
        %1024 = vst [vmem:[#allocation2 + $0x8] sm:$0x1] %v1023
        %v1025 = vld [vmem:[#allocation2 + $0xc] sm:$0xf]
        %v1026 = vsel %vm954, 0, %v1025
        %1027 = vst [vmem:[#allocation2 + $0xc] sm:$0xf] %v1026
        %1028 = vst.msk [vmem:[#allocation2 + $0x10] sm:$0xf] %vm958, 0
        %v1029 = vld [vmem:[#allocation2 + $0x14] sm:$0x1]
        %v1030 = vsel %vm961, 0, %v1029
        %1031 = vst [vmem:[#allocation2 + $0x14] sm:$0x1] %v1030
      $region64: #{coarse_denoise_encoder.9} parent=59 // pred_fallthru
        _
      %p1032 = scmp.gt.s32.totalorder %s28, 0
      // Predicated region
      $region65: #{coarse_denoise_encoder.9} parent=59 // pred_check
        %p1033 = pneg %p1032
      $region66: #{coarse_denoise_encoder.9} parent=59 // pred_check_branch
        %1035 = sbr.rel (%p1033) target = $region68
      $region67: #{coarse_denoise_encoder.9} parent=59 // pred_region
        %v1036 = vld [vmem:[%s640] sm:$0xf]
        %v1037 = vld [vmem:[%s640 + $0x4] sm:$0xf]
        %v1038 = vunpack.c.l.bf16 %v1036
        %v1039 = vunpack.c.l.bf16 %v1037
        %v1040 = vmul.f32 %v1038, %v754
        %v1041 = vmul.f32 %v1039, %v754
        %v1042 = vpack.c.bf16 %v1040, %v1040
        %v1043 = vpack.c.bf16 %v1041, %v1041
        %v1045 = vshrl.u32 %v1042, 16
        %v1047 = vrot.slane %v1045, 7
        %v1048 = vshll.u32 %v1042, 16
        %v1050 = vor.u32 %v1047, %v1048
        %v1051 = vrot.slane %v1047, 4
        %v1053 = vshrl.u32 %v1043, 16
        %v1055 = vrot.slane %v1053, 7
        %v1056 = vshll.u32 %v1043, 16
        %v1058 = vor.u32 %v1055, %v1056
        %v1059 = vsel %vm790, %v1051, %v1058
        %v1060 = vrot.slane %v1055, 4
        %v1064 = vld [vmem:[#allocation2] sm:$0xf]
        %v1065 = vsel %vm954, %v1050, %v1064
        %1066 = vst [vmem:[#allocation2] sm:$0xf] %v1065
        %1067 = vst.msk [vmem:[#allocation2 + $0x4] sm:$0xf] %vm958, %v1059
        %v1068 = vld [vmem:[#allocation2 + $0x8] sm:$0x1]
        %v1069 = vsel %vm961, %v1060, %v1068
        %1070 = vst [vmem:[#allocation2 + $0x8] sm:$0x1] %v1069
        %v1071 = vld [vmem:[%s657] sm:$0xf]
        %v1072 = vld [vmem:[%s657 + $0x4] sm:$0xf]
        %v1073 = vunpack.c.l.bf16 %v1071
        %v1074 = vunpack.c.l.bf16 %v1072
        %v1075 = vmul.f32 %v1073, %v754
        %v1076 = vmul.f32 %v1074, %v754
        %v1077 = vpack.c.bf16 %v1075, %v1075
        %v1078 = vpack.c.bf16 %v1076, %v1076
        %v1080 = vshrl.u32 %v1077, 16
        %v1082 = vrot.slane %v1080, 7
        %v1083 = vshll.u32 %v1077, 16
        %v1085 = vor.u32 %v1082, %v1083
        %v1086 = vrot.slane %v1082, 4
        %v1088 = vshrl.u32 %v1078, 16
        %v1090 = vrot.slane %v1088, 7
        %v1091 = vshll.u32 %v1078, 16
        %v1093 = vor.u32 %v1090, %v1091
        %v1094 = vsel %vm790, %v1086, %v1093
        %v1095 = vrot.slane %v1090, 4
        %s1099 = scalar_lea.vmem [#allocation2], 12
        %v1100 = vld [vmem:[%s1099] sm:$0xf]
        %v1101 = vsel %vm954, %v1085, %v1100
        %1102 = vst [vmem:[%s1099] sm:$0xf] %v1101
        %1103 = vst.msk [vmem:[%s1099 + $0x4] sm:$0xf] %vm958, %v1094
        %v1104 = vld [vmem:[%s1099 + $0x8] sm:$0x1]
        %v1105 = vsel %vm961, %v1095, %v1104
        %1106 = vst [vmem:[%s1099 + $0x8] sm:$0x1] %v1105
      $region68: #{coarse_denoise_encoder.9} parent=59 // pred_fallthru
        _
      %p1107 = scmp.eq.s32.totalorder %s28, 1
      // Predicated region
      $region69: #{coarse_denoise_encoder.9} parent=59 // pred_check
        %p1108 = pneg %p1107
      $region70: #{coarse_denoise_encoder.9} parent=59 // pred_check_branch
        %1110 = sbr.rel (%p1108) target = $region72
      $region71: #{coarse_denoise_encoder.9} parent=59 // pred_region
        %s1111 = scalar_lea.vmem [#allocation2], 120
        %v1112 = vld [vmem:[%s1111] sm:$0xf]
        %v1113 = vsel %vm954, 0, %v1112
        %1114 = vst [vmem:[%s1111] sm:$0xf] %v1113
        %1115 = vst.msk [vmem:[%s1111 + $0x4] sm:$0xf] %vm958, 0
        %v1116 = vld [vmem:[%s1111 + $0x8] sm:$0x1]
        %v1117 = vsel %vm961, 0, %v1116
        %1118 = vst [vmem:[%s1111 + $0x8] sm:$0x1] %v1117
        %v1119 = vld [vmem:[%s1111 + $0xc] sm:$0xf]
        %v1120 = vsel %vm954, 0, %v1119
        %1121 = vst [vmem:[%s1111 + $0xc] sm:$0xf] %v1120
        %1122 = vst.msk [vmem:[%s1111 + $0x10] sm:$0xf] %vm958, 0
        %v1123 = vld [vmem:[%s1111 + $0x14] sm:$0x1]
        %v1124 = vsel %vm961, 0, %v1123
        %1125 = vst [vmem:[%s1111 + $0x14] sm:$0x1] %v1124
      $region72: #{coarse_denoise_encoder.9} parent=59 // pred_fallthru
        _
      %p1126 = scmp.lt.s32.totalorder %s28, 1
      // Predicated region
      $region73: #{coarse_denoise_encoder.9} parent=59 // pred_check
        %p1127 = pneg %p1126
      $region74: #{coarse_denoise_encoder.9} parent=59 // pred_check_branch
        %1129 = sbr.rel (%p1127) target = $region76
      $region75: #{coarse_denoise_encoder.9} parent=59 // pred_region
        %v1130 = vld [vmem:[%s674] sm:$0xf]
        %v1131 = vld [vmem:[%s674 + $0x4] sm:$0xf]
        %v1132 = vunpack.c.l.bf16 %v1130
        %v1133 = vunpack.c.l.bf16 %v1131
        %v1134 = vmul.f32 %v1132, %v754
        %v1135 = vmul.f32 %v1133, %v754
        %v1136 = vpack.c.bf16 %v1134, %v1134
        %v1137 = vpack.c.bf16 %v1135, %v1135
        %v1139 = vshrl.u32 %v1136, 16
        %v1141 = vrot.slane %v1139, 7
        %v1142 = vshll.u32 %v1136, 16
        %v1144 = vor.u32 %v1141, %v1142
        %v1145 = vrot.slane %v1141, 4
        %v1147 = vshrl.u32 %v1137, 16
        %v1149 = vrot.slane %v1147, 7
        %v1150 = vshll.u32 %v1137, 16
        %v1152 = vor.u32 %v1149, %v1150
        %v1153 = vsel %vm790, %v1145, %v1152
        %v1154 = vrot.slane %v1149, 4
        %s1158 = scalar_lea.vmem [#allocation2], 120
        %v1159 = vld [vmem:[%s1158] sm:$0xf]
        %v1160 = vsel %vm954, %v1144, %v1159
        %1161 = vst [vmem:[%s1158] sm:$0xf] %v1160
        %1162 = vst.msk [vmem:[%s1158 + $0x4] sm:$0xf] %vm958, %v1153
        %v1163 = vld [vmem:[%s1158 + $0x8] sm:$0x1]
        %v1164 = vsel %vm961, %v1154, %v1163
        %1165 = vst [vmem:[%s1158 + $0x8] sm:$0x1] %v1164
        %v1166 = vld [vmem:[%s692] sm:$0xf]
        %v1167 = vld [vmem:[%s692 + $0x4] sm:$0xf]
        %v1168 = vunpack.c.l.bf16 %v1166
        %v1169 = vunpack.c.l.bf16 %v1167
        %v1170 = vmul.f32 %v1168, %v754
        %v1171 = vmul.f32 %v1169, %v754
        %v1172 = vpack.c.bf16 %v1170, %v1170
        %v1173 = vpack.c.bf16 %v1171, %v1171
        %v1175 = vshrl.u32 %v1172, 16
        %v1177 = vrot.slane %v1175, 7
        %v1178 = vshll.u32 %v1172, 16
        %v1180 = vor.u32 %v1177, %v1178
        %v1181 = vrot.slane %v1177, 4
        %v1183 = vshrl.u32 %v1173, 16
        %v1185 = vrot.slane %v1183, 7
        %v1186 = vshll.u32 %v1173, 16
        %v1188 = vor.u32 %v1185, %v1186
        %v1189 = vsel %vm790, %v1181, %v1188
        %v1190 = vrot.slane %v1185, 4
        %s1194 = scalar_lea.vmem [#allocation2], 132
        %v1195 = vld [vmem:[%s1194] sm:$0xf]
        %v1196 = vsel %vm954, %v1180, %v1195
        %1197 = vst [vmem:[%s1194] sm:$0xf] %v1196
        %1198 = vst.msk [vmem:[%s1194 + $0x4] sm:$0xf] %vm958, %v1189
        %v1199 = vld [vmem:[%s1194 + $0x8] sm:$0x1]
        %v1200 = vsel %vm961, %v1190, %v1199
        %1201 = vst [vmem:[%s1194 + $0x8] sm:$0x1] %v1200
      $region76: #{coarse_denoise_encoder.9} parent=59 // pred_fallthru
        _
      %v1202 = vld [vmem:[#allocation2] sm:$0x1]
      %v1203 = vsel %vm961, 0, %v1202
      %1204 = vst [vmem:[#allocation2] sm:$0x1] %v1203
      %v1205 = vld [vmem:[#allocation2 + $0xc] sm:$0x1]
      %v1206 = vsel %vm961, 0, %v1205
      %1207 = vst [vmem:[#allocation2 + $0xc] sm:$0x1] %v1206
      %v1208 = vld [vmem:[#allocation2 + $0x18] sm:$0x1]
      %v1209 = vsel %vm961, 0, %v1208
      %1210 = vst [vmem:[#allocation2 + $0x18] sm:$0x1] %v1209
      %v1211 = vld [vmem:[#allocation2 + $0x24] sm:$0x1]
      %v1212 = vsel %vm961, 0, %v1211
      %1213 = vst [vmem:[#allocation2 + $0x24] sm:$0x1] %v1212
      %v1214 = vld [vmem:[#allocation2 + $0x30] sm:$0x1]
      %v1215 = vsel %vm961, 0, %v1214
      %1216 = vst [vmem:[#allocation2 + $0x30] sm:$0x1] %v1215
      %v1217 = vld [vmem:[#allocation2 + $0x3c] sm:$0x1]
      %v1218 = vsel %vm961, 0, %v1217
      %1219 = vst [vmem:[#allocation2 + $0x3c] sm:$0x1] %v1218
      %v1220 = vld [vmem:[#allocation2 + $0x48] sm:$0x1]
      %v1221 = vsel %vm961, 0, %v1220
      %1222 = vst [vmem:[#allocation2 + $0x48] sm:$0x1] %v1221
      %v1223 = vld [vmem:[#allocation2 + $0x54] sm:$0x1]
      %v1224 = vsel %vm961, 0, %v1223
      %1225 = vst [vmem:[#allocation2 + $0x54] sm:$0x1] %v1224
      %v1226 = vld [vmem:[#allocation2 + $0x60] sm:$0x1]
      %v1227 = vsel %vm961, 0, %v1226
      %1228 = vst [vmem:[#allocation2 + $0x60] sm:$0x1] %v1227
      %v1229 = vld [vmem:[#allocation2 + $0x6c] sm:$0x1]
      %v1230 = vsel %vm961, 0, %v1229
      %1231 = vst [vmem:[#allocation2 + $0x6c] sm:$0x1] %v1230
      %v1232 = vld [vmem:[#allocation2 + $0x78] sm:$0x1]
      %v1233 = vsel %vm961, 0, %v1232
      %1234 = vst [vmem:[#allocation2 + $0x78] sm:$0x1] %v1233
      %v1235 = vld [vmem:[#allocation2 + $0x84] sm:$0x1]
      %v1236 = vsel %vm961, 0, %v1235
      %1237 = vst [vmem:[#allocation2 + $0x84] sm:$0x1] %v1236
      %vm1238 = vmand %vm960, %vm953
      %v1239 = vld [vmem:[#allocation2 + $0x8] sm:$0x1]
      %v1240 = vsel %vm1238, 0, %v1239
      %1241 = vst [vmem:[#allocation2 + $0x8] sm:$0x1] %v1240
      %v1242 = vld [vmem:[#allocation2 + $0x14] sm:$0x1]
      %v1243 = vsel %vm1238, 0, %v1242
      %1244 = vst [vmem:[#allocation2 + $0x14] sm:$0x1] %v1243
      %v1245 = vld [vmem:[#allocation2 + $0x20] sm:$0x1]
      %v1246 = vsel %vm1238, 0, %v1245
      %1247 = vst [vmem:[#allocation2 + $0x20] sm:$0x1] %v1246
      %v1248 = vld [vmem:[#allocation2 + $0x2c] sm:$0x1]
      %v1249 = vsel %vm1238, 0, %v1248
      %1250 = vst [vmem:[#allocation2 + $0x2c] sm:$0x1] %v1249
      %v1251 = vld [vmem:[#allocation2 + $0x38] sm:$0x1]
      %v1252 = vsel %vm1238, 0, %v1251
      %1253 = vst [vmem:[#allocation2 + $0x38] sm:$0x1] %v1252
      %v1254 = vld [vmem:[#allocation2 + $0x44] sm:$0x1]
      %v1255 = vsel %vm1238, 0, %v1254
      %1256 = vst [vmem:[#allocation2 + $0x44] sm:$0x1] %v1255
      %v1257 = vld [vmem:[#allocation2 + $0x50] sm:$0x1]
      %v1258 = vsel %vm1238, 0, %v1257
      %1259 = vst [vmem:[#allocation2 + $0x50] sm:$0x1] %v1258
      %v1260 = vld [vmem:[#allocation2 + $0x5c] sm:$0x1]
      %v1261 = vsel %vm1238, 0, %v1260
      %1262 = vst [vmem:[#allocation2 + $0x5c] sm:$0x1] %v1261
      %v1263 = vld [vmem:[#allocation2 + $0x68] sm:$0x1]
      %v1264 = vsel %vm1238, 0, %v1263
      %1265 = vst [vmem:[#allocation2 + $0x68] sm:$0x1] %v1264
      %v1266 = vld [vmem:[#allocation2 + $0x74] sm:$0x1]
      %v1267 = vsel %vm1238, 0, %v1266
      %1268 = vst [vmem:[#allocation2 + $0x74] sm:$0x1] %v1267
      %v1269 = vld [vmem:[#allocation2 + $0x80] sm:$0x1]
      %v1270 = vsel %vm1238, 0, %v1269
      %1271 = vst [vmem:[#allocation2 + $0x80] sm:$0x1] %v1270
      %v1272 = vld [vmem:[#allocation2 + $0x8c] sm:$0x1]
      %v1273 = vsel %vm1238, 0, %v1272
      %1274 = vst [vmem:[#allocation2 + $0x8c] sm:$0x1] %v1273
      %v1275 = vld [vmem:[#allocation2] sm:$0xf]
      %v1276 = vld [vmem:[#allocation2 + $0x4] sm:$0xf]
      %v1277 = vld [vmem:[#allocation2 + $0x8] sm:$0x1]
      %v1278 = vld [vmem:[#allocation2 + $0xc] sm:$0xf]
      %v1279 = vld [vmem:[#allocation2 + $0x10] sm:$0xf]
      %v1280 = vld [vmem:[#allocation2 + $0x14] sm:$0x1]
      %v1281 = vld [vmem:[#allocation2 + $0x18] sm:$0xf]
      %v1282 = vld [vmem:[#allocation2 + $0x1c] sm:$0xf]
      %v1283 = vld [vmem:[#allocation2 + $0x20] sm:$0x1]
      %v1284 = vld [vmem:[#allocation2 + $0x24] sm:$0xf]
      %v1285 = vld [vmem:[#allocation2 + $0x28] sm:$0xf]
      %v1286 = vld [vmem:[#allocation2 + $0x2c] sm:$0x1]
      %v1287 = vld [vmem:[#allocation2 + $0x30] sm:$0xf]
      %v1288 = vld [vmem:[#allocation2 + $0x34] sm:$0xf]
      %v1289 = vld [vmem:[#allocation2 + $0x38] sm:$0x1]
      %v1290 = vld [vmem:[#allocation2 + $0x3c] sm:$0xf]
      %v1291 = vld [vmem:[#allocation2 + $0x40] sm:$0xf]
      %v1292 = vld [vmem:[#allocation2 + $0x44] sm:$0x1]
      %v1293 = vld [vmem:[#allocation2 + $0x48] sm:$0xf]
      %v1294 = vld [vmem:[#allocation2 + $0x4c] sm:$0xf]
      %v1295 = vld [vmem:[#allocation2 + $0x50] sm:$0x1]
      %v1296 = vld [vmem:[#allocation2 + $0x54] sm:$0xf]
      %v1297 = vld [vmem:[#allocation2 + $0x58] sm:$0xf]
      %v1298 = vld [vmem:[#allocation2 + $0x5c] sm:$0x1]
      %v1299 = vld [vmem:[#allocation2 + $0x60] sm:$0xf]
      %v1300 = vld [vmem:[#allocation2 + $0x64] sm:$0xf]
      %v1301 = vld [vmem:[#allocation2 + $0x68] sm:$0x1]
      %v1302 = vld [vmem:[#allocation2 + $0x6c] sm:$0xf]
      %v1303 = vld [vmem:[#allocation2 + $0x70] sm:$0xf]
      %v1304 = vld [vmem:[#allocation2 + $0x74] sm:$0x1]
      %v1305 = vld [vmem:[#allocation2 + $0x78] sm:$0xf]
      %v1306 = vld [vmem:[#allocation2 + $0x7c] sm:$0xf]
      %v1307 = vld [vmem:[#allocation2 + $0x80] sm:$0x1]
      %v1308 = vld [vmem:[#allocation2 + $0x84] sm:$0xf]
      %v1309 = vld [vmem:[#allocation2 + $0x88] sm:$0xf]
      %v1310 = vld [vmem:[#allocation2 + $0x8c] sm:$0x1]
      %vm1311 = vsmask.f32 3328
      %vm1312 = vsmask.f32 7440
      %vm1313 = vmor %vm1311, %vm1312
      %v1315 = vshrl.u32 %v1275, 16
      %v1317 = vrot.slane %v1315, 4
      %v1318 = vshll.u32 %v1275, 16
      %v1320 = vrot.slane %v1318, 5
      %v1321 = vor.u32 %v1317, %v1320
      %v1322 = vrot.slane %v1321, 4
      %v1324 = vshll.u32 %v1276, 16
      %v1326 = vrot.slane %v1324, 5
      %v1327 = vsel %vm1313, %v1322, %v1326
      %v1328 = vshrl.u32 %v1276, 16
      %v1330 = vrot.slane %v1328, 4
      %v1331 = vor.u32 %v1330, %v1326
      %v1332 = vrot.slane %v1331, 4
      %v1334 = vshll.u32 %v1277, 16
      %v1336 = vrot.slane %v1334, 5
      %v1337 = vsel %vm1313, %v1332, %v1336
      %v1339 = vshrl.u32 %v1278, 16
      %v1341 = vrot.slane %v1339, 4
      %v1342 = vshll.u32 %v1278, 16
      %v1344 = vrot.slane %v1342, 5
      %v1345 = vor.u32 %v1341, %v1344
      %v1346 = vrot.slane %v1345, 4
      %v1348 = vshll.u32 %v1279, 16
      %v1350 = vrot.slane %v1348, 5
      %v1351 = vsel %vm1313, %v1346, %v1350
      %v1352 = vshrl.u32 %v1279, 16
      %v1354 = vrot.slane %v1352, 4
      %v1355 = vor.u32 %v1354, %v1350
      %v1356 = vrot.slane %v1355, 4
      %v1358 = vshll.u32 %v1280, 16
      %v1360 = vrot.slane %v1358, 5
      %v1361 = vsel %vm1313, %v1356, %v1360
      %v1363 = vshrl.u32 %v1281, 16
      %v1365 = vrot.slane %v1363, 4
      %v1366 = vshll.u32 %v1281, 16
      %v1368 = vrot.slane %v1366, 5
      %v1369 = vor.u32 %v1365, %v1368
      %v1370 = vrot.slane %v1369, 4
      %v1372 = vshll.u32 %v1282, 16
      %v1374 = vrot.slane %v1372, 5
      %v1375 = vsel %vm1313, %v1370, %v1374
      %v1376 = vshrl.u32 %v1282, 16
      %v1378 = vrot.slane %v1376, 4
      %v1379 = vor.u32 %v1378, %v1374
      %v1380 = vrot.slane %v1379, 4
      %v1382 = vshll.u32 %v1283, 16
      %v1384 = vrot.slane %v1382, 5
      %v1385 = vsel %vm1313, %v1380, %v1384
      %v1387 = vshrl.u32 %v1284, 16
      %v1389 = vrot.slane %v1387, 4
      %v1390 = vshll.u32 %v1284, 16
      %v1392 = vrot.slane %v1390, 5
      %v1393 = vor.u32 %v1389, %v1392
      %v1394 = vrot.slane %v1393, 4
      %v1396 = vshll.u32 %v1285, 16
      %v1398 = vrot.slane %v1396, 5
      %v1399 = vsel %vm1313, %v1394, %v1398
      %v1400 = vshrl.u32 %v1285, 16
      %v1402 = vrot.slane %v1400, 4
      %v1403 = vor.u32 %v1402, %v1398
      %v1404 = vrot.slane %v1403, 4
      %v1406 = vshll.u32 %v1286, 16
      %v1408 = vrot.slane %v1406, 5
      %v1409 = vsel %vm1313, %v1404, %v1408
      %v1411 = vshrl.u32 %v1287, 16
      %v1413 = vrot.slane %v1411, 4
      %v1414 = vshll.u32 %v1287, 16
      %v1416 = vrot.slane %v1414, 5
      %v1417 = vor.u32 %v1413, %v1416
      %v1418 = vrot.slane %v1417, 4
      %v1420 = vshll.u32 %v1288, 16
      %v1422 = vrot.slane %v1420, 5
      %v1423 = vsel %vm1313, %v1418, %v1422
      %v1424 = vshrl.u32 %v1288, 16
      %v1426 = vrot.slane %v1424, 4
      %v1427 = vor.u32 %v1426, %v1422
      %v1428 = vrot.slane %v1427, 4
      %v1430 = vshll.u32 %v1289, 16
      %v1432 = vrot.slane %v1430, 5
      %v1433 = vsel %vm1313, %v1428, %v1432
      %v1435 = vshrl.u32 %v1290, 16
      %v1437 = vrot.slane %v1435, 4
      %v1438 = vshll.u32 %v1290, 16
      %v1440 = vrot.slane %v1438, 5
      %v1441 = vor.u32 %v1437, %v1440
      %v1442 = vrot.slane %v1441, 4
      %v1444 = vshll.u32 %v1291, 16
      %v1446 = vrot.slane %v1444, 5
      %v1447 = vsel %vm1313, %v1442, %v1446
      %v1448 = vshrl.u32 %v1291, 16
      %v1450 = vrot.slane %v1448, 4
      %v1451 = vor.u32 %v1450, %v1446
      %v1452 = vrot.slane %v1451, 4
      %v1454 = vshll.u32 %v1292, 16
      %v1456 = vrot.slane %v1454, 5
      %v1457 = vsel %vm1313, %v1452, %v1456
      %v1459 = vshrl.u32 %v1293, 16
      %v1461 = vrot.slane %v1459, 4
      %v1462 = vshll.u32 %v1293, 16
      %v1464 = vrot.slane %v1462, 5
      %v1465 = vor.u32 %v1461, %v1464
      %v1466 = vrot.slane %v1465, 4
      %v1468 = vshll.u32 %v1294, 16
      %v1470 = vrot.slane %v1468, 5
      %v1471 = vsel %vm1313, %v1466, %v1470
      %v1472 = vshrl.u32 %v1294, 16
      %v1474 = vrot.slane %v1472, 4
      %v1475 = vor.u32 %v1474, %v1470
      %v1476 = vrot.slane %v1475, 4
      %v1478 = vshll.u32 %v1295, 16
      %v1480 = vrot.slane %v1478, 5
      %v1481 = vsel %vm1313, %v1476, %v1480
      %v1483 = vshrl.u32 %v1296, 16
      %v1485 = vrot.slane %v1483, 4
      %v1486 = vshll.u32 %v1296, 16
      %v1488 = vrot.slane %v1486, 5
      %v1489 = vor.u32 %v1485, %v1488
      %v1490 = vrot.slane %v1489, 4
      %v1492 = vshll.u32 %v1297, 16
      %v1494 = vrot.slane %v1492, 5
      %v1495 = vsel %vm1313, %v1490, %v1494
      %v1496 = vshrl.u32 %v1297, 16
      %v1498 = vrot.slane %v1496, 4
      %v1499 = vor.u32 %v1498, %v1494
      %v1500 = vrot.slane %v1499, 4
      %v1502 = vshll.u32 %v1298, 16
      %v1504 = vrot.slane %v1502, 5
      %v1505 = vsel %vm1313, %v1500, %v1504
      %v1507 = vshrl.u32 %v1299, 16
      %v1509 = vrot.slane %v1507, 4
      %v1510 = vshll.u32 %v1299, 16
      %v1512 = vrot.slane %v1510, 5
      %v1513 = vor.u32 %v1509, %v1512
      %v1514 = vrot.slane %v1513, 4
      %v1516 = vshll.u32 %v1300, 16
      %v1518 = vrot.slane %v1516, 5
      %v1519 = vsel %vm1313, %v1514, %v1518
      %v1520 = vshrl.u32 %v1300, 16
      %v1522 = vrot.slane %v1520, 4
      %v1523 = vor.u32 %v1522, %v1518
      %v1524 = vrot.slane %v1523, 4
      %v1526 = vshll.u32 %v1301, 16
      %v1528 = vrot.slane %v1526, 5
      %v1529 = vsel %vm1313, %v1524, %v1528
      %v1531 = vshrl.u32 %v1302, 16
      %v1533 = vrot.slane %v1531, 4
      %v1534 = vshll.u32 %v1302, 16
      %v1536 = vrot.slane %v1534, 5
      %v1537 = vor.u32 %v1533, %v1536
      %v1538 = vrot.slane %v1537, 4
      %v1540 = vshll.u32 %v1303, 16
      %v1542 = vrot.slane %v1540, 5
      %v1543 = vsel %vm1313, %v1538, %v1542
      %v1544 = vshrl.u32 %v1303, 16
      %v1546 = vrot.slane %v1544, 4
      %v1547 = vor.u32 %v1546, %v1542
      %v1548 = vrot.slane %v1547, 4
      %v1550 = vshll.u32 %v1304, 16
      %v1552 = vrot.slane %v1550, 5
      %v1553 = vsel %vm1313, %v1548, %v1552
      %v1574 = vunpack.c.l.b16 %v1275
      %v1575 = vunpack.c.l.b16 %v1276
      %v1576 = vunpack.c.l.b16 %v1278
      %v1577 = vunpack.c.l.b16 %v1279
      %v1578 = vunpack.c.l.b16 %v1281
      %v1579 = vunpack.c.l.b16 %v1282
      %v1580 = vunpack.c.l.b16 %v1284
      %v1581 = vunpack.c.l.b16 %v1285
      %v1582 = vunpack.c.l.b16 %v1287
      %v1583 = vunpack.c.l.b16 %v1288
      %v1584 = vunpack.c.l.b16 %v1290
      %v1585 = vunpack.c.l.b16 %v1291
      %v1586 = vunpack.c.l.b16 %v1293
      %v1587 = vunpack.c.l.b16 %v1294
      %v1588 = vunpack.c.l.b16 %v1296
      %v1589 = vunpack.c.l.b16 %v1297
      %v1590 = vunpack.c.l.b16 %v1299
      %v1591 = vunpack.c.l.b16 %v1300
      %v1592 = vunpack.c.l.b16 %v1302
      %v1593 = vunpack.c.l.b16 %v1303
      %v1594 = vpack.c.b16 %v1575, %v1574
      %v1595 = vpack.c.b16 %v1577, %v1576
      %v1596 = vpack.c.b16 %v1579, %v1578
      %v1597 = vpack.c.b16 %v1581, %v1580
      %v1598 = vpack.c.b16 %v1583, %v1582
      %v1599 = vpack.c.b16 %v1585, %v1584
      %v1600 = vpack.c.b16 %v1587, %v1586
      %v1601 = vpack.c.b16 %v1589, %v1588
      %v1602 = vpack.c.b16 %v1591, %v1590
      %v1603 = vpack.c.b16 %v1593, %v1592
      %v1604 = vunpack.c.l.b16 %v1327
      %v1605 = vunpack.c.l.b16 %v1337
      %v1606 = vunpack.c.l.b16 %v1351
      %v1607 = vunpack.c.l.b16 %v1361
      %v1608 = vunpack.c.l.b16 %v1375
      %v1609 = vunpack.c.l.b16 %v1385
      %v1610 = vunpack.c.l.b16 %v1399
      %v1611 = vunpack.c.l.b16 %v1409
      %v1612 = vunpack.c.l.b16 %v1423
      %v1613 = vunpack.c.l.b16 %v1433
      %v1614 = vunpack.c.l.b16 %v1447
      %v1615 = vunpack.c.l.b16 %v1457
      %v1616 = vunpack.c.l.b16 %v1471
      %v1617 = vunpack.c.l.b16 %v1481
      %v1618 = vunpack.c.l.b16 %v1495
      %v1619 = vunpack.c.l.b16 %v1505
      %v1620 = vunpack.c.l.b16 %v1519
      %v1621 = vunpack.c.l.b16 %v1529
      %v1622 = vunpack.c.l.b16 %v1543
      %v1623 = vunpack.c.l.b16 %v1553
      %v1624 = vpack.c.b16 %v1605, %v1604
      %v1625 = vpack.c.b16 %v1607, %v1606
      %v1626 = vpack.c.b16 %v1609, %v1608
      %v1627 = vpack.c.b16 %v1611, %v1610
      %v1628 = vpack.c.b16 %v1613, %v1612
      %v1629 = vpack.c.b16 %v1615, %v1614
      %v1630 = vpack.c.b16 %v1617, %v1616
      %v1631 = vpack.c.b16 %v1619, %v1618
      %v1632 = vpack.c.b16 %v1621, %v1620
      %v1633 = vpack.c.b16 %v1623, %v1622
      %1634 = vrot.lane.b32.xlu0 %v1624, 64
      %v1635 = vpop.permute.xlu0 %1634
      %1636 = vrot.lane.b32.xlu0 %v1625, 64
      %v1637 = vpop.permute.xlu0 %1636
      %1638 = vrot.lane.b32.xlu0 %v1626, 64
      %v1639 = vpop.permute.xlu0 %1638
      %1640 = vrot.lane.b32.xlu0 %v1627, 64
      %v1641 = vpop.permute.xlu0 %1640
      %1642 = vrot.lane.b32.xlu0 %v1628, 64
      %v1643 = vpop.permute.xlu0 %1642
      %1644 = vrot.lane.b32.xlu0 %v1629, 64
      %v1645 = vpop.permute.xlu0 %1644
      %1646 = vrot.lane.b32.xlu0 %v1630, 64
      %v1647 = vpop.permute.xlu0 %1646
      %1648 = vrot.lane.b32.xlu0 %v1631, 64
      %v1649 = vpop.permute.xlu0 %1648
      %1650 = vrot.lane.b32.xlu0 %v1632, 64
      %v1651 = vpop.permute.xlu0 %1650
      %1652 = vrot.lane.b32.xlu0 %v1633, 64
      %v1653 = vpop.permute.xlu0 %1652
      %vm1654 = vcmask 523264
      %v1657 = vsel %vm1654, %v1594, %v1635
      %v1660 = vsel %vm1654, %v1595, %v1637
      %v1663 = vsel %vm1654, %v1596, %v1639
      %v1666 = vsel %vm1654, %v1597, %v1641
      %v1669 = vsel %vm1654, %v1598, %v1643
      %v1672 = vsel %vm1654, %v1599, %v1645
      %v1675 = vsel %vm1654, %v1600, %v1647
      %v1678 = vsel %vm1654, %v1601, %v1649
      %v1681 = vsel %vm1654, %v1602, %v1651
      %v1684 = vsel %vm1654, %v1603, %v1653
      %v1695 = vunpack.c.l.b16 %v1657
      %v1696 = vunpack.c.h.b16 %v1657
      %v1697 = vunpack.c.l.b16 %v1660
      %v1698 = vunpack.c.h.b16 %v1660
      %v1699 = vunpack.c.l.b16 %v1663
      %v1700 = vunpack.c.h.b16 %v1663
      %v1701 = vunpack.c.l.b16 %v1666
      %v1702 = vunpack.c.h.b16 %v1666
      %v1703 = vunpack.c.l.b16 %v1669
      %v1704 = vunpack.c.h.b16 %v1669
      %v1705 = vunpack.c.l.b16 %v1672
      %v1706 = vunpack.c.h.b16 %v1672
      %v1707 = vunpack.c.l.b16 %v1675
      %v1708 = vunpack.c.h.b16 %v1675
      %v1709 = vunpack.c.l.b16 %v1678
      %v1710 = vunpack.c.h.b16 %v1678
      %v1711 = vunpack.c.l.b16 %v1681
      %v1712 = vunpack.c.h.b16 %v1681
      %v1713 = vunpack.c.l.b16 %v1684
      %v1714 = vunpack.c.h.b16 %v1684
      %v1715 = vpack.c.b16 %v1695, %v1695
      %v1716 = vpack.c.b16 %v1696, %v1696
      %v1717 = vpack.c.b16 %v1697, %v1697
      %v1718 = vpack.c.b16 %v1698, %v1698
      %v1719 = vpack.c.b16 %v1699, %v1699
      %v1720 = vpack.c.b16 %v1700, %v1700
      %v1721 = vpack.c.b16 %v1701, %v1701
      %v1722 = vpack.c.b16 %v1702, %v1702
      %v1723 = vpack.c.b16 %v1703, %v1703
      %v1724 = vpack.c.b16 %v1704, %v1704
      %v1725 = vpack.c.b16 %v1705, %v1705
      %v1726 = vpack.c.b16 %v1706, %v1706
      %v1727 = vpack.c.b16 %v1707, %v1707
      %v1728 = vpack.c.b16 %v1708, %v1708
      %v1729 = vpack.c.b16 %v1709, %v1709
      %v1730 = vpack.c.b16 %v1710, %v1710
      %v1731 = vpack.c.b16 %v1711, %v1711
      %v1732 = vpack.c.b16 %v1712, %v1712
      %v1733 = vpack.c.b16 %v1713, %v1713
      %v1734 = vpack.c.b16 %v1714, %v1714
      %1755 = vst [vmem:[#allocation4] sm:$0xf] %v1715
      %1756 = vst [vmem:[#allocation4 + $0x14] sm:$0xf] %v1716
      %1757 = vst [vmem:[#allocation4 + $0x28] sm:$0xf] %v1717
      %1758 = vst [vmem:[#allocation4 + $0x3c] sm:$0xf] %v1718
      %1759 = vst [vmem:[#allocation4 + $0x50] sm:$0xf] %v1719
      %1760 = vst [vmem:[#allocation4 + $0x64] sm:$0xf] %v1720
      %1761 = vst [vmem:[#allocation4 + $0x78] sm:$0xf] %v1721
      %1762 = vst [vmem:[#allocation4 + $0x8c] sm:$0xf] %v1722
      %1763 = vst [vmem:[#allocation4 + $0xa0] sm:$0xf] %v1723
      %1764 = vst [vmem:[#allocation4 + $0xb4] sm:$0xf] %v1724
      %1765 = vst [vmem:[#allocation4 + $0xc8] sm:$0xf] %v1725
      %1766 = vst [vmem:[#allocation4 + $0xdc] sm:$0xf] %v1726
      %1767 = vst [vmem:[#allocation4 + $0xf0] sm:$0xf] %v1727
      %1768 = vst [vmem:[#allocation4 + $0x104] sm:$0xf] %v1728
      %1769 = vst [vmem:[#allocation4 + $0x118] sm:$0xf] %v1729
      %1770 = vst [vmem:[#allocation4 + $0x12c] sm:$0xf] %v1730
      %1771 = vst [vmem:[#allocation4 + $0x140] sm:$0xf] %v1731
      %1772 = vst [vmem:[#allocation4 + $0x154] sm:$0xf] %v1732
      %1773 = vst [vmem:[#allocation4 + $0x168] sm:$0xf] %v1733
      %1774 = vst [vmem:[#allocation4 + $0x17c] sm:$0xf] %v1734
      %vm1785 = vcmask 1042432
      %vm1786 = vcmask 1046532
      %vm1787 = vmor %vm1785, %vm1786
      %v1788 = vrot.slane %v1275, 5
      %v1789 = vrot.slane %v1788, 4
      %v1790 = vrot.slane %v1276, 5
      %v1791 = vsel %vm1787, %v1789, %v1790
      %v1792 = vrot.slane %v1790, 4
      %v1793 = vrot.slane %v1277, 5
      %v1794 = vsel %vm1787, %v1792, %v1793
      %v1795 = vrot.slane %v1278, 5
      %v1796 = vrot.slane %v1795, 4
      %v1797 = vrot.slane %v1279, 5
      %v1798 = vsel %vm1787, %v1796, %v1797
      %v1799 = vrot.slane %v1797, 4
      %v1800 = vrot.slane %v1280, 5
      %v1801 = vsel %vm1787, %v1799, %v1800
      %v1802 = vrot.slane %v1281, 5
      %v1803 = vrot.slane %v1802, 4
      %v1804 = vrot.slane %v1282, 5
      %v1805 = vsel %vm1787, %v1803, %v1804
      %v1806 = vrot.slane %v1804, 4
      %v1807 = vrot.slane %v1283, 5
      %v1808 = vsel %vm1787, %v1806, %v1807
      %v1809 = vrot.slane %v1284, 5
      %v1810 = vrot.slane %v1809, 4
      %v1811 = vrot.slane %v1285, 5
      %v1812 = vsel %vm1787, %v1810, %v1811
      %v1813 = vrot.slane %v1811, 4
      %v1814 = vrot.slane %v1286, 5
      %v1815 = vsel %vm1787, %v1813, %v1814
      %v1816 = vrot.slane %v1287, 5
      %v1817 = vrot.slane %v1816, 4
      %v1818 = vrot.slane %v1288, 5
      %v1819 = vsel %vm1787, %v1817, %v1818
      %v1820 = vrot.slane %v1818, 4
      %v1821 = vrot.slane %v1289, 5
      %v1822 = vsel %vm1787, %v1820, %v1821
      %v1823 = vrot.slane %v1290, 5
      %v1824 = vrot.slane %v1823, 4
      %v1825 = vrot.slane %v1291, 5
      %v1826 = vsel %vm1787, %v1824, %v1825
      %v1827 = vrot.slane %v1825, 4
      %v1828 = vrot.slane %v1292, 5
      %v1829 = vsel %vm1787, %v1827, %v1828
      %v1830 = vrot.slane %v1293, 5
      %v1831 = vrot.slane %v1830, 4
      %v1832 = vrot.slane %v1294, 5
      %v1833 = vsel %vm1787, %v1831, %v1832
      %v1834 = vrot.slane %v1832, 4
      %v1835 = vrot.slane %v1295, 5
      %v1836 = vsel %vm1787, %v1834, %v1835
      %v1837 = vrot.slane %v1296, 5
      %v1838 = vrot.slane %v1837, 4
      %v1839 = vrot.slane %v1297, 5
      %v1840 = vsel %vm1787, %v1838, %v1839
      %v1841 = vrot.slane %v1839, 4
      %v1842 = vrot.slane %v1298, 5
      %v1843 = vsel %vm1787, %v1841, %v1842
      %v1844 = vrot.slane %v1299, 5
      %v1845 = vrot.slane %v1844, 4
      %v1846 = vrot.slane %v1300, 5
      %v1847 = vsel %vm1787, %v1845, %v1846
      %v1848 = vrot.slane %v1846, 4
      %v1849 = vrot.slane %v1301, 5
      %v1850 = vsel %vm1787, %v1848, %v1849
      %v1851 = vrot.slane %v1302, 5
      %v1852 = vrot.slane %v1851, 4
      %v1853 = vrot.slane %v1303, 5
      %v1854 = vsel %vm1787, %v1852, %v1853
      %v1855 = vrot.slane %v1853, 4
      %v1856 = vrot.slane %v1304, 5
      %v1857 = vsel %vm1787, %v1855, %v1856
      %v1858 = vunpack.c.l.b16 %v1791
      %v1859 = vunpack.c.l.b16 %v1794
      %v1860 = vunpack.c.l.b16 %v1798
      %v1861 = vunpack.c.l.b16 %v1801
      %v1862 = vunpack.c.l.b16 %v1805
      %v1863 = vunpack.c.l.b16 %v1808
      %v1864 = vunpack.c.l.b16 %v1812
      %v1865 = vunpack.c.l.b16 %v1815
      %v1866 = vunpack.c.l.b16 %v1819
      %v1867 = vunpack.c.l.b16 %v1822
      %v1868 = vunpack.c.l.b16 %v1826
      %v1869 = vunpack.c.l.b16 %v1829
      %v1870 = vunpack.c.l.b16 %v1833
      %v1871 = vunpack.c.l.b16 %v1836
      %v1872 = vunpack.c.l.b16 %v1840
      %v1873 = vunpack.c.l.b16 %v1843
      %v1874 = vunpack.c.l.b16 %v1847
      %v1875 = vunpack.c.l.b16 %v1850
      %v1876 = vunpack.c.l.b16 %v1854
      %v1877 = vunpack.c.l.b16 %v1857
      %v1878 = vpack.c.b16 %v1859, %v1858
      %v1879 = vpack.c.b16 %v1861, %v1860
      %v1880 = vpack.c.b16 %v1863, %v1862
      %v1881 = vpack.c.b16 %v1865, %v1864
      %v1882 = vpack.c.b16 %v1867, %v1866
      %v1883 = vpack.c.b16 %v1869, %v1868
      %v1884 = vpack.c.b16 %v1871, %v1870
      %v1885 = vpack.c.b16 %v1873, %v1872
      %v1886 = vpack.c.b16 %v1875, %v1874
      %v1887 = vpack.c.b16 %v1877, %v1876
      %v1890 = vunpack.c.l.b16 %v1305
      %v1891 = vunpack.c.l.b16 %v1306
      %v1892 = vpack.c.b16 %v1891, %v1890
      %1893 = vrot.lane.b32.xlu0 %v1595, 64
      %v1894 = vpop.permute.xlu0 %1893
      %1895 = vrot.lane.b32.xlu0 %v1596, 64
      %v1896 = vpop.permute.xlu0 %1895
      %1897 = vrot.lane.b32.xlu0 %v1597, 64
      %v1898 = vpop.permute.xlu0 %1897
      %1899 = vrot.lane.b32.xlu0 %v1598, 64
      %v1900 = vpop.permute.xlu0 %1899
      %1901 = vrot.lane.b32.xlu0 %v1599, 64
      %v1902 = vpop.permute.xlu0 %1901
      %1903 = vrot.lane.b32.xlu0 %v1600, 64
      %v1904 = vpop.permute.xlu0 %1903
      %1905 = vrot.lane.b32.xlu0 %v1601, 64
      %v1906 = vpop.permute.xlu0 %1905
      %1907 = vrot.lane.b32.xlu0 %v1602, 64
      %v1908 = vpop.permute.xlu0 %1907
      %1909 = vrot.lane.b32.xlu0 %v1603, 64
      %v1910 = vpop.permute.xlu0 %1909
      %1911 = vrot.lane.b32.xlu0 %v1892, 64
      %v1912 = vpop.permute.xlu0 %1911
      %v1915 = vsel %vm1654, %v1878, %v1894
      %v1918 = vsel %vm1654, %v1879, %v1896
      %v1921 = vsel %vm1654, %v1880, %v1898
      %v1924 = vsel %vm1654, %v1881, %v1900
      %v1927 = vsel %vm1654, %v1882, %v1902
      %v1930 = vsel %vm1654, %v1883, %v1904
      %v1933 = vsel %vm1654, %v1884, %v1906
      %v1936 = vsel %vm1654, %v1885, %v1908
      %v1939 = vsel %vm1654, %v1886, %v1910
      %v1942 = vsel %vm1654, %v1887, %v1912
      %v1953 = vunpack.c.l.b16 %v1915
      %v1954 = vunpack.c.h.b16 %v1915
      %v1955 = vunpack.c.l.b16 %v1918
      %v1956 = vunpack.c.h.b16 %v1918
      %v1957 = vunpack.c.l.b16 %v1921
      %v1958 = vunpack.c.h.b16 %v1921
      %v1959 = vunpack.c.l.b16 %v1924
      %v1960 = vunpack.c.h.b16 %v1924
      %v1961 = vunpack.c.l.b16 %v1927
      %v1962 = vunpack.c.h.b16 %v1927
      %v1963 = vunpack.c.l.b16 %v1930
      %v1964 = vunpack.c.h.b16 %v1930
      %v1965 = vunpack.c.l.b16 %v1933
      %v1966 = vunpack.c.h.b16 %v1933
      %v1967 = vunpack.c.l.b16 %v1936
      %v1968 = vunpack.c.h.b16 %v1936
      %v1969 = vunpack.c.l.b16 %v1939
      %v1970 = vunpack.c.h.b16 %v1939
      %v1971 = vunpack.c.l.b16 %v1942
      %v1972 = vunpack.c.h.b16 %v1942
      %v1973 = vpack.c.b16 %v1953, %v1953
      %v1974 = vpack.c.b16 %v1954, %v1954
      %v1975 = vpack.c.b16 %v1955, %v1955
      %v1976 = vpack.c.b16 %v1956, %v1956
      %v1977 = vpack.c.b16 %v1957, %v1957
      %v1978 = vpack.c.b16 %v1958, %v1958
      %v1979 = vpack.c.b16 %v1959, %v1959
      %v1980 = vpack.c.b16 %v1960, %v1960
      %v1981 = vpack.c.b16 %v1961, %v1961
      %v1982 = vpack.c.b16 %v1962, %v1962
      %v1983 = vpack.c.b16 %v1963, %v1963
      %v1984 = vpack.c.b16 %v1964, %v1964
      %v1985 = vpack.c.b16 %v1965, %v1965
      %v1986 = vpack.c.b16 %v1966, %v1966
      %v1987 = vpack.c.b16 %v1967, %v1967
      %v1988 = vpack.c.b16 %v1968, %v1968
      %v1989 = vpack.c.b16 %v1969, %v1969
      %v1990 = vpack.c.b16 %v1970, %v1970
      %v1991 = vpack.c.b16 %v1971, %v1971
      %v1992 = vpack.c.b16 %v1972, %v1972
      %2013 = vst [vmem:[#allocation4 + $0x4] sm:$0xf] %v1973
      %2014 = vst [vmem:[#allocation4 + $0x18] sm:$0xf] %v1974
      %2015 = vst [vmem:[#allocation4 + $0x2c] sm:$0xf] %v1975
      %2016 = vst [vmem:[#allocation4 + $0x40] sm:$0xf] %v1976
      %2017 = vst [vmem:[#allocation4 + $0x54] sm:$0xf] %v1977
      %2018 = vst [vmem:[#allocation4 + $0x68] sm:$0xf] %v1978
      %2019 = vst [vmem:[#allocation4 + $0x7c] sm:$0xf] %v1979
      %2020 = vst [vmem:[#allocation4 + $0x90] sm:$0xf] %v1980
      %2021 = vst [vmem:[#allocation4 + $0xa4] sm:$0xf] %v1981
      %2022 = vst [vmem:[#allocation4 + $0xb8] sm:$0xf] %v1982
      %2023 = vst [vmem:[#allocation4 + $0xcc] sm:$0xf] %v1983
      %2024 = vst [vmem:[#allocation4 + $0xe0] sm:$0xf] %v1984
      %2025 = vst [vmem:[#allocation4 + $0xf4] sm:$0xf] %v1985
      %2026 = vst [vmem:[#allocation4 + $0x108] sm:$0xf] %v1986
      %2027 = vst [vmem:[#allocation4 + $0x11c] sm:$0xf] %v1987
      %2028 = vst [vmem:[#allocation4 + $0x130] sm:$0xf] %v1988
      %2029 = vst [vmem:[#allocation4 + $0x144] sm:$0xf] %v1989
      %2030 = vst [vmem:[#allocation4 + $0x158] sm:$0xf] %v1990
      %2031 = vst [vmem:[#allocation4 + $0x16c] sm:$0xf] %v1991
      %2032 = vst [vmem:[#allocation4 + $0x180] sm:$0xf] %v1992
      %v2034 = vshrl.u32 %v1305, 16
      %v2036 = vrot.slane %v2034, 4
      %v2037 = vshll.u32 %v1305, 16
      %v2039 = vrot.slane %v2037, 5
      %v2040 = vor.u32 %v2036, %v2039
      %v2041 = vrot.slane %v2040, 4
      %v2043 = vshll.u32 %v1306, 16
      %v2045 = vrot.slane %v2043, 5
      %v2046 = vsel %vm1313, %v2041, %v2045
      %v2047 = vshrl.u32 %v1306, 16
      %v2049 = vrot.slane %v2047, 4
      %v2050 = vor.u32 %v2049, %v2045
      %v2051 = vrot.slane %v2050, 4
      %v2053 = vshll.u32 %v1307, 16
      %v2055 = vrot.slane %v2053, 5
      %v2056 = vsel %vm1313, %v2051, %v2055
      %v2058 = vrot.slane %v1305, 5
      %v2059 = vrot.slane %v2058, 4
      %v2060 = vrot.slane %v1306, 5
      %v2061 = vsel %vm1787, %v2059, %v2060
      %v2062 = vrot.slane %v2060, 4
      %v2063 = vrot.slane %v1307, 5
      %v2064 = vsel %vm1787, %v2062, %v2063
      %v2065 = vunpack.c.l.b16 %v2046
      %v2066 = vunpack.c.l.b16 %v2056
      %v2067 = vpack.c.b16 %v2066, %v2065
      %v2068 = vunpack.c.l.b16 %v2061
      %v2069 = vunpack.c.l.b16 %v2064
      %v2070 = vpack.c.b16 %v2069, %v2068
      %2071 = vrot.lane.b32.xlu0 %v1879, 64
      %v2072 = vpop.permute.xlu0 %2071
      %2073 = vrot.lane.b32.xlu0 %v1880, 64
      %v2074 = vpop.permute.xlu0 %2073
      %2075 = vrot.lane.b32.xlu0 %v1881, 64
      %v2076 = vpop.permute.xlu0 %2075
      %2077 = vrot.lane.b32.xlu0 %v1882, 64
      %v2078 = vpop.permute.xlu0 %2077
      %2079 = vrot.lane.b32.xlu0 %v1883, 64
      %v2080 = vpop.permute.xlu0 %2079
      %2081 = vrot.lane.b32.xlu0 %v1884, 64
      %v2082 = vpop.permute.xlu0 %2081
      %2083 = vrot.lane.b32.xlu0 %v1885, 64
      %v2084 = vpop.permute.xlu0 %2083
      %2085 = vrot.lane.b32.xlu0 %v1886, 64
      %v2086 = vpop.permute.xlu0 %2085
      %2087 = vrot.lane.b32.xlu0 %v1887, 64
      %v2088 = vpop.permute.xlu0 %2087
      %2089 = vrot.lane.b32.xlu0 %v2070, 64
      %v2090 = vpop.permute.xlu0 %2089
      %v2093 = vsel %vm1654, %v1625, %v2072
      %v2096 = vsel %vm1654, %v1626, %v2074
      %v2099 = vsel %vm1654, %v1627, %v2076
      %v2102 = vsel %vm1654, %v1628, %v2078
      %v2105 = vsel %vm1654, %v1629, %v2080
      %v2108 = vsel %vm1654, %v1630, %v2082
      %v2111 = vsel %vm1654, %v1631, %v2084
      %v2114 = vsel %vm1654, %v1632, %v2086
      %v2117 = vsel %vm1654, %v1633, %v2088
      %v2120 = vsel %vm1654, %v2067, %v2090
      %v2131 = vunpack.c.l.b16 %v2093
      %v2132 = vunpack.c.h.b16 %v2093
      %v2133 = vunpack.c.l.b16 %v2096
      %v2134 = vunpack.c.h.b16 %v2096
      %v2135 = vunpack.c.l.b16 %v2099
      %v2136 = vunpack.c.h.b16 %v2099
      %v2137 = vunpack.c.l.b16 %v2102
      %v2138 = vunpack.c.h.b16 %v2102
      %v2139 = vunpack.c.l.b16 %v2105
      %v2140 = vunpack.c.h.b16 %v2105
      %v2141 = vunpack.c.l.b16 %v2108
      %v2142 = vunpack.c.h.b16 %v2108
      %v2143 = vunpack.c.l.b16 %v2111
      %v2144 = vunpack.c.h.b16 %v2111
      %v2145 = vunpack.c.l.b16 %v2114
      %v2146 = vunpack.c.h.b16 %v2114
      %v2147 = vunpack.c.l.b16 %v2117
      %v2148 = vunpack.c.h.b16 %v2117
      %v2149 = vunpack.c.l.b16 %v2120
      %v2150 = vunpack.c.h.b16 %v2120
      %v2151 = vpack.c.b16 %v2131, %v2131
      %v2152 = vpack.c.b16 %v2132, %v2132
      %v2153 = vpack.c.b16 %v2133, %v2133
      %v2154 = vpack.c.b16 %v2134, %v2134
      %v2155 = vpack.c.b16 %v2135, %v2135
      %v2156 = vpack.c.b16 %v2136, %v2136
      %v2157 = vpack.c.b16 %v2137, %v2137
      %v2158 = vpack.c.b16 %v2138, %v2138
      %v2159 = vpack.c.b16 %v2139, %v2139
      %v2160 = vpack.c.b16 %v2140, %v2140
      %v2161 = vpack.c.b16 %v2141, %v2141
      %v2162 = vpack.c.b16 %v2142, %v2142
      %v2163 = vpack.c.b16 %v2143, %v2143
      %v2164 = vpack.c.b16 %v2144, %v2144
      %v2165 = vpack.c.b16 %v2145, %v2145
      %v2166 = vpack.c.b16 %v2146, %v2146
      %v2167 = vpack.c.b16 %v2147, %v2147
      %v2168 = vpack.c.b16 %v2148, %v2148
      %v2169 = vpack.c.b16 %v2149, %v2149
      %v2170 = vpack.c.b16 %v2150, %v2150
      %2191 = vst [vmem:[#allocation4 + $0x8] sm:$0xf] %v2151
      %2192 = vst [vmem:[#allocation4 + $0x1c] sm:$0xf] %v2152
      %2193 = vst [vmem:[#allocation4 + $0x30] sm:$0xf] %v2153
      %2194 = vst [vmem:[#allocation4 + $0x44] sm:$0xf] %v2154
      %2195 = vst [vmem:[#allocation4 + $0x58] sm:$0xf] %v2155
      %2196 = vst [vmem:[#allocation4 + $0x6c] sm:$0xf] %v2156
      %2197 = vst [vmem:[#allocation4 + $0x80] sm:$0xf] %v2157
      %2198 = vst [vmem:[#allocation4 + $0x94] sm:$0xf] %v2158
      %2199 = vst [vmem:[#allocation4 + $0xa8] sm:$0xf] %v2159
      %2200 = vst [vmem:[#allocation4 + $0xbc] sm:$0xf] %v2160
      %2201 = vst [vmem:[#allocation4 + $0xd0] sm:$0xf] %v2161
      %2202 = vst [vmem:[#allocation4 + $0xe4] sm:$0xf] %v2162
      %2203 = vst [vmem:[#allocation4 + $0xf8] sm:$0xf] %v2163
      %2204 = vst [vmem:[#allocation4 + $0x10c] sm:$0xf] %v2164
      %2205 = vst [vmem:[#allocation4 + $0x120] sm:$0xf] %v2165
      %2206 = vst [vmem:[#allocation4 + $0x134] sm:$0xf] %v2166
      %2207 = vst [vmem:[#allocation4 + $0x148] sm:$0xf] %v2167
      %2208 = vst [vmem:[#allocation4 + $0x15c] sm:$0xf] %v2168
      %2209 = vst [vmem:[#allocation4 + $0x170] sm:$0xf] %v2169
      %2210 = vst [vmem:[#allocation4 + $0x184] sm:$0xf] %v2170
      %v2212 = vshrl.u32 %v1308, 16
      %v2214 = vrot.slane %v2212, 4
      %v2215 = vshll.u32 %v1308, 16
      %v2217 = vrot.slane %v2215, 5
      %v2218 = vor.u32 %v2214, %v2217
      %v2219 = vrot.slane %v2218, 4
      %v2221 = vshll.u32 %v1309, 16
      %v2223 = vrot.slane %v2221, 5
      %v2224 = vsel %vm1313, %v2219, %v2223
      %v2225 = vshrl.u32 %v1309, 16
      %v2227 = vrot.slane %v2225, 4
      %v2228 = vor.u32 %v2227, %v2223
      %v2229 = vrot.slane %v2228, 4
      %v2231 = vshll.u32 %v1310, 16
      %v2233 = vrot.slane %v2231, 5
      %v2234 = vsel %vm1313, %v2229, %v2233
      %v2237 = vunpack.c.l.b16 %v1308
      %v2238 = vunpack.c.l.b16 %v1309
      %v2239 = vpack.c.b16 %v2238, %v2237
      %v2240 = vunpack.c.l.b16 %v2224
      %v2241 = vunpack.c.l.b16 %v2234
      %v2242 = vpack.c.b16 %v2241, %v2240
      %2243 = vrot.lane.b32.xlu0 %v2067, 64
      %v2244 = vpop.permute.xlu0 %2243
      %2245 = vrot.lane.b32.xlu0 %v2242, 64
      %v2246 = vpop.permute.xlu0 %2245
      %v2249 = vsel %vm1654, %v1892, %v2244
      %v2252 = vsel %vm1654, %v2239, %v2246
      %v2255 = vunpack.c.l.b16 %v2249
      %v2256 = vunpack.c.h.b16 %v2249
      %v2257 = vunpack.c.l.b16 %v2252
      %v2258 = vunpack.c.h.b16 %v2252
      %v2259 = vpack.c.b16 %v2255, %v2255
      %v2260 = vpack.c.b16 %v2256, %v2256
      %v2261 = vpack.c.b16 %v2257, %v2257
      %v2262 = vpack.c.b16 %v2258, %v2258
      %2267 = vst [vmem:[#allocation4 + $0xc] sm:$0xf] %v1719
      %2268 = vst [vmem:[#allocation4 + $0x20] sm:$0xf] %v1720
      %2269 = vst [vmem:[#allocation4 + $0x34] sm:$0xf] %v1721
      %2270 = vst [vmem:[#allocation4 + $0x48] sm:$0xf] %v1722
      %2271 = vst [vmem:[#allocation4 + $0x5c] sm:$0xf] %v1723
      %2272 = vst [vmem:[#allocation4 + $0x70] sm:$0xf] %v1724
      %2273 = vst [vmem:[#allocation4 + $0x84] sm:$0xf] %v1725
      %2274 = vst [vmem:[#allocation4 + $0x98] sm:$0xf] %v1726
      %2275 = vst [vmem:[#allocation4 + $0xac] sm:$0xf] %v1727
      %2276 = vst [vmem:[#allocation4 + $0xc0] sm:$0xf] %v1728
      %2277 = vst [vmem:[#allocation4 + $0xd4] sm:$0xf] %v1729
      %2278 = vst [vmem:[#allocation4 + $0xe8] sm:$0xf] %v1730
      %2279 = vst [vmem:[#allocation4 + $0xfc] sm:$0xf] %v1731
      %2280 = vst [vmem:[#allocation4 + $0x110] sm:$0xf] %v1732
      %2281 = vst [vmem:[#allocation4 + $0x124] sm:$0xf] %v1733
      %2282 = vst [vmem:[#allocation4 + $0x138] sm:$0xf] %v1734
      %2283 = vst [vmem:[#allocation4 + $0x14c] sm:$0xf] %v2259
      %2284 = vst [vmem:[#allocation4 + $0x160] sm:$0xf] %v2260
      %2285 = vst [vmem:[#allocation4 + $0x174] sm:$0xf] %v2261
      %2286 = vst [vmem:[#allocation4 + $0x188] sm:$0xf] %v2262
      %v2288 = vrot.slane %v1308, 5
      %v2289 = vrot.slane %v2288, 4
      %v2290 = vrot.slane %v1309, 5
      %v2291 = vsel %vm1787, %v2289, %v2290
      %v2292 = vrot.slane %v2290, 4
      %v2293 = vrot.slane %v1310, 5
      %v2294 = vsel %vm1787, %v2292, %v2293
      %v2295 = vunpack.c.l.b16 %v2291
      %v2296 = vunpack.c.l.b16 %v2294
      %v2297 = vpack.c.b16 %v2296, %v2295
      %v2298 = vsel %vm1654, %v1880, %v1637
      %v2299 = vsel %vm1654, %v1881, %v1639
      %v2300 = vsel %vm1654, %v1882, %v1641
      %v2301 = vsel %vm1654, %v1883, %v1643
      %v2302 = vsel %vm1654, %v1884, %v1645
      %v2303 = vsel %vm1654, %v1885, %v1647
      %v2304 = vsel %vm1654, %v1886, %v1649
      %v2305 = vsel %vm1654, %v1887, %v1651
      %v2307 = vsel %vm1654, %v2070, %v1653
      %v2309 = vsel %vm1654, %v2297, %v2244
      %v2320 = vunpack.c.l.b16 %v2298
      %v2321 = vunpack.c.h.b16 %v2298
      %v2322 = vunpack.c.l.b16 %v2299
      %v2323 = vunpack.c.h.b16 %v2299
      %v2324 = vunpack.c.l.b16 %v2300
      %v2325 = vunpack.c.h.b16 %v2300
      %v2326 = vunpack.c.l.b16 %v2301
      %v2327 = vunpack.c.h.b16 %v2301
      %v2328 = vunpack.c.l.b16 %v2302
      %v2329 = vunpack.c.h.b16 %v2302
      %v2330 = vunpack.c.l.b16 %v2303
      %v2331 = vunpack.c.h.b16 %v2303
      %v2332 = vunpack.c.l.b16 %v2304
      %v2333 = vunpack.c.h.b16 %v2304
      %v2334 = vunpack.c.l.b16 %v2305
      %v2335 = vunpack.c.h.b16 %v2305
      %v2336 = vunpack.c.l.b16 %v2307
      %v2337 = vunpack.c.h.b16 %v2307
      %v2338 = vunpack.c.l.b16 %v2309
      %v2339 = vunpack.c.h.b16 %v2309
      %v2340 = vpack.c.b16 %v2320, %v2320
      %v2341 = vpack.c.b16 %v2321, %v2321
      %v2342 = vpack.c.b16 %v2322, %v2322
      %v2343 = vpack.c.b16 %v2323, %v2323
      %v2344 = vpack.c.b16 %v2324, %v2324
      %v2345 = vpack.c.b16 %v2325, %v2325
      %v2346 = vpack.c.b16 %v2326, %v2326
      %v2347 = vpack.c.b16 %v2327, %v2327
      %v2348 = vpack.c.b16 %v2328, %v2328
      %v2349 = vpack.c.b16 %v2329, %v2329
      %v2350 = vpack.c.b16 %v2330, %v2330
      %v2351 = vpack.c.b16 %v2331, %v2331
      %v2352 = vpack.c.b16 %v2332, %v2332
      %v2353 = vpack.c.b16 %v2333, %v2333
      %v2354 = vpack.c.b16 %v2334, %v2334
      %v2355 = vpack.c.b16 %v2335, %v2335
      %v2356 = vpack.c.b16 %v2336, %v2336
      %v2357 = vpack.c.b16 %v2337, %v2337
      %v2358 = vpack.c.b16 %v2338, %v2338
      %v2359 = vpack.c.b16 %v2339, %v2339
      %2380 = vst [vmem:[#allocation4 + $0x10] sm:$0xf] %v2340
      %2381 = vst [vmem:[#allocation4 + $0x24] sm:$0xf] %v2341
      %2382 = vst [vmem:[#allocation4 + $0x38] sm:$0xf] %v2342
      %2383 = vst [vmem:[#allocation4 + $0x4c] sm:$0xf] %v2343
      %2384 = vst [vmem:[#allocation4 + $0x60] sm:$0xf] %v2344
      %2385 = vst [vmem:[#allocation4 + $0x74] sm:$0xf] %v2345
      %2386 = vst [vmem:[#allocation4 + $0x88] sm:$0xf] %v2346
      %2387 = vst [vmem:[#allocation4 + $0x9c] sm:$0xf] %v2347
      %2388 = vst [vmem:[#allocation4 + $0xb0] sm:$0xf] %v2348
      %2389 = vst [vmem:[#allocation4 + $0xc4] sm:$0xf] %v2349
      %2390 = vst [vmem:[#allocation4 + $0xd8] sm:$0xf] %v2350
      %2391 = vst [vmem:[#allocation4 + $0xec] sm:$0xf] %v2351
      %2392 = vst [vmem:[#allocation4 + $0x100] sm:$0xf] %v2352
      %2393 = vst [vmem:[#allocation4 + $0x114] sm:$0xf] %v2353
      %2394 = vst [vmem:[#allocation4 + $0x128] sm:$0xf] %v2354
      %2395 = vst [vmem:[#allocation4 + $0x13c] sm:$0xf] %v2355
      %2396 = vst [vmem:[#allocation4 + $0x150] sm:$0xf] %v2356
      %2397 = vst [vmem:[#allocation4 + $0x164] sm:$0xf] %v2357
      %2398 = vst [vmem:[#allocation4 + $0x178] sm:$0xf] %v2358
      %2399 = vst [vmem:[#allocation4 + $0x18c] sm:$0xf] %v2359
      %v2400 = vld [vmem:[#allocation4] sm:$0xff]
      %v2401 = vld [vmem:[#allocation4 + $0x8] sm:$0xff]
      %v2402 = vld [vmem:[#allocation4 + $0x10] sm:$0xf]
      %v2403 = vld [vmem:[#allocation4 + $0x14] sm:$0xff]
      %v2404 = vld [vmem:[#allocation4 + $0x1c] sm:$0xff]
      %v2405 = vld [vmem:[#allocation4 + $0x24] sm:$0xf]
      %v2406 = vld [vmem:[#allocation4 + $0x28] sm:$0xff]
      %v2407 = vld [vmem:[#allocation4 + $0x30] sm:$0xff]
      %v2408 = vld [vmem:[#allocation4 + $0x38] sm:$0xf]
      %v2409 = vld [vmem:[#allocation4 + $0x3c] sm:$0xff]
      %v2410 = vld [vmem:[#allocation4 + $0x44] sm:$0xff]
      %v2411 = vld [vmem:[#allocation4 + $0x4c] sm:$0xf]
      %v2412 = vld [vmem:[#allocation4 + $0x50] sm:$0xff]
      %v2413 = vld [vmem:[#allocation4 + $0x58] sm:$0xff]
      %v2414 = vld [vmem:[#allocation4 + $0x60] sm:$0xf]
      %v2415 = vld [vmem:[#allocation4 + $0x64] sm:$0xff]
      %v2416 = vld [vmem:[#allocation4 + $0x6c] sm:$0xff]
      %v2417 = vld [vmem:[#allocation4 + $0x74] sm:$0xf]
      %v2418 = vld [vmem:[#allocation4 + $0x78] sm:$0xff]
      %v2419 = vld [vmem:[#allocation4 + $0x80] sm:$0xff]
      %v2420 = vld [vmem:[#allocation4 + $0x88] sm:$0xf]
      %v2421 = vld [vmem:[#allocation4 + $0x8c] sm:$0xff]
      %v2422 = vld [vmem:[#allocation4 + $0x94] sm:$0xff]
      %v2423 = vld [vmem:[#allocation4 + $0x9c] sm:$0xf]
      %v2424 = vld [vmem:[#allocation4 + $0xa0] sm:$0xff]
      %v2425 = vld [vmem:[#allocation4 + $0xa8] sm:$0xff]
      %v2426 = vld [vmem:[#allocation4 + $0xb0] sm:$0xf]
      %v2427 = vld [vmem:[#allocation4 + $0xb4] sm:$0xff]
      %v2428 = vld [vmem:[#allocation4 + $0xbc] sm:$0xff]
      %v2429 = vld [vmem:[#allocation4 + $0xc4] sm:$0xf]
      %v2430 = vld [vmem:[#allocation4 + $0xc8] sm:$0xff]
      %v2431 = vld [vmem:[#allocation4 + $0xd0] sm:$0xff]
      %v2432 = vld [vmem:[#allocation4 + $0xd8] sm:$0xf]
      %v2433 = vld [vmem:[#allocation4 + $0xdc] sm:$0xff]
      %v2434 = vld [vmem:[#allocation4 + $0xe4] sm:$0xff]
      %v2435 = vld [vmem:[#allocation4 + $0xec] sm:$0xf]
      %v2436 = vld [vmem:[#allocation4 + $0xf0] sm:$0xff]
      %v2437 = vld [vmem:[#allocation4 + $0xf8] sm:$0xff]
      %v2438 = vld [vmem:[#allocation4 + $0x100] sm:$0xf]
      %v2439 = vld [vmem:[#allocation4 + $0x104] sm:$0xff]
      %v2440 = vld [vmem:[#allocation4 + $0x10c] sm:$0xff]
      %v2441 = vld [vmem:[#allocation4 + $0x114] sm:$0xf]
      %v2442 = vld [vmem:[#allocation4 + $0x118] sm:$0xff]
      %v2443 = vld [vmem:[#allocation4 + $0x120] sm:$0xff]
      %v2444 = vld [vmem:[#allocation4 + $0x128] sm:$0xf]
      %v2445 = vld [vmem:[#allocation4 + $0x12c] sm:$0xff]
      %v2446 = vld [vmem:[#allocation4 + $0x134] sm:$0xff]
      %v2447 = vld [vmem:[#allocation4 + $0x13c] sm:$0xf]
      %v2448 = vld [vmem:[#allocation4 + $0x140] sm:$0xff]
      %v2449 = vld [vmem:[#allocation4 + $0x148] sm:$0xff]
      %v2450 = vld [vmem:[#allocation4 + $0x150] sm:$0xf]
      %v2451 = vld [vmem:[#allocation4 + $0x154] sm:$0xff]
      %v2452 = vld [vmem:[#allocation4 + $0x15c] sm:$0xff]
      %v2453 = vld [vmem:[#allocation4 + $0x164] sm:$0xf]
      %v2454 = vld [vmem:[#allocation4 + $0x168] sm:$0xff]
      %v2455 = vld [vmem:[#allocation4 + $0x170] sm:$0xff]
      %v2456 = vld [vmem:[#allocation4 + $0x178] sm:$0xf]
      %v2457 = vld [vmem:[#allocation4 + $0x17c] sm:$0xff]
      %v2458 = vld [vmem:[#allocation4 + $0x184] sm:$0xff]
      %v2459 = vld [vmem:[#allocation4 + $0x18c] sm:$0xf]
      %v2460 = vld [vmem:[%s6] sm:$0xf]
      %v2461 = vld [vmem:[%s6 + $0x4] sm:$0xf]
      %v2462 = vld [vmem:[%s6 + $0x8] sm:$0xf]
      %v2463 = vld [vmem:[%s6 + $0xc] sm:$0xf]
      %v2464 = vld [vmem:[%s6 + $0x10] sm:$0xf]
      %v2465 = vld [vmem:[%s6 + $0x14] sm:$0xf]
      %v2466 = vld [vmem:[%s6 + $0x18] sm:$0xf]
      %v2467 = vld [vmem:[%s6 + $0x1c] sm:$0xf]
      %v2468 = vld [vmem:[%s6 + $0x20] sm:$0xf]
      %v2469 = vld [vmem:[%s6 + $0x24] sm:$0xf]
      %v2470 = vld [vmem:[%s6 + $0x28] sm:$0xf]
      %v2471 = vld [vmem:[%s6 + $0x2c] sm:$0xf]
      %v2472 = vld [vmem:[%s6 + $0x30] sm:$0xf]
      %v2473 = vld [vmem:[%s6 + $0x34] sm:$0xf]
      %v2474 = vld [vmem:[%s6 + $0x38] sm:$0xf]
      %v2475 = vld [vmem:[%s6 + $0x3c] sm:$0xf]
      %v2476 = vld [vmem:[%s6 + $0x40] sm:$0xf]
      %v2477 = vld [vmem:[%s6 + $0x44] sm:$0xf]
      %v2478 = vld [vmem:[%s6 + $0x48] sm:$0xf]
      %v2479 = vld [vmem:[%s6 + $0x4c] sm:$0xf]
      %v2480 = vld [vmem:[%s6 + $0x50] sm:$0xf]
      %v2481 = vld [vmem:[%s6 + $0x54] sm:$0xf]
      %v2482 = vld [vmem:[%s6 + $0x58] sm:$0xf]
      %v2483 = vld [vmem:[%s6 + $0x5c] sm:$0xf]
      %v2484 = vld [vmem:[%s6 + $0x60] sm:$0xf]
      %v2485 = vld [vmem:[%s6 + $0x64] sm:$0xf]
      %v2486 = vld [vmem:[%s6 + $0x68] sm:$0xf]
      %v2487 = vld [vmem:[%s6 + $0x6c] sm:$0xf]
      %v2488 = vld [vmem:[%s6 + $0x70] sm:$0xf]
      %v2489 = vld [vmem:[%s6 + $0x74] sm:$0xf]
      %v2490 = vld [vmem:[%s6 + $0x78] sm:$0xf]
      %v2491 = vld [vmem:[%s6 + $0x7c] sm:$0xf]
      %v2492 = vld [vmem:[%s6 + $0x80] sm:$0xf]
      %v2493 = vld [vmem:[%s6 + $0x84] sm:$0xf]
      %v2494 = vld [vmem:[%s6 + $0x88] sm:$0xf]
      %v2495 = vld [vmem:[%s6 + $0x8c] sm:$0xf]
      %v2496 = vld [vmem:[%s6 + $0x90] sm:$0xf]
      %v2497 = vld [vmem:[%s6 + $0x94] sm:$0xf]
      %v2498 = vld [vmem:[%s6 + $0x98] sm:$0xf]
      %v2499 = vld [vmem:[%s6 + $0x9c] sm:$0xf]
      %v2500 = vld [vmem:[%s6 + $0xa0] sm:$0xf]
      %v2501 = vld [vmem:[%s6 + $0xa4] sm:$0xf]
      %v2502 = vld [vmem:[%s6 + $0xa8] sm:$0xf]
      %v2503 = vld [vmem:[%s6 + $0xac] sm:$0xf]
      %v2504 = vld [vmem:[%s6 + $0xb0] sm:$0xf]
      %v2505 = vld [vmem:[%s6 + $0xb4] sm:$0xf]
      %v2506 = vld [vmem:[%s6 + $0xb8] sm:$0xf]
      %v2507 = vld [vmem:[%s6 + $0xbc] sm:$0xf]
      %v2508 = vld [vmem:[%s6 + $0xc0] sm:$0xf]
      %v2509 = vld [vmem:[%s6 + $0xc4] sm:$0xf]
      %v2510 = vld [vmem:[%s6 + $0xc8] sm:$0xf]
      %v2511 = vld [vmem:[%s6 + $0xcc] sm:$0xf]
      %v2512 = vld [vmem:[%s6 + $0xd0] sm:$0xf]
      %v2513 = vld [vmem:[%s6 + $0xd4] sm:$0xf]
      %v2514 = vld [vmem:[%s6 + $0xd8] sm:$0xf]
      %v2515 = vld [vmem:[%s6 + $0xdc] sm:$0xf]
      %v2516 = vld [vmem:[%s6 + $0xe0] sm:$0xf]
      %v2517 = vld [vmem:[%s6 + $0xe4] sm:$0xf]
      %v2518 = vld [vmem:[%s6 + $0xe8] sm:$0xf]
      %v2519 = vld [vmem:[%s6 + $0xec] sm:$0xf]
      %v2520 = vld [vmem:[%s6 + $0xf0] sm:$0xf]
      %v2521 = vld [vmem:[%s6 + $0xf4] sm:$0xf]
      %v2522 = vld [vmem:[%s6 + $0xf8] sm:$0xf]
      %v2523 = vld [vmem:[%s6 + $0xfc] sm:$0xf]
      %v2524 = vld [vmem:[%s6 + $0x100] sm:$0xf]
      %v2525 = vld [vmem:[%s6 + $0x104] sm:$0xf]
      %v2526 = vld [vmem:[%s6 + $0x108] sm:$0xf]
      %v2527 = vld [vmem:[%s6 + $0x10c] sm:$0xf]
      %v2528 = vld [vmem:[%s6 + $0x110] sm:$0xf]
      %v2529 = vld [vmem:[%s6 + $0x114] sm:$0xf]
      %v2530 = vld [vmem:[%s6 + $0x118] sm:$0xf]
      %v2531 = vld [vmem:[%s6 + $0x11c] sm:$0xf]
      %v2532 = vld [vmem:[%s6 + $0x120] sm:$0xf]
      %v2533 = vld [vmem:[%s6 + $0x124] sm:$0xf]
      %v2534 = vld [vmem:[%s6 + $0x128] sm:$0xf]
      %v2535 = vld [vmem:[%s6 + $0x12c] sm:$0xf]
      %v2536 = vld [vmem:[%s6 + $0x130] sm:$0xf]
      %v2537 = vld [vmem:[%s6 + $0x134] sm:$0xf]
      %v2538 = vld [vmem:[%s6 + $0x138] sm:$0xf]
      %v2539 = vld [vmem:[%s6 + $0x13c] sm:$0xf]
      %v2540 = vld [vmem:[%s7] sm:$0x1]
      %v2542 = vperm.slane %v2540, 0
      %v2604 = vunpack.c.l.b16 %v2400
      %v2605 = vunpack.c.h.b16 %v2400
      %v2606 = vunpack.c.l.b16 %v2401
      %v2607 = vunpack.c.h.b16 %v2401
      %v2608 = vunpack.c.l.b16 %v2402
      %v2609 = vunpack.c.l.b16 %v2403
      %v2610 = vunpack.c.h.b16 %v2403
      %v2611 = vunpack.c.l.b16 %v2404
      %v2612 = vunpack.c.h.b16 %v2404
      %v2613 = vunpack.c.l.b16 %v2405
      %v2614 = vunpack.c.l.b16 %v2406
      %v2615 = vunpack.c.h.b16 %v2406
      %v2616 = vunpack.c.l.b16 %v2407
      %v2617 = vunpack.c.h.b16 %v2407
      %v2618 = vunpack.c.l.b16 %v2408
      %v2619 = vunpack.c.l.b16 %v2409
      %v2620 = vunpack.c.h.b16 %v2409
      %v2621 = vunpack.c.l.b16 %v2410
      %v2622 = vunpack.c.h.b16 %v2410
      %v2623 = vunpack.c.l.b16 %v2411
      %v2624 = vunpack.c.l.b16 %v2412
      %v2625 = vunpack.c.h.b16 %v2412
      %v2626 = vunpack.c.l.b16 %v2413
      %v2627 = vunpack.c.h.b16 %v2413
      %v2628 = vunpack.c.l.b16 %v2414
      %v2629 = vunpack.c.l.b16 %v2415
      %v2630 = vunpack.c.h.b16 %v2415
      %v2631 = vunpack.c.l.b16 %v2416
      %v2632 = vunpack.c.h.b16 %v2416
      %v2633 = vunpack.c.l.b16 %v2417
      %v2634 = vunpack.c.l.b16 %v2418
      %v2635 = vunpack.c.h.b16 %v2418
      %v2636 = vunpack.c.l.b16 %v2419
      %v2637 = vunpack.c.h.b16 %v2419
      %v2638 = vunpack.c.l.b16 %v2420
      %v2639 = vunpack.c.l.b16 %v2421
      %v2640 = vunpack.c.h.b16 %v2421
      %v2641 = vunpack.c.l.b16 %v2422
      %v2642 = vunpack.c.h.b16 %v2422
      %v2643 = vunpack.c.l.b16 %v2423
      %v2644 = vunpack.c.l.b16 %v2424
      %v2645 = vunpack.c.h.b16 %v2424
      %v2646 = vunpack.c.l.b16 %v2425
      %v2647 = vunpack.c.h.b16 %v2425
      %v2648 = vunpack.c.l.b16 %v2426
      %v2649 = vunpack.c.l.b16 %v2427
      %v2650 = vunpack.c.h.b16 %v2427
      %v2651 = vunpack.c.l.b16 %v2428
      %v2652 = vunpack.c.h.b16 %v2428
      %v2653 = vunpack.c.l.b16 %v2429
      %v2654 = vunpack.c.l.b16 %v2430
      %v2655 = vunpack.c.h.b16 %v2430
      %v2656 = vunpack.c.l.b16 %v2431
      %v2657 = vunpack.c.h.b16 %v2431
      %v2658 = vunpack.c.l.b16 %v2432
      %v2659 = vunpack.c.l.b16 %v2433
      %v2660 = vunpack.c.h.b16 %v2433
      %v2661 = vunpack.c.l.b16 %v2434
      %v2662 = vunpack.c.h.b16 %v2434
      %v2663 = vunpack.c.l.b16 %v2435
      %v2664 = vunpack.c.l.b16 %v2436
      %v2665 = vunpack.c.h.b16 %v2436
      %v2666 = vunpack.c.l.b16 %v2437
      %v2667 = vunpack.c.h.b16 %v2437
      %v2668 = vunpack.c.l.b16 %v2438
      %v2669 = vunpack.c.l.b16 %v2439
      %v2670 = vunpack.c.h.b16 %v2439
      %v2671 = vunpack.c.l.b16 %v2440
      %v2672 = vunpack.c.h.b16 %v2440
      %v2673 = vunpack.c.l.b16 %v2441
      %v2674 = vunpack.c.l.b16 %v2442
      %v2675 = vunpack.c.h.b16 %v2442
      %v2676 = vunpack.c.l.b16 %v2443
      %v2677 = vunpack.c.h.b16 %v2443
      %v2678 = vunpack.c.l.b16 %v2444
      %v2679 = vunpack.c.l.b16 %v2445
      %v2680 = vunpack.c.h.b16 %v2445
      %v2681 = vunpack.c.l.b16 %v2446
      %v2682 = vunpack.c.h.b16 %v2446
      %v2683 = vunpack.c.l.b16 %v2447
      %v2684 = vunpack.c.l.b16 %v2448
      %v2685 = vunpack.c.h.b16 %v2448
      %v2686 = vunpack.c.l.b16 %v2449
      %v2687 = vunpack.c.h.b16 %v2449
      %v2688 = vunpack.c.l.b16 %v2450
      %v2689 = vunpack.c.l.b16 %v2451
      %v2690 = vunpack.c.h.b16 %v2451
      %v2691 = vunpack.c.l.b16 %v2452
      %v2692 = vunpack.c.h.b16 %v2452
      %v2693 = vunpack.c.l.b16 %v2453
      %v2694 = vunpack.c.l.b16 %v2454
      %v2695 = vunpack.c.h.b16 %v2454
      %v2696 = vunpack.c.l.b16 %v2455
      %v2697 = vunpack.c.h.b16 %v2455
      %v2698 = vunpack.c.l.b16 %v2456
      %v2699 = vunpack.c.l.b16 %v2457
      %v2700 = vunpack.c.h.b16 %v2457
      %v2701 = vunpack.c.l.b16 %v2458
      %v2702 = vunpack.c.h.b16 %v2458
      %v2703 = vunpack.c.l.b16 %v2459
      %v2704 = vpack.c.b16 %v2609, %v2604
      %v2705 = vpack.c.b16 %v2610, %v2605
      %v2706 = vpack.c.b16 %v2611, %v2606
      %v2707 = vpack.c.b16 %v2612, %v2607
      %v2708 = vpack.c.b16 %v2613, %v2608
      %v2709 = vpack.c.b16 %v2619, %v2614
      %v2710 = vpack.c.b16 %v2620, %v2615
      %v2711 = vpack.c.b16 %v2621, %v2616
      %v2712 = vpack.c.b16 %v2622, %v2617
      %v2713 = vpack.c.b16 %v2623, %v2618
      %v2714 = vpack.c.b16 %v2629, %v2624
      %v2715 = vpack.c.b16 %v2630, %v2625
      %v2716 = vpack.c.b16 %v2631, %v2626
      %v2717 = vpack.c.b16 %v2632, %v2627
      %v2718 = vpack.c.b16 %v2633, %v2628
      %v2719 = vpack.c.b16 %v2639, %v2634
      %v2720 = vpack.c.b16 %v2640, %v2635
      %v2721 = vpack.c.b16 %v2641, %v2636
      %v2722 = vpack.c.b16 %v2642, %v2637
      %v2723 = vpack.c.b16 %v2643, %v2638
      %v2724 = vpack.c.b16 %v2649, %v2644
      %v2725 = vpack.c.b16 %v2650, %v2645
      %v2726 = vpack.c.b16 %v2651, %v2646
      %v2727 = vpack.c.b16 %v2652, %v2647
      %v2728 = vpack.c.b16 %v2653, %v2648
      %v2729 = vpack.c.b16 %v2659, %v2654
      %v2730 = vpack.c.b16 %v2660, %v2655
      %v2731 = vpack.c.b16 %v2661, %v2656
      %v2732 = vpack.c.b16 %v2662, %v2657
      %v2733 = vpack.c.b16 %v2663, %v2658
      %v2734 = vpack.c.b16 %v2669, %v2664
      %v2735 = vpack.c.b16 %v2670, %v2665
      %v2736 = vpack.c.b16 %v2671, %v2666
      %v2737 = vpack.c.b16 %v2672, %v2667
      %v2738 = vpack.c.b16 %v2673, %v2668
      %v2739 = vpack.c.b16 %v2679, %v2674
      %v2740 = vpack.c.b16 %v2680, %v2675
      %v2741 = vpack.c.b16 %v2681, %v2676
      %v2742 = vpack.c.b16 %v2682, %v2677
      %v2743 = vpack.c.b16 %v2683, %v2678
      %v2744 = vpack.c.b16 %v2689, %v2684
      %v2745 = vpack.c.b16 %v2690, %v2685
      %v2746 = vpack.c.b16 %v2691, %v2686
      %v2747 = vpack.c.b16 %v2692, %v2687
      %v2748 = vpack.c.b16 %v2693, %v2688
      %v2749 = vpack.c.b16 %v2699, %v2694
      %v2750 = vpack.c.b16 %v2700, %v2695
      %v2751 = vpack.c.b16 %v2701, %v2696
      %v2752 = vpack.c.b16 %v2702, %v2697
      %v2753 = vpack.c.b16 %v2703, %v2698
      %v2884 = vunpack.c.l.b16 %v2460
      %v2885 = vunpack.c.l.b16 %v2461
      %v2886 = vunpack.c.l.b16 %v2462
      %v2887 = vunpack.c.l.b16 %v2463
      %v2888 = vunpack.c.l.b16 %v2464
      %v2889 = vunpack.c.l.b16 %v2465
      %v2890 = vunpack.c.l.b16 %v2466
      %v2891 = vunpack.c.l.b16 %v2467
      %v2892 = vunpack.c.l.b16 %v2468
      %v2893 = vunpack.c.l.b16 %v2469
      %v2894 = vunpack.c.l.b16 %v2470
      %v2895 = vunpack.c.l.b16 %v2471
      %v2896 = vunpack.c.l.b16 %v2472
      %v2897 = vunpack.c.l.b16 %v2473
      %v2898 = vunpack.c.l.b16 %v2474
      %v2899 = vunpack.c.l.b16 %v2475
      %v2900 = vunpack.c.l.b16 %v2476
      %v2901 = vunpack.c.l.b16 %v2477
      %v2902 = vunpack.c.l.b16 %v2478
      %v2903 = vunpack.c.l.b16 %v2479
      %v2904 = vunpack.c.l.b16 %v2480
      %v2905 = vunpack.c.l.b16 %v2481
      %v2906 = vunpack.c.l.b16 %v2482
      %v2907 = vunpack.c.l.b16 %v2483
      %v2908 = vunpack.c.l.b16 %v2484
      %v2909 = vunpack.c.l.b16 %v2485
      %v2910 = vunpack.c.l.b16 %v2486
      %v2911 = vunpack.c.l.b16 %v2487
      %v2912 = vunpack.c.l.b16 %v2488
      %v2913 = vunpack.c.l.b16 %v2489
      %v2914 = vunpack.c.l.b16 %v2490
      %v2915 = vunpack.c.l.b16 %v2491
      %v2916 = vunpack.c.l.b16 %v2492
      %v2917 = vunpack.c.l.b16 %v2493
      %v2918 = vunpack.c.l.b16 %v2494
      %v2919 = vunpack.c.l.b16 %v2495
      %v2920 = vunpack.c.l.b16 %v2496
      %v2921 = vunpack.c.l.b16 %v2497
      %v2922 = vunpack.c.l.b16 %v2498
      %v2923 = vunpack.c.l.b16 %v2499
      %v2924 = vunpack.c.l.b16 %v2500
      %v2925 = vunpack.c.l.b16 %v2501
      %v2926 = vunpack.c.l.b16 %v2502
      %v2927 = vunpack.c.l.b16 %v2503
      %v2928 = vunpack.c.l.b16 %v2504
      %v2929 = vunpack.c.l.b16 %v2505
      %v2930 = vunpack.c.l.b16 %v2506
      %v2931 = vunpack.c.l.b16 %v2507
      %v2932 = vunpack.c.l.b16 %v2508
      %v2933 = vunpack.c.l.b16 %v2509
      %v2934 = vunpack.c.l.b16 %v2510
      %v2935 = vunpack.c.l.b16 %v2511
      %v2936 = vunpack.c.l.b16 %v2512
      %v2937 = vunpack.c.l.b16 %v2513
      %v2938 = vunpack.c.l.b16 %v2514
      %v2939 = vunpack.c.l.b16 %v2515
      %v2940 = vunpack.c.l.b16 %v2516
      %v2941 = vunpack.c.l.b16 %v2517
      %v2942 = vunpack.c.l.b16 %v2518
      %v2943 = vunpack.c.l.b16 %v2519
      %v2944 = vunpack.c.l.b16 %v2520
      %v2945 = vunpack.c.l.b16 %v2521
      %v2946 = vunpack.c.l.b16 %v2522
      %v2947 = vunpack.c.l.b16 %v2523
      %v2948 = vunpack.c.l.b16 %v2524
      %v2949 = vunpack.c.l.b16 %v2525
      %v2950 = vunpack.c.l.b16 %v2526
      %v2951 = vunpack.c.l.b16 %v2527
      %v2952 = vunpack.c.l.b16 %v2528
      %v2953 = vunpack.c.l.b16 %v2529
      %v2954 = vunpack.c.l.b16 %v2530
      %v2955 = vunpack.c.l.b16 %v2531
      %v2956 = vunpack.c.l.b16 %v2532
      %v2957 = vunpack.c.l.b16 %v2533
      %v2958 = vunpack.c.l.b16 %v2534
      %v2959 = vunpack.c.l.b16 %v2535
      %v2960 = vunpack.c.l.b16 %v2536
      %v2961 = vunpack.c.l.b16 %v2537
      %v2962 = vunpack.c.l.b16 %v2538
      %v2963 = vunpack.c.l.b16 %v2539
      %v2964 = vpack.c.b16 %v2885, %v2884
      %v2965 = vpack.c.b16 %v2887, %v2886
      %v2966 = vpack.c.b16 %v2889, %v2888
      %v2967 = vpack.c.b16 %v2891, %v2890
      %v2968 = vpack.c.b16 %v2893, %v2892
      %v2969 = vpack.c.b16 %v2895, %v2894
      %v2970 = vpack.c.b16 %v2897, %v2896
      %v2971 = vpack.c.b16 %v2899, %v2898
      %v2972 = vpack.c.b16 %v2901, %v2900
      %v2973 = vpack.c.b16 %v2903, %v2902
      %v2974 = vpack.c.b16 %v2905, %v2904
      %v2975 = vpack.c.b16 %v2907, %v2906
      %v2976 = vpack.c.b16 %v2909, %v2908
      %v2977 = vpack.c.b16 %v2911, %v2910
      %v2978 = vpack.c.b16 %v2913, %v2912
      %v2979 = vpack.c.b16 %v2915, %v2914
      %v2980 = vpack.c.b16 %v2917, %v2916
      %v2981 = vpack.c.b16 %v2919, %v2918
      %v2982 = vpack.c.b16 %v2921, %v2920
      %v2983 = vpack.c.b16 %v2923, %v2922
      %v2984 = vpack.c.b16 %v2925, %v2924
      %v2985 = vpack.c.b16 %v2927, %v2926
      %v2986 = vpack.c.b16 %v2929, %v2928
      %v2987 = vpack.c.b16 %v2931, %v2930
      %v2988 = vpack.c.b16 %v2933, %v2932
      %v2989 = vpack.c.b16 %v2935, %v2934
      %v2990 = vpack.c.b16 %v2937, %v2936
      %v2991 = vpack.c.b16 %v2939, %v2938
      %v2992 = vpack.c.b16 %v2941, %v2940
      %v2993 = vpack.c.b16 %v2943, %v2942
      %v2994 = vpack.c.b16 %v2945, %v2944
      %v2995 = vpack.c.b16 %v2947, %v2946
      %v2996 = vpack.c.b16 %v2949, %v2948
      %v2997 = vpack.c.b16 %v2951, %v2950
      %v2998 = vpack.c.b16 %v2953, %v2952
      %v2999 = vpack.c.b16 %v2955, %v2954
      %v3000 = vpack.c.b16 %v2957, %v2956
      %v3001 = vpack.c.b16 %v2959, %v2958
      %v3002 = vpack.c.b16 %v2961, %v2960
      %v3003 = vpack.c.b16 %v2963, %v2962
      %3044 = vmatpush.bf16.msra.mxu0 %v2971
      %3045 = vmatpush.bf16.msra.mxu0 %v2970
      %3046 = vmatpush.bf16.msra.mxu0 %v2969
      %3047 = vmatpush.bf16.msra.mxu0 %v2968
      %3048 = vmatpush.bf16.msra.mxu0 %v2967
      %3049 = vmatpush.bf16.msra.mxu0 %v2966
      %3050 = vmatpush.bf16.msra.mxu0 %v2965
      %3051 = vmatpush.bf16.msra.mxu0 %v2964
      %3052 = vmatmul.bf16.gmra.mxu0 %v2704
      %v3053 = vpop.f32.mrf.mxu0
      %v3054 = vadd.f32 %v2542, %v3053
      %v3055 = vpop.f32.mrf.mxu0
      %v3056 = vadd.f32 %v2542, %v3055
      %3057 = vmatmul.bf16.gmra.mxu0 %v2709
      %v3058 = vpop.f32.mrf.mxu0
      %v3059 = vadd.f32 %v2542, %v3058
      %v3060 = vpop.f32.mrf.mxu0
      %v3061 = vadd.f32 %v2542, %v3060
      %3062 = vmatmul.bf16.gmra.mxu0 %v2714
      %v3063 = vpop.f32.mrf.mxu0
      %v3064 = vadd.f32 %v2542, %v3063
      %v3065 = vpop.f32.mrf.mxu0
      %v3066 = vadd.f32 %v2542, %v3065
      %3067 = vmatmul.bf16.gmra.mxu0 %v2719
      %v3068 = vpop.f32.mrf.mxu0
      %v3069 = vadd.f32 %v2542, %v3068
      %v3070 = vpop.f32.mrf.mxu0
      %v3071 = vadd.f32 %v2542, %v3070
      %3072 = vmatmul.bf16.gmra.mxu0 %v2724
      %v3073 = vpop.f32.mrf.mxu0
      %v3074 = vadd.f32 %v2542, %v3073
      %v3075 = vpop.f32.mrf.mxu0
      %v3076 = vadd.f32 %v2542, %v3075
      %3077 = vmatmul.bf16.gmra.mxu0 %v2729
      %v3078 = vpop.f32.mrf.mxu0
      %v3079 = vadd.f32 %v2542, %v3078
      %v3080 = vpop.f32.mrf.mxu0
      %v3081 = vadd.f32 %v2542, %v3080
      %3082 = vmatmul.bf16.gmra.mxu0 %v2734
      %v3083 = vpop.f32.mrf.mxu0
      %v3084 = vadd.f32 %v2542, %v3083
      %v3085 = vpop.f32.mrf.mxu0
      %v3086 = vadd.f32 %v2542, %v3085
      %3087 = vmatmul.bf16.gmra.mxu0 %v2739
      %v3088 = vpop.f32.mrf.mxu0
      %v3089 = vadd.f32 %v2542, %v3088
      %v3090 = vpop.f32.mrf.mxu0
      %v3091 = vadd.f32 %v2542, %v3090
      %3092 = vmatmul.bf16.gmra.mxu0 %v2744
      %v3093 = vpop.f32.mrf.mxu0
      %v3094 = vadd.f32 %v2542, %v3093
      %v3095 = vpop.f32.mrf.mxu0
      %v3096 = vadd.f32 %v2542, %v3095
      %3097 = vmatmul.bf16.gmra.mxu0 %v2749
      %v3098 = vpop.f32.mrf.mxu0
      %v3099 = vadd.f32 %v2542, %v3098
      %v3100 = vpop.f32.mrf.mxu0
      %v3101 = vadd.f32 %v2542, %v3100
      %3102 = vdwg.mxu0
      %3103 = vmatpush.bf16.msra.mxu0 %v2979
      %3104 = vmatpush.bf16.msra.mxu0 %v2978
      %3105 = vmatpush.bf16.msra.mxu0 %v2977
      %3106 = vmatpush.bf16.msra.mxu0 %v2976
      %3107 = vmatpush.bf16.msra.mxu0 %v2975
      %3108 = vmatpush.bf16.msra.mxu0 %v2974
      %3109 = vmatpush.bf16.msra.mxu0 %v2973
      %3110 = vmatpush.bf16.msra.mxu0 %v2972
      %3111 = vmatmul.bf16.gmra.mxu0 %v2705
      %v3112 = vpop.f32.mrf.mxu0
      %v3113 = vadd.f32 %v3054, %v3112
      %v3114 = vpop.f32.mrf.mxu0
      %v3115 = vadd.f32 %v3056, %v3114
      %3116 = vmatmul.bf16.gmra.mxu0 %v2710
      %v3117 = vpop.f32.mrf.mxu0
      %v3118 = vadd.f32 %v3059, %v3117
      %v3119 = vpop.f32.mrf.mxu0
      %v3120 = vadd.f32 %v3061, %v3119
      %3121 = vmatmul.bf16.gmra.mxu0 %v2715
      %v3122 = vpop.f32.mrf.mxu0
      %v3123 = vadd.f32 %v3064, %v3122
      %v3124 = vpop.f32.mrf.mxu0
      %v3125 = vadd.f32 %v3066, %v3124
      %3126 = vmatmul.bf16.gmra.mxu0 %v2720
      %v3127 = vpop.f32.mrf.mxu0
      %v3128 = vadd.f32 %v3069, %v3127
      %v3129 = vpop.f32.mrf.mxu0
      %v3130 = vadd.f32 %v3071, %v3129
      %3131 = vmatmul.bf16.gmra.mxu0 %v2725
      %v3132 = vpop.f32.mrf.mxu0
      %v3133 = vadd.f32 %v3074, %v3132
      %v3134 = vpop.f32.mrf.mxu0
      %v3135 = vadd.f32 %v3076, %v3134
      %3136 = vmatmul.bf16.gmra.mxu0 %v2730
      %v3137 = vpop.f32.mrf.mxu0
      %v3138 = vadd.f32 %v3079, %v3137
      %v3139 = vpop.f32.mrf.mxu0
      %v3140 = vadd.f32 %v3081, %v3139
      %3141 = vmatmul.bf16.gmra.mxu0 %v2735
      %v3142 = vpop.f32.mrf.mxu0
      %v3143 = vadd.f32 %v3084, %v3142
      %v3144 = vpop.f32.mrf.mxu0
      %v3145 = vadd.f32 %v3086, %v3144
      %3146 = vmatmul.bf16.gmra.mxu0 %v2740
      %v3147 = vpop.f32.mrf.mxu0
      %v3148 = vadd.f32 %v3089, %v3147
      %v3149 = vpop.f32.mrf.mxu0
      %v3150 = vadd.f32 %v3091, %v3149
      %3151 = vmatmul.bf16.gmra.mxu0 %v2745
      %v3152 = vpop.f32.mrf.mxu0
      %v3153 = vadd.f32 %v3094, %v3152
      %v3154 = vpop.f32.mrf.mxu0
      %v3155 = vadd.f32 %v3096, %v3154
      %3156 = vmatmul.bf16.gmra.mxu0 %v2750
      %v3157 = vpop.f32.mrf.mxu0
      %v3158 = vadd.f32 %v3099, %v3157
      %v3159 = vpop.f32.mrf.mxu0
      %v3160 = vadd.f32 %v3101, %v3159
      %3161 = vdwg.mxu0
      %3162 = vmatpush.bf16.msra.mxu0 %v2987
      %3163 = vmatpush.bf16.msra.mxu0 %v2986
      %3164 = vmatpush.bf16.msra.mxu0 %v2985
      %3165 = vmatpush.bf16.msra.mxu0 %v2984
      %3166 = vmatpush.bf16.msra.mxu0 %v2983
      %3167 = vmatpush.bf16.msra.mxu0 %v2982
      %3168 = vmatpush.bf16.msra.mxu0 %v2981
      %3169 = vmatpush.bf16.msra.mxu0 %v2980
      %3170 = vmatmul.bf16.gmra.mxu0 %v2706
      %v3171 = vpop.f32.mrf.mxu0
      %v3172 = vadd.f32 %v3113, %v3171
      %v3173 = vpop.f32.mrf.mxu0
      %v3174 = vadd.f32 %v3115, %v3173
      %3175 = vmatmul.bf16.gmra.mxu0 %v2711
      %v3176 = vpop.f32.mrf.mxu0
      %v3177 = vadd.f32 %v3118, %v3176
      %v3178 = vpop.f32.mrf.mxu0
      %v3179 = vadd.f32 %v3120, %v3178
      %3180 = vmatmul.bf16.gmra.mxu0 %v2716
      %v3181 = vpop.f32.mrf.mxu0
      %v3182 = vadd.f32 %v3123, %v3181
      %v3183 = vpop.f32.mrf.mxu0
      %v3184 = vadd.f32 %v3125, %v3183
      %3185 = vmatmul.bf16.gmra.mxu0 %v2721
      %v3186 = vpop.f32.mrf.mxu0
      %v3187 = vadd.f32 %v3128, %v3186
      %v3188 = vpop.f32.mrf.mxu0
      %v3189 = vadd.f32 %v3130, %v3188
      %3190 = vmatmul.bf16.gmra.mxu0 %v2726
      %v3191 = vpop.f32.mrf.mxu0
      %v3192 = vadd.f32 %v3133, %v3191
      %v3193 = vpop.f32.mrf.mxu0
      %v3194 = vadd.f32 %v3135, %v3193
      %3195 = vmatmul.bf16.gmra.mxu0 %v2731
      %v3196 = vpop.f32.mrf.mxu0
      %v3197 = vadd.f32 %v3138, %v3196
      %v3198 = vpop.f32.mrf.mxu0
      %v3199 = vadd.f32 %v3140, %v3198
      %3200 = vmatmul.bf16.gmra.mxu0 %v2736
      %v3201 = vpop.f32.mrf.mxu0
      %v3202 = vadd.f32 %v3143, %v3201
      %v3203 = vpop.f32.mrf.mxu0
      %v3204 = vadd.f32 %v3145, %v3203
      %3205 = vmatmul.bf16.gmra.mxu0 %v2741
      %v3206 = vpop.f32.mrf.mxu0
      %v3207 = vadd.f32 %v3148, %v3206
      %v3208 = vpop.f32.mrf.mxu0
      %v3209 = vadd.f32 %v3150, %v3208
      %3210 = vmatmul.bf16.gmra.mxu0 %v2746
      %v3211 = vpop.f32.mrf.mxu0
      %v3212 = vadd.f32 %v3153, %v3211
      %v3213 = vpop.f32.mrf.mxu0
      %v3214 = vadd.f32 %v3155, %v3213
      %3215 = vmatmul.bf16.gmra.mxu0 %v2751
      %v3216 = vpop.f32.mrf.mxu0
      %v3217 = vadd.f32 %v3158, %v3216
      %v3218 = vpop.f32.mrf.mxu0
      %v3219 = vadd.f32 %v3160, %v3218
      %3220 = vdwg.mxu0
      %3221 = vmatpush.bf16.msra.mxu0 %v2995
      %3222 = vmatpush.bf16.msra.mxu0 %v2994
      %3223 = vmatpush.bf16.msra.mxu0 %v2993
      %3224 = vmatpush.bf16.msra.mxu0 %v2992
      %3225 = vmatpush.bf16.msra.mxu0 %v2991
      %3226 = vmatpush.bf16.msra.mxu0 %v2990
      %3227 = vmatpush.bf16.msra.mxu0 %v2989
      %3228 = vmatpush.bf16.msra.mxu0 %v2988
      %3229 = vmatmul.bf16.gmra.mxu0 %v2707
      %v3230 = vpop.f32.mrf.mxu0
      %v3231 = vadd.f32 %v3172, %v3230
      %v3232 = vpop.f32.mrf.mxu0
      %v3233 = vadd.f32 %v3174, %v3232
      %3234 = vmatmul.bf16.gmra.mxu0 %v2712
      %v3235 = vpop.f32.mrf.mxu0
      %v3236 = vadd.f32 %v3177, %v3235
      %v3237 = vpop.f32.mrf.mxu0
      %v3238 = vadd.f32 %v3179, %v3237
      %3239 = vmatmul.bf16.gmra.mxu0 %v2717
      %v3240 = vpop.f32.mrf.mxu0
      %v3241 = vadd.f32 %v3182, %v3240
      %v3242 = vpop.f32.mrf.mxu0
      %v3243 = vadd.f32 %v3184, %v3242
      %3244 = vmatmul.bf16.gmra.mxu0 %v2722
      %v3245 = vpop.f32.mrf.mxu0
      %v3246 = vadd.f32 %v3187, %v3245
      %v3247 = vpop.f32.mrf.mxu0
      %v3248 = vadd.f32 %v3189, %v3247
      %3249 = vmatmul.bf16.gmra.mxu0 %v2727
      %v3250 = vpop.f32.mrf.mxu0
      %v3251 = vadd.f32 %v3192, %v3250
      %v3252 = vpop.f32.mrf.mxu0
      %v3253 = vadd.f32 %v3194, %v3252
      %3254 = vmatmul.bf16.gmra.mxu0 %v2732
      %v3255 = vpop.f32.mrf.mxu0
      %v3256 = vadd.f32 %v3197, %v3255
      %v3257 = vpop.f32.mrf.mxu0
      %v3258 = vadd.f32 %v3199, %v3257
      %3259 = vmatmul.bf16.gmra.mxu0 %v2737
      %v3260 = vpop.f32.mrf.mxu0
      %v3261 = vadd.f32 %v3202, %v3260
      %v3262 = vpop.f32.mrf.mxu0
      %v3263 = vadd.f32 %v3204, %v3262
      %3264 = vmatmul.bf16.gmra.mxu0 %v2742
      %v3265 = vpop.f32.mrf.mxu0
      %v3266 = vadd.f32 %v3207, %v3265
      %v3267 = vpop.f32.mrf.mxu0
      %v3268 = vadd.f32 %v3209, %v3267
      %3269 = vmatmul.bf16.gmra.mxu0 %v2747
      %v3270 = vpop.f32.mrf.mxu0
      %v3271 = vadd.f32 %v3212, %v3270
      %v3272 = vpop.f32.mrf.mxu0
      %v3273 = vadd.f32 %v3214, %v3272
      %3274 = vmatmul.bf16.gmra.mxu0 %v2752
      %v3275 = vpop.f32.mrf.mxu0
      %v3276 = vadd.f32 %v3217, %v3275
      %v3277 = vpop.f32.mrf.mxu0
      %v3278 = vadd.f32 %v3219, %v3277
      %3279 = vdwg.mxu0
      %3280 = vmatpush.bf16.msra.mxu0 %v3003
      %3281 = vmatpush.bf16.msra.mxu0 %v3002
      %3282 = vmatpush.bf16.msra.mxu0 %v3001
      %3283 = vmatpush.bf16.msra.mxu0 %v3000
      %3284 = vmatpush.bf16.msra.mxu0 %v2999
      %3285 = vmatpush.bf16.msra.mxu0 %v2998
      %3286 = vmatpush.bf16.msra.mxu0 %v2997
      %3287 = vmatpush.bf16.msra.mxu0 %v2996
      %3288 = vmatmul.bf16.gmra.mxu0 %v2708
      %v3289 = vpop.f32.mrf.mxu0
      %v3290 = vadd.f32 %v3231, %v3289
      %v3291 = vpop.f32.mrf.mxu0
      %v3292 = vadd.f32 %v3233, %v3291
      %3293 = vmatmul.bf16.gmra.mxu0 %v2713
      %v3294 = vpop.f32.mrf.mxu0
      %v3295 = vadd.f32 %v3236, %v3294
      %v3296 = vpop.f32.mrf.mxu0
      %v3297 = vadd.f32 %v3238, %v3296
      %3298 = vmatmul.bf16.gmra.mxu0 %v2718
      %v3299 = vpop.f32.mrf.mxu0
      %v3300 = vadd.f32 %v3241, %v3299
      %v3301 = vpop.f32.mrf.mxu0
      %v3302 = vadd.f32 %v3243, %v3301
      %3303 = vmatmul.bf16.gmra.mxu0 %v2723
      %v3304 = vpop.f32.mrf.mxu0
      %v3305 = vadd.f32 %v3246, %v3304
      %v3306 = vpop.f32.mrf.mxu0
      %v3307 = vadd.f32 %v3248, %v3306
      %3308 = vmatmul.bf16.gmra.mxu0 %v2728
      %v3309 = vpop.f32.mrf.mxu0
      %v3310 = vadd.f32 %v3251, %v3309
      %v3311 = vpop.f32.mrf.mxu0
      %v3312 = vadd.f32 %v3253, %v3311
      %3313 = vmatmul.bf16.gmra.mxu0 %v2733
      %v3314 = vpop.f32.mrf.mxu0
      %v3315 = vadd.f32 %v3256, %v3314
      %v3316 = vpop.f32.mrf.mxu0
      %v3317 = vadd.f32 %v3258, %v3316
      %3318 = vmatmul.bf16.gmra.mxu0 %v2738
      %v3319 = vpop.f32.mrf.mxu0
      %v3320 = vadd.f32 %v3261, %v3319
      %v3321 = vpop.f32.mrf.mxu0
      %v3322 = vadd.f32 %v3263, %v3321
      %3323 = vmatmul.bf16.gmra.mxu0 %v2743
      %v3324 = vpop.f32.mrf.mxu0
      %v3325 = vadd.f32 %v3266, %v3324
      %v3326 = vpop.f32.mrf.mxu0
      %v3327 = vadd.f32 %v3268, %v3326
      %3328 = vmatmul.bf16.gmra.mxu0 %v2748
      %v3329 = vpop.f32.mrf.mxu0
      %v3330 = vadd.f32 %v3271, %v3329
      %v3331 = vpop.f32.mrf.mxu0
      %v3332 = vadd.f32 %v3273, %v3331
      %3333 = vmatmul.bf16.gmra.mxu0 %v2753
      %v3334 = vpop.f32.mrf.mxu0
      %v3335 = vadd.f32 %v3276, %v3334
      %v3336 = vpop.f32.mrf.mxu0
      %v3337 = vadd.f32 %v3278, %v3336
      %3338 = vdwg.mxu0
      %vm3339 = vcmp.ge.f32.partialorder %v3290, 0.0
      %vm3340 = vcmp.ge.f32.partialorder %v3292, 0.0
      %vm3341 = vcmp.ge.f32.partialorder %v3295, 0.0
      %vm3342 = vcmp.ge.f32.partialorder %v3297, 0.0
      %vm3343 = vcmp.ge.f32.partialorder %v3300, 0.0
      %vm3344 = vcmp.ge.f32.partialorder %v3302, 0.0
      %vm3345 = vcmp.ge.f32.partialorder %v3305, 0.0
      %vm3346 = vcmp.ge.f32.partialorder %v3307, 0.0
      %vm3347 = vcmp.ge.f32.partialorder %v3310, 0.0
      %vm3348 = vcmp.ge.f32.partialorder %v3312, 0.0
      %vm3349 = vcmp.ge.f32.partialorder %v3315, 0.0
      %vm3350 = vcmp.ge.f32.partialorder %v3317, 0.0
      %vm3351 = vcmp.ge.f32.partialorder %v3320, 0.0
      %vm3352 = vcmp.ge.f32.partialorder %v3322, 0.0
      %vm3353 = vcmp.ge.f32.partialorder %v3325, 0.0
      %vm3354 = vcmp.ge.f32.partialorder %v3327, 0.0
      %vm3355 = vcmp.ge.f32.partialorder %v3330, 0.0
      %vm3356 = vcmp.ge.f32.partialorder %v3332, 0.0
      %vm3357 = vcmp.ge.f32.partialorder %v3335, 0.0
      %vm3358 = vcmp.ge.f32.partialorder %v3337, 0.0
      %v3359 = vmul.f32 %v3290, 0.2
      %v3360 = vmul.f32 %v3292, 0.2
      %v3361 = vmul.f32 %v3295, 0.2
      %v3362 = vmul.f32 %v3297, 0.2
      %v3363 = vmul.f32 %v3300, 0.2
      %v3364 = vmul.f32 %v3302, 0.2
      %v3365 = vmul.f32 %v3305, 0.2
      %v3366 = vmul.f32 %v3307, 0.2
      %v3367 = vmul.f32 %v3310, 0.2
      %v3368 = vmul.f32 %v3312, 0.2
      %v3369 = vmul.f32 %v3315, 0.2
      %v3370 = vmul.f32 %v3317, 0.2
      %v3371 = vmul.f32 %v3320, 0.2
      %v3372 = vmul.f32 %v3322, 0.2
      %v3373 = vmul.f32 %v3325, 0.2
      %v3374 = vmul.f32 %v3327, 0.2
      %v3375 = vmul.f32 %v3330, 0.2
      %v3376 = vmul.f32 %v3332, 0.2
      %v3377 = vmul.f32 %v3335, 0.2
      %v3378 = vmul.f32 %v3337, 0.2
      %v3379 = vsel %vm3339, %v3290, %v3359
      %v3380 = vsel %vm3340, %v3292, %v3360
      %v3381 = vsel %vm3341, %v3295, %v3361
      %v3382 = vsel %vm3342, %v3297, %v3362
      %v3383 = vsel %vm3343, %v3300, %v3363
      %v3384 = vsel %vm3344, %v3302, %v3364
      %v3385 = vsel %vm3345, %v3305, %v3365
      %v3386 = vsel %vm3346, %v3307, %v3366
      %v3387 = vsel %vm3347, %v3310, %v3367
      %v3388 = vsel %vm3348, %v3312, %v3368
      %v3389 = vsel %vm3349, %v3315, %v3369
      %v3390 = vsel %vm3350, %v3317, %v3370
      %v3391 = vsel %vm3351, %v3320, %v3371
      %v3392 = vsel %vm3352, %v3322, %v3372
      %v3393 = vsel %vm3353, %v3325, %v3373
      %v3394 = vsel %vm3354, %v3327, %v3374
      %v3395 = vsel %vm3355, %v3330, %v3375
      %v3396 = vsel %vm3356, %v3332, %v3376
      %v3397 = vsel %vm3357, %v3335, %v3377
      %v3398 = vsel %vm3358, %v3337, %v3378
      %v3399 = vpack.c.bf16 %v3379, %v3379
      %v3400 = vpack.c.bf16 %v3380, %v3380
      %v3401 = vpack.c.bf16 %v3381, %v3381
      %v3402 = vpack.c.bf16 %v3382, %v3382
      %v3403 = vpack.c.bf16 %v3383, %v3383
      %v3404 = vpack.c.bf16 %v3384, %v3384
      %v3405 = vpack.c.bf16 %v3385, %v3385
      %v3406 = vpack.c.bf16 %v3386, %v3386
      %v3407 = vpack.c.bf16 %v3387, %v3387
      %v3408 = vpack.c.bf16 %v3388, %v3388
      %v3409 = vpack.c.bf16 %v3389, %v3389
      %v3410 = vpack.c.bf16 %v3390, %v3390
      %v3411 = vpack.c.bf16 %v3391, %v3391
      %v3412 = vpack.c.bf16 %v3392, %v3392
      %v3413 = vpack.c.bf16 %v3393, %v3393
      %v3414 = vpack.c.bf16 %v3394, %v3394
      %v3415 = vpack.c.bf16 %v3395, %v3395
      %v3416 = vpack.c.bf16 %v3396, %v3396
      %v3417 = vpack.c.bf16 %v3397, %v3397
      %v3418 = vpack.c.bf16 %v3398, %v3398
      %v3420 = vshrl.u32 %v3399, 16
      %v3422 = vrot.slane %v3420, 7
      %v3423 = vshll.u32 %v3399, 16
      %v3425 = vor.u32 %v3422, %v3423
      %v3426 = vrot.slane %v3422, 4
      %v3428 = vshrl.u32 %v3400, 16
      %v3430 = vrot.slane %v3428, 7
      %v3431 = vshll.u32 %v3400, 16
      %v3433 = vor.u32 %v3430, %v3431
      %v3434 = vsel %vm790, %v3426, %v3433
      %v3435 = vrot.slane %v3430, 4
      %v3437 = vshrl.u32 %v3401, 16
      %v3439 = vrot.slane %v3437, 7
      %v3440 = vshll.u32 %v3401, 16
      %v3442 = vor.u32 %v3439, %v3440
      %v3443 = vrot.slane %v3439, 4
      %v3445 = vshrl.u32 %v3402, 16
      %v3447 = vrot.slane %v3445, 7
      %v3448 = vshll.u32 %v3402, 16
      %v3450 = vor.u32 %v3447, %v3448
      %v3451 = vsel %vm790, %v3443, %v3450
      %v3452 = vrot.slane %v3447, 4
      %v3454 = vshrl.u32 %v3403, 16
      %v3456 = vrot.slane %v3454, 7
      %v3457 = vshll.u32 %v3403, 16
      %v3459 = vor.u32 %v3456, %v3457
      %v3460 = vrot.slane %v3456, 4
      %v3462 = vshrl.u32 %v3404, 16
      %v3464 = vrot.slane %v3462, 7
      %v3465 = vshll.u32 %v3404, 16
      %v3467 = vor.u32 %v3464, %v3465
      %v3468 = vsel %vm790, %v3460, %v3467
      %v3469 = vrot.slane %v3464, 4
      %v3471 = vshrl.u32 %v3405, 16
      %v3473 = vrot.slane %v3471, 7
      %v3474 = vshll.u32 %v3405, 16
      %v3476 = vor.u32 %v3473, %v3474
      %v3477 = vrot.slane %v3473, 4
      %v3479 = vshrl.u32 %v3406, 16
      %v3481 = vrot.slane %v3479, 7
      %v3482 = vshll.u32 %v3406, 16
      %v3484 = vor.u32 %v3481, %v3482
      %v3485 = vsel %vm790, %v3477, %v3484
      %v3486 = vrot.slane %v3481, 4
      %v3488 = vshrl.u32 %v3407, 16
      %v3490 = vrot.slane %v3488, 7
      %v3491 = vshll.u32 %v3407, 16
      %v3493 = vor.u32 %v3490, %v3491
      %v3494 = vrot.slane %v3490, 4
      %v3496 = vshrl.u32 %v3408, 16
      %v3498 = vrot.slane %v3496, 7
      %v3499 = vshll.u32 %v3408, 16
      %v3501 = vor.u32 %v3498, %v3499
      %v3502 = vsel %vm790, %v3494, %v3501
      %v3503 = vrot.slane %v3498, 4
      %v3505 = vshrl.u32 %v3409, 16
      %v3507 = vrot.slane %v3505, 7
      %v3508 = vshll.u32 %v3409, 16
      %v3510 = vor.u32 %v3507, %v3508
      %v3511 = vrot.slane %v3507, 4
      %v3513 = vshrl.u32 %v3410, 16
      %v3515 = vrot.slane %v3513, 7
      %v3516 = vshll.u32 %v3410, 16
      %v3518 = vor.u32 %v3515, %v3516
      %v3519 = vsel %vm790, %v3511, %v3518
      %v3520 = vrot.slane %v3515, 4
      %v3522 = vshrl.u32 %v3411, 16
      %v3524 = vrot.slane %v3522, 7
      %v3525 = vshll.u32 %v3411, 16
      %v3527 = vor.u32 %v3524, %v3525
      %v3528 = vrot.slane %v3524, 4
      %v3530 = vshrl.u32 %v3412, 16
      %v3532 = vrot.slane %v3530, 7
      %v3533 = vshll.u32 %v3412, 16
      %v3535 = vor.u32 %v3532, %v3533
      %v3536 = vsel %vm790, %v3528, %v3535
      %v3537 = vrot.slane %v3532, 4
      %v3539 = vshrl.u32 %v3413, 16
      %v3541 = vrot.slane %v3539, 7
      %v3542 = vshll.u32 %v3413, 16
      %v3544 = vor.u32 %v3541, %v3542
      %v3545 = vrot.slane %v3541, 4
      %v3547 = vshrl.u32 %v3414, 16
      %v3549 = vrot.slane %v3547, 7
      %v3550 = vshll.u32 %v3414, 16
      %v3552 = vor.u32 %v3549, %v3550
      %v3553 = vsel %vm790, %v3545, %v3552
      %v3554 = vrot.slane %v3549, 4
      %v3556 = vshrl.u32 %v3415, 16
      %v3558 = vrot.slane %v3556, 7
      %v3559 = vshll.u32 %v3415, 16
      %v3561 = vor.u32 %v3558, %v3559
      %v3562 = vrot.slane %v3558, 4
      %v3564 = vshrl.u32 %v3416, 16
      %v3566 = vrot.slane %v3564, 7
      %v3567 = vshll.u32 %v3416, 16
      %v3569 = vor.u32 %v3566, %v3567
      %v3570 = vsel %vm790, %v3562, %v3569
      %v3571 = vrot.slane %v3566, 4
      %v3573 = vshrl.u32 %v3417, 16
      %v3575 = vrot.slane %v3573, 7
      %v3576 = vshll.u32 %v3417, 16
      %v3578 = vor.u32 %v3575, %v3576
      %v3579 = vrot.slane %v3575, 4
      %v3581 = vshrl.u32 %v3418, 16
      %v3583 = vrot.slane %v3581, 7
      %v3584 = vshll.u32 %v3418, 16
      %v3586 = vor.u32 %v3583, %v3584
      %v3587 = vsel %vm790, %v3579, %v3586
      %v3588 = vrot.slane %v3583, 4
      %v3619 = vld [vmem:[#allocation3] sm:$0xf]
      %v3620 = vsel %vm954, %v3425, %v3619
      %3621 = vst [vmem:[#allocation3] sm:$0xf] %v3620
      %3622 = vst.msk [vmem:[#allocation3 + $0x4] sm:$0xf] %vm958, %v3434
      %v3623 = vld [vmem:[#allocation3 + $0x8] sm:$0x1]
      %v3624 = vsel %vm961, %v3435, %v3623
      %3625 = vst [vmem:[#allocation3 + $0x8] sm:$0x1] %v3624
      %v3626 = vld [vmem:[#allocation3 + $0xc] sm:$0xf]
      %v3627 = vsel %vm954, %v3442, %v3626
      %3628 = vst [vmem:[#allocation3 + $0xc] sm:$0xf] %v3627
      %3629 = vst.msk [vmem:[#allocation3 + $0x10] sm:$0xf] %vm958, %v3451
      %v3630 = vld [vmem:[#allocation3 + $0x14] sm:$0x1]
      %v3631 = vsel %vm961, %v3452, %v3630
      %3632 = vst [vmem:[#allocation3 + $0x14] sm:$0x1] %v3631
      %v3633 = vld [vmem:[#allocation3 + $0x18] sm:$0xf]
      %v3634 = vsel %vm954, %v3459, %v3633
      %3635 = vst [vmem:[#allocation3 + $0x18] sm:$0xf] %v3634
      %3636 = vst.msk [vmem:[#allocation3 + $0x1c] sm:$0xf] %vm958, %v3468
      %v3637 = vld [vmem:[#allocation3 + $0x20] sm:$0x1]
      %v3638 = vsel %vm961, %v3469, %v3637
      %3639 = vst [vmem:[#allocation3 + $0x20] sm:$0x1] %v3638
      %v3640 = vld [vmem:[#allocation3 + $0x24] sm:$0xf]
      %v3641 = vsel %vm954, %v3476, %v3640
      %3642 = vst [vmem:[#allocation3 + $0x24] sm:$0xf] %v3641
      %3643 = vst.msk [vmem:[#allocation3 + $0x28] sm:$0xf] %vm958, %v3485
      %v3644 = vld [vmem:[#allocation3 + $0x2c] sm:$0x1]
      %v3645 = vsel %vm961, %v3486, %v3644
      %3646 = vst [vmem:[#allocation3 + $0x2c] sm:$0x1] %v3645
      %v3647 = vld [vmem:[#allocation3 + $0x30] sm:$0xf]
      %v3648 = vsel %vm954, %v3493, %v3647
      %3649 = vst [vmem:[#allocation3 + $0x30] sm:$0xf] %v3648
      %3650 = vst.msk [vmem:[#allocation3 + $0x34] sm:$0xf] %vm958, %v3502
      %v3651 = vld [vmem:[#allocation3 + $0x38] sm:$0x1]
      %v3652 = vsel %vm961, %v3503, %v3651
      %3653 = vst [vmem:[#allocation3 + $0x38] sm:$0x1] %v3652
      %v3654 = vld [vmem:[#allocation3 + $0x3c] sm:$0xf]
      %v3655 = vsel %vm954, %v3510, %v3654
      %3656 = vst [vmem:[#allocation3 + $0x3c] sm:$0xf] %v3655
      %3657 = vst.msk [vmem:[#allocation3 + $0x40] sm:$0xf] %vm958, %v3519
      %v3658 = vld [vmem:[#allocation3 + $0x44] sm:$0x1]
      %v3659 = vsel %vm961, %v3520, %v3658
      %3660 = vst [vmem:[#allocation3 + $0x44] sm:$0x1] %v3659
      %v3661 = vld [vmem:[#allocation3 + $0x48] sm:$0xf]
      %v3662 = vsel %vm954, %v3527, %v3661
      %3663 = vst [vmem:[#allocation3 + $0x48] sm:$0xf] %v3662
      %3664 = vst.msk [vmem:[#allocation3 + $0x4c] sm:$0xf] %vm958, %v3536
      %v3665 = vld [vmem:[#allocation3 + $0x50] sm:$0x1]
      %v3666 = vsel %vm961, %v3537, %v3665
      %3667 = vst [vmem:[#allocation3 + $0x50] sm:$0x1] %v3666
      %v3668 = vld [vmem:[#allocation3 + $0x54] sm:$0xf]
      %v3669 = vsel %vm954, %v3544, %v3668
      %3670 = vst [vmem:[#allocation3 + $0x54] sm:$0xf] %v3669
      %3671 = vst.msk [vmem:[#allocation3 + $0x58] sm:$0xf] %vm958, %v3553
      %v3672 = vld [vmem:[#allocation3 + $0x5c] sm:$0x1]
      %v3673 = vsel %vm961, %v3554, %v3672
      %3674 = vst [vmem:[#allocation3 + $0x5c] sm:$0x1] %v3673
      %v3675 = vld [vmem:[#allocation3 + $0x60] sm:$0xf]
      %v3676 = vsel %vm954, %v3561, %v3675
      %3677 = vst [vmem:[#allocation3 + $0x60] sm:$0xf] %v3676
      %3678 = vst.msk [vmem:[#allocation3 + $0x64] sm:$0xf] %vm958, %v3570
      %v3679 = vld [vmem:[#allocation3 + $0x68] sm:$0x1]
      %v3680 = vsel %vm961, %v3571, %v3679
      %3681 = vst [vmem:[#allocation3 + $0x68] sm:$0x1] %v3680
      %v3682 = vld [vmem:[#allocation3 + $0x6c] sm:$0xf]
      %v3683 = vsel %vm954, %v3578, %v3682
      %3684 = vst [vmem:[#allocation3 + $0x6c] sm:$0xf] %v3683
      %3685 = vst.msk [vmem:[#allocation3 + $0x70] sm:$0xf] %vm958, %v3587
      %v3686 = vld [vmem:[#allocation3 + $0x74] sm:$0x1]
      %v3687 = vsel %vm961, %v3588, %v3686
      %3688 = vst [vmem:[#allocation3 + $0x74] sm:$0x1] %v3687
      %v3689 = vld [vmem:[#allocation3] sm:$0x1]
      %v3690 = vsel %vm961, 0, %v3689
      %3691 = vst [vmem:[#allocation3] sm:$0x1] %v3690
      %v3692 = vld [vmem:[#allocation3 + $0xc] sm:$0x1]
      %v3693 = vsel %vm961, 0, %v3692
      %3694 = vst [vmem:[#allocation3 + $0xc] sm:$0x1] %v3693
      %v3695 = vld [vmem:[#allocation3 + $0x18] sm:$0x1]
      %v3696 = vsel %vm961, 0, %v3695
      %3697 = vst [vmem:[#allocation3 + $0x18] sm:$0x1] %v3696
      %v3698 = vld [vmem:[#allocation3 + $0x24] sm:$0x1]
      %v3699 = vsel %vm961, 0, %v3698
      %3700 = vst [vmem:[#allocation3 + $0x24] sm:$0x1] %v3699
      %v3701 = vld [vmem:[#allocation3 + $0x30] sm:$0x1]
      %v3702 = vsel %vm961, 0, %v3701
      %3703 = vst [vmem:[#allocation3 + $0x30] sm:$0x1] %v3702
      %v3704 = vld [vmem:[#allocation3 + $0x3c] sm:$0x1]
      %v3705 = vsel %vm961, 0, %v3704
      %3706 = vst [vmem:[#allocation3 + $0x3c] sm:$0x1] %v3705
      %v3707 = vld [vmem:[#allocation3 + $0x48] sm:$0x1]
      %v3708 = vsel %vm961, 0, %v3707
      %3709 = vst [vmem:[#allocation3 + $0x48] sm:$0x1] %v3708
      %v3710 = vld [vmem:[#allocation3 + $0x54] sm:$0x1]
      %v3711 = vsel %vm961, 0, %v3710
      %3712 = vst [vmem:[#allocation3 + $0x54] sm:$0x1] %v3711
      %v3713 = vld [vmem:[#allocation3 + $0x60] sm:$0x1]
      %v3714 = vsel %vm961, 0, %v3713
      %3715 = vst [vmem:[#allocation3 + $0x60] sm:$0x1] %v3714
      %v3716 = vld [vmem:[#allocation3 + $0x6c] sm:$0x1]
      %v3717 = vsel %vm961, 0, %v3716
      %3718 = vst [vmem:[#allocation3 + $0x6c] sm:$0x1] %v3717
      %v3719 = vld [vmem:[#allocation3 + $0x8] sm:$0x1]
      %v3720 = vsel %vm1238, 0, %v3719
      %3721 = vst [vmem:[#allocation3 + $0x8] sm:$0x1] %v3720
      %v3722 = vld [vmem:[#allocation3 + $0x14] sm:$0x1]
      %v3723 = vsel %vm1238, 0, %v3722
      %3724 = vst [vmem:[#allocation3 + $0x14] sm:$0x1] %v3723
      %v3725 = vld [vmem:[#allocation3 + $0x20] sm:$0x1]
      %v3726 = vsel %vm1238, 0, %v3725
      %3727 = vst [vmem:[#allocation3 + $0x20] sm:$0x1] %v3726
      %v3728 = vld [vmem:[#allocation3 + $0x2c] sm:$0x1]
      %v3729 = vsel %vm1238, 0, %v3728
      %3730 = vst [vmem:[#allocation3 + $0x2c] sm:$0x1] %v3729
      %v3731 = vld [vmem:[#allocation3 + $0x38] sm:$0x1]
      %v3732 = vsel %vm1238, 0, %v3731
      %3733 = vst [vmem:[#allocation3 + $0x38] sm:$0x1] %v3732
      %v3734 = vld [vmem:[#allocation3 + $0x44] sm:$0x1]
      %v3735 = vsel %vm1238, 0, %v3734
      %3736 = vst [vmem:[#allocation3 + $0x44] sm:$0x1] %v3735
      %v3737 = vld [vmem:[#allocation3 + $0x50] sm:$0x1]
      %v3738 = vsel %vm1238, 0, %v3737
      %3739 = vst [vmem:[#allocation3 + $0x50] sm:$0x1] %v3738
      %v3740 = vld [vmem:[#allocation3 + $0x5c] sm:$0x1]
      %v3741 = vsel %vm1238, 0, %v3740
      %3742 = vst [vmem:[#allocation3 + $0x5c] sm:$0x1] %v3741
      %v3743 = vld [vmem:[#allocation3 + $0x68] sm:$0x1]
      %v3744 = vsel %vm1238, 0, %v3743
      %3745 = vst [vmem:[#allocation3 + $0x68] sm:$0x1] %v3744
      %v3746 = vld [vmem:[#allocation3 + $0x74] sm:$0x1]
      %v3747 = vsel %vm1238, 0, %v3746
      %3748 = vst [vmem:[#allocation3 + $0x74] sm:$0x1] %v3747
      // Predicated region
      $region77: #{coarse_denoise_encoder.9} parent=59 // pred_check
        %p3749 = pneg %p1014
      $region78: #{coarse_denoise_encoder.9} parent=59 // pred_check_branch
        %3751 = sbr.rel (%p3749) target = $region80
      $region79: #{coarse_denoise_encoder.9} parent=59 // pred_region
        %3752 = vst.msk [vmem:[#allocation3] sm:$0xf] %vm958, 0
        %3753 = vst.msk [vmem:[#allocation3 + $0x4] sm:$0xf] %vm958, 0
        %vm3754 = vcmask 516096
        %3755 = vst.msk [vmem:[#allocation3 + $0x8] sm:$0x1] %vm3754, 0
      $region80: #{coarse_denoise_encoder.9} parent=59 // pred_fallthru
        _
      // Predicated region
      $region81: #{coarse_denoise_encoder.9} parent=59 // pred_check
        %p3756 = pneg %p1107
      $region82: #{coarse_denoise_encoder.9} parent=59 // pred_check_branch
        %3758 = sbr.rel (%p3756) target = $region84
      $region83: #{coarse_denoise_encoder.9} parent=59 // pred_region
        %s3759 = scalar_lea.vmem [#allocation3], 108
        %3760 = vst.msk [vmem:[%s3759] sm:$0xf] %vm958, 0
        %3761 = vst.msk [vmem:[%s3759 + $0x4] sm:$0xf] %vm958, 0
        %vm3762 = vcmask 516096
        %3763 = vst.msk [vmem:[%s3759 + $0x8] sm:$0x1] %vm3762, 0
      $region84: #{coarse_denoise_encoder.9} parent=59 // pred_fallthru
        _
      %v3764 = vld [vmem:[#allocation3] sm:$0xf]
      %v3765 = vld [vmem:[#allocation3 + $0x4] sm:$0xf]
      %v3766 = vld [vmem:[#allocation3 + $0x8] sm:$0x1]
      %v3767 = vld [vmem:[#allocation3 + $0xc] sm:$0xf]
      %v3768 = vld [vmem:[#allocation3 + $0x10] sm:$0xf]
      %v3769 = vld [vmem:[#allocation3 + $0x14] sm:$0x1]
      %v3770 = vld [vmem:[#allocation3 + $0x18] sm:$0xf]
      %v3771 = vld [vmem:[#allocation3 + $0x1c] sm:$0xf]
      %v3772 = vld [vmem:[#allocation3 + $0x20] sm:$0x1]
      %v3773 = vld [vmem:[#allocation3 + $0x24] sm:$0xf]
      %v3774 = vld [vmem:[#allocation3 + $0x28] sm:$0xf]
      %v3775 = vld [vmem:[#allocation3 + $0x2c] sm:$0x1]
      %v3776 = vld [vmem:[#allocation3 + $0x30] sm:$0xf]
      %v3777 = vld [vmem:[#allocation3 + $0x34] sm:$0xf]
      %v3778 = vld [vmem:[#allocation3 + $0x38] sm:$0x1]
      %v3779 = vld [vmem:[#allocation3 + $0x3c] sm:$0xf]
      %v3780 = vld [vmem:[#allocation3 + $0x40] sm:$0xf]
      %v3781 = vld [vmem:[#allocation3 + $0x44] sm:$0x1]
      %v3782 = vld [vmem:[#allocation3 + $0x48] sm:$0xf]
      %v3783 = vld [vmem:[#allocation3 + $0x4c] sm:$0xf]
      %v3784 = vld [vmem:[#allocation3 + $0x50] sm:$0x1]
      %v3785 = vld [vmem:[#allocation3 + $0x54] sm:$0xf]
      %v3786 = vld [vmem:[#allocation3 + $0x58] sm:$0xf]
      %v3787 = vld [vmem:[#allocation3 + $0x5c] sm:$0x1]
      %v3788 = vld [vmem:[#allocation3 + $0x60] sm:$0xf]
      %v3789 = vld [vmem:[#allocation3 + $0x64] sm:$0xf]
      %v3790 = vld [vmem:[#allocation3 + $0x68] sm:$0x1]
      %v3791 = vld [vmem:[#allocation3 + $0x6c] sm:$0xf]
      %v3792 = vld [vmem:[#allocation3 + $0x70] sm:$0xf]
      %v3793 = vld [vmem:[#allocation3 + $0x74] sm:$0x1]
      %v3795 = vshrl.u32 %v3764, 16
      %v3797 = vrot.slane %v3795, 4
      %v3798 = vshll.u32 %v3764, 16
      %v3800 = vrot.slane %v3798, 5
      %v3801 = vor.u32 %v3797, %v3800
      %v3802 = vrot.slane %v3801, 4
      %v3804 = vshll.u32 %v3765, 16
      %v3806 = vrot.slane %v3804, 5
      %v3807 = vsel %vm1313, %v3802, %v3806
      %v3808 = vshrl.u32 %v3765, 16
      %v3810 = vrot.slane %v3808, 4
      %v3811 = vor.u32 %v3810, %v3806
      %v3812 = vrot.slane %v3811, 4
      %v3814 = vshll.u32 %v3766, 16
      %v3816 = vrot.slane %v3814, 5
      %v3817 = vsel %vm1313, %v3812, %v3816
      %v3819 = vshrl.u32 %v3767, 16
      %v3821 = vrot.slane %v3819, 4
      %v3822 = vshll.u32 %v3767, 16
      %v3824 = vrot.slane %v3822, 5
      %v3825 = vor.u32 %v3821, %v3824
      %v3826 = vrot.slane %v3825, 4
      %v3828 = vshll.u32 %v3768, 16
      %v3830 = vrot.slane %v3828, 5
      %v3831 = vsel %vm1313, %v3826, %v3830
      %v3832 = vshrl.u32 %v3768, 16
      %v3834 = vrot.slane %v3832, 4
      %v3835 = vor.u32 %v3834, %v3830
      %v3836 = vrot.slane %v3835, 4
      %v3838 = vshll.u32 %v3769, 16
      %v3840 = vrot.slane %v3838, 5
      %v3841 = vsel %vm1313, %v3836, %v3840
      %v3843 = vshrl.u32 %v3770, 16
      %v3845 = vrot.slane %v3843, 4
      %v3846 = vshll.u32 %v3770, 16
      %v3848 = vrot.slane %v3846, 5
      %v3849 = vor.u32 %v3845, %v3848
      %v3850 = vrot.slane %v3849, 4
      %v3852 = vshll.u32 %v3771, 16
      %v3854 = vrot.slane %v3852, 5
      %v3855 = vsel %vm1313, %v3850, %v3854
      %v3856 = vshrl.u32 %v3771, 16
      %v3858 = vrot.slane %v3856, 4
      %v3859 = vor.u32 %v3858, %v3854
      %v3860 = vrot.slane %v3859, 4
      %v3862 = vshll.u32 %v3772, 16
      %v3864 = vrot.slane %v3862, 5
      %v3865 = vsel %vm1313, %v3860, %v3864
      %v3867 = vshrl.u32 %v3773, 16
      %v3869 = vrot.slane %v3867, 4
      %v3870 = vshll.u32 %v3773, 16
      %v3872 = vrot.slane %v3870, 5
      %v3873 = vor.u32 %v3869, %v3872
      %v3874 = vrot.slane %v3873, 4
      %v3876 = vshll.u32 %v3774, 16
      %v3878 = vrot.slane %v3876, 5
      %v3879 = vsel %vm1313, %v3874, %v3878
      %v3880 = vshrl.u32 %v3774, 16
      %v3882 = vrot.slane %v3880, 4
      %v3883 = vor.u32 %v3882, %v3878
      %v3884 = vrot.slane %v3883, 4
      %v3886 = vshll.u32 %v3775, 16
      %v3888 = vrot.slane %v3886, 5
      %v3889 = vsel %vm1313, %v3884, %v3888
      %v3891 = vshrl.u32 %v3776, 16
      %v3893 = vrot.slane %v3891, 4
      %v3894 = vshll.u32 %v3776, 16
      %v3896 = vrot.slane %v3894, 5
      %v3897 = vor.u32 %v3893, %v3896
      %v3898 = vrot.slane %v3897, 4
      %v3900 = vshll.u32 %v3777, 16
      %v3902 = vrot.slane %v3900, 5
      %v3903 = vsel %vm1313, %v3898, %v3902
      %v3904 = vshrl.u32 %v3777, 16
      %v3906 = vrot.slane %v3904, 4
      %v3907 = vor.u32 %v3906, %v3902
      %v3908 = vrot.slane %v3907, 4
      %v3910 = vshll.u32 %v3778, 16
      %v3912 = vrot.slane %v3910, 5
      %v3913 = vsel %vm1313, %v3908, %v3912
      %v3915 = vshrl.u32 %v3779, 16
      %v3917 = vrot.slane %v3915, 4
      %v3918 = vshll.u32 %v3779, 16
      %v3920 = vrot.slane %v3918, 5
      %v3921 = vor.u32 %v3917, %v3920
      %v3922 = vrot.slane %v3921, 4
      %v3924 = vshll.u32 %v3780, 16
      %v3926 = vrot.slane %v3924, 5
      %v3927 = vsel %vm1313, %v3922, %v3926
      %v3928 = vshrl.u32 %v3780, 16
      %v3930 = vrot.slane %v3928, 4
      %v3931 = vor.u32 %v3930, %v3926
      %v3932 = vrot.slane %v3931, 4
      %v3934 = vshll.u32 %v3781, 16
      %v3936 = vrot.slane %v3934, 5
      %v3937 = vsel %vm1313, %v3932, %v3936
      %v3939 = vshrl.u32 %v3782, 16
      %v3941 = vrot.slane %v3939, 4
      %v3942 = vshll.u32 %v3782, 16
      %v3944 = vrot.slane %v3942, 5
      %v3945 = vor.u32 %v3941, %v3944
      %v3946 = vrot.slane %v3945, 4
      %v3948 = vshll.u32 %v3783, 16
      %v3950 = vrot.slane %v3948, 5
      %v3951 = vsel %vm1313, %v3946, %v3950
      %v3952 = vshrl.u32 %v3783, 16
      %v3954 = vrot.slane %v3952, 4
      %v3955 = vor.u32 %v3954, %v3950
      %v3956 = vrot.slane %v3955, 4
      %v3958 = vshll.u32 %v3784, 16
      %v3960 = vrot.slane %v3958, 5
      %v3961 = vsel %vm1313, %v3956, %v3960
      %v3963 = vshrl.u32 %v3785, 16
      %v3965 = vrot.slane %v3963, 4
      %v3966 = vshll.u32 %v3785, 16
      %v3968 = vrot.slane %v3966, 5
      %v3969 = vor.u32 %v3965, %v3968
      %v3970 = vrot.slane %v3969, 4
      %v3972 = vshll.u32 %v3786, 16
      %v3974 = vrot.slane %v3972, 5
      %v3975 = vsel %vm1313, %v3970, %v3974
      %v3976 = vshrl.u32 %v3786, 16
      %v3978 = vrot.slane %v3976, 4
      %v3979 = vor.u32 %v3978, %v3974
      %v3980 = vrot.slane %v3979, 4
      %v3982 = vshll.u32 %v3787, 16
      %v3984 = vrot.slane %v3982, 5
      %v3985 = vsel %vm1313, %v3980, %v3984
      %v4002 = vunpack.c.l.b16 %v3764
      %v4003 = vunpack.c.l.b16 %v3765
      %v4004 = vunpack.c.l.b16 %v3767
      %v4005 = vunpack.c.l.b16 %v3768
      %v4006 = vunpack.c.l.b16 %v3770
      %v4007 = vunpack.c.l.b16 %v3771
      %v4008 = vunpack.c.l.b16 %v3773
      %v4009 = vunpack.c.l.b16 %v3774
      %v4010 = vunpack.c.l.b16 %v3776
      %v4011 = vunpack.c.l.b16 %v3777
      %v4012 = vunpack.c.l.b16 %v3779
      %v4013 = vunpack.c.l.b16 %v3780
      %v4014 = vunpack.c.l.b16 %v3782
      %v4015 = vunpack.c.l.b16 %v3783
      %v4016 = vunpack.c.l.b16 %v3785
      %v4017 = vunpack.c.l.b16 %v3786
      %v4018 = vpack.c.b16 %v4003, %v4002
      %v4019 = vpack.c.b16 %v4005, %v4004
      %v4020 = vpack.c.b16 %v4007, %v4006
      %v4021 = vpack.c.b16 %v4009, %v4008
      %v4022 = vpack.c.b16 %v4011, %v4010
      %v4023 = vpack.c.b16 %v4013, %v4012
      %v4024 = vpack.c.b16 %v4015, %v4014
      %v4025 = vpack.c.b16 %v4017, %v4016
      %v4026 = vunpack.c.l.b16 %v3807
      %v4027 = vunpack.c.l.b16 %v3817
      %v4028 = vunpack.c.l.b16 %v3831
      %v4029 = vunpack.c.l.b16 %v3841
      %v4030 = vunpack.c.l.b16 %v3855
      %v4031 = vunpack.c.l.b16 %v3865
      %v4032 = vunpack.c.l.b16 %v3879
      %v4033 = vunpack.c.l.b16 %v3889
      %v4034 = vunpack.c.l.b16 %v3903
      %v4035 = vunpack.c.l.b16 %v3913
      %v4036 = vunpack.c.l.b16 %v3927
      %v4037 = vunpack.c.l.b16 %v3937
      %v4038 = vunpack.c.l.b16 %v3951
      %v4039 = vunpack.c.l.b16 %v3961
      %v4040 = vunpack.c.l.b16 %v3975
      %v4041 = vunpack.c.l.b16 %v3985
      %v4042 = vpack.c.b16 %v4027, %v4026
      %v4043 = vpack.c.b16 %v4029, %v4028
      %v4044 = vpack.c.b16 %v4031, %v4030
      %v4045 = vpack.c.b16 %v4033, %v4032
      %v4046 = vpack.c.b16 %v4035, %v4034
      %v4047 = vpack.c.b16 %v4037, %v4036
      %v4048 = vpack.c.b16 %v4039, %v4038
      %v4049 = vpack.c.b16 %v4041, %v4040
      %4050 = vrot.lane.b32.xlu0 %v4042, 64
      %v4051 = vpop.permute.xlu0 %4050
      %4052 = vrot.lane.b32.xlu0 %v4043, 64
      %v4053 = vpop.permute.xlu0 %4052
      %4054 = vrot.lane.b32.xlu0 %v4044, 64
      %v4055 = vpop.permute.xlu0 %4054
      %4056 = vrot.lane.b32.xlu0 %v4045, 64
      %v4057 = vpop.permute.xlu0 %4056
      %4058 = vrot.lane.b32.xlu0 %v4046, 64
      %v4059 = vpop.permute.xlu0 %4058
      %4060 = vrot.lane.b32.xlu0 %v4047, 64
      %v4061 = vpop.permute.xlu0 %4060
      %4062 = vrot.lane.b32.xlu0 %v4048, 64
      %v4063 = vpop.permute.xlu0 %4062
      %4064 = vrot.lane.b32.xlu0 %v4049, 64
      %v4065 = vpop.permute.xlu0 %4064
      %v4068 = vsel %vm1654, %v4018, %v4051
      %v4071 = vsel %vm1654, %v4019, %v4053
      %v4074 = vsel %vm1654, %v4020, %v4055
      %v4077 = vsel %vm1654, %v4021, %v4057
      %v4080 = vsel %vm1654, %v4022, %v4059
      %v4083 = vsel %vm1654, %v4023, %v4061
      %v4086 = vsel %vm1654, %v4024, %v4063
      %v4089 = vsel %vm1654, %v4025, %v4065
      %v4098 = vunpack.c.l.b16 %v4068
      %v4099 = vunpack.c.h.b16 %v4068
      %v4100 = vunpack.c.l.b16 %v4071
      %v4101 = vunpack.c.h.b16 %v4071
      %v4102 = vunpack.c.l.b16 %v4074
      %v4103 = vunpack.c.h.b16 %v4074
      %v4104 = vunpack.c.l.b16 %v4077
      %v4105 = vunpack.c.h.b16 %v4077
      %v4106 = vunpack.c.l.b16 %v4080
      %v4107 = vunpack.c.h.b16 %v4080
      %v4108 = vunpack.c.l.b16 %v4083
      %v4109 = vunpack.c.h.b16 %v4083
      %v4110 = vunpack.c.l.b16 %v4086
      %v4111 = vunpack.c.h.b16 %v4086
      %v4112 = vunpack.c.l.b16 %v4089
      %v4113 = vunpack.c.h.b16 %v4089
      %v4114 = vpack.c.b16 %v4098, %v4098
      %v4115 = vpack.c.b16 %v4099, %v4099
      %v4116 = vpack.c.b16 %v4100, %v4100
      %v4117 = vpack.c.b16 %v4101, %v4101
      %v4118 = vpack.c.b16 %v4102, %v4102
      %v4119 = vpack.c.b16 %v4103, %v4103
      %v4120 = vpack.c.b16 %v4104, %v4104
      %v4121 = vpack.c.b16 %v4105, %v4105
      %v4122 = vpack.c.b16 %v4106, %v4106
      %v4123 = vpack.c.b16 %v4107, %v4107
      %v4124 = vpack.c.b16 %v4108, %v4108
      %v4125 = vpack.c.b16 %v4109, %v4109
      %v4126 = vpack.c.b16 %v4110, %v4110
      %v4127 = vpack.c.b16 %v4111, %v4111
      %v4128 = vpack.c.b16 %v4112, %v4112
      %v4129 = vpack.c.b16 %v4113, %v4113
      %4146 = vst [vmem:[#allocation4] sm:$0xf] %v4114
      %4147 = vst [vmem:[#allocation4 + $0x14] sm:$0xf] %v4115
      %4148 = vst [vmem:[#allocation4 + $0x28] sm:$0xf] %v4116
      %4149 = vst [vmem:[#allocation4 + $0x3c] sm:$0xf] %v4117
      %4150 = vst [vmem:[#allocation4 + $0x50] sm:$0xf] %v4118
      %4151 = vst [vmem:[#allocation4 + $0x64] sm:$0xf] %v4119
      %4152 = vst [vmem:[#allocation4 + $0x78] sm:$0xf] %v4120
      %4153 = vst [vmem:[#allocation4 + $0x8c] sm:$0xf] %v4121
      %4154 = vst [vmem:[#allocation4 + $0xa0] sm:$0xf] %v4122
      %4155 = vst [vmem:[#allocation4 + $0xb4] sm:$0xf] %v4123
      %4156 = vst [vmem:[#allocation4 + $0xc8] sm:$0xf] %v4124
      %4157 = vst [vmem:[#allocation4 + $0xdc] sm:$0xf] %v4125
      %4158 = vst [vmem:[#allocation4 + $0xf0] sm:$0xf] %v4126
      %4159 = vst [vmem:[#allocation4 + $0x104] sm:$0xf] %v4127
      %4160 = vst [vmem:[#allocation4 + $0x118] sm:$0xf] %v4128
      %4161 = vst [vmem:[#allocation4 + $0x12c] sm:$0xf] %v4129
      %v4170 = vrot.slane %v3764, 5
      %v4171 = vrot.slane %v4170, 4
      %v4172 = vrot.slane %v3765, 5
      %v4173 = vsel %vm1787, %v4171, %v4172
      %v4174 = vrot.slane %v4172, 4
      %v4175 = vrot.slane %v3766, 5
      %v4176 = vsel %vm1787, %v4174, %v4175
      %v4177 = vrot.slane %v3767, 5
      %v4178 = vrot.slane %v4177, 4
      %v4179 = vrot.slane %v3768, 5
      %v4180 = vsel %vm1787, %v4178, %v4179
      %v4181 = vrot.slane %v4179, 4
      %v4182 = vrot.slane %v3769, 5
      %v4183 = vsel %vm1787, %v4181, %v4182
      %v4184 = vrot.slane %v3770, 5
      %v4185 = vrot.slane %v4184, 4
      %v4186 = vrot.slane %v3771, 5
      %v4187 = vsel %vm1787, %v4185, %v4186
      %v4188 = vrot.slane %v4186, 4
      %v4189 = vrot.slane %v3772, 5
      %v4190 = vsel %vm1787, %v4188, %v4189
      %v4191 = vrot.slane %v3773, 5
      %v4192 = vrot.slane %v4191, 4
      %v4193 = vrot.slane %v3774, 5
      %v4194 = vsel %vm1787, %v4192, %v4193
      %v4195 = vrot.slane %v4193, 4
      %v4196 = vrot.slane %v3775, 5
      %v4197 = vsel %vm1787, %v4195, %v4196
      %v4198 = vrot.slane %v3776, 5
      %v4199 = vrot.slane %v4198, 4
      %v4200 = vrot.slane %v3777, 5
      %v4201 = vsel %vm1787, %v4199, %v4200
      %v4202 = vrot.slane %v4200, 4
      %v4203 = vrot.slane %v3778, 5
      %v4204 = vsel %vm1787, %v4202, %v4203
      %v4205 = vrot.slane %v3779, 5
      %v4206 = vrot.slane %v4205, 4
      %v4207 = vrot.slane %v3780, 5
      %v4208 = vsel %vm1787, %v4206, %v4207
      %v4209 = vrot.slane %v4207, 4
      %v4210 = vrot.slane %v3781, 5
      %v4211 = vsel %vm1787, %v4209, %v4210
      %v4212 = vrot.slane %v3782, 5
      %v4213 = vrot.slane %v4212, 4
      %v4214 = vrot.slane %v3783, 5
      %v4215 = vsel %vm1787, %v4213, %v4214
      %v4216 = vrot.slane %v4214, 4
      %v4217 = vrot.slane %v3784, 5
      %v4218 = vsel %vm1787, %v4216, %v4217
      %v4219 = vrot.slane %v3785, 5
      %v4220 = vrot.slane %v4219, 4
      %v4221 = vrot.slane %v3786, 5
      %v4222 = vsel %vm1787, %v4220, %v4221
      %v4223 = vrot.slane %v4221, 4
      %v4224 = vrot.slane %v3787, 5
      %v4225 = vsel %vm1787, %v4223, %v4224
      %v4226 = vunpack.c.l.b16 %v4173
      %v4227 = vunpack.c.l.b16 %v4176
      %v4228 = vunpack.c.l.b16 %v4180
      %v4229 = vunpack.c.l.b16 %v4183
      %v4230 = vunpack.c.l.b16 %v4187
      %v4231 = vunpack.c.l.b16 %v4190
      %v4232 = vunpack.c.l.b16 %v4194
      %v4233 = vunpack.c.l.b16 %v4197
      %v4234 = vunpack.c.l.b16 %v4201
      %v4235 = vunpack.c.l.b16 %v4204
      %v4236 = vunpack.c.l.b16 %v4208
      %v4237 = vunpack.c.l.b16 %v4211
      %v4238 = vunpack.c.l.b16 %v4215
      %v4239 = vunpack.c.l.b16 %v4218
      %v4240 = vunpack.c.l.b16 %v4222
      %v4241 = vunpack.c.l.b16 %v4225
      %v4242 = vpack.c.b16 %v4227, %v4226
      %v4243 = vpack.c.b16 %v4229, %v4228
      %v4244 = vpack.c.b16 %v4231, %v4230
      %v4245 = vpack.c.b16 %v4233, %v4232
      %v4246 = vpack.c.b16 %v4235, %v4234
      %v4247 = vpack.c.b16 %v4237, %v4236
      %v4248 = vpack.c.b16 %v4239, %v4238
      %v4249 = vpack.c.b16 %v4241, %v4240
      %v4252 = vunpack.c.l.b16 %v3788
      %v4253 = vunpack.c.l.b16 %v3789
      %v4254 = vpack.c.b16 %v4253, %v4252
      %4255 = vrot.lane.b32.xlu0 %v4019, 64
      %v4256 = vpop.permute.xlu0 %4255
      %4257 = vrot.lane.b32.xlu0 %v4020, 64
      %v4258 = vpop.permute.xlu0 %4257
      %4259 = vrot.lane.b32.xlu0 %v4021, 64
      %v4260 = vpop.permute.xlu0 %4259
      %4261 = vrot.lane.b32.xlu0 %v4022, 64
      %v4262 = vpop.permute.xlu0 %4261
      %4263 = vrot.lane.b32.xlu0 %v4023, 64
      %v4264 = vpop.permute.xlu0 %4263
      %4265 = vrot.lane.b32.xlu0 %v4024, 64
      %v4266 = vpop.permute.xlu0 %4265
      %4267 = vrot.lane.b32.xlu0 %v4025, 64
      %v4268 = vpop.permute.xlu0 %4267
      %4269 = vrot.lane.b32.xlu0 %v4254, 64
      %v4270 = vpop.permute.xlu0 %4269
      %v4273 = vsel %vm1654, %v4242, %v4256
      %v4276 = vsel %vm1654, %v4243, %v4258
      %v4279 = vsel %vm1654, %v4244, %v4260
      %v4282 = vsel %vm1654, %v4245, %v4262
      %v4285 = vsel %vm1654, %v4246, %v4264
      %v4288 = vsel %vm1654, %v4247, %v4266
      %v4291 = vsel %vm1654, %v4248, %v4268
      %v4294 = vsel %vm1654, %v4249, %v4270
      %v4303 = vunpack.c.l.b16 %v4273
      %v4304 = vunpack.c.h.b16 %v4273
      %v4305 = vunpack.c.l.b16 %v4276
      %v4306 = vunpack.c.h.b16 %v4276
      %v4307 = vunpack.c.l.b16 %v4279
      %v4308 = vunpack.c.h.b16 %v4279
      %v4309 = vunpack.c.l.b16 %v4282
      %v4310 = vunpack.c.h.b16 %v4282
      %v4311 = vunpack.c.l.b16 %v4285
      %v4312 = vunpack.c.h.b16 %v4285
      %v4313 = vunpack.c.l.b16 %v4288
      %v4314 = vunpack.c.h.b16 %v4288
      %v4315 = vunpack.c.l.b16 %v4291
      %v4316 = vunpack.c.h.b16 %v4291
      %v4317 = vunpack.c.l.b16 %v4294
      %v4318 = vunpack.c.h.b16 %v4294
      %v4319 = vpack.c.b16 %v4303, %v4303
      %v4320 = vpack.c.b16 %v4304, %v4304
      %v4321 = vpack.c.b16 %v4305, %v4305
      %v4322 = vpack.c.b16 %v4306, %v4306
      %v4323 = vpack.c.b16 %v4307, %v4307
      %v4324 = vpack.c.b16 %v4308, %v4308
      %v4325 = vpack.c.b16 %v4309, %v4309
      %v4326 = vpack.c.b16 %v4310, %v4310
      %v4327 = vpack.c.b16 %v4311, %v4311
      %v4328 = vpack.c.b16 %v4312, %v4312
      %v4329 = vpack.c.b16 %v4313, %v4313
      %v4330 = vpack.c.b16 %v4314, %v4314
      %v4331 = vpack.c.b16 %v4315, %v4315
      %v4332 = vpack.c.b16 %v4316, %v4316
      %v4333 = vpack.c.b16 %v4317, %v4317
      %v4334 = vpack.c.b16 %v4318, %v4318
      %4351 = vst [vmem:[#allocation4 + $0x4] sm:$0xf] %v4319
      %4352 = vst [vmem:[#allocation4 + $0x18] sm:$0xf] %v4320
      %4353 = vst [vmem:[#allocation4 + $0x2c] sm:$0xf] %v4321
      %4354 = vst [vmem:[#allocation4 + $0x40] sm:$0xf] %v4322
      %4355 = vst [vmem:[#allocation4 + $0x54] sm:$0xf] %v4323
      %4356 = vst [vmem:[#allocation4 + $0x68] sm:$0xf] %v4324
      %4357 = vst [vmem:[#allocation4 + $0x7c] sm:$0xf] %v4325
      %4358 = vst [vmem:[#allocation4 + $0x90] sm:$0xf] %v4326
      %4359 = vst [vmem:[#allocation4 + $0xa4] sm:$0xf] %v4327
      %4360 = vst [vmem:[#allocation4 + $0xb8] sm:$0xf] %v4328
      %4361 = vst [vmem:[#allocation4 + $0xcc] sm:$0xf] %v4329
      %4362 = vst [vmem:[#allocation4 + $0xe0] sm:$0xf] %v4330
      %4363 = vst [vmem:[#allocation4 + $0xf4] sm:$0xf] %v4331
      %4364 = vst [vmem:[#allocation4 + $0x108] sm:$0xf] %v4332
      %4365 = vst [vmem:[#allocation4 + $0x11c] sm:$0xf] %v4333
      %4366 = vst [vmem:[#allocation4 + $0x130] sm:$0xf] %v4334
      %v4368 = vshrl.u32 %v3788, 16
      %v4370 = vrot.slane %v4368, 4
      %v4371 = vshll.u32 %v3788, 16
      %v4373 = vrot.slane %v4371, 5
      %v4374 = vor.u32 %v4370, %v4373
      %v4375 = vrot.slane %v4374, 4
      %v4377 = vshll.u32 %v3789, 16
      %v4379 = vrot.slane %v4377, 5
      %v4380 = vsel %vm1313, %v4375, %v4379
      %v4381 = vshrl.u32 %v3789, 16
      %v4383 = vrot.slane %v4381, 4
      %v4384 = vor.u32 %v4383, %v4379
      %v4385 = vrot.slane %v4384, 4
      %v4387 = vshll.u32 %v3790, 16
      %v4389 = vrot.slane %v4387, 5
      %v4390 = vsel %vm1313, %v4385, %v4389
      %v4392 = vrot.slane %v3788, 5
      %v4393 = vrot.slane %v4392, 4
      %v4394 = vrot.slane %v3789, 5
      %v4395 = vsel %vm1787, %v4393, %v4394
      %v4396 = vrot.slane %v4394, 4
      %v4397 = vrot.slane %v3790, 5
      %v4398 = vsel %vm1787, %v4396, %v4397
      %v4399 = vunpack.c.l.b16 %v4380
      %v4400 = vunpack.c.l.b16 %v4390
      %v4401 = vpack.c.b16 %v4400, %v4399
      %v4402 = vunpack.c.l.b16 %v4395
      %v4403 = vunpack.c.l.b16 %v4398
      %v4404 = vpack.c.b16 %v4403, %v4402
      %4405 = vrot.lane.b32.xlu0 %v4243, 64
      %v4406 = vpop.permute.xlu0 %4405
      %4407 = vrot.lane.b32.xlu0 %v4244, 64
      %v4408 = vpop.permute.xlu0 %4407
      %4409 = vrot.lane.b32.xlu0 %v4245, 64
      %v4410 = vpop.permute.xlu0 %4409
      %4411 = vrot.lane.b32.xlu0 %v4246, 64
      %v4412 = vpop.permute.xlu0 %4411
      %4413 = vrot.lane.b32.xlu0 %v4247, 64
      %v4414 = vpop.permute.xlu0 %4413
      %4415 = vrot.lane.b32.xlu0 %v4248, 64
      %v4416 = vpop.permute.xlu0 %4415
      %4417 = vrot.lane.b32.xlu0 %v4249, 64
      %v4418 = vpop.permute.xlu0 %4417
      %4419 = vrot.lane.b32.xlu0 %v4404, 64
      %v4420 = vpop.permute.xlu0 %4419
      %v4423 = vsel %vm1654, %v4043, %v4406
      %v4426 = vsel %vm1654, %v4044, %v4408
      %v4429 = vsel %vm1654, %v4045, %v4410
      %v4432 = vsel %vm1654, %v4046, %v4412
      %v4435 = vsel %vm1654, %v4047, %v4414
      %v4438 = vsel %vm1654, %v4048, %v4416
      %v4441 = vsel %vm1654, %v4049, %v4418
      %v4444 = vsel %vm1654, %v4401, %v4420
      %v4453 = vunpack.c.l.b16 %v4423
      %v4454 = vunpack.c.h.b16 %v4423
      %v4455 = vunpack.c.l.b16 %v4426
      %v4456 = vunpack.c.h.b16 %v4426
      %v4457 = vunpack.c.l.b16 %v4429
      %v4458 = vunpack.c.h.b16 %v4429
      %v4459 = vunpack.c.l.b16 %v4432
      %v4460 = vunpack.c.h.b16 %v4432
      %v4461 = vunpack.c.l.b16 %v4435
      %v4462 = vunpack.c.h.b16 %v4435
      %v4463 = vunpack.c.l.b16 %v4438
      %v4464 = vunpack.c.h.b16 %v4438
      %v4465 = vunpack.c.l.b16 %v4441
      %v4466 = vunpack.c.h.b16 %v4441
      %v4467 = vunpack.c.l.b16 %v4444
      %v4468 = vunpack.c.h.b16 %v4444
      %v4469 = vpack.c.b16 %v4453, %v4453
      %v4470 = vpack.c.b16 %v4454, %v4454
      %v4471 = vpack.c.b16 %v4455, %v4455
      %v4472 = vpack.c.b16 %v4456, %v4456
      %v4473 = vpack.c.b16 %v4457, %v4457
      %v4474 = vpack.c.b16 %v4458, %v4458
      %v4475 = vpack.c.b16 %v4459, %v4459
      %v4476 = vpack.c.b16 %v4460, %v4460
      %v4477 = vpack.c.b16 %v4461, %v4461
      %v4478 = vpack.c.b16 %v4462, %v4462
      %v4479 = vpack.c.b16 %v4463, %v4463
      %v4480 = vpack.c.b16 %v4464, %v4464
      %v4481 = vpack.c.b16 %v4465, %v4465
      %v4482 = vpack.c.b16 %v4466, %v4466
      %v4483 = vpack.c.b16 %v4467, %v4467
      %v4484 = vpack.c.b16 %v4468, %v4468
      %4501 = vst [vmem:[#allocation4 + $0x8] sm:$0xf] %v4469
      %4502 = vst [vmem:[#allocation4 + $0x1c] sm:$0xf] %v4470
      %4503 = vst [vmem:[#allocation4 + $0x30] sm:$0xf] %v4471
      %4504 = vst [vmem:[#allocation4 + $0x44] sm:$0xf] %v4472
      %4505 = vst [vmem:[#allocation4 + $0x58] sm:$0xf] %v4473
      %4506 = vst [vmem:[#allocation4 + $0x6c] sm:$0xf] %v4474
      %4507 = vst [vmem:[#allocation4 + $0x80] sm:$0xf] %v4475
      %4508 = vst [vmem:[#allocation4 + $0x94] sm:$0xf] %v4476
      %4509 = vst [vmem:[#allocation4 + $0xa8] sm:$0xf] %v4477
      %4510 = vst [vmem:[#allocation4 + $0xbc] sm:$0xf] %v4478
      %4511 = vst [vmem:[#allocation4 + $0xd0] sm:$0xf] %v4479
      %4512 = vst [vmem:[#allocation4 + $0xe4] sm:$0xf] %v4480
      %4513 = vst [vmem:[#allocation4 + $0xf8] sm:$0xf] %v4481
      %4514 = vst [vmem:[#allocation4 + $0x10c] sm:$0xf] %v4482
      %4515 = vst [vmem:[#allocation4 + $0x120] sm:$0xf] %v4483
      %4516 = vst [vmem:[#allocation4 + $0x134] sm:$0xf] %v4484
      %v4518 = vshrl.u32 %v3791, 16
      %v4520 = vrot.slane %v4518, 4
      %v4521 = vshll.u32 %v3791, 16
      %v4523 = vrot.slane %v4521, 5
      %v4524 = vor.u32 %v4520, %v4523
      %v4525 = vrot.slane %v4524, 4
      %v4527 = vshll.u32 %v3792, 16
      %v4529 = vrot.slane %v4527, 5
      %v4530 = vsel %vm1313, %v4525, %v4529
      %v4531 = vshrl.u32 %v3792, 16
      %v4533 = vrot.slane %v4531, 4
      %v4534 = vor.u32 %v4533, %v4529
      %v4535 = vrot.slane %v4534, 4
      %v4537 = vshll.u32 %v3793, 16
      %v4539 = vrot.slane %v4537, 5
      %v4540 = vsel %vm1313, %v4535, %v4539
      %v4543 = vunpack.c.l.b16 %v3791
      %v4544 = vunpack.c.l.b16 %v3792
      %v4545 = vpack.c.b16 %v4544, %v4543
      %v4546 = vunpack.c.l.b16 %v4530
      %v4547 = vunpack.c.l.b16 %v4540
      %v4548 = vpack.c.b16 %v4547, %v4546
      %4549 = vrot.lane.b32.xlu0 %v4401, 64
      %v4550 = vpop.permute.xlu0 %4549
      %4551 = vrot.lane.b32.xlu0 %v4548, 64
      %v4552 = vpop.permute.xlu0 %4551
      %v4555 = vsel %vm1654, %v4254, %v4550
      %v4558 = vsel %vm1654, %v4545, %v4552
      %v4561 = vunpack.c.l.b16 %v4555
      %v4562 = vunpack.c.h.b16 %v4555
      %v4563 = vunpack.c.l.b16 %v4558
      %v4564 = vunpack.c.h.b16 %v4558
      %v4565 = vpack.c.b16 %v4561, %v4561
      %v4566 = vpack.c.b16 %v4562, %v4562
      %v4567 = vpack.c.b16 %v4563, %v4563
      %v4568 = vpack.c.b16 %v4564, %v4564
      %4573 = vst [vmem:[#allocation4 + $0xc] sm:$0xf] %v4118
      %4574 = vst [vmem:[#allocation4 + $0x20] sm:$0xf] %v4119
      %4575 = vst [vmem:[#allocation4 + $0x34] sm:$0xf] %v4120
      %4576 = vst [vmem:[#allocation4 + $0x48] sm:$0xf] %v4121
      %4577 = vst [vmem:[#allocation4 + $0x5c] sm:$0xf] %v4122
      %4578 = vst [vmem:[#allocation4 + $0x70] sm:$0xf] %v4123
      %4579 = vst [vmem:[#allocation4 + $0x84] sm:$0xf] %v4124
      %4580 = vst [vmem:[#allocation4 + $0x98] sm:$0xf] %v4125
      %4581 = vst [vmem:[#allocation4 + $0xac] sm:$0xf] %v4126
      %4582 = vst [vmem:[#allocation4 + $0xc0] sm:$0xf] %v4127
      %4583 = vst [vmem:[#allocation4 + $0xd4] sm:$0xf] %v4128
      %4584 = vst [vmem:[#allocation4 + $0xe8] sm:$0xf] %v4129
      %4585 = vst [vmem:[#allocation4 + $0xfc] sm:$0xf] %v4565
      %4586 = vst [vmem:[#allocation4 + $0x110] sm:$0xf] %v4566
      %4587 = vst [vmem:[#allocation4 + $0x124] sm:$0xf] %v4567
      %4588 = vst [vmem:[#allocation4 + $0x138] sm:$0xf] %v4568
      %v4590 = vrot.slane %v3791, 5
      %v4591 = vrot.slane %v4590, 4
      %v4592 = vrot.slane %v3792, 5
      %v4593 = vsel %vm1787, %v4591, %v4592
      %v4594 = vrot.slane %v4592, 4
      %v4595 = vrot.slane %v3793, 5
      %v4596 = vsel %vm1787, %v4594, %v4595
      %v4597 = vunpack.c.l.b16 %v4593
      %v4598 = vunpack.c.l.b16 %v4596
      %v4599 = vpack.c.b16 %v4598, %v4597
      %v4600 = vsel %vm1654, %v4244, %v1639
      %v4601 = vsel %vm1654, %v4245, %v1641
      %v4602 = vsel %vm1654, %v4246, %v1643
      %v4603 = vsel %vm1654, %v4247, %v1645
      %v4604 = vsel %vm1654, %v4248, %v1647
      %v4605 = vsel %vm1654, %v4249, %v1649
      %v4607 = vsel %vm1654, %v4404, %v1651
      %v4609 = vsel %vm1654, %v4599, %v1653
      %v4618 = vunpack.c.l.b16 %v4600
      %v4619 = vunpack.c.h.b16 %v4600
      %v4620 = vunpack.c.l.b16 %v4601
      %v4621 = vunpack.c.h.b16 %v4601
      %v4622 = vunpack.c.l.b16 %v4602
      %v4623 = vunpack.c.h.b16 %v4602
      %v4624 = vunpack.c.l.b16 %v4603
      %v4625 = vunpack.c.h.b16 %v4603
      %v4626 = vunpack.c.l.b16 %v4604
      %v4627 = vunpack.c.h.b16 %v4604
      %v4628 = vunpack.c.l.b16 %v4605
      %v4629 = vunpack.c.h.b16 %v4605
      %v4630 = vunpack.c.l.b16 %v4607
      %v4631 = vunpack.c.h.b16 %v4607
      %v4632 = vunpack.c.l.b16 %v4609
      %v4633 = vunpack.c.h.b16 %v4609
      %v4634 = vpack.c.b16 %v4618, %v4618
      %v4635 = vpack.c.b16 %v4619, %v4619
      %v4636 = vpack.c.b16 %v4620, %v4620
      %v4637 = vpack.c.b16 %v4621, %v4621
      %v4638 = vpack.c.b16 %v4622, %v4622
      %v4639 = vpack.c.b16 %v4623, %v4623
      %v4640 = vpack.c.b16 %v4624, %v4624
      %v4641 = vpack.c.b16 %v4625, %v4625
      %v4642 = vpack.c.b16 %v4626, %v4626
      %v4643 = vpack.c.b16 %v4627, %v4627
      %v4644 = vpack.c.b16 %v4628, %v4628
      %v4645 = vpack.c.b16 %v4629, %v4629
      %v4646 = vpack.c.b16 %v4630, %v4630
      %v4647 = vpack.c.b16 %v4631, %v4631
      %v4648 = vpack.c.b16 %v4632, %v4632
      %v4649 = vpack.c.b16 %v4633, %v4633
      %4666 = vst [vmem:[#allocation4 + $0x10] sm:$0xf] %v4634
      %4667 = vst [vmem:[#allocation4 + $0x24] sm:$0xf] %v4635
      %4668 = vst [vmem:[#allocation4 + $0x38] sm:$0xf] %v4636
      %4669 = vst [vmem:[#allocation4 + $0x4c] sm:$0xf] %v4637
      %4670 = vst [vmem:[#allocation4 + $0x60] sm:$0xf] %v4638
      %4671 = vst [vmem:[#allocation4 + $0x74] sm:$0xf] %v4639
      %4672 = vst [vmem:[#allocation4 + $0x88] sm:$0xf] %v4640
      %4673 = vst [vmem:[#allocation4 + $0x9c] sm:$0xf] %v4641
      %4674 = vst [vmem:[#allocation4 + $0xb0] sm:$0xf] %v4642
      %4675 = vst [vmem:[#allocation4 + $0xc4] sm:$0xf] %v4643
      %4676 = vst [vmem:[#allocation4 + $0xd8] sm:$0xf] %v4644
      %4677 = vst [vmem:[#allocation4 + $0xec] sm:$0xf] %v4645
      %4678 = vst [vmem:[#allocation4 + $0x100] sm:$0xf] %v4646
      %4679 = vst [vmem:[#allocation4 + $0x114] sm:$0xf] %v4647
      %4680 = vst [vmem:[#allocation4 + $0x128] sm:$0xf] %v4648
      %4681 = vst [vmem:[#allocation4 + $0x13c] sm:$0xf] %v4649
      %v4682 = vld [vmem:[#allocation4] sm:$0xff]
      %v4683 = vld [vmem:[#allocation4 + $0x8] sm:$0xff]
      %v4684 = vld [vmem:[#allocation4 + $0x10] sm:$0xf]
      %v4685 = vld [vmem:[#allocation4 + $0x14] sm:$0xff]
      %v4686 = vld [vmem:[#allocation4 + $0x1c] sm:$0xff]
      %v4687 = vld [vmem:[#allocation4 + $0x24] sm:$0xf]
      %v4688 = vld [vmem:[#allocation4 + $0x28] sm:$0xff]
      %v4689 = vld [vmem:[#allocation4 + $0x30] sm:$0xff]
      %v4690 = vld [vmem:[#allocation4 + $0x38] sm:$0xf]
      %v4691 = vld [vmem:[#allocation4 + $0x3c] sm:$0xff]
      %v4692 = vld [vmem:[#allocation4 + $0x44] sm:$0xff]
      %v4693 = vld [vmem:[#allocation4 + $0x4c] sm:$0xf]
      %v4694 = vld [vmem:[#allocation4 + $0x50] sm:$0xff]
      %v4695 = vld [vmem:[#allocation4 + $0x58] sm:$0xff]
      %v4696 = vld [vmem:[#allocation4 + $0x60] sm:$0xf]
      %v4697 = vld [vmem:[#allocation4 + $0x64] sm:$0xff]
      %v4698 = vld [vmem:[#allocation4 + $0x6c] sm:$0xff]
      %v4699 = vld [vmem:[#allocation4 + $0x74] sm:$0xf]
      %v4700 = vld [vmem:[#allocation4 + $0x78] sm:$0xff]
      %v4701 = vld [vmem:[#allocation4 + $0x80] sm:$0xff]
      %v4702 = vld [vmem:[#allocation4 + $0x88] sm:$0xf]
      %v4703 = vld [vmem:[#allocation4 + $0x8c] sm:$0xff]
      %v4704 = vld [vmem:[#allocation4 + $0x94] sm:$0xff]
      %v4705 = vld [vmem:[#allocation4 + $0x9c] sm:$0xf]
      %v4706 = vld [vmem:[#allocation4 + $0xa0] sm:$0xff]
      %v4707 = vld [vmem:[#allocation4 + $0xa8] sm:$0xff]
      %v4708 = vld [vmem:[#allocation4 + $0xb0] sm:$0xf]
      %v4709 = vld [vmem:[#allocation4 + $0xb4] sm:$0xff]
      %v4710 = vld [vmem:[#allocation4 + $0xbc] sm:$0xff]
      %v4711 = vld [vmem:[#allocation4 + $0xc4] sm:$0xf]
      %v4712 = vld [vmem:[#allocation4 + $0xc8] sm:$0xff]
      %v4713 = vld [vmem:[#allocation4 + $0xd0] sm:$0xff]
      %v4714 = vld [vmem:[#allocation4 + $0xd8] sm:$0xf]
      %v4715 = vld [vmem:[#allocation4 + $0xdc] sm:$0xff]
      %v4716 = vld [vmem:[#allocation4 + $0xe4] sm:$0xff]
      %v4717 = vld [vmem:[#allocation4 + $0xec] sm:$0xf]
      %v4718 = vld [vmem:[#allocation4 + $0xf0] sm:$0xff]
      %v4719 = vld [vmem:[#allocation4 + $0xf8] sm:$0xff]
      %v4720 = vld [vmem:[#allocation4 + $0x100] sm:$0xf]
      %v4721 = vld [vmem:[#allocation4 + $0x104] sm:$0xff]
      %v4722 = vld [vmem:[#allocation4 + $0x10c] sm:$0xff]
      %v4723 = vld [vmem:[#allocation4 + $0x114] sm:$0xf]
      %v4724 = vld [vmem:[#allocation4 + $0x118] sm:$0xff]
      %v4725 = vld [vmem:[#allocation4 + $0x120] sm:$0xff]
      %v4726 = vld [vmem:[#allocation4 + $0x128] sm:$0xf]
      %v4727 = vld [vmem:[#allocation4 + $0x12c] sm:$0xff]
      %v4728 = vld [vmem:[#allocation4 + $0x134] sm:$0xff]
      %v4729 = vld [vmem:[#allocation4 + $0x13c] sm:$0xf]
      %v4730 = vld [vmem:[%s8] sm:$0xf]
      %v4731 = vld [vmem:[%s8 + $0x4] sm:$0xf]
      %v4732 = vld [vmem:[%s8 + $0x8] sm:$0xf]
      %v4733 = vld [vmem:[%s8 + $0xc] sm:$0xf]
      %v4734 = vld [vmem:[%s8 + $0x10] sm:$0xf]
      %v4735 = vld [vmem:[%s8 + $0x14] sm:$0xf]
      %v4736 = vld [vmem:[%s8 + $0x18] sm:$0xf]
      %v4737 = vld [vmem:[%s8 + $0x1c] sm:$0xf]
      %v4738 = vld [vmem:[%s8 + $0x20] sm:$0xf]
      %v4739 = vld [vmem:[%s8 + $0x24] sm:$0xf]
      %v4740 = vld [vmem:[%s8 + $0x28] sm:$0xf]
      %v4741 = vld [vmem:[%s8 + $0x2c] sm:$0xf]
      %v4742 = vld [vmem:[%s8 + $0x30] sm:$0xf]
      %v4743 = vld [vmem:[%s8 + $0x34] sm:$0xf]
      %v4744 = vld [vmem:[%s8 + $0x38] sm:$0xf]
      %v4745 = vld [vmem:[%s8 + $0x3c] sm:$0xf]
      %v4746 = vld [vmem:[%s8 + $0x40] sm:$0xf]
      %v4747 = vld [vmem:[%s8 + $0x44] sm:$0xf]
      %v4748 = vld [vmem:[%s8 + $0x48] sm:$0xf]
      %v4749 = vld [vmem:[%s8 + $0x4c] sm:$0xf]
      %v4750 = vld [vmem:[%s8 + $0x50] sm:$0xf]
      %v4751 = vld [vmem:[%s8 + $0x54] sm:$0xf]
      %v4752 = vld [vmem:[%s8 + $0x58] sm:$0xf]
      %v4753 = vld [vmem:[%s8 + $0x5c] sm:$0xf]
      %v4754 = vld [vmem:[%s8 + $0x60] sm:$0xf]
      %v4755 = vld [vmem:[%s8 + $0x64] sm:$0xf]
      %v4756 = vld [vmem:[%s8 + $0x68] sm:$0xf]
      %v4757 = vld [vmem:[%s8 + $0x6c] sm:$0xf]
      %v4758 = vld [vmem:[%s8 + $0x70] sm:$0xf]
      %v4759 = vld [vmem:[%s8 + $0x74] sm:$0xf]
      %v4760 = vld [vmem:[%s8 + $0x78] sm:$0xf]
      %v4761 = vld [vmem:[%s8 + $0x7c] sm:$0xf]
      %v4762 = vld [vmem:[%s8 + $0x80] sm:$0xf]
      %v4763 = vld [vmem:[%s8 + $0x84] sm:$0xf]
      %v4764 = vld [vmem:[%s8 + $0x88] sm:$0xf]
      %v4765 = vld [vmem:[%s8 + $0x8c] sm:$0xf]
      %v4766 = vld [vmem:[%s8 + $0x90] sm:$0xf]
      %v4767 = vld [vmem:[%s8 + $0x94] sm:$0xf]
      %v4768 = vld [vmem:[%s8 + $0x98] sm:$0xf]
      %v4769 = vld [vmem:[%s8 + $0x9c] sm:$0xf]
      %v4770 = vld [vmem:[%s8 + $0xa0] sm:$0xf]
      %v4771 = vld [vmem:[%s8 + $0xa4] sm:$0xf]
      %v4772 = vld [vmem:[%s8 + $0xa8] sm:$0xf]
      %v4773 = vld [vmem:[%s8 + $0xac] sm:$0xf]
      %v4774 = vld [vmem:[%s8 + $0xb0] sm:$0xf]
      %v4775 = vld [vmem:[%s8 + $0xb4] sm:$0xf]
      %v4776 = vld [vmem:[%s8 + $0xb8] sm:$0xf]
      %v4777 = vld [vmem:[%s8 + $0xbc] sm:$0xf]
      %v4778 = vld [vmem:[%s8 + $0xc0] sm:$0xf]
      %v4779 = vld [vmem:[%s8 + $0xc4] sm:$0xf]
      %v4780 = vld [vmem:[%s8 + $0xc8] sm:$0xf]
      %v4781 = vld [vmem:[%s8 + $0xcc] sm:$0xf]
      %v4782 = vld [vmem:[%s8 + $0xd0] sm:$0xf]
      %v4783 = vld [vmem:[%s8 + $0xd4] sm:$0xf]
      %v4784 = vld [vmem:[%s8 + $0xd8] sm:$0xf]
      %v4785 = vld [vmem:[%s8 + $0xdc] sm:$0xf]
      %v4786 = vld [vmem:[%s8 + $0xe0] sm:$0xf]
      %v4787 = vld [vmem:[%s8 + $0xe4] sm:$0xf]
      %v4788 = vld [vmem:[%s8 + $0xe8] sm:$0xf]
      %v4789 = vld [vmem:[%s8 + $0xec] sm:$0xf]
      %v4790 = vld [vmem:[%s8 + $0xf0] sm:$0xf]
      %v4791 = vld [vmem:[%s8 + $0xf4] sm:$0xf]
      %v4792 = vld [vmem:[%s8 + $0xf8] sm:$0xf]
      %v4793 = vld [vmem:[%s8 + $0xfc] sm:$0xf]
      %v4794 = vld [vmem:[%s8 + $0x100] sm:$0xf]
      %v4795 = vld [vmem:[%s8 + $0x104] sm:$0xf]
      %v4796 = vld [vmem:[%s8 + $0x108] sm:$0xf]
      %v4797 = vld [vmem:[%s8 + $0x10c] sm:$0xf]
      %v4798 = vld [vmem:[%s8 + $0x110] sm:$0xf]
      %v4799 = vld [vmem:[%s8 + $0x114] sm:$0xf]
      %v4800 = vld [vmem:[%s8 + $0x118] sm:$0xf]
      %v4801 = vld [vmem:[%s8 + $0x11c] sm:$0xf]
      %v4802 = vld [vmem:[%s8 + $0x120] sm:$0xf]
      %v4803 = vld [vmem:[%s8 + $0x124] sm:$0xf]
      %v4804 = vld [vmem:[%s8 + $0x128] sm:$0xf]
      %v4805 = vld [vmem:[%s8 + $0x12c] sm:$0xf]
      %v4806 = vld [vmem:[%s8 + $0x130] sm:$0xf]
      %v4807 = vld [vmem:[%s8 + $0x134] sm:$0xf]
      %v4808 = vld [vmem:[%s8 + $0x138] sm:$0xf]
      %v4809 = vld [vmem:[%s8 + $0x13c] sm:$0xf]
      %v4810 = vld [vmem:[%s9] sm:$0x1]
      %v4812 = vperm.slane %v4810, 0
      %v4862 = vunpack.c.l.b16 %v4682
      %v4863 = vunpack.c.h.b16 %v4682
      %v4864 = vunpack.c.l.b16 %v4683
      %v4865 = vunpack.c.h.b16 %v4683
      %v4866 = vunpack.c.l.b16 %v4684
      %v4867 = vunpack.c.l.b16 %v4685
      %v4868 = vunpack.c.h.b16 %v4685
      %v4869 = vunpack.c.l.b16 %v4686
      %v4870 = vunpack.c.h.b16 %v4686
      %v4871 = vunpack.c.l.b16 %v4687
      %v4872 = vunpack.c.l.b16 %v4688
      %v4873 = vunpack.c.h.b16 %v4688
      %v4874 = vunpack.c.l.b16 %v4689
      %v4875 = vunpack.c.h.b16 %v4689
      %v4876 = vunpack.c.l.b16 %v4690
      %v4877 = vunpack.c.l.b16 %v4691
      %v4878 = vunpack.c.h.b16 %v4691
      %v4879 = vunpack.c.l.b16 %v4692
      %v4880 = vunpack.c.h.b16 %v4692
      %v4881 = vunpack.c.l.b16 %v4693
      %v4882 = vunpack.c.l.b16 %v4694
      %v4883 = vunpack.c.h.b16 %v4694
      %v4884 = vunpack.c.l.b16 %v4695
      %v4885 = vunpack.c.h.b16 %v4695
      %v4886 = vunpack.c.l.b16 %v4696
      %v4887 = vunpack.c.l.b16 %v4697
      %v4888 = vunpack.c.h.b16 %v4697
      %v4889 = vunpack.c.l.b16 %v4698
      %v4890 = vunpack.c.h.b16 %v4698
      %v4891 = vunpack.c.l.b16 %v4699
      %v4892 = vunpack.c.l.b16 %v4700
      %v4893 = vunpack.c.h.b16 %v4700
      %v4894 = vunpack.c.l.b16 %v4701
      %v4895 = vunpack.c.h.b16 %v4701
      %v4896 = vunpack.c.l.b16 %v4702
      %v4897 = vunpack.c.l.b16 %v4703
      %v4898 = vunpack.c.h.b16 %v4703
      %v4899 = vunpack.c.l.b16 %v4704
      %v4900 = vunpack.c.h.b16 %v4704
      %v4901 = vunpack.c.l.b16 %v4705
      %v4902 = vunpack.c.l.b16 %v4706
      %v4903 = vunpack.c.h.b16 %v4706
      %v4904 = vunpack.c.l.b16 %v4707
      %v4905 = vunpack.c.h.b16 %v4707
      %v4906 = vunpack.c.l.b16 %v4708
      %v4907 = vunpack.c.l.b16 %v4709
      %v4908 = vunpack.c.h.b16 %v4709
      %v4909 = vunpack.c.l.b16 %v4710
      %v4910 = vunpack.c.h.b16 %v4710
      %v4911 = vunpack.c.l.b16 %v4711
      %v4912 = vunpack.c.l.b16 %v4712
      %v4913 = vunpack.c.h.b16 %v4712
      %v4914 = vunpack.c.l.b16 %v4713
      %v4915 = vunpack.c.h.b16 %v4713
      %v4916 = vunpack.c.l.b16 %v4714
      %v4917 = vunpack.c.l.b16 %v4715
      %v4918 = vunpack.c.h.b16 %v4715
      %v4919 = vunpack.c.l.b16 %v4716
      %v4920 = vunpack.c.h.b16 %v4716
      %v4921 = vunpack.c.l.b16 %v4717
      %v4922 = vunpack.c.l.b16 %v4718
      %v4923 = vunpack.c.h.b16 %v4718
      %v4924 = vunpack.c.l.b16 %v4719
      %v4925 = vunpack.c.h.b16 %v4719
      %v4926 = vunpack.c.l.b16 %v4720
      %v4927 = vunpack.c.l.b16 %v4721
      %v4928 = vunpack.c.h.b16 %v4721
      %v4929 = vunpack.c.l.b16 %v4722
      %v4930 = vunpack.c.h.b16 %v4722
      %v4931 = vunpack.c.l.b16 %v4723
      %v4932 = vunpack.c.l.b16 %v4724
      %v4933 = vunpack.c.h.b16 %v4724
      %v4934 = vunpack.c.l.b16 %v4725
      %v4935 = vunpack.c.h.b16 %v4725
      %v4936 = vunpack.c.l.b16 %v4726
      %v4937 = vunpack.c.l.b16 %v4727
      %v4938 = vunpack.c.h.b16 %v4727
      %v4939 = vunpack.c.l.b16 %v4728
      %v4940 = vunpack.c.h.b16 %v4728
      %v4941 = vunpack.c.l.b16 %v4729
      %v4942 = vpack.c.b16 %v4867, %v4862
      %v4943 = vpack.c.b16 %v4868, %v4863
      %v4944 = vpack.c.b16 %v4869, %v4864
      %v4945 = vpack.c.b16 %v4870, %v4865
      %v4946 = vpack.c.b16 %v4871, %v4866
      %v4947 = vpack.c.b16 %v4877, %v4872
      %v4948 = vpack.c.b16 %v4878, %v4873
      %v4949 = vpack.c.b16 %v4879, %v4874
      %v4950 = vpack.c.b16 %v4880, %v4875
      %v4951 = vpack.c.b16 %v4881, %v4876
      %v4952 = vpack.c.b16 %v4887, %v4882
      %v4953 = vpack.c.b16 %v4888, %v4883
      %v4954 = vpack.c.b16 %v4889, %v4884
      %v4955 = vpack.c.b16 %v4890, %v4885
      %v4956 = vpack.c.b16 %v4891, %v4886
      %v4957 = vpack.c.b16 %v4897, %v4892
      %v4958 = vpack.c.b16 %v4898, %v4893
      %v4959 = vpack.c.b16 %v4899, %v4894
      %v4960 = vpack.c.b16 %v4900, %v4895
      %v4961 = vpack.c.b16 %v4901, %v4896
      %v4962 = vpack.c.b16 %v4907, %v4902
      %v4963 = vpack.c.b16 %v4908, %v4903
      %v4964 = vpack.c.b16 %v4909, %v4904
      %v4965 = vpack.c.b16 %v4910, %v4905
      %v4966 = vpack.c.b16 %v4911, %v4906
      %v4967 = vpack.c.b16 %v4917, %v4912
      %v4968 = vpack.c.b16 %v4918, %v4913
      %v4969 = vpack.c.b16 %v4919, %v4914
      %v4970 = vpack.c.b16 %v4920, %v4915
      %v4971 = vpack.c.b16 %v4921, %v4916
      %v4972 = vpack.c.b16 %v4927, %v4922
      %v4973 = vpack.c.b16 %v4928, %v4923
      %v4974 = vpack.c.b16 %v4929, %v4924
      %v4975 = vpack.c.b16 %v4930, %v4925
      %v4976 = vpack.c.b16 %v4931, %v4926
      %v4977 = vpack.c.b16 %v4937, %v4932
      %v4978 = vpack.c.b16 %v4938, %v4933
      %v4979 = vpack.c.b16 %v4939, %v4934
      %v4980 = vpack.c.b16 %v4940, %v4935
      %v4981 = vpack.c.b16 %v4941, %v4936
      %v5102 = vunpack.c.l.b16 %v4730
      %v5103 = vunpack.c.l.b16 %v4731
      %v5104 = vunpack.c.l.b16 %v4732
      %v5105 = vunpack.c.l.b16 %v4733
      %v5106 = vunpack.c.l.b16 %v4734
      %v5107 = vunpack.c.l.b16 %v4735
      %v5108 = vunpack.c.l.b16 %v4736
      %v5109 = vunpack.c.l.b16 %v4737
      %v5110 = vunpack.c.l.b16 %v4738
      %v5111 = vunpack.c.l.b16 %v4739
      %v5112 = vunpack.c.l.b16 %v4740
      %v5113 = vunpack.c.l.b16 %v4741
      %v5114 = vunpack.c.l.b16 %v4742
      %v5115 = vunpack.c.l.b16 %v4743
      %v5116 = vunpack.c.l.b16 %v4744
      %v5117 = vunpack.c.l.b16 %v4745
      %v5118 = vunpack.c.l.b16 %v4746
      %v5119 = vunpack.c.l.b16 %v4747
      %v5120 = vunpack.c.l.b16 %v4748
      %v5121 = vunpack.c.l.b16 %v4749
      %v5122 = vunpack.c.l.b16 %v4750
      %v5123 = vunpack.c.l.b16 %v4751
      %v5124 = vunpack.c.l.b16 %v4752
      %v5125 = vunpack.c.l.b16 %v4753
      %v5126 = vunpack.c.l.b16 %v4754
      %v5127 = vunpack.c.l.b16 %v4755
      %v5128 = vunpack.c.l.b16 %v4756
      %v5129 = vunpack.c.l.b16 %v4757
      %v5130 = vunpack.c.l.b16 %v4758
      %v5131 = vunpack.c.l.b16 %v4759
      %v5132 = vunpack.c.l.b16 %v4760
      %v5133 = vunpack.c.l.b16 %v4761
      %v5134 = vunpack.c.l.b16 %v4762
      %v5135 = vunpack.c.l.b16 %v4763
      %v5136 = vunpack.c.l.b16 %v4764
      %v5137 = vunpack.c.l.b16 %v4765
      %v5138 = vunpack.c.l.b16 %v4766
      %v5139 = vunpack.c.l.b16 %v4767
      %v5140 = vunpack.c.l.b16 %v4768
      %v5141 = vunpack.c.l.b16 %v4769
      %v5142 = vunpack.c.l.b16 %v4770
      %v5143 = vunpack.c.l.b16 %v4771
      %v5144 = vunpack.c.l.b16 %v4772
      %v5145 = vunpack.c.l.b16 %v4773
      %v5146 = vunpack.c.l.b16 %v4774
      %v5147 = vunpack.c.l.b16 %v4775
      %v5148 = vunpack.c.l.b16 %v4776
      %v5149 = vunpack.c.l.b16 %v4777
      %v5150 = vunpack.c.l.b16 %v4778
      %v5151 = vunpack.c.l.b16 %v4779
      %v5152 = vunpack.c.l.b16 %v4780
      %v5153 = vunpack.c.l.b16 %v4781
      %v5154 = vunpack.c.l.b16 %v4782
      %v5155 = vunpack.c.l.b16 %v4783
      %v5156 = vunpack.c.l.b16 %v4784
      %v5157 = vunpack.c.l.b16 %v4785
      %v5158 = vunpack.c.l.b16 %v4786
      %v5159 = vunpack.c.l.b16 %v4787
      %v5160 = vunpack.c.l.b16 %v4788
      %v5161 = vunpack.c.l.b16 %v4789
      %v5162 = vunpack.c.l.b16 %v4790
      %v5163 = vunpack.c.l.b16 %v4791
      %v5164 = vunpack.c.l.b16 %v4792
      %v5165 = vunpack.c.l.b16 %v4793
      %v5166 = vunpack.c.l.b16 %v4794
      %v5167 = vunpack.c.l.b16 %v4795
      %v5168 = vunpack.c.l.b16 %v4796
      %v5169 = vunpack.c.l.b16 %v4797
      %v5170 = vunpack.c.l.b16 %v4798
      %v5171 = vunpack.c.l.b16 %v4799
      %v5172 = vunpack.c.l.b16 %v4800
      %v5173 = vunpack.c.l.b16 %v4801
      %v5174 = vunpack.c.l.b16 %v4802
      %v5175 = vunpack.c.l.b16 %v4803
      %v5176 = vunpack.c.l.b16 %v4804
      %v5177 = vunpack.c.l.b16 %v4805
      %v5178 = vunpack.c.l.b16 %v4806
      %v5179 = vunpack.c.l.b16 %v4807
      %v5180 = vunpack.c.l.b16 %v4808
      %v5181 = vunpack.c.l.b16 %v4809
      %v5182 = vpack.c.b16 %v5103, %v5102
      %v5183 = vpack.c.b16 %v5105, %v5104
      %v5184 = vpack.c.b16 %v5107, %v5106
      %v5185 = vpack.c.b16 %v5109, %v5108
      %v5186 = vpack.c.b16 %v5111, %v5110
      %v5187 = vpack.c.b16 %v5113, %v5112
      %v5188 = vpack.c.b16 %v5115, %v5114
      %v5189 = vpack.c.b16 %v5117, %v5116
      %v5190 = vpack.c.b16 %v5119, %v5118
      %v5191 = vpack.c.b16 %v5121, %v5120
      %v5192 = vpack.c.b16 %v5123, %v5122
      %v5193 = vpack.c.b16 %v5125, %v5124
      %v5194 = vpack.c.b16 %v5127, %v5126
      %v5195 = vpack.c.b16 %v5129, %v5128
      %v5196 = vpack.c.b16 %v5131, %v5130
      %v5197 = vpack.c.b16 %v5133, %v5132
      %v5198 = vpack.c.b16 %v5135, %v5134
      %v5199 = vpack.c.b16 %v5137, %v5136
      %v5200 = vpack.c.b16 %v5139, %v5138
      %v5201 = vpack.c.b16 %v5141, %v5140
      %v5202 = vpack.c.b16 %v5143, %v5142
      %v5203 = vpack.c.b16 %v5145, %v5144
      %v5204 = vpack.c.b16 %v5147, %v5146
      %v5205 = vpack.c.b16 %v5149, %v5148
      %v5206 = vpack.c.b16 %v5151, %v5150
      %v5207 = vpack.c.b16 %v5153, %v5152
      %v5208 = vpack.c.b16 %v5155, %v5154
      %v5209 = vpack.c.b16 %v5157, %v5156
      %v5210 = vpack.c.b16 %v5159, %v5158
      %v5211 = vpack.c.b16 %v5161, %v5160
      %v5212 = vpack.c.b16 %v5163, %v5162
      %v5213 = vpack.c.b16 %v5165, %v5164
      %v5214 = vpack.c.b16 %v5167, %v5166
      %v5215 = vpack.c.b16 %v5169, %v5168
      %v5216 = vpack.c.b16 %v5171, %v5170
      %v5217 = vpack.c.b16 %v5173, %v5172
      %v5218 = vpack.c.b16 %v5175, %v5174
      %v5219 = vpack.c.b16 %v5177, %v5176
      %v5220 = vpack.c.b16 %v5179, %v5178
      %v5221 = vpack.c.b16 %v5181, %v5180
      %5262 = vmatpush.bf16.msra.mxu0 %v5189
      %5263 = vmatpush.bf16.msra.mxu0 %v5188
      %5264 = vmatpush.bf16.msra.mxu0 %v5187
      %5265 = vmatpush.bf16.msra.mxu0 %v5186
      %5266 = vmatpush.bf16.msra.mxu0 %v5185
      %5267 = vmatpush.bf16.msra.mxu0 %v5184
      %5268 = vmatpush.bf16.msra.mxu0 %v5183
      %5269 = vmatpush.bf16.msra.mxu0 %v5182
      %5270 = vmatmul.bf16.gmra.mxu0 %v4942
      %v5271 = vpop.f32.mrf.mxu0
      %v5272 = vadd.f32 %v4812, %v5271
      %v5273 = vpop.f32.mrf.mxu0
      %v5274 = vadd.f32 %v4812, %v5273
      %5275 = vmatmul.bf16.gmra.mxu0 %v4947
      %v5276 = vpop.f32.mrf.mxu0
      %v5277 = vadd.f32 %v4812, %v5276
      %v5278 = vpop.f32.mrf.mxu0
      %v5279 = vadd.f32 %v4812, %v5278
      %5280 = vmatmul.bf16.gmra.mxu0 %v4952
      %v5281 = vpop.f32.mrf.mxu0
      %v5282 = vadd.f32 %v4812, %v5281
      %v5283 = vpop.f32.mrf.mxu0
      %v5284 = vadd.f32 %v4812, %v5283
      %5285 = vmatmul.bf16.gmra.mxu0 %v4957
      %v5286 = vpop.f32.mrf.mxu0
      %v5287 = vadd.f32 %v4812, %v5286
      %v5288 = vpop.f32.mrf.mxu0
      %v5289 = vadd.f32 %v4812, %v5288
      %5290 = vmatmul.bf16.gmra.mxu0 %v4962
      %v5291 = vpop.f32.mrf.mxu0
      %v5292 = vadd.f32 %v4812, %v5291
      %v5293 = vpop.f32.mrf.mxu0
      %v5294 = vadd.f32 %v4812, %v5293
      %5295 = vmatmul.bf16.gmra.mxu0 %v4967
      %v5296 = vpop.f32.mrf.mxu0
      %v5297 = vadd.f32 %v4812, %v5296
      %v5298 = vpop.f32.mrf.mxu0
      %v5299 = vadd.f32 %v4812, %v5298
      %5300 = vmatmul.bf16.gmra.mxu0 %v4972
      %v5301 = vpop.f32.mrf.mxu0
      %v5302 = vadd.f32 %v4812, %v5301
      %v5303 = vpop.f32.mrf.mxu0
      %v5304 = vadd.f32 %v4812, %v5303
      %5305 = vmatmul.bf16.gmra.mxu0 %v4977
      %v5306 = vpop.f32.mrf.mxu0
      %v5307 = vadd.f32 %v4812, %v5306
      %v5308 = vpop.f32.mrf.mxu0
      %v5309 = vadd.f32 %v4812, %v5308
      %5310 = vdwg.mxu0
      %5311 = vmatpush.bf16.msra.mxu0 %v5197
      %5312 = vmatpush.bf16.msra.mxu0 %v5196
      %5313 = vmatpush.bf16.msra.mxu0 %v5195
      %5314 = vmatpush.bf16.msra.mxu0 %v5194
      %5315 = vmatpush.bf16.msra.mxu0 %v5193
      %5316 = vmatpush.bf16.msra.mxu0 %v5192
      %5317 = vmatpush.bf16.msra.mxu0 %v5191
      %5318 = vmatpush.bf16.msra.mxu0 %v5190
      %5319 = vmatmul.bf16.gmra.mxu0 %v4943
      %v5320 = vpop.f32.mrf.mxu0
      %v5321 = vadd.f32 %v5272, %v5320
      %v5322 = vpop.f32.mrf.mxu0
      %v5323 = vadd.f32 %v5274, %v5322
      %5324 = vmatmul.bf16.gmra.mxu0 %v4948
      %v5325 = vpop.f32.mrf.mxu0
      %v5326 = vadd.f32 %v5277, %v5325
      %v5327 = vpop.f32.mrf.mxu0
      %v5328 = vadd.f32 %v5279, %v5327
      %5329 = vmatmul.bf16.gmra.mxu0 %v4953
      %v5330 = vpop.f32.mrf.mxu0
      %v5331 = vadd.f32 %v5282, %v5330
      %v5332 = vpop.f32.mrf.mxu0
      %v5333 = vadd.f32 %v5284, %v5332
      %5334 = vmatmul.bf16.gmra.mxu0 %v4958
      %v5335 = vpop.f32.mrf.mxu0
      %v5336 = vadd.f32 %v5287, %v5335
      %v5337 = vpop.f32.mrf.mxu0
      %v5338 = vadd.f32 %v5289, %v5337
      %5339 = vmatmul.bf16.gmra.mxu0 %v4963
      %v5340 = vpop.f32.mrf.mxu0
      %v5341 = vadd.f32 %v5292, %v5340
      %v5342 = vpop.f32.mrf.mxu0
      %v5343 = vadd.f32 %v5294, %v5342
      %5344 = vmatmul.bf16.gmra.mxu0 %v4968
      %v5345 = vpop.f32.mrf.mxu0
      %v5346 = vadd.f32 %v5297, %v5345
      %v5347 = vpop.f32.mrf.mxu0
      %v5348 = vadd.f32 %v5299, %v5347
      %5349 = vmatmul.bf16.gmra.mxu0 %v4973
      %v5350 = vpop.f32.mrf.mxu0
      %v5351 = vadd.f32 %v5302, %v5350
      %v5352 = vpop.f32.mrf.mxu0
      %v5353 = vadd.f32 %v5304, %v5352
      %5354 = vmatmul.bf16.gmra.mxu0 %v4978
      %v5355 = vpop.f32.mrf.mxu0
      %v5356 = vadd.f32 %v5307, %v5355
      %v5357 = vpop.f32.mrf.mxu0
      %v5358 = vadd.f32 %v5309, %v5357
      %5359 = vdwg.mxu0
      %5360 = vmatpush.bf16.msra.mxu0 %v5205
      %5361 = vmatpush.bf16.msra.mxu0 %v5204
      %5362 = vmatpush.bf16.msra.mxu0 %v5203
      %5363 = vmatpush.bf16.msra.mxu0 %v5202
      %5364 = vmatpush.bf16.msra.mxu0 %v5201
      %5365 = vmatpush.bf16.msra.mxu0 %v5200
      %5366 = vmatpush.bf16.msra.mxu0 %v5199
      %5367 = vmatpush.bf16.msra.mxu0 %v5198
      %5368 = vmatmul.bf16.gmra.mxu0 %v4944
      %v5369 = vpop.f32.mrf.mxu0
      %v5370 = vadd.f32 %v5321, %v5369
      %v5371 = vpop.f32.mrf.mxu0
      %v5372 = vadd.f32 %v5323, %v5371
      %5373 = vmatmul.bf16.gmra.mxu0 %v4949
      %v5374 = vpop.f32.mrf.mxu0
      %v5375 = vadd.f32 %v5326, %v5374
      %v5376 = vpop.f32.mrf.mxu0
      %v5377 = vadd.f32 %v5328, %v5376
      %5378 = vmatmul.bf16.gmra.mxu0 %v4954
      %v5379 = vpop.f32.mrf.mxu0
      %v5380 = vadd.f32 %v5331, %v5379
      %v5381 = vpop.f32.mrf.mxu0
      %v5382 = vadd.f32 %v5333, %v5381
      %5383 = vmatmul.bf16.gmra.mxu0 %v4959
      %v5384 = vpop.f32.mrf.mxu0
      %v5385 = vadd.f32 %v5336, %v5384
      %v5386 = vpop.f32.mrf.mxu0
      %v5387 = vadd.f32 %v5338, %v5386
      %5388 = vmatmul.bf16.gmra.mxu0 %v4964
      %v5389 = vpop.f32.mrf.mxu0
      %v5390 = vadd.f32 %v5341, %v5389
      %v5391 = vpop.f32.mrf.mxu0
      %v5392 = vadd.f32 %v5343, %v5391
      %5393 = vmatmul.bf16.gmra.mxu0 %v4969
      %v5394 = vpop.f32.mrf.mxu0
      %v5395 = vadd.f32 %v5346, %v5394
      %v5396 = vpop.f32.mrf.mxu0
      %v5397 = vadd.f32 %v5348, %v5396
      %5398 = vmatmul.bf16.gmra.mxu0 %v4974
      %v5399 = vpop.f32.mrf.mxu0
      %v5400 = vadd.f32 %v5351, %v5399
      %v5401 = vpop.f32.mrf.mxu0
      %v5402 = vadd.f32 %v5353, %v5401
      %5403 = vmatmul.bf16.gmra.mxu0 %v4979
      %v5404 = vpop.f32.mrf.mxu0
      %v5405 = vadd.f32 %v5356, %v5404
      %v5406 = vpop.f32.mrf.mxu0
      %v5407 = vadd.f32 %v5358, %v5406
      %5408 = vdwg.mxu0
      %5409 = vmatpush.bf16.msra.mxu0 %v5213
      %5410 = vmatpush.bf16.msra.mxu0 %v5212
      %5411 = vmatpush.bf16.msra.mxu0 %v5211
      %5412 = vmatpush.bf16.msra.mxu0 %v5210
      %5413 = vmatpush.bf16.msra.mxu0 %v5209
      %5414 = vmatpush.bf16.msra.mxu0 %v5208
      %5415 = vmatpush.bf16.msra.mxu0 %v5207
      %5416 = vmatpush.bf16.msra.mxu0 %v5206
      %5417 = vmatmul.bf16.gmra.mxu0 %v4945
      %v5418 = vpop.f32.mrf.mxu0
      %v5419 = vadd.f32 %v5370, %v5418
      %v5420 = vpop.f32.mrf.mxu0
      %v5421 = vadd.f32 %v5372, %v5420
      %5422 = vmatmul.bf16.gmra.mxu0 %v4950
      %v5423 = vpop.f32.mrf.mxu0
      %v5424 = vadd.f32 %v5375, %v5423
      %v5425 = vpop.f32.mrf.mxu0
      %v5426 = vadd.f32 %v5377, %v5425
      %5427 = vmatmul.bf16.gmra.mxu0 %v4955
      %v5428 = vpop.f32.mrf.mxu0
      %v5429 = vadd.f32 %v5380, %v5428
      %v5430 = vpop.f32.mrf.mxu0
      %v5431 = vadd.f32 %v5382, %v5430
      %5432 = vmatmul.bf16.gmra.mxu0 %v4960
      %v5433 = vpop.f32.mrf.mxu0
      %v5434 = vadd.f32 %v5385, %v5433
      %v5435 = vpop.f32.mrf.mxu0
      %v5436 = vadd.f32 %v5387, %v5435
      %5437 = vmatmul.bf16.gmra.mxu0 %v4965
      %v5438 = vpop.f32.mrf.mxu0
      %v5439 = vadd.f32 %v5390, %v5438
      %v5440 = vpop.f32.mrf.mxu0
      %v5441 = vadd.f32 %v5392, %v5440
      %5442 = vmatmul.bf16.gmra.mxu0 %v4970
      %v5443 = vpop.f32.mrf.mxu0
      %v5444 = vadd.f32 %v5395, %v5443
      %v5445 = vpop.f32.mrf.mxu0
      %v5446 = vadd.f32 %v5397, %v5445
      %5447 = vmatmul.bf16.gmra.mxu0 %v4975
      %v5448 = vpop.f32.mrf.mxu0
      %v5449 = vadd.f32 %v5400, %v5448
      %v5450 = vpop.f32.mrf.mxu0
      %v5451 = vadd.f32 %v5402, %v5450
      %5452 = vmatmul.bf16.gmra.mxu0 %v4980
      %v5453 = vpop.f32.mrf.mxu0
      %v5454 = vadd.f32 %v5405, %v5453
      %v5455 = vpop.f32.mrf.mxu0
      %v5456 = vadd.f32 %v5407, %v5455
      %5457 = vdwg.mxu0
      %5458 = vmatpush.bf16.msra.mxu0 %v5221
      %5459 = vmatpush.bf16.msra.mxu0 %v5220
      %5460 = vmatpush.bf16.msra.mxu0 %v5219
      %5461 = vmatpush.bf16.msra.mxu0 %v5218
      %5462 = vmatpush.bf16.msra.mxu0 %v5217
      %5463 = vmatpush.bf16.msra.mxu0 %v5216
      %5464 = vmatpush.bf16.msra.mxu0 %v5215
      %5465 = vmatpush.bf16.msra.mxu0 %v5214
      %5466 = vmatmul.bf16.gmra.mxu0 %v4946
      %v5467 = vpop.f32.mrf.mxu0
      %v5468 = vadd.f32 %v5419, %v5467
      %v5469 = vpop.f32.mrf.mxu0
      %v5470 = vadd.f32 %v5421, %v5469
      %5471 = vmatmul.bf16.gmra.mxu0 %v4951
      %v5472 = vpop.f32.mrf.mxu0
      %v5473 = vadd.f32 %v5424, %v5472
      %v5474 = vpop.f32.mrf.mxu0
      %v5475 = vadd.f32 %v5426, %v5474
      %5476 = vmatmul.bf16.gmra.mxu0 %v4956
      %v5477 = vpop.f32.mrf.mxu0
      %v5478 = vadd.f32 %v5429, %v5477
      %v5479 = vpop.f32.mrf.mxu0
      %v5480 = vadd.f32 %v5431, %v5479
      %5481 = vmatmul.bf16.gmra.mxu0 %v4961
      %v5482 = vpop.f32.mrf.mxu0
      %v5483 = vadd.f32 %v5434, %v5482
      %v5484 = vpop.f32.mrf.mxu0
      %v5485 = vadd.f32 %v5436, %v5484
      %5486 = vmatmul.bf16.gmra.mxu0 %v4966
      %v5487 = vpop.f32.mrf.mxu0
      %v5488 = vadd.f32 %v5439, %v5487
      %v5489 = vpop.f32.mrf.mxu0
      %v5490 = vadd.f32 %v5441, %v5489
      %5491 = vmatmul.bf16.gmra.mxu0 %v4971
      %v5492 = vpop.f32.mrf.mxu0
      %v5493 = vadd.f32 %v5444, %v5492
      %v5494 = vpop.f32.mrf.mxu0
      %v5495 = vadd.f32 %v5446, %v5494
      %5496 = vmatmul.bf16.gmra.mxu0 %v4976
      %v5497 = vpop.f32.mrf.mxu0
      %v5498 = vadd.f32 %v5449, %v5497
      %v5499 = vpop.f32.mrf.mxu0
      %v5500 = vadd.f32 %v5451, %v5499
      %5501 = vmatmul.bf16.gmra.mxu0 %v4981
      %v5502 = vpop.f32.mrf.mxu0
      %v5503 = vadd.f32 %v5454, %v5502
      %v5504 = vpop.f32.mrf.mxu0
      %v5505 = vadd.f32 %v5456, %v5504
      %5506 = vdwg.mxu0
      %vm5507 = vcmp.ge.f32.partialorder %v5468, 0.0
      %vm5508 = vcmp.ge.f32.partialorder %v5470, 0.0
      %vm5509 = vcmp.ge.f32.partialorder %v5473, 0.0
      %vm5510 = vcmp.ge.f32.partialorder %v5475, 0.0
      %vm5511 = vcmp.ge.f32.partialorder %v5478, 0.0
      %vm5512 = vcmp.ge.f32.partialorder %v5480, 0.0
      %vm5513 = vcmp.ge.f32.partialorder %v5483, 0.0
      %vm5514 = vcmp.ge.f32.partialorder %v5485, 0.0
      %vm5515 = vcmp.ge.f32.partialorder %v5488, 0.0
      %vm5516 = vcmp.ge.f32.partialorder %v5490, 0.0
      %vm5517 = vcmp.ge.f32.partialorder %v5493, 0.0
      %vm5518 = vcmp.ge.f32.partialorder %v5495, 0.0
      %vm5519 = vcmp.ge.f32.partialorder %v5498, 0.0
      %vm5520 = vcmp.ge.f32.partialorder %v5500, 0.0
      %vm5521 = vcmp.ge.f32.partialorder %v5503, 0.0
      %vm5522 = vcmp.ge.f32.partialorder %v5505, 0.0
      %v5523 = vmul.f32 %v5468, 0.2
      %v5524 = vmul.f32 %v5470, 0.2
      %v5525 = vmul.f32 %v5473, 0.2
      %v5526 = vmul.f32 %v5475, 0.2
      %v5527 = vmul.f32 %v5478, 0.2
      %v5528 = vmul.f32 %v5480, 0.2
      %v5529 = vmul.f32 %v5483, 0.2
      %v5530 = vmul.f32 %v5485, 0.2
      %v5531 = vmul.f32 %v5488, 0.2
      %v5532 = vmul.f32 %v5490, 0.2
      %v5533 = vmul.f32 %v5493, 0.2
      %v5534 = vmul.f32 %v5495, 0.2
      %v5535 = vmul.f32 %v5498, 0.2
      %v5536 = vmul.f32 %v5500, 0.2
      %v5537 = vmul.f32 %v5503, 0.2
      %v5538 = vmul.f32 %v5505, 0.2
      %v5539 = vsel %vm5507, %v5468, %v5523
      %v5540 = vsel %vm5508, %v5470, %v5524
      %v5541 = vsel %vm5509, %v5473, %v5525
      %v5542 = vsel %vm5510, %v5475, %v5526
      %v5543 = vsel %vm5511, %v5478, %v5527
      %v5544 = vsel %vm5512, %v5480, %v5528
      %v5545 = vsel %vm5513, %v5483, %v5529
      %v5546 = vsel %vm5514, %v5485, %v5530
      %v5547 = vsel %vm5515, %v5488, %v5531
      %v5548 = vsel %vm5516, %v5490, %v5532
      %v5549 = vsel %vm5517, %v5493, %v5533
      %v5550 = vsel %vm5518, %v5495, %v5534
      %v5551 = vsel %vm5519, %v5498, %v5535
      %v5552 = vsel %vm5520, %v5500, %v5536
      %v5553 = vsel %vm5521, %v5503, %v5537
      %v5554 = vsel %vm5522, %v5505, %v5538
      %v5555 = vpack.c.bf16 %v5539, %v5539
      %v5556 = vpack.c.bf16 %v5540, %v5540
      %v5557 = vpack.c.bf16 %v5541, %v5541
      %v5558 = vpack.c.bf16 %v5542, %v5542
      %v5559 = vpack.c.bf16 %v5543, %v5543
      %v5560 = vpack.c.bf16 %v5544, %v5544
      %v5561 = vpack.c.bf16 %v5545, %v5545
      %v5562 = vpack.c.bf16 %v5546, %v5546
      %v5563 = vpack.c.bf16 %v5547, %v5547
      %v5564 = vpack.c.bf16 %v5548, %v5548
      %v5565 = vpack.c.bf16 %v5549, %v5549
      %v5566 = vpack.c.bf16 %v5550, %v5550
      %v5567 = vpack.c.bf16 %v5551, %v5551
      %v5568 = vpack.c.bf16 %v5552, %v5552
      %v5569 = vpack.c.bf16 %v5553, %v5553
      %v5570 = vpack.c.bf16 %v5554, %v5554
      %5571 = vst.msk [vmem:[%s710] sm:$0xf] %vm958, %v5555
      %5572 = vst.msk [vmem:[%s710 + $0x4] sm:$0xf] %vm958, %v5556
      %5573 = vst.msk [vmem:[%s710 + $0x8] sm:$0xf] %vm958, %v5557
      %5574 = vst.msk [vmem:[%s710 + $0xc] sm:$0xf] %vm958, %v5558
      %5575 = vst.msk [vmem:[%s710 + $0x10] sm:$0xf] %vm958, %v5559
      %5576 = vst.msk [vmem:[%s710 + $0x14] sm:$0xf] %vm958, %v5560
      %5577 = vst.msk [vmem:[%s710 + $0x18] sm:$0xf] %vm958, %v5561
      %5578 = vst.msk [vmem:[%s710 + $0x1c] sm:$0xf] %vm958, %v5562
      %5579 = vst.msk [vmem:[%s710 + $0x20] sm:$0xf] %vm958, %v5563
      %5580 = vst.msk [vmem:[%s710 + $0x24] sm:$0xf] %vm958, %v5564
      %5581 = vst.msk [vmem:[%s710 + $0x28] sm:$0xf] %vm958, %v5565
      %5582 = vst.msk [vmem:[%s710 + $0x2c] sm:$0xf] %vm958, %v5566
      %5583 = vst.msk [vmem:[%s710 + $0x30] sm:$0xf] %vm958, %v5567
      %5584 = vst.msk [vmem:[%s710 + $0x34] sm:$0xf] %vm958, %v5568
      %5585 = vst.msk [vmem:[%s710 + $0x38] sm:$0xf] %vm958, %v5569
      %5586 = vst.msk [vmem:[%s710 + $0x3c] sm:$0xf] %vm958, %v5570
      %v5587 = vsel %vm1654, %v5539, 0.0
      %v5588 = vsel %vm1654, %v5540, 0.0
      %v5589 = vadd.f32 %v5587, %v5588
      %v5590 = vsel %vm1654, %v5541, 0.0
      %v5591 = vadd.f32 %v5589, %v5590
      %v5592 = vsel %vm1654, %v5542, 0.0
      %v5593 = vadd.f32 %v5591, %v5592
      %v5594 = vsel %vm1654, %v5543, 0.0
      %v5595 = vadd.f32 %v5593, %v5594
      %v5596 = vsel %vm1654, %v5544, 0.0
      %v5597 = vadd.f32 %v5595, %v5596
      %v5598 = vsel %vm1654, %v5545, 0.0
      %v5599 = vadd.f32 %v5597, %v5598
      %v5600 = vsel %vm1654, %v5546, 0.0
      %v5601 = vadd.f32 %v5599, %v5600
      %v5602 = vsel %vm1654, %v5547, 0.0
      %v5603 = vadd.f32 %v5601, %v5602
      %v5604 = vsel %vm1654, %v5548, 0.0
      %v5605 = vadd.f32 %v5603, %v5604
      %v5606 = vsel %vm1654, %v5549, 0.0
      %v5607 = vadd.f32 %v5605, %v5606
      %v5608 = vsel %vm1654, %v5550, 0.0
      %v5609 = vadd.f32 %v5607, %v5608
      %v5610 = vsel %vm1654, %v5551, 0.0
      %v5611 = vadd.f32 %v5609, %v5610
      %v5612 = vsel %vm1654, %v5552, 0.0
      %v5613 = vadd.f32 %v5611, %v5612
      %v5614 = vsel %vm1654, %v5553, 0.0
      %v5615 = vadd.f32 %v5613, %v5614
      %v5616 = vsel %vm1654, %v5554, 0.0
      %v5617 = vadd.f32 %v5615, %v5616
      %v5618 = vrot.slane %v5617, 4
      %v5619 = vadd.f32 %v5617, %v5618
      %v5620 = vrot.slane %v5619, 2
      %v5621 = vadd.f32 %v5619, %v5620
      %v5622 = vrot.slane %v5621, 1
      %v5623 = vadd.f32 %v5621, %v5622
      %vm5624 = vcmask 516096
      %5625 = vst.msk [vmem:[%s718] sm:$0x1] %vm5624, %v5623
      %s5626 = smul.u32 8, %s28
      %p5627 = scmp.lt.s32.totalorder %s27, 1
      %s5628 = scalar_select %p5627, %s27, 1
      %p5629 = scmp.lt.s32.totalorder %s5626, 15
      %s5630 = scalar_select %p5629, %s5626, 15
      %s5631 = smul.addr %s5630, 2
      %s5632 = smul.addr %s5628, 32
      %s5633 = sadd.s32 %s5631, %s5632
      %s5634 = smul.addr %s5633, 4
      %s5635 = scalar_lea.vmem %s10, %s5634
      %p5636 = scmp.lt.s32.totalorder %s27, 1
      %s5637 = scalar_select %p5636, %s27, 1
      %p5638 = scmp.lt.s32.totalorder %s28, 1
      %s5639 = scalar_select %p5638, %s28, 1
      %s5640 = smul.addr %s5637, 2
      %s5641 = sadd.s32 %s5639, %s5640
      %s5642 = scalar_lea.vmem %s11, %s5641
      // Predicated region
      $region85: #{coarse_denoise_encoder.9} parent=59 // pred_check
        %p5643 = pneg %p339
      $region86: #{coarse_denoise_encoder.9} parent=59 // pred_check_branch
        %5645 = sbr.rel (%p5643) target = $region88
      $region87: #{coarse_denoise_encoder.9} parent=59 // pred_region
        %s5646 = smul.u32 8, %s28
      $region88: #{coarse_denoise_encoder.9} parent=59 // pred_fallthru
        _
      // Predicated region
      $region89: #{coarse_denoise_encoder.9} parent=59 // pred_check
        %p5647 = pneg %p367
      $region90: #{coarse_denoise_encoder.9} parent=59 // pred_check_branch
        %5649 = sbr.rel (%p5647) target = $region92
      $region91: #{coarse_denoise_encoder.9} parent=59 // pred_region
        _
      $region92: #{coarse_denoise_encoder.9} parent=59 // pred_fallthru
        _
    $region60: #{coarse_denoise_encoder.9} parent=5 // pred_fallthru
      _
    %p5650 = scmp.le.s32.totalorder 2, %s18
    // Predicated region
    $region93: #{coarse_denoise_encoder.9} parent=5 // pred_check
      %p5651 = pneg %p5650
    $region94: #{coarse_denoise_encoder.9} parent=5 // pred_check_branch
      %5653 = sbr.rel (%p5651) target = $region96
    $region95: #{coarse_denoise_encoder.9} parent=5 // pred_region
      %s5654 = ssub.s32 %s18, 2
      // Predicated region
      $region97: #{coarse_denoise_encoder.9} parent=95 // pred_check
        %p5655 = pneg %p345
      $region98: #{coarse_denoise_encoder.9} parent=95 // pred_check_branch
        %5657 = sbr.rel (%p5655) target = $region100
      $region99: #{coarse_denoise_encoder.9} parent=95 // pred_region
        %s5658 = smul.u32 8, %s30
        %p5659 = scmp.lt.s32.totalorder %s29, 1
        %s5660 = scalar_select %p5659, %s29, 1
        %p5661 = scmp.lt.s32.totalorder %s5658, 15
        %s5662 = scalar_select %p5661, %s5658, 15
        %s5663 = smul.addr %s5662, 2
        %s5664 = smul.addr %s5660, 32
        %s5665 = sadd.s32 %s5663, %s5664
        %s5666 = smul.addr %s5665, 4
        %s5667 = scalar_lea.vmem %s10, %s5666
      $region100: #{coarse_denoise_encoder.9} parent=95 // pred_fallthru
        _
      // Predicated region
      $region101: #{coarse_denoise_encoder.9} parent=95 // pred_check
        %p5668 = pneg %p373
      $region102: #{coarse_denoise_encoder.9} parent=95 // pred_check_branch
        %5670 = sbr.rel (%p5668) target = $region104
      $region103: #{coarse_denoise_encoder.9} parent=95 // pred_region
        %p5671 = scmp.lt.s32.totalorder %s29, 1
        %s5672 = scalar_select %p5671, %s29, 1
        %p5673 = scmp.lt.s32.totalorder %s30, 1
        %s5674 = scalar_select %p5673, %s30, 1
        %s5675 = smul.addr %s5672, 2
        %s5676 = sadd.s32 %s5674, %s5675
        %s5677 = scalar_lea.vmem %s11, %s5676
      $region104: #{coarse_denoise_encoder.9} parent=95 // pred_fallthru
        _
    $region96: #{coarse_denoise_encoder.9} parent=5 // pred_fallthru
      _
  $region6: #{coarse_denoise_encoder.9} parent=0 // loop_footer
    %s22 = sadd.s32 1, %s18
  $region7: #{coarse_denoise_encoder.9} parent=0 // loop_footer_branch
    %17 = sbr.rel target = $region3
  $region8: #{coarse_denoise_encoder.9} parent=0 // loop_exit
    _

</llo_original>
